<compile_context>
chip_gen: v6e
topology: v6e:2x2x1
jax: 0.10.0
libtpu: 0.0.40
codegen_flags: <defaults>
</compile_context>

<pallas_src>
import jax
import jax.numpy as jnp
import numpy as np
from jax.experimental import pallas as pl
from jax.experimental.pallas import tpu as pltpu

# ---- problem sizes (small, consistent with the module, scaled down) ----
B_TOTAL = 16          # total batch
TB = 16               # batch per grid step -> grid=(1,) at this batch size
S = 16                # seq_len
VOCAB = 64            # vocab_size
E = 32                # embedding_dim
H1, H2 = 64, 32       # hidden_dims
C = 3                 # num_classes
OUT_PAD = 128         # lane-padded output width
BN_EPS = 1e-5

# ---- packed parameter slab layout: (SLAB_ROWS, 128) f32, all row starts 8-aligned ----
R_TAB = 0                      # embedding table  (VOCAB, E)   rows   0:64,  cols 0:E
R_WA = 64                      # attention Wa     (E, E)       rows  64:96,  cols 0:E
R_W1 = 96                      # W1 (BN folded)   (E, H1)      rows  96:128, cols 0:H1
R_W2 = 128                     # W2 (BN folded)   (H1, H2)     rows 128:192, cols 0:H2
R_W3 = 192                     # W3 (lane padded) (H2, 128)    rows 192:224, cols 0:128
R_BA = 224                     # attention bias ba (1, E)
R_VA = 232                     # attention score vector va (1, E)
R_B1 = 240                     # b1 (BN folded)   (1, H1)
R_B2 = 248                     # b2 (BN folded)   (1, H2)
R_B3 = 256                     # b3 (lane padded) (1, 128)
SLAB_ROWS = 264

_HP = jax.lax.Precision.HIGHEST


def text_mlp_kernel(tok_ref, slab_ref, out_ref):
    tok = tok_ref[...]                                        # (TB*S, 2) int32
    ids = tok[:, 0:1]                                         # (TB*S, 1)
    mask3 = (tok[:, 1:2] > 0).reshape(TB, S, 1)               # (TB, S, 1) bool

    # ---------- static slices of the single packed weight slab ----------
    tab = slab_ref[R_TAB:R_TAB + VOCAB, 0:E]                  # (V, E)
    wa = slab_ref[R_WA:R_WA + E, 0:E]                         # (E, E)
    w1 = slab_ref[R_W1:R_W1 + E, 0:H1]                        # (E, H1)
    w2 = slab_ref[R_W2:R_W2 + H1, 0:H2]                       # (H1, H2)
    w3 = slab_ref[R_W3:R_W3 + H2, :]                          # (H2, 128)
    ba = slab_ref[R_BA:R_BA + 1, 0:E]                         # (1, E)
    va = slab_ref[R_VA:R_VA + 1, 0:E]                         # (1, E)
    b1 = slab_ref[R_B1:R_B1 + 1, 0:H1]                        # (1, H1)
    b2 = slab_ref[R_B2:R_B2 + 1, 0:H2]                        # (1, H2)
    b3 = slab_ref[R_B3:R_B3 + 1, :]                           # (1, 128)

    # ---------- in-kernel embedding gather: one-hot(ids) @ table on the MXU ----------
    # Precision.HIGHEST => exact f32 row selection (bit-level match of jnp.take);
    # no bf16 granularity assumption on the table.
    vocab_iota = jax.lax.broadcasted_iota(jnp.int32, (TB * S, VOCAB), 1)
    onehot = (ids == vocab_iota).astype(jnp.float32)          # (TB*S, V)
    emb2d = jnp.dot(onehot, tab, preferred_element_type=jnp.float32,
                    precision=_HP)                            # (TB*S, E)
    emb = emb2d.reshape(TB, S, E)

    # ---------- attention pooling ----------
    h = jnp.tanh(jnp.dot(emb2d, wa, preferred_element_type=jnp.float32,
                         precision=_HP) + ba)                 # (TB*S, E)
    scores = jnp.sum(h.reshape(TB, S, E) * va.reshape(1, 1, E),
                     axis=-1, keepdims=True)                  # (TB, S, 1)
    scores = jnp.where(mask3, scores, jnp.float32(-1e9))
    m = jnp.max(scores, axis=1, keepdims=True)                # (TB, 1, 1)
    ex = jnp.exp(scores - m)
    w = ex / jnp.sum(ex, axis=1, keepdims=True)               # (TB, S, 1)
    pooled = jnp.sum(w * emb, axis=1)                         # (TB, E)

    # ---------- MLP head: Linear(+folded BN)+ReLU x2, then lane-padded Linear ----------
    z1 = jnp.maximum(jnp.dot(pooled, w1, preferred_element_type=jnp.float32,
                             precision=_HP) + b1, 0.0)
    z2 = jnp.maximum(jnp.dot(z1, w2, preferred_element_type=jnp.float32,
                             precision=_HP) + b2, 0.0)
    out_ref[...] = jnp.dot(z2, w3, preferred_element_type=jnp.float32,
                           precision=_HP) + b3                # (TB, 128)


def text_mlp_forward(x_ids, attention_mask, slab):
    """x_ids: (B, S) int32 token ids; attention_mask: (B, S). Returns (B, C) logits."""
    bt, s = x_ids.shape
    assert s == S and bt % TB == 0
    # Pack ids + mask into one (B*S, 2) int32 array: one DMA, no lane/sublane relayout
    # needed for the in-kernel one-hot (reshape/concat are cheap XLA prep work).
    ids = x_ids.reshape(bt * S, 1).astype(jnp.int32)
    msk = (attention_mask > 0).reshape(bt * S, 1).astype(jnp.int32)
    tok = jnp.concatenate([ids, msk], axis=1)                 # (B*S, 2)

    out = pl.pallas_call(
        text_mlp_kernel,
        out_shape=jax.ShapeDtypeStruct((bt, OUT_PAD), jnp.float32),
        grid_spec=pltpu.PrefetchScalarGridSpec(
            num_scalar_prefetch=0,
            grid=(bt // TB,),                                  # (1,) at B=16
            in_specs=[
                pl.BlockSpec((TB * S, 2), lambda i: (i, 0)),   # packed ids+mask
                pl.BlockSpec((SLAB_ROWS, OUT_PAD), lambda i: (0, 0)),  # param slab
            ],
            out_specs=pl.BlockSpec((TB, OUT_PAD), lambda i: (i, 0)),
        ),
        compiler_params=pltpu.CompilerParams(
            dimension_semantics=("parallel",)),
    )(tok, slab)
    return out[:, :C]


# ---------------- deterministic parameter construction ----------------
def xavier_uniform(key, fan_in, fan_out):
    limit = float(np.sqrt(6.0 / (fan_in + fan_out)))
    return jax.random.uniform(key, (fan_in, fan_out), jnp.float32, -limit, limit)


def build_params(key):
    ks = jax.random.split(key, 16)

    # Embedding: normal(0, 0.1), padding row (idx 0) zeroed.
    emb_table = 0.1 * jax.random.normal(ks[0], (VOCAB, E), jnp.float32)
    emb_table = emb_table.at[0].set(0.0)

    # Attention pooling: Linear(E,E) -> tanh -> Linear(E,1)
    wa = xavier_uniform(ks[1], E, E)
    ba = jnp.zeros((E,), jnp.float32)
    va = xavier_uniform(ks[2], E, 1)[:, 0]

    # MLP raw params (as the PyTorch module holds them); nontrivial BN stats so the
    # BN-folding path is actually exercised by the check.
    w1 = xavier_uniform(ks[3], E, H1)
    b1 = jnp.zeros((H1,), jnp.float32)
    g1 = jax.random.uniform(ks[4], (H1,), jnp.float32, 0.5, 1.5)
    be1 = 0.1 * jax.random.normal(ks[5], (H1,), jnp.float32)
    rm1 = 0.1 * jax.random.normal(ks[6], (H1,), jnp.float32)
    rv1 = jax.random.uniform(ks[7], (H1,), jnp.float32, 0.5, 1.5)

    w2 = xavier_uniform(ks[8], H1, H2)
    b2 = jnp.zeros((H2,), jnp.float32)
    g2 = jax.random.uniform(ks[9], (H2,), jnp.float32, 0.5, 1.5)
    be2 = 0.1 * jax.random.normal(ks[10], (H2,), jnp.float32)
    rm2 = 0.1 * jax.random.normal(ks[11], (H2,), jnp.float32)
    rv2 = jax.random.uniform(ks[12], (H2,), jnp.float32, 0.5, 1.5)

    w3 = xavier_uniform(ks[13], H2, C)
    b3 = jnp.zeros((C,), jnp.float32)

    raw = (wa, ba, va, w1, b1, g1, be1, rm1, rv1,
           w2, b2, g2, be2, rm2, rv2, w3, b3)

    # ---- fold eval-mode BatchNorm into the Linear weights / biases ----
    s1 = g1 / jnp.sqrt(rv1 + BN_EPS)
    w1f = w1 * s1[None, :]
    b1f = (b1 - rm1) * s1 + be1
    s2 = g2 / jnp.sqrt(rv2 + BN_EPS)
    w2f = w2 * s2[None, :]
    b2f = (b2 - rm2) * s2 + be2

    # ---- pack every kernel parameter into ONE lane-padded slab ----
    slab = jnp.zeros((SLAB_ROWS, OUT_PAD), jnp.float32)
    slab = slab.at[R_TAB:R_TAB + VOCAB, 0:E].set(emb_table)
    slab = slab.at[R_WA:R_WA + E, 0:E].set(wa)
    slab = slab.at[R_W1:R_W1 + E, 0:H1].set(w1f)
    slab = slab.at[R_W2:R_W2 + H1, 0:H2].set(w2f)
    slab = slab.at[R_W3:R_W3 + H2, 0:C].set(w3)
    slab = slab.at[R_BA, 0:E].set(ba)
    slab = slab.at[R_VA, 0:E].set(va)
    slab = slab.at[R_B1, 0:H1].set(b1f)
    slab = slab.at[R_B2, 0:H2].set(b2f)
    slab = slab.at[R_B3, 0:C].set(b3)

    return emb_table, slab, raw, ks[15]


def reference_forward(x, attention_mask, emb_table, raw):
    """Pure-JAX reference of the PyTorch module in eval mode (unfused BN, jnp.take gather)."""
    (wa, ba, va, w1, b1, g1, be1, rm1, rv1,
     w2, b2, g2, be2, rm2, rv2, w3, b3) = raw
    emb = jnp.take(emb_table, x, axis=0)                           # (B, S, E)
    h = jnp.tanh(jnp.einsum('bse,ef->bsf', emb, wa, precision=_HP) + ba[None, None, :])
    scores = jnp.sum(h * va[None, None, :], axis=-1)               # (B, S)
    scores = jnp.where(attention_mask > 0.0, scores, -1e9)
    w = jax.nn.softmax(scores, axis=-1)
    pooled = jnp.sum(w[..., None] * emb, axis=1)                   # (B, E)
    z1 = jnp.dot(pooled, w1, precision=_HP) + b1
    z1 = jnp.maximum((z1 - rm1) / jnp.sqrt(rv1 + BN_EPS) * g1 + be1, 0.0)
    z2 = jnp.dot(z1, w2, precision=_HP) + b2
    z2 = jnp.maximum((z2 - rm2) / jnp.sqrt(rv2 + BN_EPS) * g2 + be2, 0.0)
    return jnp.dot(z2, w3, precision=_HP) + b3


if __name__ == "__main__":
    key = jax.random.PRNGKey(0)
    emb_table, slab, raw_params, data_key = build_params(key)

    # token ids (id 0 = padding) and attention mask
    x = jax.random.randint(data_key, (B_TOTAL, S), 0, VOCAB, dtype=jnp.int32)
    x = x.at[:, S - 3:].set(0)                       # force some padding positions
    mask = (x != 0).astype(jnp.float32)              # (B, S)

    logits = text_mlp_forward(x, mask, emb_table_slab := slab)
    logits = jax.block_until_ready(logits)

    ref = jax.block_until_ready(reference_forward(x, mask, emb_table, raw_params))
    np.testing.assert_allclose(np.asarray(logits), np.asarray(ref), rtol=2e-4, atol=5e-5)
    assert logits.shape == (B_TOTAL, C)

    print("KERNEL_OK")
</pallas_src>

<mosaic_0001>
module attributes {stable_mosaic.version = 11 : i64} {
  func.func @text_mlp_kernel(%arg0: i32, %arg1: memref<256x2xi32, #tpu.memory_space<vmem>>, %arg2: memref<264x128xf32, #tpu.memory_space<vmem>>, %arg3: memref<16x128xf32, #tpu.memory_space<vmem>>) attributes {dimension_semantics = [#tpu.dimension_semantics<parallel>], iteration_bounds = array<i64: 1>, scalar_prefetch = 0 : i64, scratch_operands = 0 : i64, tpu.core_type = #tpu.core_type<tc>, window_params = [{transform_indices = @transform_0, window_bounds = array<i64: 256, 2>}, {pipeline_mode = #tpu.pipeline_mode<synchronous>, transform_indices = @transform_1, window_bounds = array<i64: 264, 128>}, {transform_indices = @transform_2, window_bounds = array<i64: 16, 128>}]} {
    %c0 = arith.constant 0 : index
    %c0_0 = arith.constant 0 : index
    %0 = vector.load %arg1[%c0, %c0_0] : memref<256x2xi32, #tpu.memory_space<vmem>>, vector<256x2xi32>
    %1 = vector.extract_strided_slice %0 {offsets = [0, 0], sizes = [256, 1], strides = [1, 1]} : vector<256x2xi32> to vector<256x1xi32>
    %2 = vector.extract_strided_slice %0 {offsets = [0, 1], sizes = [256, 1], strides = [1, 1]} : vector<256x2xi32> to vector<256x1xi32>
    %c0_i32 = arith.constant 0 : i32
    %3 = vector.broadcast %c0_i32 : i32 to vector<256x1xi32>
    %4 = arith.cmpi sgt, %2, %3 : vector<256x1xi32>
    %5 = vector.shape_cast %4 : vector<256x1xi1> to vector<16x16x1xi1>
    %c0_1 = arith.constant 0 : index
    %c0_2 = arith.constant 0 : index
    %6 = vector.load %arg2[%c0_1, %c0_2] : memref<264x128xf32, #tpu.memory_space<vmem>>, vector<64x32xf32>
    %c64 = arith.constant 64 : index
    %c0_3 = arith.constant 0 : index
    %7 = vector.load %arg2[%c64, %c0_3] : memref<264x128xf32, #tpu.memory_space<vmem>>, vector<32x32xf32>
    %c96 = arith.constant 96 : index
    %c0_4 = arith.constant 0 : index
    %8 = vector.load %arg2[%c96, %c0_4] : memref<264x128xf32, #tpu.memory_space<vmem>>, vector<32x64xf32>
    %c128 = arith.constant 128 : index
    %c0_5 = arith.constant 0 : index
    %9 = vector.load %arg2[%c128, %c0_5] : memref<264x128xf32, #tpu.memory_space<vmem>>, vector<64x32xf32>
    %c192 = arith.constant 192 : index
    %c0_6 = arith.constant 0 : index
    %10 = vector.load %arg2[%c192, %c0_6] : memref<264x128xf32, #tpu.memory_space<vmem>>, vector<32x128xf32>
    %c224 = arith.constant 224 : index
    %c0_7 = arith.constant 0 : index
    %11 = vector.load %arg2[%c224, %c0_7] : memref<264x128xf32, #tpu.memory_space<vmem>>, vector<1x32xf32>
    %c232 = arith.constant 232 : index
    %c0_8 = arith.constant 0 : index
    %12 = vector.load %arg2[%c232, %c0_8] : memref<264x128xf32, #tpu.memory_space<vmem>>, vector<1x32xf32>
    %c240 = arith.constant 240 : index
    %c0_9 = arith.constant 0 : index
    %13 = vector.load %arg2[%c240, %c0_9] : memref<264x128xf32, #tpu.memory_space<vmem>>, vector<1x64xf32>
    %c248 = arith.constant 248 : index
    %c0_10 = arith.constant 0 : index
    %14 = vector.load %arg2[%c248, %c0_10] : memref<264x128xf32, #tpu.memory_space<vmem>>, vector<1x32xf32>
    %c256 = arith.constant 256 : index
    %c0_11 = arith.constant 0 : index
    %15 = vector.load %arg2[%c256, %c0_11] : memref<264x128xf32, #tpu.memory_space<vmem>>, vector<1x128xf32>
    %16 = tpu.iota {dimensions = array<i32: 1>} : vector<256x64xi32>
    %17 = vector.broadcast %1 : vector<256x1xi32> to vector<256x64xi32>
    %18 = arith.cmpi eq, %17, %16 : vector<256x64xi32>
    %19 = arith.extui %18 : vector<256x64xi1> to vector<256x64xi32>
    %20 = arith.sitofp %19 : vector<256x64xi32> to vector<256x64xf32>
    %cst = arith.constant dense<0.000000e+00> : vector<256x32xf32>
    %21 = tpu.matmul %20, %6, %cst {dimension_numbers = #tpu.dot_dimension_numbers<[1], [0], [0], [1], [0, 0, 1, 1], [], []>, precision = #tpu.contract_precision<fp32>} : vector<256x64xf32>, vector<64x32xf32>, vector<256x32xf32> -> vector<256x32xf32>
    %22 = vector.shape_cast %21 : vector<256x32xf32> to vector<16x16x32xf32>
    %cst_12 = arith.constant dense<0.000000e+00> : vector<256x32xf32>
    %23 = tpu.matmul %21, %7, %cst_12 {dimension_numbers = #tpu.dot_dimension_numbers<[1], [0], [0], [1], [0, 0, 1, 1], [], []>, precision = #tpu.contract_precision<fp32>} : vector<256x32xf32>, vector<32x32xf32>, vector<256x32xf32> -> vector<256x32xf32>
    %24 = vector.broadcast %11 : vector<1x32xf32> to vector<256x32xf32>
    %25 = arith.addf %23, %24 : vector<256x32xf32>
    %26 = math.tanh %25 : vector<256x32xf32>
    %27 = vector.shape_cast %26 : vector<256x32xf32> to vector<16x16x32xf32>
    %28 = vector.shape_cast %12 : vector<1x32xf32> to vector<1x1x32xf32>
    %29 = vector.broadcast %28 : vector<1x1x32xf32> to vector<16x16x32xf32>
    %30 = arith.mulf %27, %29 : vector<16x16x32xf32>
    %cst_13 = arith.constant dense<0.000000e+00> : vector<16x16xf32>
    %31 = vector.multi_reduction <add>, %30, %cst_13 [2] : vector<16x16x32xf32> to vector<16x16xf32>
    %32 = vector.shape_cast %31 : vector<16x16xf32> to vector<16x16x1xf32>
    %cst_14 = arith.constant -1.000000e+09 : f32
    %33 = vector.broadcast %cst_14 : f32 to vector<16x16x1xf32>
    %34 = arith.select %5, %32, %33 : vector<16x16x1xi1>, vector<16x16x1xf32>
    %cst_15 = arith.constant dense<0xFF800000> : vector<16x1xf32>
    %35 = vector.multi_reduction <maximumf>, %34, %cst_15 [1] : vector<16x16x1xf32> to vector<16x1xf32>
    %36 = vector.shape_cast %35 : vector<16x1xf32> to vector<16x1x1xf32>
    %37 = vector.broadcast %36 : vector<16x1x1xf32> to vector<16x16x1xf32>
    %38 = arith.subf %34, %37 : vector<16x16x1xf32>
    %39 = math.exp %38 : vector<16x16x1xf32>
    %cst_16 = arith.constant dense<0.000000e+00> : vector<16x1xf32>
    %40 = vector.multi_reduction <add>, %39, %cst_16 [1] : vector<16x16x1xf32> to vector<16x1xf32>
    %41 = vector.shape_cast %40 : vector<16x1xf32> to vector<16x1x1xf32>
    %42 = vector.broadcast %41 : vector<16x1x1xf32> to vector<16x16x1xf32>
    %43 = arith.divf %39, %42 : vector<16x16x1xf32>
    %44 = vector.broadcast %43 : vector<16x16x1xf32> to vector<16x16x32xf32>
    %45 = arith.mulf %44, %22 : vector<16x16x32xf32>
    %cst_17 = arith.constant dense<0.000000e+00> : vector<16x32xf32>
    %46 = vector.multi_reduction <add>, %45, %cst_17 [1] : vector<16x16x32xf32> to vector<16x32xf32>
    %cst_18 = arith.constant dense<0.000000e+00> : vector<16x64xf32>
    %47 = tpu.matmul %46, %8, %cst_18 {dimension_numbers = #tpu.dot_dimension_numbers<[1], [0], [0], [1], [0, 0, 1, 1], [], []>, precision = #tpu.contract_precision<fp32>} : vector<16x32xf32>, vector<32x64xf32>, vector<16x64xf32> -> vector<16x64xf32>
    %48 = vector.broadcast %13 : vector<1x64xf32> to vector<16x64xf32>
    %49 = arith.addf %47, %48 : vector<16x64xf32>
    %cst_19 = arith.constant 0.000000e+00 : f32
    %50 = vector.broadcast %cst_19 : f32 to vector<16x64xf32>
    %51 = arith.maximumf %49, %50 : vector<16x64xf32>
    %cst_20 = arith.constant dense<0.000000e+00> : vector<16x32xf32>
    %52 = tpu.matmul %51, %9, %cst_20 {dimension_numbers = #tpu.dot_dimension_numbers<[1], [0], [0], [1], [0, 0, 1, 1], [], []>, precision = #tpu.contract_precision<fp32>} : vector<16x64xf32>, vector<64x32xf32>, vector<16x32xf32> -> vector<16x32xf32>
    %53 = vector.broadcast %14 : vector<1x32xf32> to vector<16x32xf32>
    %54 = arith.addf %52, %53 : vector<16x32xf32>
    %cst_21 = arith.constant 0.000000e+00 : f32
    %55 = vector.broadcast %cst_21 : f32 to vector<16x32xf32>
    %56 = arith.maximumf %54, %55 : vector<16x32xf32>
    %cst_22 = arith.constant dense<0.000000e+00> : vector<16x128xf32>
    %57 = tpu.matmul %56, %10, %cst_22 {dimension_numbers = #tpu.dot_dimension_numbers<[1], [0], [0], [1], [0, 0, 1, 1], [], []>, precision = #tpu.contract_precision<fp32>} : vector<16x32xf32>, vector<32x128xf32>, vector<16x128xf32> -> vector<16x128xf32>
    %58 = vector.broadcast %15 : vector<1x128xf32> to vector<16x128xf32>
    %59 = arith.addf %57, %58 : vector<16x128xf32>
    %c0_23 = arith.constant 0 : index
    %c0_24 = arith.constant 0 : index
    %60 = vector.load %arg3[%c0_23, %c0_24] : memref<16x128xf32, #tpu.memory_space<vmem>>, vector<16x128xf32>
    tpu.vector_store %arg3[%c0_23, %c0_24], %59 {strides = array<i32>} : memref<16x128xf32, #tpu.memory_space<vmem>>, vector<16x128xf32>,
    return
  }
  func.func @transform_0(%arg0: i32) -> (i32, i32) {
    %c0_i32 = arith.constant 0 : i32
    %c0_i32_0 = arith.constant 0 : i32
    return %arg0, %c0_i32 : i32, i32
  }
  func.func @transform_1(%arg0: i32) -> (i32, i32) {
    %c0_i32 = arith.constant 0 : i32
    %c0_i32_0 = arith.constant 0 : i32
    %c0_i32_1 = arith.constant 0 : i32
    return %c0_i32, %c0_i32_0 : i32, i32
  }
  func.func @transform_2(%arg0: i32) -> (i32, i32) {
    %c0_i32 = arith.constant 0 : i32
    %c0_i32_0 = arith.constant 0 : i32
    return %arg0, %c0_i32 : i32, i32
  }
}

</mosaic_0001>

<llo_original>
// kernel: tpu_custom_call.1
$region0: #{tpu_custom_call.1}
  #allocation0 [shape = 'u32[]', space=smem, size = 0x4, offset = 0x4, fixed_abs, tag = 'smem constant byte address 0x4 - core index']
  #allocation1 [shape = 'u32[144,128]{1,0:T(1,128)}', space=vmem, size = 0x12000, scoped, tag = 'internal scratch']
  %s0 = inlined_call_operand.vmem [shape: s32[256,2], index: 0, kind: input, shape index: {}]
  %s1 = inlined_call_operand.hbm [shape: f32[264,128], index: 1, kind: input, shape index: {}]
  %s2 = inlined_call_operand.hbm [shape: f32[16,128], index: 2, kind: output, shape index: {}]
  %s3 = sld [smem:[#allocation0]]
  $region22: #{tpu_custom_call.1} parent=0
    _
  %s5 = ssub.s32 1, %s3
  %s6 = scalar_select 0, %s5, %s3
  $region1: #{tpu_custom_call.1} parent=0
    #allocation2 [shape = 'u8[135168]{0}', space=vmem, size = 0x21000, scoped, tag = 'input window, operand 1, single buffered']
    #allocation3 [shape = 's32[1]{0}', space=sflag, size = 0x4, scoped, tag = 'scoped memory for tpu_custom_call.1']
    #allocation4 [shape = 's32[1]{0}', space=sflag, size = 0x4, scoped, tag = 'scoped memory for tpu_custom_call.1']
    #allocation5 [shape = 'u8[8192]{0}', space=vmem, size = 0x2000, scoped, tag = 'output window, operand 0, single buffered']
    %7 = vsyncpa [#allocation3], 0
    %8 = vsyncpa [#allocation4], 0
    // Predicated region
    $region2: #{tpu_custom_call.1} parent=1 // pred_check
      _
    $region3: #{tpu_custom_call.1} parent=1 // pred_check_branch
      %10 = sbr.rel (0) target = $region5
    $region4: #{tpu_custom_call.1} parent=1 // pred_region
      _
    $region5: #{tpu_custom_call.1} parent=1 // pred_fallthru
      _
    // Predicated region
    $region6: #{tpu_custom_call.1} parent=1 // pred_check
      _
    $region7: #{tpu_custom_call.1} parent=1 // pred_check_branch
      %12 = sbr.rel (0) target = $region9
    $region8: #{tpu_custom_call.1} parent=1 // pred_region
      %s14 = ssub.s32 4224, 4224
      %15 = vsyncadd [#allocation3], %s14
      %s16 = sshll.u32 [#allocation2], 4
      %s17 = int_to_ptr.vmem [resolvable:$true] %s16
      %22 = dma.hbm_to_vmem [thread:$0]  %s1, 4224, %s17, [#allocation3], 128, 128, 8
    $region9: #{tpu_custom_call.1} parent=1 // pred_fallthru
      _
    // Predicated region
    $region10: #{tpu_custom_call.1} parent=1 // pred_check
      _
    $region11: #{tpu_custom_call.1} parent=1 // pred_check_branch
      %24 = sbr.rel (0) target = $region13
    $region12: #{tpu_custom_call.1} parent=1 // pred_region
      %25 = dma.done [#allocation3], 4224
    $region13: #{tpu_custom_call.1} parent=1 // pred_fallthru
      _
    %v26 = vld [vmem:[%s0] sm:$0xff]
    %v27 = vld [vmem:[%s0 + $0x8] sm:$0xff]
    %v28 = vld [vmem:[%s0 + $0x10] sm:$0xff]
    %v29 = vld [vmem:[%s0 + $0x18] sm:$0xff]
    %v30 = vld [vmem:[%s0 + $0x20] sm:$0xff]
    %v31 = vld [vmem:[%s0 + $0x28] sm:$0xff]
    %v32 = vld [vmem:[%s0 + $0x30] sm:$0xff]
    %v33 = vld [vmem:[%s0 + $0x38] sm:$0xff]
    %v34 = vld [vmem:[%s0 + $0x40] sm:$0xff]
    %v35 = vld [vmem:[%s0 + $0x48] sm:$0xff]
    %v36 = vld [vmem:[%s0 + $0x50] sm:$0xff]
    %v37 = vld [vmem:[%s0 + $0x58] sm:$0xff]
    %v38 = vld [vmem:[%s0 + $0x60] sm:$0xff]
    %v39 = vld [vmem:[%s0 + $0x68] sm:$0xff]
    %v40 = vld [vmem:[%s0 + $0x70] sm:$0xff]
    %v41 = vld [vmem:[%s0 + $0x78] sm:$0xff]
    %v42 = vld [vmem:[%s0 + $0x80] sm:$0xff]
    %v43 = vld [vmem:[%s0 + $0x88] sm:$0xff]
    %v44 = vld [vmem:[%s0 + $0x90] sm:$0xff]
    %v45 = vld [vmem:[%s0 + $0x98] sm:$0xff]
    %v46 = vld [vmem:[%s0 + $0xa0] sm:$0xff]
    %v47 = vld [vmem:[%s0 + $0xa8] sm:$0xff]
    %v48 = vld [vmem:[%s0 + $0xb0] sm:$0xff]
    %v49 = vld [vmem:[%s0 + $0xb8] sm:$0xff]
    %v50 = vld [vmem:[%s0 + $0xc0] sm:$0xff]
    %v51 = vld [vmem:[%s0 + $0xc8] sm:$0xff]
    %v52 = vld [vmem:[%s0 + $0xd0] sm:$0xff]
    %v53 = vld [vmem:[%s0 + $0xd8] sm:$0xff]
    %v54 = vld [vmem:[%s0 + $0xe0] sm:$0xff]
    %v55 = vld [vmem:[%s0 + $0xe8] sm:$0xff]
    %v56 = vld [vmem:[%s0 + $0xf0] sm:$0xff]
    %v57 = vld [vmem:[%s0 + $0xf8] sm:$0xff]
    %vm58 = vcmp.gt.s32.totalorder %v26, 0
    %vm59 = vcmp.gt.s32.totalorder %v27, 0
    %vm60 = vcmp.gt.s32.totalorder %v28, 0
    %vm61 = vcmp.gt.s32.totalorder %v29, 0
    %vm62 = vcmp.gt.s32.totalorder %v30, 0
    %vm63 = vcmp.gt.s32.totalorder %v31, 0
    %vm64 = vcmp.gt.s32.totalorder %v32, 0
    %vm65 = vcmp.gt.s32.totalorder %v33, 0
    %vm66 = vcmp.gt.s32.totalorder %v34, 0
    %vm67 = vcmp.gt.s32.totalorder %v35, 0
    %vm68 = vcmp.gt.s32.totalorder %v36, 0
    %vm69 = vcmp.gt.s32.totalorder %v37, 0
    %vm70 = vcmp.gt.s32.totalorder %v38, 0
    %vm71 = vcmp.gt.s32.totalorder %v39, 0
    %vm72 = vcmp.gt.s32.totalorder %v40, 0
    %vm73 = vcmp.gt.s32.totalorder %v41, 0
    %vm74 = vcmp.gt.s32.totalorder %v42, 0
    %vm75 = vcmp.gt.s32.totalorder %v43, 0
    %vm76 = vcmp.gt.s32.totalorder %v44, 0
    %vm77 = vcmp.gt.s32.totalorder %v45, 0
    %vm78 = vcmp.gt.s32.totalorder %v46, 0
    %vm79 = vcmp.gt.s32.totalorder %v47, 0
    %vm80 = vcmp.gt.s32.totalorder %v48, 0
    %vm81 = vcmp.gt.s32.totalorder %v49, 0
    %vm82 = vcmp.gt.s32.totalorder %v50, 0
    %vm83 = vcmp.gt.s32.totalorder %v51, 0
    %vm84 = vcmp.gt.s32.totalorder %v52, 0
    %vm85 = vcmp.gt.s32.totalorder %v53, 0
    %vm86 = vcmp.gt.s32.totalorder %v54, 0
    %vm87 = vcmp.gt.s32.totalorder %v55, 0
    %vm88 = vcmp.gt.s32.totalorder %v56, 0
    %vm89 = vcmp.gt.s32.totalorder %v57, 0
    %v90 = vld [vmem:[#allocation2] sm:$0xff]
    %v91 = vld [vmem:[#allocation2 + $0x8] sm:$0xff]
    %v92 = vld [vmem:[#allocation2 + $0x10] sm:$0xff]
    %v93 = vld [vmem:[#allocation2 + $0x18] sm:$0xff]
    %v94 = vld [vmem:[#allocation2 + $0x20] sm:$0xff]
    %v95 = vld [vmem:[#allocation2 + $0x28] sm:$0xff]
    %v96 = vld [vmem:[#allocation2 + $0x30] sm:$0xff]
    %v97 = vld [vmem:[#allocation2 + $0x38] sm:$0xff]
    %v98 = vld [vmem:[#allocation2 + $0x40] sm:$0xff]
    %v99 = vld [vmem:[#allocation2 + $0x48] sm:$0xff]
    %v100 = vld [vmem:[#allocation2 + $0x50] sm:$0xff]
    %v101 = vld [vmem:[#allocation2 + $0x58] sm:$0xff]
    %v102 = vld [vmem:[#allocation2 + $0x60] sm:$0xff]
    %v103 = vld [vmem:[#allocation2 + $0x68] sm:$0xff]
    %v104 = vld [vmem:[#allocation2 + $0x70] sm:$0xff]
    %v105 = vld [vmem:[#allocation2 + $0x78] sm:$0xff]
    %v106 = vld [vmem:[#allocation2 + $0x80] sm:$0xff]
    %v107 = vld [vmem:[#allocation2 + $0x88] sm:$0xff]
    %v108 = vld [vmem:[#allocation2 + $0x90] sm:$0xff]
    %v109 = vld [vmem:[#allocation2 + $0x98] sm:$0xff]
    %v110 = vld [vmem:[#allocation2 + $0xa0] sm:$0xff]
    %v111 = vld [vmem:[#allocation2 + $0xa8] sm:$0xff]
    %v112 = vld [vmem:[#allocation2 + $0xb0] sm:$0xff]
    %v113 = vld [vmem:[#allocation2 + $0xb8] sm:$0xff]
    %v114 = vld [vmem:[#allocation2 + $0xc0] sm:$0xff]
    %v115 = vld [vmem:[#allocation2 + $0xc8] sm:$0xff]
    %v116 = vld [vmem:[#allocation2 + $0xd0] sm:$0xff]
    %v117 = vld [vmem:[#allocation2 + $0xd8] sm:$0xff]
    %v118 = vld [vmem:[#allocation2 + $0xe0] sm:$0x1]
    %v119 = vld [vmem:[#allocation2 + $0xe8] sm:$0x1]
    %v120 = vld [vmem:[#allocation2 + $0xf0] sm:$0x1]
    %v121 = vld [vmem:[#allocation2 + $0xf8] sm:$0x1]
    %v122 = vld [vmem:[#allocation2 + $0x100] sm:$0x1]
    %v123 = vlaneseq
    %v124 = vand.u32 %v123, 127
    %125 = vset.pattern.permute.xlu0 0
    %126 = vperm.xlu0 %125, %v26
    %v127 = vpop.permute.xlu0 %126
    %128 = vset.pattern.permute.xlu0 0
    %129 = vperm.xlu0 %128, %v27
    %v130 = vpop.permute.xlu0 %129
    %131 = vset.pattern.permute.xlu0 0
    %132 = vperm.xlu0 %131, %v28
    %v133 = vpop.permute.xlu0 %132
    %134 = vset.pattern.permute.xlu0 0
    %135 = vperm.xlu0 %134, %v29
    %v136 = vpop.permute.xlu0 %135
    %137 = vset.pattern.permute.xlu0 0
    %138 = vperm.xlu0 %137, %v30
    %v139 = vpop.permute.xlu0 %138
    %140 = vset.pattern.permute.xlu0 0
    %141 = vperm.xlu0 %140, %v31
    %v142 = vpop.permute.xlu0 %141
    %143 = vset.pattern.permute.xlu0 0
    %144 = vperm.xlu0 %143, %v32
    %v145 = vpop.permute.xlu0 %144
    %146 = vset.pattern.permute.xlu0 0
    %147 = vperm.xlu0 %146, %v33
    %v148 = vpop.permute.xlu0 %147
    %149 = vset.pattern.permute.xlu0 0
    %150 = vperm.xlu0 %149, %v34
    %v151 = vpop.permute.xlu0 %150
    %152 = vset.pattern.permute.xlu0 0
    %153 = vperm.xlu0 %152, %v35
    %v154 = vpop.permute.xlu0 %153
    %155 = vset.pattern.permute.xlu0 0
    %156 = vperm.xlu0 %155, %v36
    %v157 = vpop.permute.xlu0 %156
    %158 = vset.pattern.permute.xlu0 0
    %159 = vperm.xlu0 %158, %v37
    %v160 = vpop.permute.xlu0 %159
    %161 = vset.pattern.permute.xlu0 0
    %162 = vperm.xlu0 %161, %v38
    %v163 = vpop.permute.xlu0 %162
    %164 = vset.pattern.permute.xlu0 0
    %165 = vperm.xlu0 %164, %v39
    %v166 = vpop.permute.xlu0 %165
    %167 = vset.pattern.permute.xlu0 0
    %168 = vperm.xlu0 %167, %v40
    %v169 = vpop.permute.xlu0 %168
    %170 = vset.pattern.permute.xlu0 0
    %171 = vperm.xlu0 %170, %v41
    %v172 = vpop.permute.xlu0 %171
    %173 = vset.pattern.permute.xlu0 0
    %174 = vperm.xlu0 %173, %v42
    %v175 = vpop.permute.xlu0 %174
    %176 = vset.pattern.permute.xlu0 0
    %177 = vperm.xlu0 %176, %v43
    %v178 = vpop.permute.xlu0 %177
    %179 = vset.pattern.permute.xlu0 0
    %180 = vperm.xlu0 %179, %v44
    %v181 = vpop.permute.xlu0 %180
    %182 = vset.pattern.permute.xlu0 0
    %183 = vperm.xlu0 %182, %v45
    %v184 = vpop.permute.xlu0 %183
    %185 = vset.pattern.permute.xlu0 0
    %186 = vperm.xlu0 %185, %v46
    %v187 = vpop.permute.xlu0 %186
    %188 = vset.pattern.permute.xlu0 0
    %189 = vperm.xlu0 %188, %v47
    %v190 = vpop.permute.xlu0 %189
    %191 = vset.pattern.permute.xlu0 0
    %192 = vperm.xlu0 %191, %v48
    %v193 = vpop.permute.xlu0 %192
    %194 = vset.pattern.permute.xlu0 0
    %195 = vperm.xlu0 %194, %v49
    %v196 = vpop.permute.xlu0 %195
    %197 = vset.pattern.permute.xlu0 0
    %198 = vperm.xlu0 %197, %v50
    %v199 = vpop.permute.xlu0 %198
    %200 = vset.pattern.permute.xlu0 0
    %201 = vperm.xlu0 %200, %v51
    %v202 = vpop.permute.xlu0 %201
    %203 = vset.pattern.permute.xlu0 0
    %204 = vperm.xlu0 %203, %v52
    %v205 = vpop.permute.xlu0 %204
    %206 = vset.pattern.permute.xlu0 0
    %207 = vperm.xlu0 %206, %v53
    %v208 = vpop.permute.xlu0 %207
    %209 = vset.pattern.permute.xlu0 0
    %210 = vperm.xlu0 %209, %v54
    %v211 = vpop.permute.xlu0 %210
    %212 = vset.pattern.permute.xlu0 0
    %213 = vperm.xlu0 %212, %v55
    %v214 = vpop.permute.xlu0 %213
    %215 = vset.pattern.permute.xlu0 0
    %216 = vperm.xlu0 %215, %v56
    %v217 = vpop.permute.xlu0 %216
    %218 = vset.pattern.permute.xlu0 0
    %219 = vperm.xlu0 %218, %v57
    %v220 = vpop.permute.xlu0 %219
    %vm221 = vcmp.eq.s32.totalorder %v127, %v124
    %vm222 = vcmp.eq.s32.totalorder %v130, %v124
    %vm223 = vcmp.eq.s32.totalorder %v133, %v124
    %vm224 = vcmp.eq.s32.totalorder %v136, %v124
    %vm225 = vcmp.eq.s32.totalorder %v139, %v124
    %vm226 = vcmp.eq.s32.totalorder %v142, %v124
    %vm227 = vcmp.eq.s32.totalorder %v145, %v124
    %vm228 = vcmp.eq.s32.totalorder %v148, %v124
    %vm229 = vcmp.eq.s32.totalorder %v151, %v124
    %vm230 = vcmp.eq.s32.totalorder %v154, %v124
    %vm231 = vcmp.eq.s32.totalorder %v157, %v124
    %vm232 = vcmp.eq.s32.totalorder %v160, %v124
    %vm233 = vcmp.eq.s32.totalorder %v163, %v124
    %vm234 = vcmp.eq.s32.totalorder %v166, %v124
    %vm235 = vcmp.eq.s32.totalorder %v169, %v124
    %vm236 = vcmp.eq.s32.totalorder %v172, %v124
    %vm237 = vcmp.eq.s32.totalorder %v175, %v124
    %vm238 = vcmp.eq.s32.totalorder %v178, %v124
    %vm239 = vcmp.eq.s32.totalorder %v181, %v124
    %vm240 = vcmp.eq.s32.totalorder %v184, %v124
    %vm241 = vcmp.eq.s32.totalorder %v187, %v124
    %vm242 = vcmp.eq.s32.totalorder %v190, %v124
    %vm243 = vcmp.eq.s32.totalorder %v193, %v124
    %vm244 = vcmp.eq.s32.totalorder %v196, %v124
    %vm245 = vcmp.eq.s32.totalorder %v199, %v124
    %vm246 = vcmp.eq.s32.totalorder %v202, %v124
    %vm247 = vcmp.eq.s32.totalorder %v205, %v124
    %vm248 = vcmp.eq.s32.totalorder %v208, %v124
    %vm249 = vcmp.eq.s32.totalorder %v211, %v124
    %vm250 = vcmp.eq.s32.totalorder %v214, %v124
    %vm251 = vcmp.eq.s32.totalorder %v217, %v124
    %vm252 = vcmp.eq.s32.totalorder %v220, %v124
    %v253 = vsel %vm221, 1, 0
    %v254 = vsel %vm222, 1, 0
    %v255 = vsel %vm223, 1, 0
    %v256 = vsel %vm224, 1, 0
    %v257 = vsel %vm225, 1, 0
    %v258 = vsel %vm226, 1, 0
    %v259 = vsel %vm227, 1, 0
    %v260 = vsel %vm228, 1, 0
    %v261 = vsel %vm229, 1, 0
    %v262 = vsel %vm230, 1, 0
    %v263 = vsel %vm231, 1, 0
    %v264 = vsel %vm232, 1, 0
    %v265 = vsel %vm233, 1, 0
    %v266 = vsel %vm234, 1, 0
    %v267 = vsel %vm235, 1, 0
    %v268 = vsel %vm236, 1, 0
    %v269 = vsel %vm237, 1, 0
    %v270 = vsel %vm238, 1, 0
    %v271 = vsel %vm239, 1, 0
    %v272 = vsel %vm240, 1, 0
    %v273 = vsel %vm241, 1, 0
    %v274 = vsel %vm242, 1, 0
    %v275 = vsel %vm243, 1, 0
    %v276 = vsel %vm244, 1, 0
    %v277 = vsel %vm245, 1, 0
    %v278 = vsel %vm246, 1, 0
    %v279 = vsel %vm247, 1, 0
    %v280 = vsel %vm248, 1, 0
    %v281 = vsel %vm249, 1, 0
    %v282 = vsel %vm250, 1, 0
    %v283 = vsel %vm251, 1, 0
    %v284 = vsel %vm252, 1, 0
    %v285 = vcvt.s32.f32 %v253
    %v286 = vcvt.s32.f32 %v254
    %v287 = vcvt.s32.f32 %v255
    %v288 = vcvt.s32.f32 %v256
    %v289 = vcvt.s32.f32 %v257
    %v290 = vcvt.s32.f32 %v258
    %v291 = vcvt.s32.f32 %v259
    %v292 = vcvt.s32.f32 %v260
    %v293 = vcvt.s32.f32 %v261
    %v294 = vcvt.s32.f32 %v262
    %v295 = vcvt.s32.f32 %v263
    %v296 = vcvt.s32.f32 %v264
    %v297 = vcvt.s32.f32 %v265
    %v298 = vcvt.s32.f32 %v266
    %v299 = vcvt.s32.f32 %v267
    %v300 = vcvt.s32.f32 %v268
    %v301 = vcvt.s32.f32 %v269
    %v302 = vcvt.s32.f32 %v270
    %v303 = vcvt.s32.f32 %v271
    %v304 = vcvt.s32.f32 %v272
    %v305 = vcvt.s32.f32 %v273
    %v306 = vcvt.s32.f32 %v274
    %v307 = vcvt.s32.f32 %v275
    %v308 = vcvt.s32.f32 %v276
    %v309 = vcvt.s32.f32 %v277
    %v310 = vcvt.s32.f32 %v278
    %v311 = vcvt.s32.f32 %v279
    %v312 = vcvt.s32.f32 %v280
    %v313 = vcvt.s32.f32 %v281
    %v314 = vcvt.s32.f32 %v282
    %v315 = vcvt.s32.f32 %v283
    %v316 = vcvt.s32.f32 %v284
    %vm317 = vcmask 523264
    %v319 = vsel %vm317, %v285, 0
    %v322 = vsel %vm317, %v286, 0
    %v325 = vsel %vm317, %v287, 0
    %v328 = vsel %vm317, %v288, 0
    %v331 = vsel %vm317, %v289, 0
    %v334 = vsel %vm317, %v290, 0
    %v337 = vsel %vm317, %v291, 0
    %v340 = vsel %vm317, %v292, 0
    %v343 = vsel %vm317, %v293, 0
    %v346 = vsel %vm317, %v294, 0
    %v349 = vsel %vm317, %v295, 0
    %v352 = vsel %vm317, %v296, 0
    %v355 = vsel %vm317, %v297, 0
    %v358 = vsel %vm317, %v298, 0
    %v361 = vsel %vm317, %v299, 0
    %v364 = vsel %vm317, %v300, 0
    %v367 = vsel %vm317, %v301, 0
    %v370 = vsel %vm317, %v302, 0
    %v373 = vsel %vm317, %v303, 0
    %v376 = vsel %vm317, %v304, 0
    %v379 = vsel %vm317, %v305, 0
    %v382 = vsel %vm317, %v306, 0
    %v385 = vsel %vm317, %v307, 0
    %v388 = vsel %vm317, %v308, 0
    %v391 = vsel %vm317, %v309, 0
    %v394 = vsel %vm317, %v310, 0
    %v397 = vsel %vm317, %v311, 0
    %v400 = vsel %vm317, %v312, 0
    %v403 = vsel %vm317, %v313, 0
    %v406 = vsel %vm317, %v314, 0
    %v409 = vsel %vm317, %v315, 0
    %v412 = vsel %vm317, %v316, 0
    %414 = vmatprep.subr.mxu0 0.0
    %415 = vmatpush1.msra.mxu0 0.0
    %416 = vmatprep.subr.mxu0 0.0
    %417 = vmatpush1.msra.mxu0 0.0
    %418 = vmatprep.subr.mxu0 0.0
    %419 = vmatpush1.msra.mxu0 0.0
    %420 = vmatprep.subr.mxu0 0.0
    %421 = vmatpush1.msra.mxu0 0.0
    %422 = vmatprep.subr.mxu0 0.0
    %423 = vmatpush1.msra.mxu0 0.0
    %424 = vmatprep.subr.mxu0 0.0
    %425 = vmatpush1.msra.mxu0 0.0
    %426 = vmatprep.subr.mxu0 0.0
    %427 = vmatpush1.msra.mxu0 0.0
    %428 = vmatprep.subr.mxu0 0.0
    %429 = vmatpush1.msra.mxu0 0.0
    %430 = vmatprep.subr.mxu0 0.0
    %v431 = vand.u32 %v97, 4294901760
    %432 = vmatpush1.msra.mxu0 %v431
    %433 = vmatprep.subr.mxu0 0.0
    %v434 = vand.u32 %v96, 4294901760
    %435 = vmatpush1.msra.mxu0 %v434
    %436 = vmatprep.subr.mxu0 0.0
    %v437 = vand.u32 %v95, 4294901760
    %438 = vmatpush1.msra.mxu0 %v437
    %439 = vmatprep.subr.mxu0 0.0
    %v440 = vand.u32 %v94, 4294901760
    %441 = vmatpush1.msra.mxu0 %v440
    %442 = vmatprep.subr.mxu0 0.0
    %v443 = vand.u32 %v93, 4294901760
    %444 = vmatpush1.msra.mxu0 %v443
    %445 = vmatprep.subr.mxu0 0.0
    %v446 = vand.u32 %v92, 4294901760
    %447 = vmatpush1.msra.mxu0 %v446
    %448 = vmatprep.subr.mxu0 0.0
    %v449 = vand.u32 %v91, 4294901760
    %450 = vmatpush1.msra.mxu0 %v449
    %451 = vmatprep.subr.mxu0 0.0
    %v452 = vand.u32 %v90, 4294901760
    %453 = vmatpush1.msra.mxu0 %v452
    %454 = vmatprep.subr.mxu0 0.0
    %455 = vmatpush2.msra.mxu0 0.0
    %456 = vmatprep.subr.mxu0 0.0
    %457 = vmatpush2.msra.mxu0 0.0
    %458 = vmatprep.subr.mxu0 0.0
    %459 = vmatpush2.msra.mxu0 0.0
    %460 = vmatprep.subr.mxu0 0.0
    %461 = vmatpush2.msra.mxu0 0.0
    %462 = vmatprep.subr.mxu0 0.0
    %463 = vmatpush2.msra.mxu0 0.0
    %464 = vmatprep.subr.mxu0 0.0
    %465 = vmatpush2.msra.mxu0 0.0
    %466 = vmatprep.subr.mxu0 0.0
    %467 = vmatpush2.msra.mxu0 0.0
    %468 = vmatprep.subr.mxu0 0.0
    %469 = vmatpush2.msra.mxu0 0.0
    %470 = vmatprep.subr.mxu0 0.0
    %471 = vmatpush2.msra.mxu0 0.0
    %472 = vmatprep.subr.mxu0 0.0
    %473 = vmatpush2.msra.mxu0 0.0
    %474 = vmatprep.subr.mxu0 0.0
    %475 = vmatpush2.msra.mxu0 0.0
    %476 = vmatprep.subr.mxu0 0.0
    %477 = vmatpush2.msra.mxu0 0.0
    %478 = vmatprep.subr.mxu0 0.0
    %479 = vmatpush2.msra.mxu0 0.0
    %480 = vmatprep.subr.mxu0 0.0
    %481 = vmatpush2.msra.mxu0 0.0
    %482 = vmatprep.subr.mxu0 0.0
    %483 = vmatpush2.msra.mxu0 0.0
    %484 = vmatprep.subr.mxu0 0.0
    %485 = vmatpush2.msra.mxu0 0.0
    %486 = vmatprep.mubr.f32.mxu0 0.0
    %v487 = vand.u32 %v319, 4294901760
    %v488 = vsub.f32 %v319, %v487
    %v489 = vand.u32 %v488, 4294901760
    %v490 = vsub.f32 %v488, %v489
    %v491 = vand.u32 %v490, 4294901760
    %492 = vmatmul.mubr.f32.gmra.mxu0 %v491
    %v493 = vpop.f32.mrf.mxu0
    %v494 = vadd.f32 0.0, %v493
    %v495 = vpop.f32.mrf.mxu0
    %496 = vmatprep.mubr.f32.mxu0 0.0
    %v497 = vand.u32 %v322, 4294901760
    %v498 = vsub.f32 %v322, %v497
    %v499 = vand.u32 %v498, 4294901760
    %v500 = vsub.f32 %v498, %v499
    %v501 = vand.u32 %v500, 4294901760
    %502 = vmatmul.mubr.f32.gmra.mxu0 %v501
    %v503 = vpop.f32.mrf.mxu0
    %v504 = vadd.f32 0.0, %v503
    %v505 = vpop.f32.mrf.mxu0
    %506 = vmatprep.mubr.f32.mxu0 0.0
    %v507 = vand.u32 %v325, 4294901760
    %v508 = vsub.f32 %v325, %v507
    %v509 = vand.u32 %v508, 4294901760
    %v510 = vsub.f32 %v508, %v509
    %v511 = vand.u32 %v510, 4294901760
    %512 = vmatmul.mubr.f32.gmra.mxu0 %v511
    %v513 = vpop.f32.mrf.mxu0
    %v514 = vadd.f32 0.0, %v513
    %v515 = vpop.f32.mrf.mxu0
    %516 = vmatprep.mubr.f32.mxu0 0.0
    %v517 = vand.u32 %v328, 4294901760
    %v518 = vsub.f32 %v328, %v517
    %v519 = vand.u32 %v518, 4294901760
    %v520 = vsub.f32 %v518, %v519
    %v521 = vand.u32 %v520, 4294901760
    %522 = vmatmul.mubr.f32.gmra.mxu0 %v521
    %v523 = vpop.f32.mrf.mxu0
    %v524 = vadd.f32 0.0, %v523
    %v525 = vpop.f32.mrf.mxu0
    %526 = vmatprep.mubr.f32.mxu0 0.0
    %v527 = vand.u32 %v331, 4294901760
    %v528 = vsub.f32 %v331, %v527
    %v529 = vand.u32 %v528, 4294901760
    %v530 = vsub.f32 %v528, %v529
    %v531 = vand.u32 %v530, 4294901760
    %532 = vmatmul.mubr.f32.gmra.mxu0 %v531
    %v533 = vpop.f32.mrf.mxu0
    %v534 = vadd.f32 0.0, %v533
    %v535 = vpop.f32.mrf.mxu0
    %536 = vmatprep.mubr.f32.mxu0 0.0
    %v537 = vand.u32 %v334, 4294901760
    %v538 = vsub.f32 %v334, %v537
    %v539 = vand.u32 %v538, 4294901760
    %v540 = vsub.f32 %v538, %v539
    %v541 = vand.u32 %v540, 4294901760
    %542 = vmatmul.mubr.f32.gmra.mxu0 %v541
    %v543 = vpop.f32.mrf.mxu0
    %v544 = vadd.f32 0.0, %v543
    %v545 = vpop.f32.mrf.mxu0
    %546 = vmatprep.mubr.f32.mxu0 0.0
    %v547 = vand.u32 %v337, 4294901760
    %v548 = vsub.f32 %v337, %v547
    %v549 = vand.u32 %v548, 4294901760
    %v550 = vsub.f32 %v548, %v549
    %v551 = vand.u32 %v550, 4294901760
    %552 = vmatmul.mubr.f32.gmra.mxu0 %v551
    %v553 = vpop.f32.mrf.mxu0
    %v554 = vadd.f32 0.0, %v553
    %v555 = vpop.f32.mrf.mxu0
    %556 = vmatprep.mubr.f32.mxu0 0.0
    %v557 = vand.u32 %v340, 4294901760
    %v558 = vsub.f32 %v340, %v557
    %v559 = vand.u32 %v558, 4294901760
    %v560 = vsub.f32 %v558, %v559
    %v561 = vand.u32 %v560, 4294901760
    %562 = vmatmul.mubr.f32.gmra.mxu0 %v561
    %v563 = vpop.f32.mrf.mxu0
    %v564 = vadd.f32 0.0, %v563
    %v565 = vpop.f32.mrf.mxu0
    %566 = vmatprep.mubr.f32.mxu0 0.0
    %v567 = vand.u32 %v343, 4294901760
    %v568 = vsub.f32 %v343, %v567
    %v569 = vand.u32 %v568, 4294901760
    %v570 = vsub.f32 %v568, %v569
    %v571 = vand.u32 %v570, 4294901760
    %572 = vmatmul.mubr.f32.gmra.mxu0 %v571
    %v573 = vpop.f32.mrf.mxu0
    %v574 = vadd.f32 0.0, %v573
    %v575 = vpop.f32.mrf.mxu0
    %576 = vmatprep.mubr.f32.mxu0 0.0
    %v577 = vand.u32 %v346, 4294901760
    %v578 = vsub.f32 %v346, %v577
    %v579 = vand.u32 %v578, 4294901760
    %v580 = vsub.f32 %v578, %v579
    %v581 = vand.u32 %v580, 4294901760
    %582 = vmatmul.mubr.f32.gmra.mxu0 %v581
    %v583 = vpop.f32.mrf.mxu0
    %v584 = vadd.f32 0.0, %v583
    %v585 = vpop.f32.mrf.mxu0
    %586 = vmatprep.mubr.f32.mxu0 0.0
    %v587 = vand.u32 %v349, 4294901760
    %v588 = vsub.f32 %v349, %v587
    %v589 = vand.u32 %v588, 4294901760
    %v590 = vsub.f32 %v588, %v589
    %v591 = vand.u32 %v590, 4294901760
    %592 = vmatmul.mubr.f32.gmra.mxu0 %v591
    %v593 = vpop.f32.mrf.mxu0
    %v594 = vadd.f32 0.0, %v593
    %v595 = vpop.f32.mrf.mxu0
    %596 = vmatprep.mubr.f32.mxu0 0.0
    %v597 = vand.u32 %v352, 4294901760
    %v598 = vsub.f32 %v352, %v597
    %v599 = vand.u32 %v598, 4294901760
    %v600 = vsub.f32 %v598, %v599
    %v601 = vand.u32 %v600, 4294901760
    %602 = vmatmul.mubr.f32.gmra.mxu0 %v601
    %v603 = vpop.f32.mrf.mxu0
    %v604 = vadd.f32 0.0, %v603
    %v605 = vpop.f32.mrf.mxu0
    %606 = vmatprep.mubr.f32.mxu0 0.0
    %v607 = vand.u32 %v355, 4294901760
    %v608 = vsub.f32 %v355, %v607
    %v609 = vand.u32 %v608, 4294901760
    %v610 = vsub.f32 %v608, %v609
    %v611 = vand.u32 %v610, 4294901760
    %612 = vmatmul.mubr.f32.gmra.mxu0 %v611
    %v613 = vpop.f32.mrf.mxu0
    %v614 = vadd.f32 0.0, %v613
    %v615 = vpop.f32.mrf.mxu0
    %616 = vmatprep.mubr.f32.mxu0 0.0
    %v617 = vand.u32 %v358, 4294901760
    %v618 = vsub.f32 %v358, %v617
    %v619 = vand.u32 %v618, 4294901760
    %v620 = vsub.f32 %v618, %v619
    %v621 = vand.u32 %v620, 4294901760
    %622 = vmatmul.mubr.f32.gmra.mxu0 %v621
    %v623 = vpop.f32.mrf.mxu0
    %v624 = vadd.f32 0.0, %v623
    %v625 = vpop.f32.mrf.mxu0
    %626 = vmatprep.mubr.f32.mxu0 0.0
    %v627 = vand.u32 %v361, 4294901760
    %v628 = vsub.f32 %v361, %v627
    %v629 = vand.u32 %v628, 4294901760
    %v630 = vsub.f32 %v628, %v629
    %v631 = vand.u32 %v630, 4294901760
    %632 = vmatmul.mubr.f32.gmra.mxu0 %v631
    %v633 = vpop.f32.mrf.mxu0
    %v634 = vadd.f32 0.0, %v633
    %v635 = vpop.f32.mrf.mxu0
    %636 = vmatprep.mubr.f32.mxu0 0.0
    %v637 = vand.u32 %v364, 4294901760
    %v638 = vsub.f32 %v364, %v637
    %v639 = vand.u32 %v638, 4294901760
    %v640 = vsub.f32 %v638, %v639
    %v641 = vand.u32 %v640, 4294901760
    %642 = vmatmul.mubr.f32.gmra.mxu0 %v641
    %v643 = vpop.f32.mrf.mxu0
    %v644 = vadd.f32 0.0, %v643
    %v645 = vpop.f32.mrf.mxu0
    %646 = vmatprep.mubr.f32.mxu0 0.0
    %v647 = vand.u32 %v367, 4294901760
    %v648 = vsub.f32 %v367, %v647
    %v649 = vand.u32 %v648, 4294901760
    %v650 = vsub.f32 %v648, %v649
    %v651 = vand.u32 %v650, 4294901760
    %652 = vmatmul.mubr.f32.gmra.mxu0 %v651
    %v653 = vpop.f32.mrf.mxu0
    %v654 = vadd.f32 0.0, %v653
    %v655 = vpop.f32.mrf.mxu0
    %656 = vmatprep.mubr.f32.mxu0 0.0
    %v657 = vand.u32 %v370, 4294901760
    %v658 = vsub.f32 %v370, %v657
    %v659 = vand.u32 %v658, 4294901760
    %v660 = vsub.f32 %v658, %v659
    %v661 = vand.u32 %v660, 4294901760
    %662 = vmatmul.mubr.f32.gmra.mxu0 %v661
    %v663 = vpop.f32.mrf.mxu0
    %v664 = vadd.f32 0.0, %v663
    %v665 = vpop.f32.mrf.mxu0
    %666 = vmatprep.mubr.f32.mxu0 0.0
    %v667 = vand.u32 %v373, 4294901760
    %v668 = vsub.f32 %v373, %v667
    %v669 = vand.u32 %v668, 4294901760
    %v670 = vsub.f32 %v668, %v669
    %v671 = vand.u32 %v670, 4294901760
    %672 = vmatmul.mubr.f32.gmra.mxu0 %v671
    %v673 = vpop.f32.mrf.mxu0
    %v674 = vadd.f32 0.0, %v673
    %v675 = vpop.f32.mrf.mxu0
    %676 = vmatprep.mubr.f32.mxu0 0.0
    %v677 = vand.u32 %v376, 4294901760
    %v678 = vsub.f32 %v376, %v677
    %v679 = vand.u32 %v678, 4294901760
    %v680 = vsub.f32 %v678, %v679
    %v681 = vand.u32 %v680, 4294901760
    %682 = vmatmul.mubr.f32.gmra.mxu0 %v681
    %v683 = vpop.f32.mrf.mxu0
    %v684 = vadd.f32 0.0, %v683
    %v685 = vpop.f32.mrf.mxu0
    %686 = vmatprep.mubr.f32.mxu0 0.0
    %v687 = vand.u32 %v379, 4294901760
    %v688 = vsub.f32 %v379, %v687
    %v689 = vand.u32 %v688, 4294901760
    %v690 = vsub.f32 %v688, %v689
    %v691 = vand.u32 %v690, 4294901760
    %692 = vmatmul.mubr.f32.gmra.mxu0 %v691
    %v693 = vpop.f32.mrf.mxu0
    %v694 = vadd.f32 0.0, %v693
    %v695 = vpop.f32.mrf.mxu0
    %696 = vmatprep.mubr.f32.mxu0 0.0
    %v697 = vand.u32 %v382, 4294901760
    %v698 = vsub.f32 %v382, %v697
    %v699 = vand.u32 %v698, 4294901760
    %v700 = vsub.f32 %v698, %v699
    %v701 = vand.u32 %v700, 4294901760
    %702 = vmatmul.mubr.f32.gmra.mxu0 %v701
    %v703 = vpop.f32.mrf.mxu0
    %v704 = vadd.f32 0.0, %v703
    %v705 = vpop.f32.mrf.mxu0
    %706 = vmatprep.mubr.f32.mxu0 0.0
    %v707 = vand.u32 %v385, 4294901760
    %v708 = vsub.f32 %v385, %v707
    %v709 = vand.u32 %v708, 4294901760
    %v710 = vsub.f32 %v708, %v709
    %v711 = vand.u32 %v710, 4294901760
    %712 = vmatmul.mubr.f32.gmra.mxu0 %v711
    %v713 = vpop.f32.mrf.mxu0
    %v714 = vadd.f32 0.0, %v713
    %v715 = vpop.f32.mrf.mxu0
    %716 = vmatprep.mubr.f32.mxu0 0.0
    %v717 = vand.u32 %v388, 4294901760
    %v718 = vsub.f32 %v388, %v717
    %v719 = vand.u32 %v718, 4294901760
    %v720 = vsub.f32 %v718, %v719
    %v721 = vand.u32 %v720, 4294901760
    %722 = vmatmul.mubr.f32.gmra.mxu0 %v721
    %v723 = vpop.f32.mrf.mxu0
    %v724 = vadd.f32 0.0, %v723
    %v725 = vpop.f32.mrf.mxu0
    %726 = vmatprep.mubr.f32.mxu0 0.0
    %v727 = vand.u32 %v391, 4294901760
    %v728 = vsub.f32 %v391, %v727
    %v729 = vand.u32 %v728, 4294901760
    %v730 = vsub.f32 %v728, %v729
    %v731 = vand.u32 %v730, 4294901760
    %732 = vmatmul.mubr.f32.gmra.mxu0 %v731
    %v733 = vpop.f32.mrf.mxu0
    %v734 = vadd.f32 0.0, %v733
    %v735 = vpop.f32.mrf.mxu0
    %736 = vmatprep.mubr.f32.mxu0 0.0
    %v737 = vand.u32 %v394, 4294901760
    %v738 = vsub.f32 %v394, %v737
    %v739 = vand.u32 %v738, 4294901760
    %v740 = vsub.f32 %v738, %v739
    %v741 = vand.u32 %v740, 4294901760
    %742 = vmatmul.mubr.f32.gmra.mxu0 %v741
    %v743 = vpop.f32.mrf.mxu0
    %v744 = vadd.f32 0.0, %v743
    %v745 = vpop.f32.mrf.mxu0
    %746 = vmatprep.mubr.f32.mxu0 0.0
    %v747 = vand.u32 %v397, 4294901760
    %v748 = vsub.f32 %v397, %v747
    %v749 = vand.u32 %v748, 4294901760
    %v750 = vsub.f32 %v748, %v749
    %v751 = vand.u32 %v750, 4294901760
    %752 = vmatmul.mubr.f32.gmra.mxu0 %v751
    %v753 = vpop.f32.mrf.mxu0
    %v754 = vadd.f32 0.0, %v753
    %v755 = vpop.f32.mrf.mxu0
    %756 = vmatprep.mubr.f32.mxu0 0.0
    %v757 = vand.u32 %v400, 4294901760
    %v758 = vsub.f32 %v400, %v757
    %v759 = vand.u32 %v758, 4294901760
    %v760 = vsub.f32 %v758, %v759
    %v761 = vand.u32 %v760, 4294901760
    %762 = vmatmul.mubr.f32.gmra.mxu0 %v761
    %v763 = vpop.f32.mrf.mxu0
    %v764 = vadd.f32 0.0, %v763
    %v765 = vpop.f32.mrf.mxu0
    %766 = vmatprep.mubr.f32.mxu0 0.0
    %v767 = vand.u32 %v403, 4294901760
    %v768 = vsub.f32 %v403, %v767
    %v769 = vand.u32 %v768, 4294901760
    %v770 = vsub.f32 %v768, %v769
    %v771 = vand.u32 %v770, 4294901760
    %772 = vmatmul.mubr.f32.gmra.mxu0 %v771
    %v773 = vpop.f32.mrf.mxu0
    %v774 = vadd.f32 0.0, %v773
    %v775 = vpop.f32.mrf.mxu0
    %776 = vmatprep.mubr.f32.mxu0 0.0
    %v777 = vand.u32 %v406, 4294901760
    %v778 = vsub.f32 %v406, %v777
    %v779 = vand.u32 %v778, 4294901760
    %v780 = vsub.f32 %v778, %v779
    %v781 = vand.u32 %v780, 4294901760
    %782 = vmatmul.mubr.f32.gmra.mxu0 %v781
    %v783 = vpop.f32.mrf.mxu0
    %v784 = vadd.f32 0.0, %v783
    %v785 = vpop.f32.mrf.mxu0
    %786 = vmatprep.mubr.f32.mxu0 0.0
    %v787 = vand.u32 %v409, 4294901760
    %v788 = vsub.f32 %v409, %v787
    %v789 = vand.u32 %v788, 4294901760
    %v790 = vsub.f32 %v788, %v789
    %v791 = vand.u32 %v790, 4294901760
    %792 = vmatmul.mubr.f32.gmra.mxu0 %v791
    %v793 = vpop.f32.mrf.mxu0
    %v794 = vadd.f32 0.0, %v793
    %v795 = vpop.f32.mrf.mxu0
    %796 = vmatprep.mubr.f32.mxu0 0.0
    %v797 = vand.u32 %v412, 4294901760
    %v798 = vsub.f32 %v412, %v797
    %v799 = vand.u32 %v798, 4294901760
    %v800 = vsub.f32 %v798, %v799
    %v801 = vand.u32 %v800, 4294901760
    %802 = vmatmul.mubr.f32.gmra.mxu0 %v801
    %v803 = vpop.f32.mrf.mxu0
    %v804 = vadd.f32 0.0, %v803
    %v805 = vpop.f32.mrf.mxu0
    %806 = vdwg.mxu0
    %807 = vmatprep.subr.mxu0 0.0
    %808 = vmatpush1.msra.mxu0 0.0
    %809 = vmatprep.subr.mxu0 0.0
    %810 = vmatpush1.msra.mxu0 0.0
    %811 = vmatprep.subr.mxu0 0.0
    %812 = vmatpush1.msra.mxu0 0.0
    %813 = vmatprep.subr.mxu0 0.0
    %814 = vmatpush1.msra.mxu0 0.0
    %815 = vmatprep.subr.mxu0 0.0
    %816 = vmatpush1.msra.mxu0 0.0
    %817 = vmatprep.subr.mxu0 0.0
    %818 = vmatpush1.msra.mxu0 0.0
    %819 = vmatprep.subr.mxu0 0.0
    %820 = vmatpush1.msra.mxu0 0.0
    %821 = vmatprep.subr.mxu0 0.0
    %822 = vmatpush1.msra.mxu0 0.0
    %823 = vmatprep.subr.mxu0 0.0
    %v824 = vand.u32 %v97, 4294901760
    %v825 = vsub.f32 %v97, %v824
    %v826 = vand.u32 %v825, 4294901760
    %v827 = vsub.f32 %v825, %v826
    %v828 = vand.u32 %v827, 4294901760
    %829 = vmatpush1.msra.mxu0 %v828
    %830 = vmatprep.subr.mxu0 0.0
    %v831 = vand.u32 %v96, 4294901760
    %v832 = vsub.f32 %v96, %v831
    %v833 = vand.u32 %v832, 4294901760
    %v834 = vsub.f32 %v832, %v833
    %v835 = vand.u32 %v834, 4294901760
    %836 = vmatpush1.msra.mxu0 %v835
    %837 = vmatprep.subr.mxu0 0.0
    %v838 = vand.u32 %v95, 4294901760
    %v839 = vsub.f32 %v95, %v838
    %v840 = vand.u32 %v839, 4294901760
    %v841 = vsub.f32 %v839, %v840
    %v842 = vand.u32 %v841, 4294901760
    %843 = vmatpush1.msra.mxu0 %v842
    %844 = vmatprep.subr.mxu0 0.0
    %v845 = vand.u32 %v94, 4294901760
    %v846 = vsub.f32 %v94, %v845
    %v847 = vand.u32 %v846, 4294901760
    %v848 = vsub.f32 %v846, %v847
    %v849 = vand.u32 %v848, 4294901760
    %850 = vmatpush1.msra.mxu0 %v849
    %851 = vmatprep.subr.mxu0 0.0
    %v852 = vand.u32 %v93, 4294901760
    %v853 = vsub.f32 %v93, %v852
    %v854 = vand.u32 %v853, 4294901760
    %v855 = vsub.f32 %v853, %v854
    %v856 = vand.u32 %v855, 4294901760
    %857 = vmatpush1.msra.mxu0 %v856
    %858 = vmatprep.subr.mxu0 0.0
    %v859 = vand.u32 %v92, 4294901760
    %v860 = vsub.f32 %v92, %v859
    %v861 = vand.u32 %v860, 4294901760
    %v862 = vsub.f32 %v860, %v861
    %v863 = vand.u32 %v862, 4294901760
    %864 = vmatpush1.msra.mxu0 %v863
    %865 = vmatprep.subr.mxu0 0.0
    %v866 = vand.u32 %v91, 4294901760
    %v867 = vsub.f32 %v91, %v866
    %v868 = vand.u32 %v867, 4294901760
    %v869 = vsub.f32 %v867, %v868
    %v870 = vand.u32 %v869, 4294901760
    %871 = vmatpush1.msra.mxu0 %v870
    %872 = vmatprep.subr.mxu0 0.0
    %v873 = vand.u32 %v90, 4294901760
    %v874 = vsub.f32 %v90, %v873
    %v875 = vand.u32 %v874, 4294901760
    %v876 = vsub.f32 %v874, %v875
    %v877 = vand.u32 %v876, 4294901760
    %878 = vmatpush1.msra.mxu0 %v877
    %879 = vmatprep.subr.mxu0 0.0
    %880 = vmatpush2.msra.mxu0 0.0
    %881 = vmatprep.subr.mxu0 0.0
    %882 = vmatpush2.msra.mxu0 0.0
    %883 = vmatprep.subr.mxu0 0.0
    %884 = vmatpush2.msra.mxu0 0.0
    %885 = vmatprep.subr.mxu0 0.0
    %886 = vmatpush2.msra.mxu0 0.0
    %887 = vmatprep.subr.mxu0 0.0
    %888 = vmatpush2.msra.mxu0 0.0
    %889 = vmatprep.subr.mxu0 0.0
    %890 = vmatpush2.msra.mxu0 0.0
    %891 = vmatprep.subr.mxu0 0.0
    %892 = vmatpush2.msra.mxu0 0.0
    %893 = vmatprep.subr.mxu0 0.0
    %894 = vmatpush2.msra.mxu0 0.0
    %895 = vmatprep.subr.mxu0 0.0
    %896 = vmatpush2.msra.mxu0 0.0
    %897 = vmatprep.subr.mxu0 0.0
    %898 = vmatpush2.msra.mxu0 0.0
    %899 = vmatprep.subr.mxu0 0.0
    %900 = vmatpush2.msra.mxu0 0.0
    %901 = vmatprep.subr.mxu0 0.0
    %902 = vmatpush2.msra.mxu0 0.0
    %903 = vmatprep.subr.mxu0 0.0
    %904 = vmatpush2.msra.mxu0 0.0
    %905 = vmatprep.subr.mxu0 0.0
    %906 = vmatpush2.msra.mxu0 0.0
    %907 = vmatprep.subr.mxu0 0.0
    %908 = vmatpush2.msra.mxu0 0.0
    %909 = vmatprep.subr.mxu0 0.0
    %910 = vmatpush2.msra.mxu0 0.0
    %911 = vmatprep.mubr.f32.mxu0 0.0
    %v912 = vand.u32 %v319, 4294901760
    %913 = vmatmul.mubr.f32.gmra.mxu0 %v912
    %v914 = vpop.f32.mrf.mxu0
    %v915 = vadd.f32 %v494, %v914
    %v916 = vpop.f32.mrf.mxu0
    %917 = vmatprep.mubr.f32.mxu0 0.0
    %v918 = vand.u32 %v322, 4294901760
    %919 = vmatmul.mubr.f32.gmra.mxu0 %v918
    %v920 = vpop.f32.mrf.mxu0
    %v921 = vadd.f32 %v504, %v920
    %v922 = vpop.f32.mrf.mxu0
    %923 = vmatprep.mubr.f32.mxu0 0.0
    %v924 = vand.u32 %v325, 4294901760
    %925 = vmatmul.mubr.f32.gmra.mxu0 %v924
    %v926 = vpop.f32.mrf.mxu0
    %v927 = vadd.f32 %v514, %v926
    %v928 = vpop.f32.mrf.mxu0
    %929 = vmatprep.mubr.f32.mxu0 0.0
    %v930 = vand.u32 %v328, 4294901760
    %931 = vmatmul.mubr.f32.gmra.mxu0 %v930
    %v932 = vpop.f32.mrf.mxu0
    %v933 = vadd.f32 %v524, %v932
    %v934 = vpop.f32.mrf.mxu0
    %935 = vmatprep.mubr.f32.mxu0 0.0
    %v936 = vand.u32 %v331, 4294901760
    %937 = vmatmul.mubr.f32.gmra.mxu0 %v936
    %v938 = vpop.f32.mrf.mxu0
    %v939 = vadd.f32 %v534, %v938
    %v940 = vpop.f32.mrf.mxu0
    %941 = vmatprep.mubr.f32.mxu0 0.0
    %v942 = vand.u32 %v334, 4294901760
    %943 = vmatmul.mubr.f32.gmra.mxu0 %v942
    %v944 = vpop.f32.mrf.mxu0
    %v945 = vadd.f32 %v544, %v944
    %v946 = vpop.f32.mrf.mxu0
    %947 = vmatprep.mubr.f32.mxu0 0.0
    %v948 = vand.u32 %v337, 4294901760
    %949 = vmatmul.mubr.f32.gmra.mxu0 %v948
    %v950 = vpop.f32.mrf.mxu0
    %v951 = vadd.f32 %v554, %v950
    %v952 = vpop.f32.mrf.mxu0
    %953 = vmatprep.mubr.f32.mxu0 0.0
    %v954 = vand.u32 %v340, 4294901760
    %955 = vmatmul.mubr.f32.gmra.mxu0 %v954
    %v956 = vpop.f32.mrf.mxu0
    %v957 = vadd.f32 %v564, %v956
    %v958 = vpop.f32.mrf.mxu0
    %959 = vmatprep.mubr.f32.mxu0 0.0
    %v960 = vand.u32 %v343, 4294901760
    %961 = vmatmul.mubr.f32.gmra.mxu0 %v960
    %v962 = vpop.f32.mrf.mxu0
    %v963 = vadd.f32 %v574, %v962
    %v964 = vpop.f32.mrf.mxu0
    %965 = vmatprep.mubr.f32.mxu0 0.0
    %v966 = vand.u32 %v346, 4294901760
    %967 = vmatmul.mubr.f32.gmra.mxu0 %v966
    %v968 = vpop.f32.mrf.mxu0
    %v969 = vadd.f32 %v584, %v968
    %v970 = vpop.f32.mrf.mxu0
    %971 = vmatprep.mubr.f32.mxu0 0.0
    %v972 = vand.u32 %v349, 4294901760
    %973 = vmatmul.mubr.f32.gmra.mxu0 %v972
    %v974 = vpop.f32.mrf.mxu0
    %v975 = vadd.f32 %v594, %v974
    %v976 = vpop.f32.mrf.mxu0
    %977 = vmatprep.mubr.f32.mxu0 0.0
    %v978 = vand.u32 %v352, 4294901760
    %979 = vmatmul.mubr.f32.gmra.mxu0 %v978
    %v980 = vpop.f32.mrf.mxu0
    %v981 = vadd.f32 %v604, %v980
    %v982 = vpop.f32.mrf.mxu0
    %983 = vmatprep.mubr.f32.mxu0 0.0
    %v984 = vand.u32 %v355, 4294901760
    %985 = vmatmul.mubr.f32.gmra.mxu0 %v984
    %v986 = vpop.f32.mrf.mxu0
    %v987 = vadd.f32 %v614, %v986
    %v988 = vpop.f32.mrf.mxu0
    %989 = vmatprep.mubr.f32.mxu0 0.0
    %v990 = vand.u32 %v358, 4294901760
    %991 = vmatmul.mubr.f32.gmra.mxu0 %v990
    %v992 = vpop.f32.mrf.mxu0
    %v993 = vadd.f32 %v624, %v992
    %v994 = vpop.f32.mrf.mxu0
    %995 = vmatprep.mubr.f32.mxu0 0.0
    %v996 = vand.u32 %v361, 4294901760
    %997 = vmatmul.mubr.f32.gmra.mxu0 %v996
    %v998 = vpop.f32.mrf.mxu0
    %v999 = vadd.f32 %v634, %v998
    %v1000 = vpop.f32.mrf.mxu0
    %1001 = vmatprep.mubr.f32.mxu0 0.0
    %v1002 = vand.u32 %v364, 4294901760
    %1003 = vmatmul.mubr.f32.gmra.mxu0 %v1002
    %v1004 = vpop.f32.mrf.mxu0
    %v1005 = vadd.f32 %v644, %v1004
    %v1006 = vpop.f32.mrf.mxu0
    %1007 = vmatprep.mubr.f32.mxu0 0.0
    %v1008 = vand.u32 %v367, 4294901760
    %1009 = vmatmul.mubr.f32.gmra.mxu0 %v1008
    %v1010 = vpop.f32.mrf.mxu0
    %v1011 = vadd.f32 %v654, %v1010
    %v1012 = vpop.f32.mrf.mxu0
    %1013 = vmatprep.mubr.f32.mxu0 0.0
    %v1014 = vand.u32 %v370, 4294901760
    %1015 = vmatmul.mubr.f32.gmra.mxu0 %v1014
    %v1016 = vpop.f32.mrf.mxu0
    %v1017 = vadd.f32 %v664, %v1016
    %v1018 = vpop.f32.mrf.mxu0
    %1019 = vmatprep.mubr.f32.mxu0 0.0
    %v1020 = vand.u32 %v373, 4294901760
    %1021 = vmatmul.mubr.f32.gmra.mxu0 %v1020
    %v1022 = vpop.f32.mrf.mxu0
    %v1023 = vadd.f32 %v674, %v1022
    %v1024 = vpop.f32.mrf.mxu0
    %1025 = vmatprep.mubr.f32.mxu0 0.0
    %v1026 = vand.u32 %v376, 4294901760
    %1027 = vmatmul.mubr.f32.gmra.mxu0 %v1026
    %v1028 = vpop.f32.mrf.mxu0
    %v1029 = vadd.f32 %v684, %v1028
    %v1030 = vpop.f32.mrf.mxu0
    %1031 = vmatprep.mubr.f32.mxu0 0.0
    %v1032 = vand.u32 %v379, 4294901760
    %1033 = vmatmul.mubr.f32.gmra.mxu0 %v1032
    %v1034 = vpop.f32.mrf.mxu0
    %v1035 = vadd.f32 %v694, %v1034
    %v1036 = vpop.f32.mrf.mxu0
    %1037 = vmatprep.mubr.f32.mxu0 0.0
    %v1038 = vand.u32 %v382, 4294901760
    %1039 = vmatmul.mubr.f32.gmra.mxu0 %v1038
    %v1040 = vpop.f32.mrf.mxu0
    %v1041 = vadd.f32 %v704, %v1040
    %v1042 = vpop.f32.mrf.mxu0
    %1043 = vmatprep.mubr.f32.mxu0 0.0
    %v1044 = vand.u32 %v385, 4294901760
    %1045 = vmatmul.mubr.f32.gmra.mxu0 %v1044
    %v1046 = vpop.f32.mrf.mxu0
    %v1047 = vadd.f32 %v714, %v1046
    %v1048 = vpop.f32.mrf.mxu0
    %1049 = vmatprep.mubr.f32.mxu0 0.0
    %v1050 = vand.u32 %v388, 4294901760
    %1051 = vmatmul.mubr.f32.gmra.mxu0 %v1050
    %v1052 = vpop.f32.mrf.mxu0
    %v1053 = vadd.f32 %v724, %v1052
    %v1054 = vpop.f32.mrf.mxu0
    %1055 = vmatprep.mubr.f32.mxu0 0.0
    %v1056 = vand.u32 %v391, 4294901760
    %1057 = vmatmul.mubr.f32.gmra.mxu0 %v1056
    %v1058 = vpop.f32.mrf.mxu0
    %v1059 = vadd.f32 %v734, %v1058
    %v1060 = vpop.f32.mrf.mxu0
    %1061 = vmatprep.mubr.f32.mxu0 0.0
    %v1062 = vand.u32 %v394, 4294901760
    %1063 = vmatmul.mubr.f32.gmra.mxu0 %v1062
    %v1064 = vpop.f32.mrf.mxu0
    %v1065 = vadd.f32 %v744, %v1064
    %v1066 = vpop.f32.mrf.mxu0
    %1067 = vmatprep.mubr.f32.mxu0 0.0
    %v1068 = vand.u32 %v397, 4294901760
    %1069 = vmatmul.mubr.f32.gmra.mxu0 %v1068
    %v1070 = vpop.f32.mrf.mxu0
    %v1071 = vadd.f32 %v754, %v1070
    %v1072 = vpop.f32.mrf.mxu0
    %1073 = vmatprep.mubr.f32.mxu0 0.0
    %v1074 = vand.u32 %v400, 4294901760
    %1075 = vmatmul.mubr.f32.gmra.mxu0 %v1074
    %v1076 = vpop.f32.mrf.mxu0
    %v1077 = vadd.f32 %v764, %v1076
    %v1078 = vpop.f32.mrf.mxu0
    %1079 = vmatprep.mubr.f32.mxu0 0.0
    %v1080 = vand.u32 %v403, 4294901760
    %1081 = vmatmul.mubr.f32.gmra.mxu0 %v1080
    %v1082 = vpop.f32.mrf.mxu0
    %v1083 = vadd.f32 %v774, %v1082
    %v1084 = vpop.f32.mrf.mxu0
    %1085 = vmatprep.mubr.f32.mxu0 0.0
    %v1086 = vand.u32 %v406, 4294901760
    %1087 = vmatmul.mubr.f32.gmra.mxu0 %v1086
    %v1088 = vpop.f32.mrf.mxu0
    %v1089 = vadd.f32 %v784, %v1088
    %v1090 = vpop.f32.mrf.mxu0
    %1091 = vmatprep.mubr.f32.mxu0 0.0
    %v1092 = vand.u32 %v409, 4294901760
    %1093 = vmatmul.mubr.f32.gmra.mxu0 %v1092
    %v1094 = vpop.f32.mrf.mxu0
    %v1095 = vadd.f32 %v794, %v1094
    %v1096 = vpop.f32.mrf.mxu0
    %1097 = vmatprep.mubr.f32.mxu0 0.0
    %v1098 = vand.u32 %v412, 4294901760
    %1099 = vmatmul.mubr.f32.gmra.mxu0 %v1098
    %v1100 = vpop.f32.mrf.mxu0
    %v1101 = vadd.f32 %v804, %v1100
    %v1102 = vpop.f32.mrf.mxu0
    %1103 = vdwg.mxu0
    %1104 = vmatprep.subr.mxu0 0.0
    %1105 = vmatpush1.msra.mxu0 0.0
    %1106 = vmatprep.subr.mxu0 0.0
    %1107 = vmatpush1.msra.mxu0 0.0
    %1108 = vmatprep.subr.mxu0 0.0
    %1109 = vmatpush1.msra.mxu0 0.0
    %1110 = vmatprep.subr.mxu0 0.0
    %1111 = vmatpush1.msra.mxu0 0.0
    %1112 = vmatprep.subr.mxu0 0.0
    %1113 = vmatpush1.msra.mxu0 0.0
    %1114 = vmatprep.subr.mxu0 0.0
    %1115 = vmatpush1.msra.mxu0 0.0
    %1116 = vmatprep.subr.mxu0 0.0
    %1117 = vmatpush1.msra.mxu0 0.0
    %1118 = vmatprep.subr.mxu0 0.0
    %1119 = vmatpush1.msra.mxu0 0.0
    %1120 = vmatprep.subr.mxu0 0.0
    %v1121 = vand.u32 %v97, 4294901760
    %v1122 = vsub.f32 %v97, %v1121
    %1123 = vmatpush1.msra.mxu0 %v1122
    %1124 = vmatprep.subr.mxu0 0.0
    %v1125 = vand.u32 %v96, 4294901760
    %v1126 = vsub.f32 %v96, %v1125
    %1127 = vmatpush1.msra.mxu0 %v1126
    %1128 = vmatprep.subr.mxu0 0.0
    %v1129 = vand.u32 %v95, 4294901760
    %v1130 = vsub.f32 %v95, %v1129
    %1131 = vmatpush1.msra.mxu0 %v1130
    %1132 = vmatprep.subr.mxu0 0.0
    %v1133 = vand.u32 %v94, 4294901760
    %v1134 = vsub.f32 %v94, %v1133
    %1135 = vmatpush1.msra.mxu0 %v1134
    %1136 = vmatprep.subr.mxu0 0.0
    %v1137 = vand.u32 %v93, 4294901760
    %v1138 = vsub.f32 %v93, %v1137
    %1139 = vmatpush1.msra.mxu0 %v1138
    %1140 = vmatprep.subr.mxu0 0.0
    %v1141 = vand.u32 %v92, 4294901760
    %v1142 = vsub.f32 %v92, %v1141
    %1143 = vmatpush1.msra.mxu0 %v1142
    %1144 = vmatprep.subr.mxu0 0.0
    %v1145 = vand.u32 %v91, 4294901760
    %v1146 = vsub.f32 %v91, %v1145
    %1147 = vmatpush1.msra.mxu0 %v1146
    %1148 = vmatprep.subr.mxu0 0.0
    %v1149 = vand.u32 %v90, 4294901760
    %v1150 = vsub.f32 %v90, %v1149
    %1151 = vmatpush1.msra.mxu0 %v1150
    %1152 = vmatprep.subr.mxu0 0.0
    %1153 = vmatpush2.msra.mxu0 0.0
    %1154 = vmatprep.subr.mxu0 0.0
    %1155 = vmatpush2.msra.mxu0 0.0
    %1156 = vmatprep.subr.mxu0 0.0
    %1157 = vmatpush2.msra.mxu0 0.0
    %1158 = vmatprep.subr.mxu0 0.0
    %1159 = vmatpush2.msra.mxu0 0.0
    %1160 = vmatprep.subr.mxu0 0.0
    %1161 = vmatpush2.msra.mxu0 0.0
    %1162 = vmatprep.subr.mxu0 0.0
    %1163 = vmatpush2.msra.mxu0 0.0
    %1164 = vmatprep.subr.mxu0 0.0
    %1165 = vmatpush2.msra.mxu0 0.0
    %1166 = vmatprep.subr.mxu0 0.0
    %1167 = vmatpush2.msra.mxu0 0.0
    %1168 = vmatprep.subr.mxu0 0.0
    %1169 = vmatpush2.msra.mxu0 0.0
    %1170 = vmatprep.subr.mxu0 0.0
    %1171 = vmatpush2.msra.mxu0 0.0
    %1172 = vmatprep.subr.mxu0 0.0
    %1173 = vmatpush2.msra.mxu0 0.0
    %1174 = vmatprep.subr.mxu0 0.0
    %1175 = vmatpush2.msra.mxu0 0.0
    %1176 = vmatprep.subr.mxu0 0.0
    %1177 = vmatpush2.msra.mxu0 0.0
    %1178 = vmatprep.subr.mxu0 0.0
    %1179 = vmatpush2.msra.mxu0 0.0
    %1180 = vmatprep.subr.mxu0 0.0
    %1181 = vmatpush2.msra.mxu0 0.0
    %1182 = vmatprep.subr.mxu0 0.0
    %1183 = vmatpush2.msra.mxu0 0.0
    %1184 = vmatprep.mubr.f32.mxu0 0.0
    %v1185 = vand.u32 %v319, 4294901760
    %v1186 = vsub.f32 %v319, %v1185
    %1187 = vmatmul.mubr.f32.gmra.mxu0 %v1186
    %v1188 = vpop.f32.mrf.mxu0
    %v1189 = vadd.f32 %v915, %v1188
    %v1190 = vpop.f32.mrf.mxu0
    %1191 = vmatprep.mubr.f32.mxu0 0.0
    %v1192 = vand.u32 %v322, 4294901760
    %v1193 = vsub.f32 %v322, %v1192
    %1194 = vmatmul.mubr.f32.gmra.mxu0 %v1193
    %v1195 = vpop.f32.mrf.mxu0
    %v1196 = vadd.f32 %v921, %v1195
    %v1197 = vpop.f32.mrf.mxu0
    %1198 = vmatprep.mubr.f32.mxu0 0.0
    %v1199 = vand.u32 %v325, 4294901760
    %v1200 = vsub.f32 %v325, %v1199
    %1201 = vmatmul.mubr.f32.gmra.mxu0 %v1200
    %v1202 = vpop.f32.mrf.mxu0
    %v1203 = vadd.f32 %v927, %v1202
    %v1204 = vpop.f32.mrf.mxu0
    %1205 = vmatprep.mubr.f32.mxu0 0.0
    %v1206 = vand.u32 %v328, 4294901760
    %v1207 = vsub.f32 %v328, %v1206
    %1208 = vmatmul.mubr.f32.gmra.mxu0 %v1207
    %v1209 = vpop.f32.mrf.mxu0
    %v1210 = vadd.f32 %v933, %v1209
    %v1211 = vpop.f32.mrf.mxu0
    %1212 = vmatprep.mubr.f32.mxu0 0.0
    %v1213 = vand.u32 %v331, 4294901760
    %v1214 = vsub.f32 %v331, %v1213
    %1215 = vmatmul.mubr.f32.gmra.mxu0 %v1214
    %v1216 = vpop.f32.mrf.mxu0
    %v1217 = vadd.f32 %v939, %v1216
    %v1218 = vpop.f32.mrf.mxu0
    %1219 = vmatprep.mubr.f32.mxu0 0.0
    %v1220 = vand.u32 %v334, 4294901760
    %v1221 = vsub.f32 %v334, %v1220
    %1222 = vmatmul.mubr.f32.gmra.mxu0 %v1221
    %v1223 = vpop.f32.mrf.mxu0
    %v1224 = vadd.f32 %v945, %v1223
    %v1225 = vpop.f32.mrf.mxu0
    %1226 = vmatprep.mubr.f32.mxu0 0.0
    %v1227 = vand.u32 %v337, 4294901760
    %v1228 = vsub.f32 %v337, %v1227
    %1229 = vmatmul.mubr.f32.gmra.mxu0 %v1228
    %v1230 = vpop.f32.mrf.mxu0
    %v1231 = vadd.f32 %v951, %v1230
    %v1232 = vpop.f32.mrf.mxu0
    %1233 = vmatprep.mubr.f32.mxu0 0.0
    %v1234 = vand.u32 %v340, 4294901760
    %v1235 = vsub.f32 %v340, %v1234
    %1236 = vmatmul.mubr.f32.gmra.mxu0 %v1235
    %v1237 = vpop.f32.mrf.mxu0
    %v1238 = vadd.f32 %v957, %v1237
    %v1239 = vpop.f32.mrf.mxu0
    %1240 = vmatprep.mubr.f32.mxu0 0.0
    %v1241 = vand.u32 %v343, 4294901760
    %v1242 = vsub.f32 %v343, %v1241
    %1243 = vmatmul.mubr.f32.gmra.mxu0 %v1242
    %v1244 = vpop.f32.mrf.mxu0
    %v1245 = vadd.f32 %v963, %v1244
    %v1246 = vpop.f32.mrf.mxu0
    %1247 = vmatprep.mubr.f32.mxu0 0.0
    %v1248 = vand.u32 %v346, 4294901760
    %v1249 = vsub.f32 %v346, %v1248
    %1250 = vmatmul.mubr.f32.gmra.mxu0 %v1249
    %v1251 = vpop.f32.mrf.mxu0
    %v1252 = vadd.f32 %v969, %v1251
    %v1253 = vpop.f32.mrf.mxu0
    %1254 = vmatprep.mubr.f32.mxu0 0.0
    %v1255 = vand.u32 %v349, 4294901760
    %v1256 = vsub.f32 %v349, %v1255
    %1257 = vmatmul.mubr.f32.gmra.mxu0 %v1256
    %v1258 = vpop.f32.mrf.mxu0
    %v1259 = vadd.f32 %v975, %v1258
    %v1260 = vpop.f32.mrf.mxu0
    %1261 = vmatprep.mubr.f32.mxu0 0.0
    %v1262 = vand.u32 %v352, 4294901760
    %v1263 = vsub.f32 %v352, %v1262
    %1264 = vmatmul.mubr.f32.gmra.mxu0 %v1263
    %v1265 = vpop.f32.mrf.mxu0
    %v1266 = vadd.f32 %v981, %v1265
    %v1267 = vpop.f32.mrf.mxu0
    %1268 = vmatprep.mubr.f32.mxu0 0.0
    %v1269 = vand.u32 %v355, 4294901760
    %v1270 = vsub.f32 %v355, %v1269
    %1271 = vmatmul.mubr.f32.gmra.mxu0 %v1270
    %v1272 = vpop.f32.mrf.mxu0
    %v1273 = vadd.f32 %v987, %v1272
    %v1274 = vpop.f32.mrf.mxu0
    %1275 = vmatprep.mubr.f32.mxu0 0.0
    %v1276 = vand.u32 %v358, 4294901760
    %v1277 = vsub.f32 %v358, %v1276
    %1278 = vmatmul.mubr.f32.gmra.mxu0 %v1277
    %v1279 = vpop.f32.mrf.mxu0
    %v1280 = vadd.f32 %v993, %v1279
    %v1281 = vpop.f32.mrf.mxu0
    %1282 = vmatprep.mubr.f32.mxu0 0.0
    %v1283 = vand.u32 %v361, 4294901760
    %v1284 = vsub.f32 %v361, %v1283
    %1285 = vmatmul.mubr.f32.gmra.mxu0 %v1284
    %v1286 = vpop.f32.mrf.mxu0
    %v1287 = vadd.f32 %v999, %v1286
    %v1288 = vpop.f32.mrf.mxu0
    %1289 = vmatprep.mubr.f32.mxu0 0.0
    %v1290 = vand.u32 %v364, 4294901760
    %v1291 = vsub.f32 %v364, %v1290
    %1292 = vmatmul.mubr.f32.gmra.mxu0 %v1291
    %v1293 = vpop.f32.mrf.mxu0
    %v1294 = vadd.f32 %v1005, %v1293
    %v1295 = vpop.f32.mrf.mxu0
    %1296 = vmatprep.mubr.f32.mxu0 0.0
    %v1297 = vand.u32 %v367, 4294901760
    %v1298 = vsub.f32 %v367, %v1297
    %1299 = vmatmul.mubr.f32.gmra.mxu0 %v1298
    %v1300 = vpop.f32.mrf.mxu0
    %v1301 = vadd.f32 %v1011, %v1300
    %v1302 = vpop.f32.mrf.mxu0
    %1303 = vmatprep.mubr.f32.mxu0 0.0
    %v1304 = vand.u32 %v370, 4294901760
    %v1305 = vsub.f32 %v370, %v1304
    %1306 = vmatmul.mubr.f32.gmra.mxu0 %v1305
    %v1307 = vpop.f32.mrf.mxu0
    %v1308 = vadd.f32 %v1017, %v1307
    %v1309 = vpop.f32.mrf.mxu0
    %1310 = vmatprep.mubr.f32.mxu0 0.0
    %v1311 = vand.u32 %v373, 4294901760
    %v1312 = vsub.f32 %v373, %v1311
    %1313 = vmatmul.mubr.f32.gmra.mxu0 %v1312
    %v1314 = vpop.f32.mrf.mxu0
    %v1315 = vadd.f32 %v1023, %v1314
    %v1316 = vpop.f32.mrf.mxu0
    %1317 = vmatprep.mubr.f32.mxu0 0.0
    %v1318 = vand.u32 %v376, 4294901760
    %v1319 = vsub.f32 %v376, %v1318
    %1320 = vmatmul.mubr.f32.gmra.mxu0 %v1319
    %v1321 = vpop.f32.mrf.mxu0
    %v1322 = vadd.f32 %v1029, %v1321
    %v1323 = vpop.f32.mrf.mxu0
    %1324 = vmatprep.mubr.f32.mxu0 0.0
    %v1325 = vand.u32 %v379, 4294901760
    %v1326 = vsub.f32 %v379, %v1325
    %1327 = vmatmul.mubr.f32.gmra.mxu0 %v1326
    %v1328 = vpop.f32.mrf.mxu0
    %v1329 = vadd.f32 %v1035, %v1328
    %v1330 = vpop.f32.mrf.mxu0
    %1331 = vmatprep.mubr.f32.mxu0 0.0
    %v1332 = vand.u32 %v382, 4294901760
    %v1333 = vsub.f32 %v382, %v1332
    %1334 = vmatmul.mubr.f32.gmra.mxu0 %v1333
    %v1335 = vpop.f32.mrf.mxu0
    %v1336 = vadd.f32 %v1041, %v1335
    %v1337 = vpop.f32.mrf.mxu0
    %1338 = vmatprep.mubr.f32.mxu0 0.0
    %v1339 = vand.u32 %v385, 4294901760
    %v1340 = vsub.f32 %v385, %v1339
    %1341 = vmatmul.mubr.f32.gmra.mxu0 %v1340
    %v1342 = vpop.f32.mrf.mxu0
    %v1343 = vadd.f32 %v1047, %v1342
    %v1344 = vpop.f32.mrf.mxu0
    %1345 = vmatprep.mubr.f32.mxu0 0.0
    %v1346 = vand.u32 %v388, 4294901760
    %v1347 = vsub.f32 %v388, %v1346
    %1348 = vmatmul.mubr.f32.gmra.mxu0 %v1347
    %v1349 = vpop.f32.mrf.mxu0
    %v1350 = vadd.f32 %v1053, %v1349
    %v1351 = vpop.f32.mrf.mxu0
    %1352 = vmatprep.mubr.f32.mxu0 0.0
    %v1353 = vand.u32 %v391, 4294901760
    %v1354 = vsub.f32 %v391, %v1353
    %1355 = vmatmul.mubr.f32.gmra.mxu0 %v1354
    %v1356 = vpop.f32.mrf.mxu0
    %v1357 = vadd.f32 %v1059, %v1356
    %v1358 = vpop.f32.mrf.mxu0
    %1359 = vmatprep.mubr.f32.mxu0 0.0
    %v1360 = vand.u32 %v394, 4294901760
    %v1361 = vsub.f32 %v394, %v1360
    %1362 = vmatmul.mubr.f32.gmra.mxu0 %v1361
    %v1363 = vpop.f32.mrf.mxu0
    %v1364 = vadd.f32 %v1065, %v1363
    %v1365 = vpop.f32.mrf.mxu0
    %1366 = vmatprep.mubr.f32.mxu0 0.0
    %v1367 = vand.u32 %v397, 4294901760
    %v1368 = vsub.f32 %v397, %v1367
    %1369 = vmatmul.mubr.f32.gmra.mxu0 %v1368
    %v1370 = vpop.f32.mrf.mxu0
    %v1371 = vadd.f32 %v1071, %v1370
    %v1372 = vpop.f32.mrf.mxu0
    %1373 = vmatprep.mubr.f32.mxu0 0.0
    %v1374 = vand.u32 %v400, 4294901760
    %v1375 = vsub.f32 %v400, %v1374
    %1376 = vmatmul.mubr.f32.gmra.mxu0 %v1375
    %v1377 = vpop.f32.mrf.mxu0
    %v1378 = vadd.f32 %v1077, %v1377
    %v1379 = vpop.f32.mrf.mxu0
    %1380 = vmatprep.mubr.f32.mxu0 0.0
    %v1381 = vand.u32 %v403, 4294901760
    %v1382 = vsub.f32 %v403, %v1381
    %1383 = vmatmul.mubr.f32.gmra.mxu0 %v1382
    %v1384 = vpop.f32.mrf.mxu0
    %v1385 = vadd.f32 %v1083, %v1384
    %v1386 = vpop.f32.mrf.mxu0
    %1387 = vmatprep.mubr.f32.mxu0 0.0
    %v1388 = vand.u32 %v406, 4294901760
    %v1389 = vsub.f32 %v406, %v1388
    %1390 = vmatmul.mubr.f32.gmra.mxu0 %v1389
    %v1391 = vpop.f32.mrf.mxu0
    %v1392 = vadd.f32 %v1089, %v1391
    %v1393 = vpop.f32.mrf.mxu0
    %1394 = vmatprep.mubr.f32.mxu0 0.0
    %v1395 = vand.u32 %v409, 4294901760
    %v1396 = vsub.f32 %v409, %v1395
    %1397 = vmatmul.mubr.f32.gmra.mxu0 %v1396
    %v1398 = vpop.f32.mrf.mxu0
    %v1399 = vadd.f32 %v1095, %v1398
    %v1400 = vpop.f32.mrf.mxu0
    %1401 = vmatprep.mubr.f32.mxu0 0.0
    %v1402 = vand.u32 %v412, 4294901760
    %v1403 = vsub.f32 %v412, %v1402
    %1404 = vmatmul.mubr.f32.gmra.mxu0 %v1403
    %v1405 = vpop.f32.mrf.mxu0
    %v1406 = vadd.f32 %v1101, %v1405
    %v1407 = vpop.f32.mrf.mxu0
    %1408 = vdwg.mxu0
    %1409 = vmatprep.subr.mxu0 0.0
    %1410 = vmatpush1.msra.mxu0 0.0
    %1411 = vmatprep.subr.mxu0 0.0
    %1412 = vmatpush1.msra.mxu0 0.0
    %1413 = vmatprep.subr.mxu0 0.0
    %1414 = vmatpush1.msra.mxu0 0.0
    %1415 = vmatprep.subr.mxu0 0.0
    %1416 = vmatpush1.msra.mxu0 0.0
    %1417 = vmatprep.subr.mxu0 0.0
    %1418 = vmatpush1.msra.mxu0 0.0
    %1419 = vmatprep.subr.mxu0 0.0
    %1420 = vmatpush1.msra.mxu0 0.0
    %1421 = vmatprep.subr.mxu0 0.0
    %1422 = vmatpush1.msra.mxu0 0.0
    %1423 = vmatprep.subr.mxu0 0.0
    %1424 = vmatpush1.msra.mxu0 0.0
    %1425 = vmatprep.subr.mxu0 0.0
    %v1426 = vand.u32 %v97, 4294901760
    %1427 = vmatpush1.msra.mxu0 %v1426
    %1428 = vmatprep.subr.mxu0 0.0
    %v1429 = vand.u32 %v96, 4294901760
    %1430 = vmatpush1.msra.mxu0 %v1429
    %1431 = vmatprep.subr.mxu0 0.0
    %v1432 = vand.u32 %v95, 4294901760
    %1433 = vmatpush1.msra.mxu0 %v1432
    %1434 = vmatprep.subr.mxu0 0.0
    %v1435 = vand.u32 %v94, 4294901760
    %1436 = vmatpush1.msra.mxu0 %v1435
    %1437 = vmatprep.subr.mxu0 0.0
    %v1438 = vand.u32 %v93, 4294901760
    %1439 = vmatpush1.msra.mxu0 %v1438
    %1440 = vmatprep.subr.mxu0 0.0
    %v1441 = vand.u32 %v92, 4294901760
    %1442 = vmatpush1.msra.mxu0 %v1441
    %1443 = vmatprep.subr.mxu0 0.0
    %v1444 = vand.u32 %v91, 4294901760
    %1445 = vmatpush1.msra.mxu0 %v1444
    %1446 = vmatprep.subr.mxu0 0.0
    %v1447 = vand.u32 %v90, 4294901760
    %1448 = vmatpush1.msra.mxu0 %v1447
    %1449 = vmatprep.subr.mxu0 0.0
    %1450 = vmatpush2.msra.mxu0 0.0
    %1451 = vmatprep.subr.mxu0 0.0
    %1452 = vmatpush2.msra.mxu0 0.0
    %1453 = vmatprep.subr.mxu0 0.0
    %1454 = vmatpush2.msra.mxu0 0.0
    %1455 = vmatprep.subr.mxu0 0.0
    %1456 = vmatpush2.msra.mxu0 0.0
    %1457 = vmatprep.subr.mxu0 0.0
    %1458 = vmatpush2.msra.mxu0 0.0
    %1459 = vmatprep.subr.mxu0 0.0
    %1460 = vmatpush2.msra.mxu0 0.0
    %1461 = vmatprep.subr.mxu0 0.0
    %1462 = vmatpush2.msra.mxu0 0.0
    %1463 = vmatprep.subr.mxu0 0.0
    %1464 = vmatpush2.msra.mxu0 0.0
    %1465 = vmatprep.subr.mxu0 0.0
    %1466 = vmatpush2.msra.mxu0 0.0
    %1467 = vmatprep.subr.mxu0 0.0
    %1468 = vmatpush2.msra.mxu0 0.0
    %1469 = vmatprep.subr.mxu0 0.0
    %1470 = vmatpush2.msra.mxu0 0.0
    %1471 = vmatprep.subr.mxu0 0.0
    %1472 = vmatpush2.msra.mxu0 0.0
    %1473 = vmatprep.subr.mxu0 0.0
    %1474 = vmatpush2.msra.mxu0 0.0
    %1475 = vmatprep.subr.mxu0 0.0
    %1476 = vmatpush2.msra.mxu0 0.0
    %1477 = vmatprep.subr.mxu0 0.0
    %1478 = vmatpush2.msra.mxu0 0.0
    %1479 = vmatprep.subr.mxu0 0.0
    %1480 = vmatpush2.msra.mxu0 0.0
    %1481 = vmatprep.mubr.f32.mxu0 0.0
    %v1482 = vand.u32 %v319, 4294901760
    %v1483 = vsub.f32 %v319, %v1482
    %v1484 = vand.u32 %v1483, 4294901760
    %1485 = vmatmul.mubr.f32.gmra.mxu0 %v1484
    %v1486 = vpop.f32.mrf.mxu0
    %v1487 = vadd.f32 %v1189, %v1486
    %v1488 = vpop.f32.mrf.mxu0
    %1489 = vmatprep.mubr.f32.mxu0 0.0
    %v1490 = vand.u32 %v322, 4294901760
    %v1491 = vsub.f32 %v322, %v1490
    %v1492 = vand.u32 %v1491, 4294901760
    %1493 = vmatmul.mubr.f32.gmra.mxu0 %v1492
    %v1494 = vpop.f32.mrf.mxu0
    %v1495 = vadd.f32 %v1196, %v1494
    %v1496 = vpop.f32.mrf.mxu0
    %1497 = vmatprep.mubr.f32.mxu0 0.0
    %v1498 = vand.u32 %v325, 4294901760
    %v1499 = vsub.f32 %v325, %v1498
    %v1500 = vand.u32 %v1499, 4294901760
    %1501 = vmatmul.mubr.f32.gmra.mxu0 %v1500
    %v1502 = vpop.f32.mrf.mxu0
    %v1503 = vadd.f32 %v1203, %v1502
    %v1504 = vpop.f32.mrf.mxu0
    %1505 = vmatprep.mubr.f32.mxu0 0.0
    %v1506 = vand.u32 %v328, 4294901760
    %v1507 = vsub.f32 %v328, %v1506
    %v1508 = vand.u32 %v1507, 4294901760
    %1509 = vmatmul.mubr.f32.gmra.mxu0 %v1508
    %v1510 = vpop.f32.mrf.mxu0
    %v1511 = vadd.f32 %v1210, %v1510
    %v1512 = vpop.f32.mrf.mxu0
    %1513 = vmatprep.mubr.f32.mxu0 0.0
    %v1514 = vand.u32 %v331, 4294901760
    %v1515 = vsub.f32 %v331, %v1514
    %v1516 = vand.u32 %v1515, 4294901760
    %1517 = vmatmul.mubr.f32.gmra.mxu0 %v1516
    %v1518 = vpop.f32.mrf.mxu0
    %v1519 = vadd.f32 %v1217, %v1518
    %v1520 = vpop.f32.mrf.mxu0
    %1521 = vmatprep.mubr.f32.mxu0 0.0
    %v1522 = vand.u32 %v334, 4294901760
    %v1523 = vsub.f32 %v334, %v1522
    %v1524 = vand.u32 %v1523, 4294901760
    %1525 = vmatmul.mubr.f32.gmra.mxu0 %v1524
    %v1526 = vpop.f32.mrf.mxu0
    %v1527 = vadd.f32 %v1224, %v1526
    %v1528 = vpop.f32.mrf.mxu0
    %1529 = vmatprep.mubr.f32.mxu0 0.0
    %v1530 = vand.u32 %v337, 4294901760
    %v1531 = vsub.f32 %v337, %v1530
    %v1532 = vand.u32 %v1531, 4294901760
    %1533 = vmatmul.mubr.f32.gmra.mxu0 %v1532
    %v1534 = vpop.f32.mrf.mxu0
    %v1535 = vadd.f32 %v1231, %v1534
    %v1536 = vpop.f32.mrf.mxu0
    %1537 = vmatprep.mubr.f32.mxu0 0.0
    %v1538 = vand.u32 %v340, 4294901760
    %v1539 = vsub.f32 %v340, %v1538
    %v1540 = vand.u32 %v1539, 4294901760
    %1541 = vmatmul.mubr.f32.gmra.mxu0 %v1540
    %v1542 = vpop.f32.mrf.mxu0
    %v1543 = vadd.f32 %v1238, %v1542
    %v1544 = vpop.f32.mrf.mxu0
    %1545 = vmatprep.mubr.f32.mxu0 0.0
    %v1546 = vand.u32 %v343, 4294901760
    %v1547 = vsub.f32 %v343, %v1546
    %v1548 = vand.u32 %v1547, 4294901760
    %1549 = vmatmul.mubr.f32.gmra.mxu0 %v1548
    %v1550 = vpop.f32.mrf.mxu0
    %v1551 = vadd.f32 %v1245, %v1550
    %v1552 = vpop.f32.mrf.mxu0
    %1553 = vmatprep.mubr.f32.mxu0 0.0
    %v1554 = vand.u32 %v346, 4294901760
    %v1555 = vsub.f32 %v346, %v1554
    %v1556 = vand.u32 %v1555, 4294901760
    %1557 = vmatmul.mubr.f32.gmra.mxu0 %v1556
    %v1558 = vpop.f32.mrf.mxu0
    %v1559 = vadd.f32 %v1252, %v1558
    %v1560 = vpop.f32.mrf.mxu0
    %1561 = vmatprep.mubr.f32.mxu0 0.0
    %v1562 = vand.u32 %v349, 4294901760
    %v1563 = vsub.f32 %v349, %v1562
    %v1564 = vand.u32 %v1563, 4294901760
    %1565 = vmatmul.mubr.f32.gmra.mxu0 %v1564
    %v1566 = vpop.f32.mrf.mxu0
    %v1567 = vadd.f32 %v1259, %v1566
    %v1568 = vpop.f32.mrf.mxu0
    %1569 = vmatprep.mubr.f32.mxu0 0.0
    %v1570 = vand.u32 %v352, 4294901760
    %v1571 = vsub.f32 %v352, %v1570
    %v1572 = vand.u32 %v1571, 4294901760
    %1573 = vmatmul.mubr.f32.gmra.mxu0 %v1572
    %v1574 = vpop.f32.mrf.mxu0
    %v1575 = vadd.f32 %v1266, %v1574
    %v1576 = vpop.f32.mrf.mxu0
    %1577 = vmatprep.mubr.f32.mxu0 0.0
    %v1578 = vand.u32 %v355, 4294901760
    %v1579 = vsub.f32 %v355, %v1578
    %v1580 = vand.u32 %v1579, 4294901760
    %1581 = vmatmul.mubr.f32.gmra.mxu0 %v1580
    %v1582 = vpop.f32.mrf.mxu0
    %v1583 = vadd.f32 %v1273, %v1582
    %v1584 = vpop.f32.mrf.mxu0
    %1585 = vmatprep.mubr.f32.mxu0 0.0
    %v1586 = vand.u32 %v358, 4294901760
    %v1587 = vsub.f32 %v358, %v1586
    %v1588 = vand.u32 %v1587, 4294901760
    %1589 = vmatmul.mubr.f32.gmra.mxu0 %v1588
    %v1590 = vpop.f32.mrf.mxu0
    %v1591 = vadd.f32 %v1280, %v1590
    %v1592 = vpop.f32.mrf.mxu0
    %1593 = vmatprep.mubr.f32.mxu0 0.0
    %v1594 = vand.u32 %v361, 4294901760
    %v1595 = vsub.f32 %v361, %v1594
    %v1596 = vand.u32 %v1595, 4294901760
    %1597 = vmatmul.mubr.f32.gmra.mxu0 %v1596
    %v1598 = vpop.f32.mrf.mxu0
    %v1599 = vadd.f32 %v1287, %v1598
    %v1600 = vpop.f32.mrf.mxu0
    %1601 = vmatprep.mubr.f32.mxu0 0.0
    %v1602 = vand.u32 %v364, 4294901760
    %v1603 = vsub.f32 %v364, %v1602
    %v1604 = vand.u32 %v1603, 4294901760
    %1605 = vmatmul.mubr.f32.gmra.mxu0 %v1604
    %v1606 = vpop.f32.mrf.mxu0
    %v1607 = vadd.f32 %v1294, %v1606
    %v1608 = vpop.f32.mrf.mxu0
    %1609 = vmatprep.mubr.f32.mxu0 0.0
    %v1610 = vand.u32 %v367, 4294901760
    %v1611 = vsub.f32 %v367, %v1610
    %v1612 = vand.u32 %v1611, 4294901760
    %1613 = vmatmul.mubr.f32.gmra.mxu0 %v1612
    %v1614 = vpop.f32.mrf.mxu0
    %v1615 = vadd.f32 %v1301, %v1614
    %v1616 = vpop.f32.mrf.mxu0
    %1617 = vmatprep.mubr.f32.mxu0 0.0
    %v1618 = vand.u32 %v370, 4294901760
    %v1619 = vsub.f32 %v370, %v1618
    %v1620 = vand.u32 %v1619, 4294901760
    %1621 = vmatmul.mubr.f32.gmra.mxu0 %v1620
    %v1622 = vpop.f32.mrf.mxu0
    %v1623 = vadd.f32 %v1308, %v1622
    %v1624 = vpop.f32.mrf.mxu0
    %1625 = vmatprep.mubr.f32.mxu0 0.0
    %v1626 = vand.u32 %v373, 4294901760
    %v1627 = vsub.f32 %v373, %v1626
    %v1628 = vand.u32 %v1627, 4294901760
    %1629 = vmatmul.mubr.f32.gmra.mxu0 %v1628
    %v1630 = vpop.f32.mrf.mxu0
    %v1631 = vadd.f32 %v1315, %v1630
    %v1632 = vpop.f32.mrf.mxu0
    %1633 = vmatprep.mubr.f32.mxu0 0.0
    %v1634 = vand.u32 %v376, 4294901760
    %v1635 = vsub.f32 %v376, %v1634
    %v1636 = vand.u32 %v1635, 4294901760
    %1637 = vmatmul.mubr.f32.gmra.mxu0 %v1636
    %v1638 = vpop.f32.mrf.mxu0
    %v1639 = vadd.f32 %v1322, %v1638
    %v1640 = vpop.f32.mrf.mxu0
    %1641 = vmatprep.mubr.f32.mxu0 0.0
    %v1642 = vand.u32 %v379, 4294901760
    %v1643 = vsub.f32 %v379, %v1642
    %v1644 = vand.u32 %v1643, 4294901760
    %1645 = vmatmul.mubr.f32.gmra.mxu0 %v1644
    %v1646 = vpop.f32.mrf.mxu0
    %v1647 = vadd.f32 %v1329, %v1646
    %v1648 = vpop.f32.mrf.mxu0
    %1649 = vmatprep.mubr.f32.mxu0 0.0
    %v1650 = vand.u32 %v382, 4294901760
    %v1651 = vsub.f32 %v382, %v1650
    %v1652 = vand.u32 %v1651, 4294901760
    %1653 = vmatmul.mubr.f32.gmra.mxu0 %v1652
    %v1654 = vpop.f32.mrf.mxu0
    %v1655 = vadd.f32 %v1336, %v1654
    %v1656 = vpop.f32.mrf.mxu0
    %1657 = vmatprep.mubr.f32.mxu0 0.0
    %v1658 = vand.u32 %v385, 4294901760
    %v1659 = vsub.f32 %v385, %v1658
    %v1660 = vand.u32 %v1659, 4294901760
    %1661 = vmatmul.mubr.f32.gmra.mxu0 %v1660
    %v1662 = vpop.f32.mrf.mxu0
    %v1663 = vadd.f32 %v1343, %v1662
    %v1664 = vpop.f32.mrf.mxu0
    %1665 = vmatprep.mubr.f32.mxu0 0.0
    %v1666 = vand.u32 %v388, 4294901760
    %v1667 = vsub.f32 %v388, %v1666
    %v1668 = vand.u32 %v1667, 4294901760
    %1669 = vmatmul.mubr.f32.gmra.mxu0 %v1668
    %v1670 = vpop.f32.mrf.mxu0
    %v1671 = vadd.f32 %v1350, %v1670
    %v1672 = vpop.f32.mrf.mxu0
    %1673 = vmatprep.mubr.f32.mxu0 0.0
    %v1674 = vand.u32 %v391, 4294901760
    %v1675 = vsub.f32 %v391, %v1674
    %v1676 = vand.u32 %v1675, 4294901760
    %1677 = vmatmul.mubr.f32.gmra.mxu0 %v1676
    %v1678 = vpop.f32.mrf.mxu0
    %v1679 = vadd.f32 %v1357, %v1678
    %v1680 = vpop.f32.mrf.mxu0
    %1681 = vmatprep.mubr.f32.mxu0 0.0
    %v1682 = vand.u32 %v394, 4294901760
    %v1683 = vsub.f32 %v394, %v1682
    %v1684 = vand.u32 %v1683, 4294901760
    %1685 = vmatmul.mubr.f32.gmra.mxu0 %v1684
    %v1686 = vpop.f32.mrf.mxu0
    %v1687 = vadd.f32 %v1364, %v1686
    %v1688 = vpop.f32.mrf.mxu0
    %1689 = vmatprep.mubr.f32.mxu0 0.0
    %v1690 = vand.u32 %v397, 4294901760
    %v1691 = vsub.f32 %v397, %v1690
    %v1692 = vand.u32 %v1691, 4294901760
    %1693 = vmatmul.mubr.f32.gmra.mxu0 %v1692
    %v1694 = vpop.f32.mrf.mxu0
    %v1695 = vadd.f32 %v1371, %v1694
    %v1696 = vpop.f32.mrf.mxu0
    %1697 = vmatprep.mubr.f32.mxu0 0.0
    %v1698 = vand.u32 %v400, 4294901760
    %v1699 = vsub.f32 %v400, %v1698
    %v1700 = vand.u32 %v1699, 4294901760
    %1701 = vmatmul.mubr.f32.gmra.mxu0 %v1700
    %v1702 = vpop.f32.mrf.mxu0
    %v1703 = vadd.f32 %v1378, %v1702
    %v1704 = vpop.f32.mrf.mxu0
    %1705 = vmatprep.mubr.f32.mxu0 0.0
    %v1706 = vand.u32 %v403, 4294901760
    %v1707 = vsub.f32 %v403, %v1706
    %v1708 = vand.u32 %v1707, 4294901760
    %1709 = vmatmul.mubr.f32.gmra.mxu0 %v1708
    %v1710 = vpop.f32.mrf.mxu0
    %v1711 = vadd.f32 %v1385, %v1710
    %v1712 = vpop.f32.mrf.mxu0
    %1713 = vmatprep.mubr.f32.mxu0 0.0
    %v1714 = vand.u32 %v406, 4294901760
    %v1715 = vsub.f32 %v406, %v1714
    %v1716 = vand.u32 %v1715, 4294901760
    %1717 = vmatmul.mubr.f32.gmra.mxu0 %v1716
    %v1718 = vpop.f32.mrf.mxu0
    %v1719 = vadd.f32 %v1392, %v1718
    %v1720 = vpop.f32.mrf.mxu0
    %1721 = vmatprep.mubr.f32.mxu0 0.0
    %v1722 = vand.u32 %v409, 4294901760
    %v1723 = vsub.f32 %v409, %v1722
    %v1724 = vand.u32 %v1723, 4294901760
    %1725 = vmatmul.mubr.f32.gmra.mxu0 %v1724
    %v1726 = vpop.f32.mrf.mxu0
    %v1727 = vadd.f32 %v1399, %v1726
    %v1728 = vpop.f32.mrf.mxu0
    %1729 = vmatprep.mubr.f32.mxu0 0.0
    %v1730 = vand.u32 %v412, 4294901760
    %v1731 = vsub.f32 %v412, %v1730
    %v1732 = vand.u32 %v1731, 4294901760
    %1733 = vmatmul.mubr.f32.gmra.mxu0 %v1732
    %v1734 = vpop.f32.mrf.mxu0
    %v1735 = vadd.f32 %v1406, %v1734
    %v1736 = vpop.f32.mrf.mxu0
    %1737 = vdwg.mxu0
    %1738 = vmatprep.subr.mxu0 0.0
    %1739 = vmatpush1.msra.mxu0 0.0
    %1740 = vmatprep.subr.mxu0 0.0
    %1741 = vmatpush1.msra.mxu0 0.0
    %1742 = vmatprep.subr.mxu0 0.0
    %1743 = vmatpush1.msra.mxu0 0.0
    %1744 = vmatprep.subr.mxu0 0.0
    %1745 = vmatpush1.msra.mxu0 0.0
    %1746 = vmatprep.subr.mxu0 0.0
    %1747 = vmatpush1.msra.mxu0 0.0
    %1748 = vmatprep.subr.mxu0 0.0
    %1749 = vmatpush1.msra.mxu0 0.0
    %1750 = vmatprep.subr.mxu0 0.0
    %1751 = vmatpush1.msra.mxu0 0.0
    %1752 = vmatprep.subr.mxu0 0.0
    %1753 = vmatpush1.msra.mxu0 0.0
    %1754 = vmatprep.subr.mxu0 0.0
    %v1755 = vand.u32 %v97, 4294901760
    %v1756 = vsub.f32 %v97, %v1755
    %v1757 = vand.u32 %v1756, 4294901760
    %1758 = vmatpush1.msra.mxu0 %v1757
    %1759 = vmatprep.subr.mxu0 0.0
    %v1760 = vand.u32 %v96, 4294901760
    %v1761 = vsub.f32 %v96, %v1760
    %v1762 = vand.u32 %v1761, 4294901760
    %1763 = vmatpush1.msra.mxu0 %v1762
    %1764 = vmatprep.subr.mxu0 0.0
    %v1765 = vand.u32 %v95, 4294901760
    %v1766 = vsub.f32 %v95, %v1765
    %v1767 = vand.u32 %v1766, 4294901760
    %1768 = vmatpush1.msra.mxu0 %v1767
    %1769 = vmatprep.subr.mxu0 0.0
    %v1770 = vand.u32 %v94, 4294901760
    %v1771 = vsub.f32 %v94, %v1770
    %v1772 = vand.u32 %v1771, 4294901760
    %1773 = vmatpush1.msra.mxu0 %v1772
    %1774 = vmatprep.subr.mxu0 0.0
    %v1775 = vand.u32 %v93, 4294901760
    %v1776 = vsub.f32 %v93, %v1775
    %v1777 = vand.u32 %v1776, 4294901760
    %1778 = vmatpush1.msra.mxu0 %v1777
    %1779 = vmatprep.subr.mxu0 0.0
    %v1780 = vand.u32 %v92, 4294901760
    %v1781 = vsub.f32 %v92, %v1780
    %v1782 = vand.u32 %v1781, 4294901760
    %1783 = vmatpush1.msra.mxu0 %v1782
    %1784 = vmatprep.subr.mxu0 0.0
    %v1785 = vand.u32 %v91, 4294901760
    %v1786 = vsub.f32 %v91, %v1785
    %v1787 = vand.u32 %v1786, 4294901760
    %1788 = vmatpush1.msra.mxu0 %v1787
    %1789 = vmatprep.subr.mxu0 0.0
    %v1790 = vand.u32 %v90, 4294901760
    %v1791 = vsub.f32 %v90, %v1790
    %v1792 = vand.u32 %v1791, 4294901760
    %1793 = vmatpush1.msra.mxu0 %v1792
    %1794 = vmatprep.subr.mxu0 0.0
    %1795 = vmatpush2.msra.mxu0 0.0
    %1796 = vmatprep.subr.mxu0 0.0
    %1797 = vmatpush2.msra.mxu0 0.0
    %1798 = vmatprep.subr.mxu0 0.0
    %1799 = vmatpush2.msra.mxu0 0.0
    %1800 = vmatprep.subr.mxu0 0.0
    %1801 = vmatpush2.msra.mxu0 0.0
    %1802 = vmatprep.subr.mxu0 0.0
    %1803 = vmatpush2.msra.mxu0 0.0
    %1804 = vmatprep.subr.mxu0 0.0
    %1805 = vmatpush2.msra.mxu0 0.0
    %1806 = vmatprep.subr.mxu0 0.0
    %1807 = vmatpush2.msra.mxu0 0.0
    %1808 = vmatprep.subr.mxu0 0.0
    %1809 = vmatpush2.msra.mxu0 0.0
    %1810 = vmatprep.subr.mxu0 0.0
    %1811 = vmatpush2.msra.mxu0 0.0
    %1812 = vmatprep.subr.mxu0 0.0
    %1813 = vmatpush2.msra.mxu0 0.0
    %1814 = vmatprep.subr.mxu0 0.0
    %1815 = vmatpush2.msra.mxu0 0.0
    %1816 = vmatprep.subr.mxu0 0.0
    %1817 = vmatpush2.msra.mxu0 0.0
    %1818 = vmatprep.subr.mxu0 0.0
    %1819 = vmatpush2.msra.mxu0 0.0
    %1820 = vmatprep.subr.mxu0 0.0
    %1821 = vmatpush2.msra.mxu0 0.0
    %1822 = vmatprep.subr.mxu0 0.0
    %1823 = vmatpush2.msra.mxu0 0.0
    %1824 = vmatprep.subr.mxu0 0.0
    %1825 = vmatpush2.msra.mxu0 0.0
    %1826 = vmatprep.mubr.f32.mxu0 0.0
    %v1827 = vand.u32 %v319, 4294901760
    %1828 = vmatmul.mubr.f32.gmra.mxu0 %v1827
    %v1829 = vpop.f32.mrf.mxu0
    %v1830 = vadd.f32 %v1487, %v1829
    %v1831 = vpop.f32.mrf.mxu0
    %1832 = vmatprep.mubr.f32.mxu0 0.0
    %v1833 = vand.u32 %v322, 4294901760
    %1834 = vmatmul.mubr.f32.gmra.mxu0 %v1833
    %v1835 = vpop.f32.mrf.mxu0
    %v1836 = vadd.f32 %v1495, %v1835
    %v1837 = vpop.f32.mrf.mxu0
    %1838 = vmatprep.mubr.f32.mxu0 0.0
    %v1839 = vand.u32 %v325, 4294901760
    %1840 = vmatmul.mubr.f32.gmra.mxu0 %v1839
    %v1841 = vpop.f32.mrf.mxu0
    %v1842 = vadd.f32 %v1503, %v1841
    %v1843 = vpop.f32.mrf.mxu0
    %1844 = vmatprep.mubr.f32.mxu0 0.0
    %v1845 = vand.u32 %v328, 4294901760
    %1846 = vmatmul.mubr.f32.gmra.mxu0 %v1845
    %v1847 = vpop.f32.mrf.mxu0
    %v1848 = vadd.f32 %v1511, %v1847
    %v1849 = vpop.f32.mrf.mxu0
    %1850 = vmatprep.mubr.f32.mxu0 0.0
    %v1851 = vand.u32 %v331, 4294901760
    %1852 = vmatmul.mubr.f32.gmra.mxu0 %v1851
    %v1853 = vpop.f32.mrf.mxu0
    %v1854 = vadd.f32 %v1519, %v1853
    %v1855 = vpop.f32.mrf.mxu0
    %1856 = vmatprep.mubr.f32.mxu0 0.0
    %v1857 = vand.u32 %v334, 4294901760
    %1858 = vmatmul.mubr.f32.gmra.mxu0 %v1857
    %v1859 = vpop.f32.mrf.mxu0
    %v1860 = vadd.f32 %v1527, %v1859
    %v1861 = vpop.f32.mrf.mxu0
    %1862 = vmatprep.mubr.f32.mxu0 0.0
    %v1863 = vand.u32 %v337, 4294901760
    %1864 = vmatmul.mubr.f32.gmra.mxu0 %v1863
    %v1865 = vpop.f32.mrf.mxu0
    %v1866 = vadd.f32 %v1535, %v1865
    %v1867 = vpop.f32.mrf.mxu0
    %1868 = vmatprep.mubr.f32.mxu0 0.0
    %v1869 = vand.u32 %v340, 4294901760
    %1870 = vmatmul.mubr.f32.gmra.mxu0 %v1869
    %v1871 = vpop.f32.mrf.mxu0
    %v1872 = vadd.f32 %v1543, %v1871
    %v1873 = vpop.f32.mrf.mxu0
    %1874 = vmatprep.mubr.f32.mxu0 0.0
    %v1875 = vand.u32 %v343, 4294901760
    %1876 = vmatmul.mubr.f32.gmra.mxu0 %v1875
    %v1877 = vpop.f32.mrf.mxu0
    %v1878 = vadd.f32 %v1551, %v1877
    %v1879 = vpop.f32.mrf.mxu0
    %1880 = vmatprep.mubr.f32.mxu0 0.0
    %v1881 = vand.u32 %v346, 4294901760
    %1882 = vmatmul.mubr.f32.gmra.mxu0 %v1881
    %v1883 = vpop.f32.mrf.mxu0
    %v1884 = vadd.f32 %v1559, %v1883
    %v1885 = vpop.f32.mrf.mxu0
    %1886 = vmatprep.mubr.f32.mxu0 0.0
    %v1887 = vand.u32 %v349, 4294901760
    %1888 = vmatmul.mubr.f32.gmra.mxu0 %v1887
    %v1889 = vpop.f32.mrf.mxu0
    %v1890 = vadd.f32 %v1567, %v1889
    %v1891 = vpop.f32.mrf.mxu0
    %1892 = vmatprep.mubr.f32.mxu0 0.0
    %v1893 = vand.u32 %v352, 4294901760
    %1894 = vmatmul.mubr.f32.gmra.mxu0 %v1893
    %v1895 = vpop.f32.mrf.mxu0
    %v1896 = vadd.f32 %v1575, %v1895
    %v1897 = vpop.f32.mrf.mxu0
    %1898 = vmatprep.mubr.f32.mxu0 0.0
    %v1899 = vand.u32 %v355, 4294901760
    %1900 = vmatmul.mubr.f32.gmra.mxu0 %v1899
    %v1901 = vpop.f32.mrf.mxu0
    %v1902 = vadd.f32 %v1583, %v1901
    %v1903 = vpop.f32.mrf.mxu0
    %1904 = vmatprep.mubr.f32.mxu0 0.0
    %v1905 = vand.u32 %v358, 4294901760
    %1906 = vmatmul.mubr.f32.gmra.mxu0 %v1905
    %v1907 = vpop.f32.mrf.mxu0
    %v1908 = vadd.f32 %v1591, %v1907
    %v1909 = vpop.f32.mrf.mxu0
    %1910 = vmatprep.mubr.f32.mxu0 0.0
    %v1911 = vand.u32 %v361, 4294901760
    %1912 = vmatmul.mubr.f32.gmra.mxu0 %v1911
    %v1913 = vpop.f32.mrf.mxu0
    %v1914 = vadd.f32 %v1599, %v1913
    %v1915 = vpop.f32.mrf.mxu0
    %1916 = vmatprep.mubr.f32.mxu0 0.0
    %v1917 = vand.u32 %v364, 4294901760
    %1918 = vmatmul.mubr.f32.gmra.mxu0 %v1917
    %v1919 = vpop.f32.mrf.mxu0
    %v1920 = vadd.f32 %v1607, %v1919
    %v1921 = vpop.f32.mrf.mxu0
    %1922 = vmatprep.mubr.f32.mxu0 0.0
    %v1923 = vand.u32 %v367, 4294901760
    %1924 = vmatmul.mubr.f32.gmra.mxu0 %v1923
    %v1925 = vpop.f32.mrf.mxu0
    %v1926 = vadd.f32 %v1615, %v1925
    %v1927 = vpop.f32.mrf.mxu0
    %1928 = vmatprep.mubr.f32.mxu0 0.0
    %v1929 = vand.u32 %v370, 4294901760
    %1930 = vmatmul.mubr.f32.gmra.mxu0 %v1929
    %v1931 = vpop.f32.mrf.mxu0
    %v1932 = vadd.f32 %v1623, %v1931
    %v1933 = vpop.f32.mrf.mxu0
    %1934 = vmatprep.mubr.f32.mxu0 0.0
    %v1935 = vand.u32 %v373, 4294901760
    %1936 = vmatmul.mubr.f32.gmra.mxu0 %v1935
    %v1937 = vpop.f32.mrf.mxu0
    %v1938 = vadd.f32 %v1631, %v1937
    %v1939 = vpop.f32.mrf.mxu0
    %1940 = vmatprep.mubr.f32.mxu0 0.0
    %v1941 = vand.u32 %v376, 4294901760
    %1942 = vmatmul.mubr.f32.gmra.mxu0 %v1941
    %v1943 = vpop.f32.mrf.mxu0
    %v1944 = vadd.f32 %v1639, %v1943
    %v1945 = vpop.f32.mrf.mxu0
    %1946 = vmatprep.mubr.f32.mxu0 0.0
    %v1947 = vand.u32 %v379, 4294901760
    %1948 = vmatmul.mubr.f32.gmra.mxu0 %v1947
    %v1949 = vpop.f32.mrf.mxu0
    %v1950 = vadd.f32 %v1647, %v1949
    %v1951 = vpop.f32.mrf.mxu0
    %1952 = vmatprep.mubr.f32.mxu0 0.0
    %v1953 = vand.u32 %v382, 4294901760
    %1954 = vmatmul.mubr.f32.gmra.mxu0 %v1953
    %v1955 = vpop.f32.mrf.mxu0
    %v1956 = vadd.f32 %v1655, %v1955
    %v1957 = vpop.f32.mrf.mxu0
    %1958 = vmatprep.mubr.f32.mxu0 0.0
    %v1959 = vand.u32 %v385, 4294901760
    %1960 = vmatmul.mubr.f32.gmra.mxu0 %v1959
    %v1961 = vpop.f32.mrf.mxu0
    %v1962 = vadd.f32 %v1663, %v1961
    %v1963 = vpop.f32.mrf.mxu0
    %1964 = vmatprep.mubr.f32.mxu0 0.0
    %v1965 = vand.u32 %v388, 4294901760
    %1966 = vmatmul.mubr.f32.gmra.mxu0 %v1965
    %v1967 = vpop.f32.mrf.mxu0
    %v1968 = vadd.f32 %v1671, %v1967
    %v1969 = vpop.f32.mrf.mxu0
    %1970 = vmatprep.mubr.f32.mxu0 0.0
    %v1971 = vand.u32 %v391, 4294901760
    %1972 = vmatmul.mubr.f32.gmra.mxu0 %v1971
    %v1973 = vpop.f32.mrf.mxu0
    %v1974 = vadd.f32 %v1679, %v1973
    %v1975 = vpop.f32.mrf.mxu0
    %1976 = vmatprep.mubr.f32.mxu0 0.0
    %v1977 = vand.u32 %v394, 4294901760
    %1978 = vmatmul.mubr.f32.gmra.mxu0 %v1977
    %v1979 = vpop.f32.mrf.mxu0
    %v1980 = vadd.f32 %v1687, %v1979
    %v1981 = vpop.f32.mrf.mxu0
    %1982 = vmatprep.mubr.f32.mxu0 0.0
    %v1983 = vand.u32 %v397, 4294901760
    %1984 = vmatmul.mubr.f32.gmra.mxu0 %v1983
    %v1985 = vpop.f32.mrf.mxu0
    %v1986 = vadd.f32 %v1695, %v1985
    %v1987 = vpop.f32.mrf.mxu0
    %1988 = vmatprep.mubr.f32.mxu0 0.0
    %v1989 = vand.u32 %v400, 4294901760
    %1990 = vmatmul.mubr.f32.gmra.mxu0 %v1989
    %v1991 = vpop.f32.mrf.mxu0
    %v1992 = vadd.f32 %v1703, %v1991
    %v1993 = vpop.f32.mrf.mxu0
    %1994 = vmatprep.mubr.f32.mxu0 0.0
    %v1995 = vand.u32 %v403, 4294901760
    %1996 = vmatmul.mubr.f32.gmra.mxu0 %v1995
    %v1997 = vpop.f32.mrf.mxu0
    %v1998 = vadd.f32 %v1711, %v1997
    %v1999 = vpop.f32.mrf.mxu0
    %2000 = vmatprep.mubr.f32.mxu0 0.0
    %v2001 = vand.u32 %v406, 4294901760
    %2002 = vmatmul.mubr.f32.gmra.mxu0 %v2001
    %v2003 = vpop.f32.mrf.mxu0
    %v2004 = vadd.f32 %v1719, %v2003
    %v2005 = vpop.f32.mrf.mxu0
    %2006 = vmatprep.mubr.f32.mxu0 0.0
    %v2007 = vand.u32 %v409, 4294901760
    %2008 = vmatmul.mubr.f32.gmra.mxu0 %v2007
    %v2009 = vpop.f32.mrf.mxu0
    %v2010 = vadd.f32 %v1727, %v2009
    %v2011 = vpop.f32.mrf.mxu0
    %2012 = vmatprep.mubr.f32.mxu0 0.0
    %v2013 = vand.u32 %v412, 4294901760
    %2014 = vmatmul.mubr.f32.gmra.mxu0 %v2013
    %v2015 = vpop.f32.mrf.mxu0
    %v2016 = vadd.f32 %v1735, %v2015
    %v2017 = vpop.f32.mrf.mxu0
    %2018 = vdwg.mxu0
    %2019 = vmatprep.subr.mxu0 0.0
    %2020 = vmatpush1.msra.mxu0 0.0
    %2021 = vmatprep.subr.mxu0 0.0
    %2022 = vmatpush1.msra.mxu0 0.0
    %2023 = vmatprep.subr.mxu0 0.0
    %2024 = vmatpush1.msra.mxu0 0.0
    %2025 = vmatprep.subr.mxu0 0.0
    %2026 = vmatpush1.msra.mxu0 0.0
    %2027 = vmatprep.subr.mxu0 0.0
    %2028 = vmatpush1.msra.mxu0 0.0
    %2029 = vmatprep.subr.mxu0 0.0
    %2030 = vmatpush1.msra.mxu0 0.0
    %2031 = vmatprep.subr.mxu0 0.0
    %2032 = vmatpush1.msra.mxu0 0.0
    %2033 = vmatprep.subr.mxu0 0.0
    %2034 = vmatpush1.msra.mxu0 0.0
    %2035 = vmatprep.subr.mxu0 0.0
    %v2036 = vand.u32 %v97, 4294901760
    %2037 = vmatpush1.msra.mxu0 %v2036
    %2038 = vmatprep.subr.mxu0 0.0
    %v2039 = vand.u32 %v96, 4294901760
    %2040 = vmatpush1.msra.mxu0 %v2039
    %2041 = vmatprep.subr.mxu0 0.0
    %v2042 = vand.u32 %v95, 4294901760
    %2043 = vmatpush1.msra.mxu0 %v2042
    %2044 = vmatprep.subr.mxu0 0.0
    %v2045 = vand.u32 %v94, 4294901760
    %2046 = vmatpush1.msra.mxu0 %v2045
    %2047 = vmatprep.subr.mxu0 0.0
    %v2048 = vand.u32 %v93, 4294901760
    %2049 = vmatpush1.msra.mxu0 %v2048
    %2050 = vmatprep.subr.mxu0 0.0
    %v2051 = vand.u32 %v92, 4294901760
    %2052 = vmatpush1.msra.mxu0 %v2051
    %2053 = vmatprep.subr.mxu0 0.0
    %v2054 = vand.u32 %v91, 4294901760
    %2055 = vmatpush1.msra.mxu0 %v2054
    %2056 = vmatprep.subr.mxu0 0.0
    %v2057 = vand.u32 %v90, 4294901760
    %2058 = vmatpush1.msra.mxu0 %v2057
    %2059 = vmatprep.subr.mxu0 0.0
    %2060 = vmatpush2.msra.mxu0 0.0
    %2061 = vmatprep.subr.mxu0 0.0
    %2062 = vmatpush2.msra.mxu0 0.0
    %2063 = vmatprep.subr.mxu0 0.0
    %2064 = vmatpush2.msra.mxu0 0.0
    %2065 = vmatprep.subr.mxu0 0.0
    %2066 = vmatpush2.msra.mxu0 0.0
    %2067 = vmatprep.subr.mxu0 0.0
    %2068 = vmatpush2.msra.mxu0 0.0
    %2069 = vmatprep.subr.mxu0 0.0
    %2070 = vmatpush2.msra.mxu0 0.0
    %2071 = vmatprep.subr.mxu0 0.0
    %2072 = vmatpush2.msra.mxu0 0.0
    %2073 = vmatprep.subr.mxu0 0.0
    %2074 = vmatpush2.msra.mxu0 0.0
    %2075 = vmatprep.subr.mxu0 0.0
    %2076 = vmatpush2.msra.mxu0 0.0
    %2077 = vmatprep.subr.mxu0 0.0
    %2078 = vmatpush2.msra.mxu0 0.0
    %2079 = vmatprep.subr.mxu0 0.0
    %2080 = vmatpush2.msra.mxu0 0.0
    %2081 = vmatprep.subr.mxu0 0.0
    %2082 = vmatpush2.msra.mxu0 0.0
    %2083 = vmatprep.subr.mxu0 0.0
    %2084 = vmatpush2.msra.mxu0 0.0
    %2085 = vmatprep.subr.mxu0 0.0
    %2086 = vmatpush2.msra.mxu0 0.0
    %2087 = vmatprep.subr.mxu0 0.0
    %2088 = vmatpush2.msra.mxu0 0.0
    %2089 = vmatprep.subr.mxu0 0.0
    %2090 = vmatpush2.msra.mxu0 0.0
    %2091 = vmatprep.mubr.f32.mxu0 0.0
    %v2092 = vand.u32 %v319, 4294901760
    %2093 = vmatmul.mubr.f32.gmra.mxu0 %v2092
    %v2094 = vpop.f32.mrf.mxu0
    %v2095 = vadd.f32 %v1830, %v2094
    %v2096 = vpop.f32.mrf.mxu0
    %2097 = vmatprep.mubr.f32.mxu0 0.0
    %v2098 = vand.u32 %v322, 4294901760
    %2099 = vmatmul.mubr.f32.gmra.mxu0 %v2098
    %v2100 = vpop.f32.mrf.mxu0
    %v2101 = vadd.f32 %v1836, %v2100
    %v2102 = vpop.f32.mrf.mxu0
    %2103 = vmatprep.mubr.f32.mxu0 0.0
    %v2104 = vand.u32 %v325, 4294901760
    %2105 = vmatmul.mubr.f32.gmra.mxu0 %v2104
    %v2106 = vpop.f32.mrf.mxu0
    %v2107 = vadd.f32 %v1842, %v2106
    %v2108 = vpop.f32.mrf.mxu0
    %2109 = vmatprep.mubr.f32.mxu0 0.0
    %v2110 = vand.u32 %v328, 4294901760
    %2111 = vmatmul.mubr.f32.gmra.mxu0 %v2110
    %v2112 = vpop.f32.mrf.mxu0
    %v2113 = vadd.f32 %v1848, %v2112
    %v2114 = vpop.f32.mrf.mxu0
    %2115 = vmatprep.mubr.f32.mxu0 0.0
    %v2116 = vand.u32 %v331, 4294901760
    %2117 = vmatmul.mubr.f32.gmra.mxu0 %v2116
    %v2118 = vpop.f32.mrf.mxu0
    %v2119 = vadd.f32 %v1854, %v2118
    %v2120 = vpop.f32.mrf.mxu0
    %2121 = vmatprep.mubr.f32.mxu0 0.0
    %v2122 = vand.u32 %v334, 4294901760
    %2123 = vmatmul.mubr.f32.gmra.mxu0 %v2122
    %v2124 = vpop.f32.mrf.mxu0
    %v2125 = vadd.f32 %v1860, %v2124
    %v2126 = vpop.f32.mrf.mxu0
    %2127 = vmatprep.mubr.f32.mxu0 0.0
    %v2128 = vand.u32 %v337, 4294901760
    %2129 = vmatmul.mubr.f32.gmra.mxu0 %v2128
    %v2130 = vpop.f32.mrf.mxu0
    %v2131 = vadd.f32 %v1866, %v2130
    %v2132 = vpop.f32.mrf.mxu0
    %2133 = vmatprep.mubr.f32.mxu0 0.0
    %v2134 = vand.u32 %v340, 4294901760
    %2135 = vmatmul.mubr.f32.gmra.mxu0 %v2134
    %v2136 = vpop.f32.mrf.mxu0
    %v2137 = vadd.f32 %v1872, %v2136
    %v2138 = vpop.f32.mrf.mxu0
    %2139 = vmatprep.mubr.f32.mxu0 0.0
    %v2140 = vand.u32 %v343, 4294901760
    %2141 = vmatmul.mubr.f32.gmra.mxu0 %v2140
    %v2142 = vpop.f32.mrf.mxu0
    %v2143 = vadd.f32 %v1878, %v2142
    %v2144 = vpop.f32.mrf.mxu0
    %2145 = vmatprep.mubr.f32.mxu0 0.0
    %v2146 = vand.u32 %v346, 4294901760
    %2147 = vmatmul.mubr.f32.gmra.mxu0 %v2146
    %v2148 = vpop.f32.mrf.mxu0
    %v2149 = vadd.f32 %v1884, %v2148
    %v2150 = vpop.f32.mrf.mxu0
    %2151 = vmatprep.mubr.f32.mxu0 0.0
    %v2152 = vand.u32 %v349, 4294901760
    %2153 = vmatmul.mubr.f32.gmra.mxu0 %v2152
    %v2154 = vpop.f32.mrf.mxu0
    %v2155 = vadd.f32 %v1890, %v2154
    %v2156 = vpop.f32.mrf.mxu0
    %2157 = vmatprep.mubr.f32.mxu0 0.0
    %v2158 = vand.u32 %v352, 4294901760
    %2159 = vmatmul.mubr.f32.gmra.mxu0 %v2158
    %v2160 = vpop.f32.mrf.mxu0
    %v2161 = vadd.f32 %v1896, %v2160
    %v2162 = vpop.f32.mrf.mxu0
    %2163 = vmatprep.mubr.f32.mxu0 0.0
    %v2164 = vand.u32 %v355, 4294901760
    %2165 = vmatmul.mubr.f32.gmra.mxu0 %v2164
    %v2166 = vpop.f32.mrf.mxu0
    %v2167 = vadd.f32 %v1902, %v2166
    %v2168 = vpop.f32.mrf.mxu0
    %2169 = vmatprep.mubr.f32.mxu0 0.0
    %v2170 = vand.u32 %v358, 4294901760
    %2171 = vmatmul.mubr.f32.gmra.mxu0 %v2170
    %v2172 = vpop.f32.mrf.mxu0
    %v2173 = vadd.f32 %v1908, %v2172
    %v2174 = vpop.f32.mrf.mxu0
    %2175 = vmatprep.mubr.f32.mxu0 0.0
    %v2176 = vand.u32 %v361, 4294901760
    %2177 = vmatmul.mubr.f32.gmra.mxu0 %v2176
    %v2178 = vpop.f32.mrf.mxu0
    %v2179 = vadd.f32 %v1914, %v2178
    %v2180 = vpop.f32.mrf.mxu0
    %2181 = vmatprep.mubr.f32.mxu0 0.0
    %v2182 = vand.u32 %v364, 4294901760
    %2183 = vmatmul.mubr.f32.gmra.mxu0 %v2182
    %v2184 = vpop.f32.mrf.mxu0
    %v2185 = vadd.f32 %v1920, %v2184
    %v2186 = vpop.f32.mrf.mxu0
    %2187 = vmatprep.mubr.f32.mxu0 0.0
    %v2188 = vand.u32 %v367, 4294901760
    %2189 = vmatmul.mubr.f32.gmra.mxu0 %v2188
    %v2190 = vpop.f32.mrf.mxu0
    %v2191 = vadd.f32 %v1926, %v2190
    %v2192 = vpop.f32.mrf.mxu0
    %2193 = vmatprep.mubr.f32.mxu0 0.0
    %v2194 = vand.u32 %v370, 4294901760
    %2195 = vmatmul.mubr.f32.gmra.mxu0 %v2194
    %v2196 = vpop.f32.mrf.mxu0
    %v2197 = vadd.f32 %v1932, %v2196
    %v2198 = vpop.f32.mrf.mxu0
    %2199 = vmatprep.mubr.f32.mxu0 0.0
    %v2200 = vand.u32 %v373, 4294901760
    %2201 = vmatmul.mubr.f32.gmra.mxu0 %v2200
    %v2202 = vpop.f32.mrf.mxu0
    %v2203 = vadd.f32 %v1938, %v2202
    %v2204 = vpop.f32.mrf.mxu0
    %2205 = vmatprep.mubr.f32.mxu0 0.0
    %v2206 = vand.u32 %v376, 4294901760
    %2207 = vmatmul.mubr.f32.gmra.mxu0 %v2206
    %v2208 = vpop.f32.mrf.mxu0
    %v2209 = vadd.f32 %v1944, %v2208
    %v2210 = vpop.f32.mrf.mxu0
    %2211 = vmatprep.mubr.f32.mxu0 0.0
    %v2212 = vand.u32 %v379, 4294901760
    %2213 = vmatmul.mubr.f32.gmra.mxu0 %v2212
    %v2214 = vpop.f32.mrf.mxu0
    %v2215 = vadd.f32 %v1950, %v2214
    %v2216 = vpop.f32.mrf.mxu0
    %2217 = vmatprep.mubr.f32.mxu0 0.0
    %v2218 = vand.u32 %v382, 4294901760
    %2219 = vmatmul.mubr.f32.gmra.mxu0 %v2218
    %v2220 = vpop.f32.mrf.mxu0
    %v2221 = vadd.f32 %v1956, %v2220
    %v2222 = vpop.f32.mrf.mxu0
    %2223 = vmatprep.mubr.f32.mxu0 0.0
    %v2224 = vand.u32 %v385, 4294901760
    %2225 = vmatmul.mubr.f32.gmra.mxu0 %v2224
    %v2226 = vpop.f32.mrf.mxu0
    %v2227 = vadd.f32 %v1962, %v2226
    %v2228 = vpop.f32.mrf.mxu0
    %2229 = vmatprep.mubr.f32.mxu0 0.0
    %v2230 = vand.u32 %v388, 4294901760
    %2231 = vmatmul.mubr.f32.gmra.mxu0 %v2230
    %v2232 = vpop.f32.mrf.mxu0
    %v2233 = vadd.f32 %v1968, %v2232
    %v2234 = vpop.f32.mrf.mxu0
    %2235 = vmatprep.mubr.f32.mxu0 0.0
    %v2236 = vand.u32 %v391, 4294901760
    %2237 = vmatmul.mubr.f32.gmra.mxu0 %v2236
    %v2238 = vpop.f32.mrf.mxu0
    %v2239 = vadd.f32 %v1974, %v2238
    %v2240 = vpop.f32.mrf.mxu0
    %2241 = vmatprep.mubr.f32.mxu0 0.0
    %v2242 = vand.u32 %v394, 4294901760
    %2243 = vmatmul.mubr.f32.gmra.mxu0 %v2242
    %v2244 = vpop.f32.mrf.mxu0
    %v2245 = vadd.f32 %v1980, %v2244
    %v2246 = vpop.f32.mrf.mxu0
    %2247 = vmatprep.mubr.f32.mxu0 0.0
    %v2248 = vand.u32 %v397, 4294901760
    %2249 = vmatmul.mubr.f32.gmra.mxu0 %v2248
    %v2250 = vpop.f32.mrf.mxu0
    %v2251 = vadd.f32 %v1986, %v2250
    %v2252 = vpop.f32.mrf.mxu0
    %2253 = vmatprep.mubr.f32.mxu0 0.0
    %v2254 = vand.u32 %v400, 4294901760
    %2255 = vmatmul.mubr.f32.gmra.mxu0 %v2254
    %v2256 = vpop.f32.mrf.mxu0
    %v2257 = vadd.f32 %v1992, %v2256
    %v2258 = vpop.f32.mrf.mxu0
    %2259 = vmatprep.mubr.f32.mxu0 0.0
    %v2260 = vand.u32 %v403, 4294901760
    %2261 = vmatmul.mubr.f32.gmra.mxu0 %v2260
    %v2262 = vpop.f32.mrf.mxu0
    %v2263 = vadd.f32 %v1998, %v2262
    %v2264 = vpop.f32.mrf.mxu0
    %2265 = vmatprep.mubr.f32.mxu0 0.0
    %v2266 = vand.u32 %v406, 4294901760
    %2267 = vmatmul.mubr.f32.gmra.mxu0 %v2266
    %v2268 = vpop.f32.mrf.mxu0
    %v2269 = vadd.f32 %v2004, %v2268
    %v2270 = vpop.f32.mrf.mxu0
    %2271 = vmatprep.mubr.f32.mxu0 0.0
    %v2272 = vand.u32 %v409, 4294901760
    %2273 = vmatmul.mubr.f32.gmra.mxu0 %v2272
    %v2274 = vpop.f32.mrf.mxu0
    %v2275 = vadd.f32 %v2010, %v2274
    %v2276 = vpop.f32.mrf.mxu0
    %2277 = vmatprep.mubr.f32.mxu0 0.0
    %v2278 = vand.u32 %v412, 4294901760
    %2279 = vmatmul.mubr.f32.gmra.mxu0 %v2278
    %v2280 = vpop.f32.mrf.mxu0
    %v2281 = vadd.f32 %v2016, %v2280
    %v2282 = vpop.f32.mrf.mxu0
    %2283 = vdwg.mxu0
    %v2284 = vlaneseq
    %v2285 = vshrl.u32 %v2284, 7
    %v2286 = vsub.s32 0, %v2285
    %v2287 = vrot.slane %v118, %v2286
    %vm2288 = vcmask 261120
    %v2290 = vsel %vm2288, %v2095, 0
    %v2293 = vsel %vm2288, %v2101, 0
    %v2296 = vsel %vm2288, %v2107, 0
    %v2299 = vsel %vm2288, %v2113, 0
    %v2302 = vsel %vm2288, %v2119, 0
    %v2305 = vsel %vm2288, %v2125, 0
    %v2308 = vsel %vm2288, %v2131, 0
    %v2311 = vsel %vm2288, %v2137, 0
    %v2314 = vsel %vm2288, %v2143, 0
    %v2317 = vsel %vm2288, %v2149, 0
    %v2320 = vsel %vm2288, %v2155, 0
    %v2323 = vsel %vm2288, %v2161, 0
    %v2326 = vsel %vm2288, %v2167, 0
    %v2329 = vsel %vm2288, %v2173, 0
    %v2332 = vsel %vm2288, %v2179, 0
    %v2335 = vsel %vm2288, %v2185, 0
    %v2338 = vsel %vm2288, %v2191, 0
    %v2341 = vsel %vm2288, %v2197, 0
    %v2344 = vsel %vm2288, %v2203, 0
    %v2347 = vsel %vm2288, %v2209, 0
    %v2350 = vsel %vm2288, %v2215, 0
    %v2353 = vsel %vm2288, %v2221, 0
    %v2356 = vsel %vm2288, %v2227, 0
    %v2359 = vsel %vm2288, %v2233, 0
    %v2362 = vsel %vm2288, %v2239, 0
    %v2365 = vsel %vm2288, %v2245, 0
    %v2368 = vsel %vm2288, %v2251, 0
    %v2371 = vsel %vm2288, %v2257, 0
    %v2374 = vsel %vm2288, %v2263, 0
    %v2377 = vsel %vm2288, %v2269, 0
    %v2380 = vsel %vm2288, %v2275, 0
    %v2383 = vsel %vm2288, %v2281, 0
    %2385 = vmatprep.subr.mxu0 0.0
    %2386 = vmatpush1.msra.mxu0 0.0
    %2387 = vmatprep.subr.mxu0 0.0
    %2388 = vmatpush1.msra.mxu0 0.0
    %2389 = vmatprep.subr.mxu0 0.0
    %2390 = vmatpush1.msra.mxu0 0.0
    %2391 = vmatprep.subr.mxu0 0.0
    %2392 = vmatpush1.msra.mxu0 0.0
    %2393 = vmatprep.subr.mxu0 0.0
    %2394 = vmatpush1.msra.mxu0 0.0
    %2395 = vmatprep.subr.mxu0 0.0
    %2396 = vmatpush1.msra.mxu0 0.0
    %2397 = vmatprep.subr.mxu0 0.0
    %2398 = vmatpush1.msra.mxu0 0.0
    %2399 = vmatprep.subr.mxu0 0.0
    %2400 = vmatpush1.msra.mxu0 0.0
    %2401 = vmatprep.subr.mxu0 0.0
    %2402 = vmatpush1.msra.mxu0 0.0
    %2403 = vmatprep.subr.mxu0 0.0
    %2404 = vmatpush1.msra.mxu0 0.0
    %2405 = vmatprep.subr.mxu0 0.0
    %2406 = vmatpush1.msra.mxu0 0.0
    %2407 = vmatprep.subr.mxu0 0.0
    %2408 = vmatpush1.msra.mxu0 0.0
    %2409 = vmatprep.subr.mxu0 0.0
    %v2410 = vand.u32 %v101, 4294901760
    %2411 = vmatpush1.msra.mxu0 %v2410
    %2412 = vmatprep.subr.mxu0 0.0
    %v2413 = vand.u32 %v100, 4294901760
    %2414 = vmatpush1.msra.mxu0 %v2413
    %2415 = vmatprep.subr.mxu0 0.0
    %v2416 = vand.u32 %v99, 4294901760
    %2417 = vmatpush1.msra.mxu0 %v2416
    %2418 = vmatprep.subr.mxu0 0.0
    %v2419 = vand.u32 %v98, 4294901760
    %2420 = vmatpush1.msra.mxu0 %v2419
    %2421 = vmatprep.subr.mxu0 0.0
    %2422 = vmatpush2.msra.mxu0 0.0
    %2423 = vmatprep.subr.mxu0 0.0
    %2424 = vmatpush2.msra.mxu0 0.0
    %2425 = vmatprep.subr.mxu0 0.0
    %2426 = vmatpush2.msra.mxu0 0.0
    %2427 = vmatprep.subr.mxu0 0.0
    %2428 = vmatpush2.msra.mxu0 0.0
    %2429 = vmatprep.subr.mxu0 0.0
    %2430 = vmatpush2.msra.mxu0 0.0
    %2431 = vmatprep.subr.mxu0 0.0
    %2432 = vmatpush2.msra.mxu0 0.0
    %2433 = vmatprep.subr.mxu0 0.0
    %2434 = vmatpush2.msra.mxu0 0.0
    %2435 = vmatprep.subr.mxu0 0.0
    %2436 = vmatpush2.msra.mxu0 0.0
    %2437 = vmatprep.subr.mxu0 0.0
    %2438 = vmatpush2.msra.mxu0 0.0
    %2439 = vmatprep.subr.mxu0 0.0
    %2440 = vmatpush2.msra.mxu0 0.0
    %2441 = vmatprep.subr.mxu0 0.0
    %2442 = vmatpush2.msra.mxu0 0.0
    %2443 = vmatprep.subr.mxu0 0.0
    %2444 = vmatpush2.msra.mxu0 0.0
    %2445 = vmatprep.subr.mxu0 0.0
    %2446 = vmatpush2.msra.mxu0 0.0
    %2447 = vmatprep.subr.mxu0 0.0
    %2448 = vmatpush2.msra.mxu0 0.0
    %2449 = vmatprep.subr.mxu0 0.0
    %2450 = vmatpush2.msra.mxu0 0.0
    %2451 = vmatprep.subr.mxu0 0.0
    %2452 = vmatpush2.msra.mxu0 0.0
    %2453 = vmatprep.mubr.f32.mxu0 0.0
    %v2454 = vand.u32 %v2290, 4294901760
    %v2455 = vsub.f32 %v2290, %v2454
    %v2456 = vand.u32 %v2455, 4294901760
    %v2457 = vsub.f32 %v2455, %v2456
    %v2458 = vand.u32 %v2457, 4294901760
    %2459 = vmatmul.mubr.f32.gmra.mxu0 %v2458
    %v2460 = vpop.f32.mrf.mxu0
    %v2461 = vadd.f32 %v2287, %v2460
    %v2462 = vpop.f32.mrf.mxu0
    %2463 = vmatprep.mubr.f32.mxu0 0.0
    %v2464 = vand.u32 %v2293, 4294901760
    %v2465 = vsub.f32 %v2293, %v2464
    %v2466 = vand.u32 %v2465, 4294901760
    %v2467 = vsub.f32 %v2465, %v2466
    %v2468 = vand.u32 %v2467, 4294901760
    %2469 = vmatmul.mubr.f32.gmra.mxu0 %v2468
    %v2470 = vpop.f32.mrf.mxu0
    %v2471 = vadd.f32 %v2287, %v2470
    %v2472 = vpop.f32.mrf.mxu0
    %2473 = vmatprep.mubr.f32.mxu0 0.0
    %v2474 = vand.u32 %v2296, 4294901760
    %v2475 = vsub.f32 %v2296, %v2474
    %v2476 = vand.u32 %v2475, 4294901760
    %v2477 = vsub.f32 %v2475, %v2476
    %v2478 = vand.u32 %v2477, 4294901760
    %2479 = vmatmul.mubr.f32.gmra.mxu0 %v2478
    %v2480 = vpop.f32.mrf.mxu0
    %v2481 = vadd.f32 %v2287, %v2480
    %v2482 = vpop.f32.mrf.mxu0
    %2483 = vmatprep.mubr.f32.mxu0 0.0
    %v2484 = vand.u32 %v2299, 4294901760
    %v2485 = vsub.f32 %v2299, %v2484
    %v2486 = vand.u32 %v2485, 4294901760
    %v2487 = vsub.f32 %v2485, %v2486
    %v2488 = vand.u32 %v2487, 4294901760
    %2489 = vmatmul.mubr.f32.gmra.mxu0 %v2488
    %v2490 = vpop.f32.mrf.mxu0
    %v2491 = vadd.f32 %v2287, %v2490
    %v2492 = vpop.f32.mrf.mxu0
    %2493 = vmatprep.mubr.f32.mxu0 0.0
    %v2494 = vand.u32 %v2302, 4294901760
    %v2495 = vsub.f32 %v2302, %v2494
    %v2496 = vand.u32 %v2495, 4294901760
    %v2497 = vsub.f32 %v2495, %v2496
    %v2498 = vand.u32 %v2497, 4294901760
    %2499 = vmatmul.mubr.f32.gmra.mxu0 %v2498
    %v2500 = vpop.f32.mrf.mxu0
    %v2501 = vadd.f32 %v2287, %v2500
    %v2502 = vpop.f32.mrf.mxu0
    %2503 = vmatprep.mubr.f32.mxu0 0.0
    %v2504 = vand.u32 %v2305, 4294901760
    %v2505 = vsub.f32 %v2305, %v2504
    %v2506 = vand.u32 %v2505, 4294901760
    %v2507 = vsub.f32 %v2505, %v2506
    %v2508 = vand.u32 %v2507, 4294901760
    %2509 = vmatmul.mubr.f32.gmra.mxu0 %v2508
    %v2510 = vpop.f32.mrf.mxu0
    %v2511 = vadd.f32 %v2287, %v2510
    %v2512 = vpop.f32.mrf.mxu0
    %2513 = vmatprep.mubr.f32.mxu0 0.0
    %v2514 = vand.u32 %v2308, 4294901760
    %v2515 = vsub.f32 %v2308, %v2514
    %v2516 = vand.u32 %v2515, 4294901760
    %v2517 = vsub.f32 %v2515, %v2516
    %v2518 = vand.u32 %v2517, 4294901760
    %2519 = vmatmul.mubr.f32.gmra.mxu0 %v2518
    %v2520 = vpop.f32.mrf.mxu0
    %v2521 = vadd.f32 %v2287, %v2520
    %v2522 = vpop.f32.mrf.mxu0
    %2523 = vmatprep.mubr.f32.mxu0 0.0
    %v2524 = vand.u32 %v2311, 4294901760
    %v2525 = vsub.f32 %v2311, %v2524
    %v2526 = vand.u32 %v2525, 4294901760
    %v2527 = vsub.f32 %v2525, %v2526
    %v2528 = vand.u32 %v2527, 4294901760
    %2529 = vmatmul.mubr.f32.gmra.mxu0 %v2528
    %v2530 = vpop.f32.mrf.mxu0
    %v2531 = vadd.f32 %v2287, %v2530
    %v2532 = vpop.f32.mrf.mxu0
    %2533 = vmatprep.mubr.f32.mxu0 0.0
    %v2534 = vand.u32 %v2314, 4294901760
    %v2535 = vsub.f32 %v2314, %v2534
    %v2536 = vand.u32 %v2535, 4294901760
    %v2537 = vsub.f32 %v2535, %v2536
    %v2538 = vand.u32 %v2537, 4294901760
    %2539 = vmatmul.mubr.f32.gmra.mxu0 %v2538
    %v2540 = vpop.f32.mrf.mxu0
    %v2541 = vadd.f32 %v2287, %v2540
    %v2542 = vpop.f32.mrf.mxu0
    %2543 = vmatprep.mubr.f32.mxu0 0.0
    %v2544 = vand.u32 %v2317, 4294901760
    %v2545 = vsub.f32 %v2317, %v2544
    %v2546 = vand.u32 %v2545, 4294901760
    %v2547 = vsub.f32 %v2545, %v2546
    %v2548 = vand.u32 %v2547, 4294901760
    %2549 = vmatmul.mubr.f32.gmra.mxu0 %v2548
    %v2550 = vpop.f32.mrf.mxu0
    %v2551 = vadd.f32 %v2287, %v2550
    %v2552 = vpop.f32.mrf.mxu0
    %2553 = vmatprep.mubr.f32.mxu0 0.0
    %v2554 = vand.u32 %v2320, 4294901760
    %v2555 = vsub.f32 %v2320, %v2554
    %v2556 = vand.u32 %v2555, 4294901760
    %v2557 = vsub.f32 %v2555, %v2556
    %v2558 = vand.u32 %v2557, 4294901760
    %2559 = vmatmul.mubr.f32.gmra.mxu0 %v2558
    %v2560 = vpop.f32.mrf.mxu0
    %v2561 = vadd.f32 %v2287, %v2560
    %v2562 = vpop.f32.mrf.mxu0
    %2563 = vmatprep.mubr.f32.mxu0 0.0
    %v2564 = vand.u32 %v2323, 4294901760
    %v2565 = vsub.f32 %v2323, %v2564
    %v2566 = vand.u32 %v2565, 4294901760
    %v2567 = vsub.f32 %v2565, %v2566
    %v2568 = vand.u32 %v2567, 4294901760
    %2569 = vmatmul.mubr.f32.gmra.mxu0 %v2568
    %v2570 = vpop.f32.mrf.mxu0
    %v2571 = vadd.f32 %v2287, %v2570
    %v2572 = vpop.f32.mrf.mxu0
    %2573 = vmatprep.mubr.f32.mxu0 0.0
    %v2574 = vand.u32 %v2326, 4294901760
    %v2575 = vsub.f32 %v2326, %v2574
    %v2576 = vand.u32 %v2575, 4294901760
    %v2577 = vsub.f32 %v2575, %v2576
    %v2578 = vand.u32 %v2577, 4294901760
    %2579 = vmatmul.mubr.f32.gmra.mxu0 %v2578
    %v2580 = vpop.f32.mrf.mxu0
    %v2581 = vadd.f32 %v2287, %v2580
    %v2582 = vpop.f32.mrf.mxu0
    %2583 = vmatprep.mubr.f32.mxu0 0.0
    %v2584 = vand.u32 %v2329, 4294901760
    %v2585 = vsub.f32 %v2329, %v2584
    %v2586 = vand.u32 %v2585, 4294901760
    %v2587 = vsub.f32 %v2585, %v2586
    %v2588 = vand.u32 %v2587, 4294901760
    %2589 = vmatmul.mubr.f32.gmra.mxu0 %v2588
    %v2590 = vpop.f32.mrf.mxu0
    %v2591 = vadd.f32 %v2287, %v2590
    %v2592 = vpop.f32.mrf.mxu0
    %2593 = vmatprep.mubr.f32.mxu0 0.0
    %v2594 = vand.u32 %v2332, 4294901760
    %v2595 = vsub.f32 %v2332, %v2594
    %v2596 = vand.u32 %v2595, 4294901760
    %v2597 = vsub.f32 %v2595, %v2596
    %v2598 = vand.u32 %v2597, 4294901760
    %2599 = vmatmul.mubr.f32.gmra.mxu0 %v2598
    %v2600 = vpop.f32.mrf.mxu0
    %v2601 = vadd.f32 %v2287, %v2600
    %v2602 = vpop.f32.mrf.mxu0
    %2603 = vmatprep.mubr.f32.mxu0 0.0
    %v2604 = vand.u32 %v2335, 4294901760
    %v2605 = vsub.f32 %v2335, %v2604
    %v2606 = vand.u32 %v2605, 4294901760
    %v2607 = vsub.f32 %v2605, %v2606
    %v2608 = vand.u32 %v2607, 4294901760
    %2609 = vmatmul.mubr.f32.gmra.mxu0 %v2608
    %v2610 = vpop.f32.mrf.mxu0
    %v2611 = vadd.f32 %v2287, %v2610
    %v2612 = vpop.f32.mrf.mxu0
    %2613 = vmatprep.mubr.f32.mxu0 0.0
    %v2614 = vand.u32 %v2338, 4294901760
    %v2615 = vsub.f32 %v2338, %v2614
    %v2616 = vand.u32 %v2615, 4294901760
    %v2617 = vsub.f32 %v2615, %v2616
    %v2618 = vand.u32 %v2617, 4294901760
    %2619 = vmatmul.mubr.f32.gmra.mxu0 %v2618
    %v2620 = vpop.f32.mrf.mxu0
    %v2621 = vadd.f32 %v2287, %v2620
    %v2622 = vpop.f32.mrf.mxu0
    %2623 = vmatprep.mubr.f32.mxu0 0.0
    %v2624 = vand.u32 %v2341, 4294901760
    %v2625 = vsub.f32 %v2341, %v2624
    %v2626 = vand.u32 %v2625, 4294901760
    %v2627 = vsub.f32 %v2625, %v2626
    %v2628 = vand.u32 %v2627, 4294901760
    %2629 = vmatmul.mubr.f32.gmra.mxu0 %v2628
    %v2630 = vpop.f32.mrf.mxu0
    %v2631 = vadd.f32 %v2287, %v2630
    %v2632 = vpop.f32.mrf.mxu0
    %2633 = vmatprep.mubr.f32.mxu0 0.0
    %v2634 = vand.u32 %v2344, 4294901760
    %v2635 = vsub.f32 %v2344, %v2634
    %v2636 = vand.u32 %v2635, 4294901760
    %v2637 = vsub.f32 %v2635, %v2636
    %v2638 = vand.u32 %v2637, 4294901760
    %2639 = vmatmul.mubr.f32.gmra.mxu0 %v2638
    %v2640 = vpop.f32.mrf.mxu0
    %v2641 = vadd.f32 %v2287, %v2640
    %v2642 = vpop.f32.mrf.mxu0
    %2643 = vmatprep.mubr.f32.mxu0 0.0
    %v2644 = vand.u32 %v2347, 4294901760
    %v2645 = vsub.f32 %v2347, %v2644
    %v2646 = vand.u32 %v2645, 4294901760
    %v2647 = vsub.f32 %v2645, %v2646
    %v2648 = vand.u32 %v2647, 4294901760
    %2649 = vmatmul.mubr.f32.gmra.mxu0 %v2648
    %v2650 = vpop.f32.mrf.mxu0
    %v2651 = vadd.f32 %v2287, %v2650
    %v2652 = vpop.f32.mrf.mxu0
    %2653 = vmatprep.mubr.f32.mxu0 0.0
    %v2654 = vand.u32 %v2350, 4294901760
    %v2655 = vsub.f32 %v2350, %v2654
    %v2656 = vand.u32 %v2655, 4294901760
    %v2657 = vsub.f32 %v2655, %v2656
    %v2658 = vand.u32 %v2657, 4294901760
    %2659 = vmatmul.mubr.f32.gmra.mxu0 %v2658
    %v2660 = vpop.f32.mrf.mxu0
    %v2661 = vadd.f32 %v2287, %v2660
    %v2662 = vpop.f32.mrf.mxu0
    %2663 = vmatprep.mubr.f32.mxu0 0.0
    %v2664 = vand.u32 %v2353, 4294901760
    %v2665 = vsub.f32 %v2353, %v2664
    %v2666 = vand.u32 %v2665, 4294901760
    %v2667 = vsub.f32 %v2665, %v2666
    %v2668 = vand.u32 %v2667, 4294901760
    %2669 = vmatmul.mubr.f32.gmra.mxu0 %v2668
    %v2670 = vpop.f32.mrf.mxu0
    %v2671 = vadd.f32 %v2287, %v2670
    %v2672 = vpop.f32.mrf.mxu0
    %2673 = vmatprep.mubr.f32.mxu0 0.0
    %v2674 = vand.u32 %v2356, 4294901760
    %v2675 = vsub.f32 %v2356, %v2674
    %v2676 = vand.u32 %v2675, 4294901760
    %v2677 = vsub.f32 %v2675, %v2676
    %v2678 = vand.u32 %v2677, 4294901760
    %2679 = vmatmul.mubr.f32.gmra.mxu0 %v2678
    %v2680 = vpop.f32.mrf.mxu0
    %v2681 = vadd.f32 %v2287, %v2680
    %v2682 = vpop.f32.mrf.mxu0
    %2683 = vmatprep.mubr.f32.mxu0 0.0
    %v2684 = vand.u32 %v2359, 4294901760
    %v2685 = vsub.f32 %v2359, %v2684
    %v2686 = vand.u32 %v2685, 4294901760
    %v2687 = vsub.f32 %v2685, %v2686
    %v2688 = vand.u32 %v2687, 4294901760
    %2689 = vmatmul.mubr.f32.gmra.mxu0 %v2688
    %v2690 = vpop.f32.mrf.mxu0
    %v2691 = vadd.f32 %v2287, %v2690
    %v2692 = vpop.f32.mrf.mxu0
    %2693 = vmatprep.mubr.f32.mxu0 0.0
    %v2694 = vand.u32 %v2362, 4294901760
    %v2695 = vsub.f32 %v2362, %v2694
    %v2696 = vand.u32 %v2695, 4294901760
    %v2697 = vsub.f32 %v2695, %v2696
    %v2698 = vand.u32 %v2697, 4294901760
    %2699 = vmatmul.mubr.f32.gmra.mxu0 %v2698
    %v2700 = vpop.f32.mrf.mxu0
    %v2701 = vadd.f32 %v2287, %v2700
    %v2702 = vpop.f32.mrf.mxu0
    %2703 = vmatprep.mubr.f32.mxu0 0.0
    %v2704 = vand.u32 %v2365, 4294901760
    %v2705 = vsub.f32 %v2365, %v2704
    %v2706 = vand.u32 %v2705, 4294901760
    %v2707 = vsub.f32 %v2705, %v2706
    %v2708 = vand.u32 %v2707, 4294901760
    %2709 = vmatmul.mubr.f32.gmra.mxu0 %v2708
    %v2710 = vpop.f32.mrf.mxu0
    %v2711 = vadd.f32 %v2287, %v2710
    %v2712 = vpop.f32.mrf.mxu0
    %2713 = vmatprep.mubr.f32.mxu0 0.0
    %v2714 = vand.u32 %v2368, 4294901760
    %v2715 = vsub.f32 %v2368, %v2714
    %v2716 = vand.u32 %v2715, 4294901760
    %v2717 = vsub.f32 %v2715, %v2716
    %v2718 = vand.u32 %v2717, 4294901760
    %2719 = vmatmul.mubr.f32.gmra.mxu0 %v2718
    %v2720 = vpop.f32.mrf.mxu0
    %v2721 = vadd.f32 %v2287, %v2720
    %v2722 = vpop.f32.mrf.mxu0
    %2723 = vmatprep.mubr.f32.mxu0 0.0
    %v2724 = vand.u32 %v2371, 4294901760
    %v2725 = vsub.f32 %v2371, %v2724
    %v2726 = vand.u32 %v2725, 4294901760
    %v2727 = vsub.f32 %v2725, %v2726
    %v2728 = vand.u32 %v2727, 4294901760
    %2729 = vmatmul.mubr.f32.gmra.mxu0 %v2728
    %v2730 = vpop.f32.mrf.mxu0
    %v2731 = vadd.f32 %v2287, %v2730
    %v2732 = vpop.f32.mrf.mxu0
    %2733 = vmatprep.mubr.f32.mxu0 0.0
    %v2734 = vand.u32 %v2374, 4294901760
    %v2735 = vsub.f32 %v2374, %v2734
    %v2736 = vand.u32 %v2735, 4294901760
    %v2737 = vsub.f32 %v2735, %v2736
    %v2738 = vand.u32 %v2737, 4294901760
    %2739 = vmatmul.mubr.f32.gmra.mxu0 %v2738
    %v2740 = vpop.f32.mrf.mxu0
    %v2741 = vadd.f32 %v2287, %v2740
    %v2742 = vpop.f32.mrf.mxu0
    %2743 = vmatprep.mubr.f32.mxu0 0.0
    %v2744 = vand.u32 %v2377, 4294901760
    %v2745 = vsub.f32 %v2377, %v2744
    %v2746 = vand.u32 %v2745, 4294901760
    %v2747 = vsub.f32 %v2745, %v2746
    %v2748 = vand.u32 %v2747, 4294901760
    %2749 = vmatmul.mubr.f32.gmra.mxu0 %v2748
    %v2750 = vpop.f32.mrf.mxu0
    %v2751 = vadd.f32 %v2287, %v2750
    %v2752 = vpop.f32.mrf.mxu0
    %2753 = vmatprep.mubr.f32.mxu0 0.0
    %v2754 = vand.u32 %v2380, 4294901760
    %v2755 = vsub.f32 %v2380, %v2754
    %v2756 = vand.u32 %v2755, 4294901760
    %v2757 = vsub.f32 %v2755, %v2756
    %v2758 = vand.u32 %v2757, 4294901760
    %2759 = vmatmul.mubr.f32.gmra.mxu0 %v2758
    %v2760 = vpop.f32.mrf.mxu0
    %v2761 = vadd.f32 %v2287, %v2760
    %v2762 = vpop.f32.mrf.mxu0
    %2763 = vmatprep.mubr.f32.mxu0 0.0
    %v2764 = vand.u32 %v2383, 4294901760
    %v2765 = vsub.f32 %v2383, %v2764
    %v2766 = vand.u32 %v2765, 4294901760
    %v2767 = vsub.f32 %v2765, %v2766
    %v2768 = vand.u32 %v2767, 4294901760
    %2769 = vmatmul.mubr.f32.gmra.mxu0 %v2768
    %v2770 = vpop.f32.mrf.mxu0
    %v2771 = vadd.f32 %v2287, %v2770
    %v2772 = vpop.f32.mrf.mxu0
    %2773 = vdwg.mxu0
    %2774 = vmatprep.subr.mxu0 0.0
    %2775 = vmatpush1.msra.mxu0 0.0
    %2776 = vmatprep.subr.mxu0 0.0
    %2777 = vmatpush1.msra.mxu0 0.0
    %2778 = vmatprep.subr.mxu0 0.0
    %2779 = vmatpush1.msra.mxu0 0.0
    %2780 = vmatprep.subr.mxu0 0.0
    %2781 = vmatpush1.msra.mxu0 0.0
    %2782 = vmatprep.subr.mxu0 0.0
    %2783 = vmatpush1.msra.mxu0 0.0
    %2784 = vmatprep.subr.mxu0 0.0
    %2785 = vmatpush1.msra.mxu0 0.0
    %2786 = vmatprep.subr.mxu0 0.0
    %2787 = vmatpush1.msra.mxu0 0.0
    %2788 = vmatprep.subr.mxu0 0.0
    %2789 = vmatpush1.msra.mxu0 0.0
    %2790 = vmatprep.subr.mxu0 0.0
    %2791 = vmatpush1.msra.mxu0 0.0
    %2792 = vmatprep.subr.mxu0 0.0
    %2793 = vmatpush1.msra.mxu0 0.0
    %2794 = vmatprep.subr.mxu0 0.0
    %2795 = vmatpush1.msra.mxu0 0.0
    %2796 = vmatprep.subr.mxu0 0.0
    %2797 = vmatpush1.msra.mxu0 0.0
    %2798 = vmatprep.subr.mxu0 0.0
    %v2799 = vand.u32 %v101, 4294901760
    %v2800 = vsub.f32 %v101, %v2799
    %v2801 = vand.u32 %v2800, 4294901760
    %v2802 = vsub.f32 %v2800, %v2801
    %v2803 = vand.u32 %v2802, 4294901760
    %2804 = vmatpush1.msra.mxu0 %v2803
    %2805 = vmatprep.subr.mxu0 0.0
    %v2806 = vand.u32 %v100, 4294901760
    %v2807 = vsub.f32 %v100, %v2806
    %v2808 = vand.u32 %v2807, 4294901760
    %v2809 = vsub.f32 %v2807, %v2808
    %v2810 = vand.u32 %v2809, 4294901760
    %2811 = vmatpush1.msra.mxu0 %v2810
    %2812 = vmatprep.subr.mxu0 0.0
    %v2813 = vand.u32 %v99, 4294901760
    %v2814 = vsub.f32 %v99, %v2813
    %v2815 = vand.u32 %v2814, 4294901760
    %v2816 = vsub.f32 %v2814, %v2815
    %v2817 = vand.u32 %v2816, 4294901760
    %2818 = vmatpush1.msra.mxu0 %v2817
    %2819 = vmatprep.subr.mxu0 0.0
    %v2820 = vand.u32 %v98, 4294901760
    %v2821 = vsub.f32 %v98, %v2820
    %v2822 = vand.u32 %v2821, 4294901760
    %v2823 = vsub.f32 %v2821, %v2822
    %v2824 = vand.u32 %v2823, 4294901760
    %2825 = vmatpush1.msra.mxu0 %v2824
    %2826 = vmatprep.subr.mxu0 0.0
    %2827 = vmatpush2.msra.mxu0 0.0
    %2828 = vmatprep.subr.mxu0 0.0
    %2829 = vmatpush2.msra.mxu0 0.0
    %2830 = vmatprep.subr.mxu0 0.0
    %2831 = vmatpush2.msra.mxu0 0.0
    %2832 = vmatprep.subr.mxu0 0.0
    %2833 = vmatpush2.msra.mxu0 0.0
    %2834 = vmatprep.subr.mxu0 0.0
    %2835 = vmatpush2.msra.mxu0 0.0
    %2836 = vmatprep.subr.mxu0 0.0
    %2837 = vmatpush2.msra.mxu0 0.0
    %2838 = vmatprep.subr.mxu0 0.0
    %2839 = vmatpush2.msra.mxu0 0.0
    %2840 = vmatprep.subr.mxu0 0.0
    %2841 = vmatpush2.msra.mxu0 0.0
    %2842 = vmatprep.subr.mxu0 0.0
    %2843 = vmatpush2.msra.mxu0 0.0
    %2844 = vmatprep.subr.mxu0 0.0
    %2845 = vmatpush2.msra.mxu0 0.0
    %2846 = vmatprep.subr.mxu0 0.0
    %2847 = vmatpush2.msra.mxu0 0.0
    %2848 = vmatprep.subr.mxu0 0.0
    %2849 = vmatpush2.msra.mxu0 0.0
    %2850 = vmatprep.subr.mxu0 0.0
    %2851 = vmatpush2.msra.mxu0 0.0
    %2852 = vmatprep.subr.mxu0 0.0
    %2853 = vmatpush2.msra.mxu0 0.0
    %2854 = vmatprep.subr.mxu0 0.0
    %2855 = vmatpush2.msra.mxu0 0.0
    %2856 = vmatprep.subr.mxu0 0.0
    %2857 = vmatpush2.msra.mxu0 0.0
    %2858 = vmatprep.mubr.f32.mxu0 0.0
    %v2859 = vand.u32 %v2290, 4294901760
    %2860 = vmatmul.mubr.f32.gmra.mxu0 %v2859
    %v2861 = vpop.f32.mrf.mxu0
    %v2862 = vadd.f32 %v2461, %v2861
    %v2863 = vpop.f32.mrf.mxu0
    %2864 = vmatprep.mubr.f32.mxu0 0.0
    %v2865 = vand.u32 %v2293, 4294901760
    %2866 = vmatmul.mubr.f32.gmra.mxu0 %v2865
    %v2867 = vpop.f32.mrf.mxu0
    %v2868 = vadd.f32 %v2471, %v2867
    %v2869 = vpop.f32.mrf.mxu0
    %2870 = vmatprep.mubr.f32.mxu0 0.0
    %v2871 = vand.u32 %v2296, 4294901760
    %2872 = vmatmul.mubr.f32.gmra.mxu0 %v2871
    %v2873 = vpop.f32.mrf.mxu0
    %v2874 = vadd.f32 %v2481, %v2873
    %v2875 = vpop.f32.mrf.mxu0
    %2876 = vmatprep.mubr.f32.mxu0 0.0
    %v2877 = vand.u32 %v2299, 4294901760
    %2878 = vmatmul.mubr.f32.gmra.mxu0 %v2877
    %v2879 = vpop.f32.mrf.mxu0
    %v2880 = vadd.f32 %v2491, %v2879
    %v2881 = vpop.f32.mrf.mxu0
    %2882 = vmatprep.mubr.f32.mxu0 0.0
    %v2883 = vand.u32 %v2302, 4294901760
    %2884 = vmatmul.mubr.f32.gmra.mxu0 %v2883
    %v2885 = vpop.f32.mrf.mxu0
    %v2886 = vadd.f32 %v2501, %v2885
    %v2887 = vpop.f32.mrf.mxu0
    %2888 = vmatprep.mubr.f32.mxu0 0.0
    %v2889 = vand.u32 %v2305, 4294901760
    %2890 = vmatmul.mubr.f32.gmra.mxu0 %v2889
    %v2891 = vpop.f32.mrf.mxu0
    %v2892 = vadd.f32 %v2511, %v2891
    %v2893 = vpop.f32.mrf.mxu0
    %2894 = vmatprep.mubr.f32.mxu0 0.0
    %v2895 = vand.u32 %v2308, 4294901760
    %2896 = vmatmul.mubr.f32.gmra.mxu0 %v2895
    %v2897 = vpop.f32.mrf.mxu0
    %v2898 = vadd.f32 %v2521, %v2897
    %v2899 = vpop.f32.mrf.mxu0
    %2900 = vmatprep.mubr.f32.mxu0 0.0
    %v2901 = vand.u32 %v2311, 4294901760
    %2902 = vmatmul.mubr.f32.gmra.mxu0 %v2901
    %v2903 = vpop.f32.mrf.mxu0
    %v2904 = vadd.f32 %v2531, %v2903
    %v2905 = vpop.f32.mrf.mxu0
    %2906 = vmatprep.mubr.f32.mxu0 0.0
    %v2907 = vand.u32 %v2314, 4294901760
    %2908 = vmatmul.mubr.f32.gmra.mxu0 %v2907
    %v2909 = vpop.f32.mrf.mxu0
    %v2910 = vadd.f32 %v2541, %v2909
    %v2911 = vpop.f32.mrf.mxu0
    %2912 = vmatprep.mubr.f32.mxu0 0.0
    %v2913 = vand.u32 %v2317, 4294901760
    %2914 = vmatmul.mubr.f32.gmra.mxu0 %v2913
    %v2915 = vpop.f32.mrf.mxu0
    %v2916 = vadd.f32 %v2551, %v2915
    %v2917 = vpop.f32.mrf.mxu0
    %2918 = vmatprep.mubr.f32.mxu0 0.0
    %v2919 = vand.u32 %v2320, 4294901760
    %2920 = vmatmul.mubr.f32.gmra.mxu0 %v2919
    %v2921 = vpop.f32.mrf.mxu0
    %v2922 = vadd.f32 %v2561, %v2921
    %v2923 = vpop.f32.mrf.mxu0
    %2924 = vmatprep.mubr.f32.mxu0 0.0
    %v2925 = vand.u32 %v2323, 4294901760
    %2926 = vmatmul.mubr.f32.gmra.mxu0 %v2925
    %v2927 = vpop.f32.mrf.mxu0
    %v2928 = vadd.f32 %v2571, %v2927
    %v2929 = vpop.f32.mrf.mxu0
    %2930 = vmatprep.mubr.f32.mxu0 0.0
    %v2931 = vand.u32 %v2326, 4294901760
    %2932 = vmatmul.mubr.f32.gmra.mxu0 %v2931
    %v2933 = vpop.f32.mrf.mxu0
    %v2934 = vadd.f32 %v2581, %v2933
    %v2935 = vpop.f32.mrf.mxu0
    %2936 = vmatprep.mubr.f32.mxu0 0.0
    %v2937 = vand.u32 %v2329, 4294901760
    %2938 = vmatmul.mubr.f32.gmra.mxu0 %v2937
    %v2939 = vpop.f32.mrf.mxu0
    %v2940 = vadd.f32 %v2591, %v2939
    %v2941 = vpop.f32.mrf.mxu0
    %2942 = vmatprep.mubr.f32.mxu0 0.0
    %v2943 = vand.u32 %v2332, 4294901760
    %2944 = vmatmul.mubr.f32.gmra.mxu0 %v2943
    %v2945 = vpop.f32.mrf.mxu0
    %v2946 = vadd.f32 %v2601, %v2945
    %v2947 = vpop.f32.mrf.mxu0
    %2948 = vmatprep.mubr.f32.mxu0 0.0
    %v2949 = vand.u32 %v2335, 4294901760
    %2950 = vmatmul.mubr.f32.gmra.mxu0 %v2949
    %v2951 = vpop.f32.mrf.mxu0
    %v2952 = vadd.f32 %v2611, %v2951
    %v2953 = vpop.f32.mrf.mxu0
    %2954 = vmatprep.mubr.f32.mxu0 0.0
    %v2955 = vand.u32 %v2338, 4294901760
    %2956 = vmatmul.mubr.f32.gmra.mxu0 %v2955
    %v2957 = vpop.f32.mrf.mxu0
    %v2958 = vadd.f32 %v2621, %v2957
    %v2959 = vpop.f32.mrf.mxu0
    %2960 = vmatprep.mubr.f32.mxu0 0.0
    %v2961 = vand.u32 %v2341, 4294901760
    %2962 = vmatmul.mubr.f32.gmra.mxu0 %v2961
    %v2963 = vpop.f32.mrf.mxu0
    %v2964 = vadd.f32 %v2631, %v2963
    %v2965 = vpop.f32.mrf.mxu0
    %2966 = vmatprep.mubr.f32.mxu0 0.0
    %v2967 = vand.u32 %v2344, 4294901760
    %2968 = vmatmul.mubr.f32.gmra.mxu0 %v2967
    %v2969 = vpop.f32.mrf.mxu0
    %v2970 = vadd.f32 %v2641, %v2969
    %v2971 = vpop.f32.mrf.mxu0
    %2972 = vmatprep.mubr.f32.mxu0 0.0
    %v2973 = vand.u32 %v2347, 4294901760
    %2974 = vmatmul.mubr.f32.gmra.mxu0 %v2973
    %v2975 = vpop.f32.mrf.mxu0
    %v2976 = vadd.f32 %v2651, %v2975
    %v2977 = vpop.f32.mrf.mxu0
    %2978 = vmatprep.mubr.f32.mxu0 0.0
    %v2979 = vand.u32 %v2350, 4294901760
    %2980 = vmatmul.mubr.f32.gmra.mxu0 %v2979
    %v2981 = vpop.f32.mrf.mxu0
    %v2982 = vadd.f32 %v2661, %v2981
    %v2983 = vpop.f32.mrf.mxu0
    %2984 = vmatprep.mubr.f32.mxu0 0.0
    %v2985 = vand.u32 %v2353, 4294901760
    %2986 = vmatmul.mubr.f32.gmra.mxu0 %v2985
    %v2987 = vpop.f32.mrf.mxu0
    %v2988 = vadd.f32 %v2671, %v2987
    %v2989 = vpop.f32.mrf.mxu0
    %2990 = vmatprep.mubr.f32.mxu0 0.0
    %v2991 = vand.u32 %v2356, 4294901760
    %2992 = vmatmul.mubr.f32.gmra.mxu0 %v2991
    %v2993 = vpop.f32.mrf.mxu0
    %v2994 = vadd.f32 %v2681, %v2993
    %v2995 = vpop.f32.mrf.mxu0
    %2996 = vmatprep.mubr.f32.mxu0 0.0
    %v2997 = vand.u32 %v2359, 4294901760
    %2998 = vmatmul.mubr.f32.gmra.mxu0 %v2997
    %v2999 = vpop.f32.mrf.mxu0
    %v3000 = vadd.f32 %v2691, %v2999
    %v3001 = vpop.f32.mrf.mxu0
    %3002 = vmatprep.mubr.f32.mxu0 0.0
    %v3003 = vand.u32 %v2362, 4294901760
    %3004 = vmatmul.mubr.f32.gmra.mxu0 %v3003
    %v3005 = vpop.f32.mrf.mxu0
    %v3006 = vadd.f32 %v2701, %v3005
    %v3007 = vpop.f32.mrf.mxu0
    %3008 = vmatprep.mubr.f32.mxu0 0.0
    %v3009 = vand.u32 %v2365, 4294901760
    %3010 = vmatmul.mubr.f32.gmra.mxu0 %v3009
    %v3011 = vpop.f32.mrf.mxu0
    %v3012 = vadd.f32 %v2711, %v3011
    %v3013 = vpop.f32.mrf.mxu0
    %3014 = vmatprep.mubr.f32.mxu0 0.0
    %v3015 = vand.u32 %v2368, 4294901760
    %3016 = vmatmul.mubr.f32.gmra.mxu0 %v3015
    %v3017 = vpop.f32.mrf.mxu0
    %v3018 = vadd.f32 %v2721, %v3017
    %v3019 = vpop.f32.mrf.mxu0
    %3020 = vmatprep.mubr.f32.mxu0 0.0
    %v3021 = vand.u32 %v2371, 4294901760
    %3022 = vmatmul.mubr.f32.gmra.mxu0 %v3021
    %v3023 = vpop.f32.mrf.mxu0
    %v3024 = vadd.f32 %v2731, %v3023
    %v3025 = vpop.f32.mrf.mxu0
    %3026 = vmatprep.mubr.f32.mxu0 0.0
    %v3027 = vand.u32 %v2374, 4294901760
    %3028 = vmatmul.mubr.f32.gmra.mxu0 %v3027
    %v3029 = vpop.f32.mrf.mxu0
    %v3030 = vadd.f32 %v2741, %v3029
    %v3031 = vpop.f32.mrf.mxu0
    %3032 = vmatprep.mubr.f32.mxu0 0.0
    %v3033 = vand.u32 %v2377, 4294901760
    %3034 = vmatmul.mubr.f32.gmra.mxu0 %v3033
    %v3035 = vpop.f32.mrf.mxu0
    %v3036 = vadd.f32 %v2751, %v3035
    %v3037 = vpop.f32.mrf.mxu0
    %3038 = vmatprep.mubr.f32.mxu0 0.0
    %v3039 = vand.u32 %v2380, 4294901760
    %3040 = vmatmul.mubr.f32.gmra.mxu0 %v3039
    %v3041 = vpop.f32.mrf.mxu0
    %v3042 = vadd.f32 %v2761, %v3041
    %v3043 = vpop.f32.mrf.mxu0
    %3044 = vmatprep.mubr.f32.mxu0 0.0
    %v3045 = vand.u32 %v2383, 4294901760
    %3046 = vmatmul.mubr.f32.gmra.mxu0 %v3045
    %v3047 = vpop.f32.mrf.mxu0
    %v3048 = vadd.f32 %v2771, %v3047
    %v3049 = vpop.f32.mrf.mxu0
    %3050 = vdwg.mxu0
    %3051 = vmatprep.subr.mxu0 0.0
    %3052 = vmatpush1.msra.mxu0 0.0
    %3053 = vmatprep.subr.mxu0 0.0
    %3054 = vmatpush1.msra.mxu0 0.0
    %3055 = vmatprep.subr.mxu0 0.0
    %3056 = vmatpush1.msra.mxu0 0.0
    %3057 = vmatprep.subr.mxu0 0.0
    %3058 = vmatpush1.msra.mxu0 0.0
    %3059 = vmatprep.subr.mxu0 0.0
    %3060 = vmatpush1.msra.mxu0 0.0
    %3061 = vmatprep.subr.mxu0 0.0
    %3062 = vmatpush1.msra.mxu0 0.0
    %3063 = vmatprep.subr.mxu0 0.0
    %3064 = vmatpush1.msra.mxu0 0.0
    %3065 = vmatprep.subr.mxu0 0.0
    %3066 = vmatpush1.msra.mxu0 0.0
    %3067 = vmatprep.subr.mxu0 0.0
    %3068 = vmatpush1.msra.mxu0 0.0
    %3069 = vmatprep.subr.mxu0 0.0
    %3070 = vmatpush1.msra.mxu0 0.0
    %3071 = vmatprep.subr.mxu0 0.0
    %3072 = vmatpush1.msra.mxu0 0.0
    %3073 = vmatprep.subr.mxu0 0.0
    %3074 = vmatpush1.msra.mxu0 0.0
    %3075 = vmatprep.subr.mxu0 0.0
    %v3076 = vand.u32 %v101, 4294901760
    %v3077 = vsub.f32 %v101, %v3076
    %3078 = vmatpush1.msra.mxu0 %v3077
    %3079 = vmatprep.subr.mxu0 0.0
    %v3080 = vand.u32 %v100, 4294901760
    %v3081 = vsub.f32 %v100, %v3080
    %3082 = vmatpush1.msra.mxu0 %v3081
    %3083 = vmatprep.subr.mxu0 0.0
    %v3084 = vand.u32 %v99, 4294901760
    %v3085 = vsub.f32 %v99, %v3084
    %3086 = vmatpush1.msra.mxu0 %v3085
    %3087 = vmatprep.subr.mxu0 0.0
    %v3088 = vand.u32 %v98, 4294901760
    %v3089 = vsub.f32 %v98, %v3088
    %3090 = vmatpush1.msra.mxu0 %v3089
    %3091 = vmatprep.subr.mxu0 0.0
    %3092 = vmatpush2.msra.mxu0 0.0
    %3093 = vmatprep.subr.mxu0 0.0
    %3094 = vmatpush2.msra.mxu0 0.0
    %3095 = vmatprep.subr.mxu0 0.0
    %3096 = vmatpush2.msra.mxu0 0.0
    %3097 = vmatprep.subr.mxu0 0.0
    %3098 = vmatpush2.msra.mxu0 0.0
    %3099 = vmatprep.subr.mxu0 0.0
    %3100 = vmatpush2.msra.mxu0 0.0
    %3101 = vmatprep.subr.mxu0 0.0
    %3102 = vmatpush2.msra.mxu0 0.0
    %3103 = vmatprep.subr.mxu0 0.0
    %3104 = vmatpush2.msra.mxu0 0.0
    %3105 = vmatprep.subr.mxu0 0.0
    %3106 = vmatpush2.msra.mxu0 0.0
    %3107 = vmatprep.subr.mxu0 0.0
    %3108 = vmatpush2.msra.mxu0 0.0
    %3109 = vmatprep.subr.mxu0 0.0
    %3110 = vmatpush2.msra.mxu0 0.0
    %3111 = vmatprep.subr.mxu0 0.0
    %3112 = vmatpush2.msra.mxu0 0.0
    %3113 = vmatprep.subr.mxu0 0.0
    %3114 = vmatpush2.msra.mxu0 0.0
    %3115 = vmatprep.subr.mxu0 0.0
    %3116 = vmatpush2.msra.mxu0 0.0
    %3117 = vmatprep.subr.mxu0 0.0
    %3118 = vmatpush2.msra.mxu0 0.0
    %3119 = vmatprep.subr.mxu0 0.0
    %3120 = vmatpush2.msra.mxu0 0.0
    %3121 = vmatprep.subr.mxu0 0.0
    %3122 = vmatpush2.msra.mxu0 0.0
    %3123 = vmatprep.mubr.f32.mxu0 0.0
    %v3124 = vand.u32 %v2290, 4294901760
    %v3125 = vsub.f32 %v2290, %v3124
    %3126 = vmatmul.mubr.f32.gmra.mxu0 %v3125
    %v3127 = vpop.f32.mrf.mxu0
    %v3128 = vadd.f32 %v2862, %v3127
    %v3129 = vpop.f32.mrf.mxu0
    %3130 = vmatprep.mubr.f32.mxu0 0.0
    %v3131 = vand.u32 %v2293, 4294901760
    %v3132 = vsub.f32 %v2293, %v3131
    %3133 = vmatmul.mubr.f32.gmra.mxu0 %v3132
    %v3134 = vpop.f32.mrf.mxu0
    %v3135 = vadd.f32 %v2868, %v3134
    %v3136 = vpop.f32.mrf.mxu0
    %3137 = vmatprep.mubr.f32.mxu0 0.0
    %v3138 = vand.u32 %v2296, 4294901760
    %v3139 = vsub.f32 %v2296, %v3138
    %3140 = vmatmul.mubr.f32.gmra.mxu0 %v3139
    %v3141 = vpop.f32.mrf.mxu0
    %v3142 = vadd.f32 %v2874, %v3141
    %v3143 = vpop.f32.mrf.mxu0
    %3144 = vmatprep.mubr.f32.mxu0 0.0
    %v3145 = vand.u32 %v2299, 4294901760
    %v3146 = vsub.f32 %v2299, %v3145
    %3147 = vmatmul.mubr.f32.gmra.mxu0 %v3146
    %v3148 = vpop.f32.mrf.mxu0
    %v3149 = vadd.f32 %v2880, %v3148
    %v3150 = vpop.f32.mrf.mxu0
    %3151 = vmatprep.mubr.f32.mxu0 0.0
    %v3152 = vand.u32 %v2302, 4294901760
    %v3153 = vsub.f32 %v2302, %v3152
    %3154 = vmatmul.mubr.f32.gmra.mxu0 %v3153
    %v3155 = vpop.f32.mrf.mxu0
    %v3156 = vadd.f32 %v2886, %v3155
    %v3157 = vpop.f32.mrf.mxu0
    %3158 = vmatprep.mubr.f32.mxu0 0.0
    %v3159 = vand.u32 %v2305, 4294901760
    %v3160 = vsub.f32 %v2305, %v3159
    %3161 = vmatmul.mubr.f32.gmra.mxu0 %v3160
    %v3162 = vpop.f32.mrf.mxu0
    %v3163 = vadd.f32 %v2892, %v3162
    %v3164 = vpop.f32.mrf.mxu0
    %3165 = vmatprep.mubr.f32.mxu0 0.0
    %v3166 = vand.u32 %v2308, 4294901760
    %v3167 = vsub.f32 %v2308, %v3166
    %3168 = vmatmul.mubr.f32.gmra.mxu0 %v3167
    %v3169 = vpop.f32.mrf.mxu0
    %v3170 = vadd.f32 %v2898, %v3169
    %v3171 = vpop.f32.mrf.mxu0
    %3172 = vmatprep.mubr.f32.mxu0 0.0
    %v3173 = vand.u32 %v2311, 4294901760
    %v3174 = vsub.f32 %v2311, %v3173
    %3175 = vmatmul.mubr.f32.gmra.mxu0 %v3174
    %v3176 = vpop.f32.mrf.mxu0
    %v3177 = vadd.f32 %v2904, %v3176
    %v3178 = vpop.f32.mrf.mxu0
    %3179 = vmatprep.mubr.f32.mxu0 0.0
    %v3180 = vand.u32 %v2314, 4294901760
    %v3181 = vsub.f32 %v2314, %v3180
    %3182 = vmatmul.mubr.f32.gmra.mxu0 %v3181
    %v3183 = vpop.f32.mrf.mxu0
    %v3184 = vadd.f32 %v2910, %v3183
    %v3185 = vpop.f32.mrf.mxu0
    %3186 = vmatprep.mubr.f32.mxu0 0.0
    %v3187 = vand.u32 %v2317, 4294901760
    %v3188 = vsub.f32 %v2317, %v3187
    %3189 = vmatmul.mubr.f32.gmra.mxu0 %v3188
    %v3190 = vpop.f32.mrf.mxu0
    %v3191 = vadd.f32 %v2916, %v3190
    %v3192 = vpop.f32.mrf.mxu0
    %3193 = vmatprep.mubr.f32.mxu0 0.0
    %v3194 = vand.u32 %v2320, 4294901760
    %v3195 = vsub.f32 %v2320, %v3194
    %3196 = vmatmul.mubr.f32.gmra.mxu0 %v3195
    %v3197 = vpop.f32.mrf.mxu0
    %v3198 = vadd.f32 %v2922, %v3197
    %v3199 = vpop.f32.mrf.mxu0
    %3200 = vmatprep.mubr.f32.mxu0 0.0
    %v3201 = vand.u32 %v2323, 4294901760
    %v3202 = vsub.f32 %v2323, %v3201
    %3203 = vmatmul.mubr.f32.gmra.mxu0 %v3202
    %v3204 = vpop.f32.mrf.mxu0
    %v3205 = vadd.f32 %v2928, %v3204
    %v3206 = vpop.f32.mrf.mxu0
    %3207 = vmatprep.mubr.f32.mxu0 0.0
    %v3208 = vand.u32 %v2326, 4294901760
    %v3209 = vsub.f32 %v2326, %v3208
    %3210 = vmatmul.mubr.f32.gmra.mxu0 %v3209
    %v3211 = vpop.f32.mrf.mxu0
    %v3212 = vadd.f32 %v2934, %v3211
    %v3213 = vpop.f32.mrf.mxu0
    %3214 = vmatprep.mubr.f32.mxu0 0.0
    %v3215 = vand.u32 %v2329, 4294901760
    %v3216 = vsub.f32 %v2329, %v3215
    %3217 = vmatmul.mubr.f32.gmra.mxu0 %v3216
    %v3218 = vpop.f32.mrf.mxu0
    %v3219 = vadd.f32 %v2940, %v3218
    %v3220 = vpop.f32.mrf.mxu0
    %3221 = vmatprep.mubr.f32.mxu0 0.0
    %v3222 = vand.u32 %v2332, 4294901760
    %v3223 = vsub.f32 %v2332, %v3222
    %3224 = vmatmul.mubr.f32.gmra.mxu0 %v3223
    %v3225 = vpop.f32.mrf.mxu0
    %v3226 = vadd.f32 %v2946, %v3225
    %v3227 = vpop.f32.mrf.mxu0
    %3228 = vmatprep.mubr.f32.mxu0 0.0
    %v3229 = vand.u32 %v2335, 4294901760
    %v3230 = vsub.f32 %v2335, %v3229
    %3231 = vmatmul.mubr.f32.gmra.mxu0 %v3230
    %v3232 = vpop.f32.mrf.mxu0
    %v3233 = vadd.f32 %v2952, %v3232
    %v3234 = vpop.f32.mrf.mxu0
    %3235 = vmatprep.mubr.f32.mxu0 0.0
    %v3236 = vand.u32 %v2338, 4294901760
    %v3237 = vsub.f32 %v2338, %v3236
    %3238 = vmatmul.mubr.f32.gmra.mxu0 %v3237
    %v3239 = vpop.f32.mrf.mxu0
    %v3240 = vadd.f32 %v2958, %v3239
    %v3241 = vpop.f32.mrf.mxu0
    %3242 = vmatprep.mubr.f32.mxu0 0.0
    %v3243 = vand.u32 %v2341, 4294901760
    %v3244 = vsub.f32 %v2341, %v3243
    %3245 = vmatmul.mubr.f32.gmra.mxu0 %v3244
    %v3246 = vpop.f32.mrf.mxu0
    %v3247 = vadd.f32 %v2964, %v3246
    %v3248 = vpop.f32.mrf.mxu0
    %3249 = vmatprep.mubr.f32.mxu0 0.0
    %v3250 = vand.u32 %v2344, 4294901760
    %v3251 = vsub.f32 %v2344, %v3250
    %3252 = vmatmul.mubr.f32.gmra.mxu0 %v3251
    %v3253 = vpop.f32.mrf.mxu0
    %v3254 = vadd.f32 %v2970, %v3253
    %v3255 = vpop.f32.mrf.mxu0
    %3256 = vmatprep.mubr.f32.mxu0 0.0
    %v3257 = vand.u32 %v2347, 4294901760
    %v3258 = vsub.f32 %v2347, %v3257
    %3259 = vmatmul.mubr.f32.gmra.mxu0 %v3258
    %v3260 = vpop.f32.mrf.mxu0
    %v3261 = vadd.f32 %v2976, %v3260
    %v3262 = vpop.f32.mrf.mxu0
    %3263 = vmatprep.mubr.f32.mxu0 0.0
    %v3264 = vand.u32 %v2350, 4294901760
    %v3265 = vsub.f32 %v2350, %v3264
    %3266 = vmatmul.mubr.f32.gmra.mxu0 %v3265
    %v3267 = vpop.f32.mrf.mxu0
    %v3268 = vadd.f32 %v2982, %v3267
    %v3269 = vpop.f32.mrf.mxu0
    %3270 = vmatprep.mubr.f32.mxu0 0.0
    %v3271 = vand.u32 %v2353, 4294901760
    %v3272 = vsub.f32 %v2353, %v3271
    %3273 = vmatmul.mubr.f32.gmra.mxu0 %v3272
    %v3274 = vpop.f32.mrf.mxu0
    %v3275 = vadd.f32 %v2988, %v3274
    %v3276 = vpop.f32.mrf.mxu0
    %3277 = vmatprep.mubr.f32.mxu0 0.0
    %v3278 = vand.u32 %v2356, 4294901760
    %v3279 = vsub.f32 %v2356, %v3278
    %3280 = vmatmul.mubr.f32.gmra.mxu0 %v3279
    %v3281 = vpop.f32.mrf.mxu0
    %v3282 = vadd.f32 %v2994, %v3281
    %v3283 = vpop.f32.mrf.mxu0
    %3284 = vmatprep.mubr.f32.mxu0 0.0
    %v3285 = vand.u32 %v2359, 4294901760
    %v3286 = vsub.f32 %v2359, %v3285
    %3287 = vmatmul.mubr.f32.gmra.mxu0 %v3286
    %v3288 = vpop.f32.mrf.mxu0
    %v3289 = vadd.f32 %v3000, %v3288
    %v3290 = vpop.f32.mrf.mxu0
    %3291 = vmatprep.mubr.f32.mxu0 0.0
    %v3292 = vand.u32 %v2362, 4294901760
    %v3293 = vsub.f32 %v2362, %v3292
    %3294 = vmatmul.mubr.f32.gmra.mxu0 %v3293
    %v3295 = vpop.f32.mrf.mxu0
    %v3296 = vadd.f32 %v3006, %v3295
    %v3297 = vpop.f32.mrf.mxu0
    %3298 = vmatprep.mubr.f32.mxu0 0.0
    %v3299 = vand.u32 %v2365, 4294901760
    %v3300 = vsub.f32 %v2365, %v3299
    %3301 = vmatmul.mubr.f32.gmra.mxu0 %v3300
    %v3302 = vpop.f32.mrf.mxu0
    %v3303 = vadd.f32 %v3012, %v3302
    %v3304 = vpop.f32.mrf.mxu0
    %3305 = vmatprep.mubr.f32.mxu0 0.0
    %v3306 = vand.u32 %v2368, 4294901760
    %v3307 = vsub.f32 %v2368, %v3306
    %3308 = vmatmul.mubr.f32.gmra.mxu0 %v3307
    %v3309 = vpop.f32.mrf.mxu0
    %v3310 = vadd.f32 %v3018, %v3309
    %v3311 = vpop.f32.mrf.mxu0
    %3312 = vmatprep.mubr.f32.mxu0 0.0
    %v3313 = vand.u32 %v2371, 4294901760
    %v3314 = vsub.f32 %v2371, %v3313
    %3315 = vmatmul.mubr.f32.gmra.mxu0 %v3314
    %v3316 = vpop.f32.mrf.mxu0
    %v3317 = vadd.f32 %v3024, %v3316
    %v3318 = vpop.f32.mrf.mxu0
    %3319 = vmatprep.mubr.f32.mxu0 0.0
    %v3320 = vand.u32 %v2374, 4294901760
    %v3321 = vsub.f32 %v2374, %v3320
    %3322 = vmatmul.mubr.f32.gmra.mxu0 %v3321
    %v3323 = vpop.f32.mrf.mxu0
    %v3324 = vadd.f32 %v3030, %v3323
    %v3325 = vpop.f32.mrf.mxu0
    %3326 = vmatprep.mubr.f32.mxu0 0.0
    %v3327 = vand.u32 %v2377, 4294901760
    %v3328 = vsub.f32 %v2377, %v3327
    %3329 = vmatmul.mubr.f32.gmra.mxu0 %v3328
    %v3330 = vpop.f32.mrf.mxu0
    %v3331 = vadd.f32 %v3036, %v3330
    %v3332 = vpop.f32.mrf.mxu0
    %3333 = vmatprep.mubr.f32.mxu0 0.0
    %v3334 = vand.u32 %v2380, 4294901760
    %v3335 = vsub.f32 %v2380, %v3334
    %3336 = vmatmul.mubr.f32.gmra.mxu0 %v3335
    %v3337 = vpop.f32.mrf.mxu0
    %v3338 = vadd.f32 %v3042, %v3337
    %v3339 = vpop.f32.mrf.mxu0
    %3340 = vmatprep.mubr.f32.mxu0 0.0
    %v3341 = vand.u32 %v2383, 4294901760
    %v3342 = vsub.f32 %v2383, %v3341
    %3343 = vmatmul.mubr.f32.gmra.mxu0 %v3342
    %v3344 = vpop.f32.mrf.mxu0
    %v3345 = vadd.f32 %v3048, %v3344
    %v3346 = vpop.f32.mrf.mxu0
    %3347 = vdwg.mxu0
    %3348 = vmatprep.subr.mxu0 0.0
    %3349 = vmatpush1.msra.mxu0 0.0
    %3350 = vmatprep.subr.mxu0 0.0
    %3351 = vmatpush1.msra.mxu0 0.0
    %3352 = vmatprep.subr.mxu0 0.0
    %3353 = vmatpush1.msra.mxu0 0.0
    %3354 = vmatprep.subr.mxu0 0.0
    %3355 = vmatpush1.msra.mxu0 0.0
    %3356 = vmatprep.subr.mxu0 0.0
    %3357 = vmatpush1.msra.mxu0 0.0
    %3358 = vmatprep.subr.mxu0 0.0
    %3359 = vmatpush1.msra.mxu0 0.0
    %3360 = vmatprep.subr.mxu0 0.0
    %3361 = vmatpush1.msra.mxu0 0.0
    %3362 = vmatprep.subr.mxu0 0.0
    %3363 = vmatpush1.msra.mxu0 0.0
    %3364 = vmatprep.subr.mxu0 0.0
    %3365 = vmatpush1.msra.mxu0 0.0
    %3366 = vmatprep.subr.mxu0 0.0
    %3367 = vmatpush1.msra.mxu0 0.0
    %3368 = vmatprep.subr.mxu0 0.0
    %3369 = vmatpush1.msra.mxu0 0.0
    %3370 = vmatprep.subr.mxu0 0.0
    %3371 = vmatpush1.msra.mxu0 0.0
    %3372 = vmatprep.subr.mxu0 0.0
    %v3373 = vand.u32 %v101, 4294901760
    %3374 = vmatpush1.msra.mxu0 %v3373
    %3375 = vmatprep.subr.mxu0 0.0
    %v3376 = vand.u32 %v100, 4294901760
    %3377 = vmatpush1.msra.mxu0 %v3376
    %3378 = vmatprep.subr.mxu0 0.0
    %v3379 = vand.u32 %v99, 4294901760
    %3380 = vmatpush1.msra.mxu0 %v3379
    %3381 = vmatprep.subr.mxu0 0.0
    %v3382 = vand.u32 %v98, 4294901760
    %3383 = vmatpush1.msra.mxu0 %v3382
    %3384 = vmatprep.subr.mxu0 0.0
    %3385 = vmatpush2.msra.mxu0 0.0
    %3386 = vmatprep.subr.mxu0 0.0
    %3387 = vmatpush2.msra.mxu0 0.0
    %3388 = vmatprep.subr.mxu0 0.0
    %3389 = vmatpush2.msra.mxu0 0.0
    %3390 = vmatprep.subr.mxu0 0.0
    %3391 = vmatpush2.msra.mxu0 0.0
    %3392 = vmatprep.subr.mxu0 0.0
    %3393 = vmatpush2.msra.mxu0 0.0
    %3394 = vmatprep.subr.mxu0 0.0
    %3395 = vmatpush2.msra.mxu0 0.0
    %3396 = vmatprep.subr.mxu0 0.0
    %3397 = vmatpush2.msra.mxu0 0.0
    %3398 = vmatprep.subr.mxu0 0.0
    %3399 = vmatpush2.msra.mxu0 0.0
    %3400 = vmatprep.subr.mxu0 0.0
    %3401 = vmatpush2.msra.mxu0 0.0
    %3402 = vmatprep.subr.mxu0 0.0
    %3403 = vmatpush2.msra.mxu0 0.0
    %3404 = vmatprep.subr.mxu0 0.0
    %3405 = vmatpush2.msra.mxu0 0.0
    %3406 = vmatprep.subr.mxu0 0.0
    %3407 = vmatpush2.msra.mxu0 0.0
    %3408 = vmatprep.subr.mxu0 0.0
    %3409 = vmatpush2.msra.mxu0 0.0
    %3410 = vmatprep.subr.mxu0 0.0
    %3411 = vmatpush2.msra.mxu0 0.0
    %3412 = vmatprep.subr.mxu0 0.0
    %3413 = vmatpush2.msra.mxu0 0.0
    %3414 = vmatprep.subr.mxu0 0.0
    %3415 = vmatpush2.msra.mxu0 0.0
    %3416 = vmatprep.mubr.f32.mxu0 0.0
    %v3417 = vand.u32 %v2290, 4294901760
    %v3418 = vsub.f32 %v2290, %v3417
    %v3419 = vand.u32 %v3418, 4294901760
    %3420 = vmatmul.mubr.f32.gmra.mxu0 %v3419
    %v3421 = vpop.f32.mrf.mxu0
    %v3422 = vadd.f32 %v3128, %v3421
    %v3423 = vpop.f32.mrf.mxu0
    %3424 = vmatprep.mubr.f32.mxu0 0.0
    %v3425 = vand.u32 %v2293, 4294901760
    %v3426 = vsub.f32 %v2293, %v3425
    %v3427 = vand.u32 %v3426, 4294901760
    %3428 = vmatmul.mubr.f32.gmra.mxu0 %v3427
    %v3429 = vpop.f32.mrf.mxu0
    %v3430 = vadd.f32 %v3135, %v3429
    %v3431 = vpop.f32.mrf.mxu0
    %3432 = vmatprep.mubr.f32.mxu0 0.0
    %v3433 = vand.u32 %v2296, 4294901760
    %v3434 = vsub.f32 %v2296, %v3433
    %v3435 = vand.u32 %v3434, 4294901760
    %3436 = vmatmul.mubr.f32.gmra.mxu0 %v3435
    %v3437 = vpop.f32.mrf.mxu0
    %v3438 = vadd.f32 %v3142, %v3437
    %v3439 = vpop.f32.mrf.mxu0
    %3440 = vmatprep.mubr.f32.mxu0 0.0
    %v3441 = vand.u32 %v2299, 4294901760
    %v3442 = vsub.f32 %v2299, %v3441
    %v3443 = vand.u32 %v3442, 4294901760
    %3444 = vmatmul.mubr.f32.gmra.mxu0 %v3443
    %v3445 = vpop.f32.mrf.mxu0
    %v3446 = vadd.f32 %v3149, %v3445
    %v3447 = vpop.f32.mrf.mxu0
    %3448 = vmatprep.mubr.f32.mxu0 0.0
    %v3449 = vand.u32 %v2302, 4294901760
    %v3450 = vsub.f32 %v2302, %v3449
    %v3451 = vand.u32 %v3450, 4294901760
    %3452 = vmatmul.mubr.f32.gmra.mxu0 %v3451
    %v3453 = vpop.f32.mrf.mxu0
    %v3454 = vadd.f32 %v3156, %v3453
    %v3455 = vpop.f32.mrf.mxu0
    %3456 = vmatprep.mubr.f32.mxu0 0.0
    %v3457 = vand.u32 %v2305, 4294901760
    %v3458 = vsub.f32 %v2305, %v3457
    %v3459 = vand.u32 %v3458, 4294901760
    %3460 = vmatmul.mubr.f32.gmra.mxu0 %v3459
    %v3461 = vpop.f32.mrf.mxu0
    %v3462 = vadd.f32 %v3163, %v3461
    %v3463 = vpop.f32.mrf.mxu0
    %3464 = vmatprep.mubr.f32.mxu0 0.0
    %v3465 = vand.u32 %v2308, 4294901760
    %v3466 = vsub.f32 %v2308, %v3465
    %v3467 = vand.u32 %v3466, 4294901760
    %3468 = vmatmul.mubr.f32.gmra.mxu0 %v3467
    %v3469 = vpop.f32.mrf.mxu0
    %v3470 = vadd.f32 %v3170, %v3469
    %v3471 = vpop.f32.mrf.mxu0
    %3472 = vmatprep.mubr.f32.mxu0 0.0
    %v3473 = vand.u32 %v2311, 4294901760
    %v3474 = vsub.f32 %v2311, %v3473
    %v3475 = vand.u32 %v3474, 4294901760
    %3476 = vmatmul.mubr.f32.gmra.mxu0 %v3475
    %v3477 = vpop.f32.mrf.mxu0
    %v3478 = vadd.f32 %v3177, %v3477
    %v3479 = vpop.f32.mrf.mxu0
    %3480 = vmatprep.mubr.f32.mxu0 0.0
    %v3481 = vand.u32 %v2314, 4294901760
    %v3482 = vsub.f32 %v2314, %v3481
    %v3483 = vand.u32 %v3482, 4294901760
    %3484 = vmatmul.mubr.f32.gmra.mxu0 %v3483
    %v3485 = vpop.f32.mrf.mxu0
    %v3486 = vadd.f32 %v3184, %v3485
    %v3487 = vpop.f32.mrf.mxu0
    %3488 = vmatprep.mubr.f32.mxu0 0.0
    %v3489 = vand.u32 %v2317, 4294901760
    %v3490 = vsub.f32 %v2317, %v3489
    %v3491 = vand.u32 %v3490, 4294901760
    %3492 = vmatmul.mubr.f32.gmra.mxu0 %v3491
    %v3493 = vpop.f32.mrf.mxu0
    %v3494 = vadd.f32 %v3191, %v3493
    %v3495 = vpop.f32.mrf.mxu0
    %3496 = vmatprep.mubr.f32.mxu0 0.0
    %v3497 = vand.u32 %v2320, 4294901760
    %v3498 = vsub.f32 %v2320, %v3497
    %v3499 = vand.u32 %v3498, 4294901760
    %3500 = vmatmul.mubr.f32.gmra.mxu0 %v3499
    %v3501 = vpop.f32.mrf.mxu0
    %v3502 = vadd.f32 %v3198, %v3501
    %v3503 = vpop.f32.mrf.mxu0
    %3504 = vmatprep.mubr.f32.mxu0 0.0
    %v3505 = vand.u32 %v2323, 4294901760
    %v3506 = vsub.f32 %v2323, %v3505
    %v3507 = vand.u32 %v3506, 4294901760
    %3508 = vmatmul.mubr.f32.gmra.mxu0 %v3507
    %v3509 = vpop.f32.mrf.mxu0
    %v3510 = vadd.f32 %v3205, %v3509
    %v3511 = vpop.f32.mrf.mxu0
    %3512 = vmatprep.mubr.f32.mxu0 0.0
    %v3513 = vand.u32 %v2326, 4294901760
    %v3514 = vsub.f32 %v2326, %v3513
    %v3515 = vand.u32 %v3514, 4294901760
    %3516 = vmatmul.mubr.f32.gmra.mxu0 %v3515
    %v3517 = vpop.f32.mrf.mxu0
    %v3518 = vadd.f32 %v3212, %v3517
    %v3519 = vpop.f32.mrf.mxu0
    %3520 = vmatprep.mubr.f32.mxu0 0.0
    %v3521 = vand.u32 %v2329, 4294901760
    %v3522 = vsub.f32 %v2329, %v3521
    %v3523 = vand.u32 %v3522, 4294901760
    %3524 = vmatmul.mubr.f32.gmra.mxu0 %v3523
    %v3525 = vpop.f32.mrf.mxu0
    %v3526 = vadd.f32 %v3219, %v3525
    %v3527 = vpop.f32.mrf.mxu0
    %3528 = vmatprep.mubr.f32.mxu0 0.0
    %v3529 = vand.u32 %v2332, 4294901760
    %v3530 = vsub.f32 %v2332, %v3529
    %v3531 = vand.u32 %v3530, 4294901760
    %3532 = vmatmul.mubr.f32.gmra.mxu0 %v3531
    %v3533 = vpop.f32.mrf.mxu0
    %v3534 = vadd.f32 %v3226, %v3533
    %v3535 = vpop.f32.mrf.mxu0
    %3536 = vmatprep.mubr.f32.mxu0 0.0
    %v3537 = vand.u32 %v2335, 4294901760
    %v3538 = vsub.f32 %v2335, %v3537
    %v3539 = vand.u32 %v3538, 4294901760
    %3540 = vmatmul.mubr.f32.gmra.mxu0 %v3539
    %v3541 = vpop.f32.mrf.mxu0
    %v3542 = vadd.f32 %v3233, %v3541
    %v3543 = vpop.f32.mrf.mxu0
    %3544 = vmatprep.mubr.f32.mxu0 0.0
    %v3545 = vand.u32 %v2338, 4294901760
    %v3546 = vsub.f32 %v2338, %v3545
    %v3547 = vand.u32 %v3546, 4294901760
    %3548 = vmatmul.mubr.f32.gmra.mxu0 %v3547
    %v3549 = vpop.f32.mrf.mxu0
    %v3550 = vadd.f32 %v3240, %v3549
    %v3551 = vpop.f32.mrf.mxu0
    %3552 = vmatprep.mubr.f32.mxu0 0.0
    %v3553 = vand.u32 %v2341, 4294901760
    %v3554 = vsub.f32 %v2341, %v3553
    %v3555 = vand.u32 %v3554, 4294901760
    %3556 = vmatmul.mubr.f32.gmra.mxu0 %v3555
    %v3557 = vpop.f32.mrf.mxu0
    %v3558 = vadd.f32 %v3247, %v3557
    %v3559 = vpop.f32.mrf.mxu0
    %3560 = vmatprep.mubr.f32.mxu0 0.0
    %v3561 = vand.u32 %v2344, 4294901760
    %v3562 = vsub.f32 %v2344, %v3561
    %v3563 = vand.u32 %v3562, 4294901760
    %3564 = vmatmul.mubr.f32.gmra.mxu0 %v3563
    %v3565 = vpop.f32.mrf.mxu0
    %v3566 = vadd.f32 %v3254, %v3565
    %v3567 = vpop.f32.mrf.mxu0
    %3568 = vmatprep.mubr.f32.mxu0 0.0
    %v3569 = vand.u32 %v2347, 4294901760
    %v3570 = vsub.f32 %v2347, %v3569
    %v3571 = vand.u32 %v3570, 4294901760
    %3572 = vmatmul.mubr.f32.gmra.mxu0 %v3571
    %v3573 = vpop.f32.mrf.mxu0
    %v3574 = vadd.f32 %v3261, %v3573
    %v3575 = vpop.f32.mrf.mxu0
    %3576 = vmatprep.mubr.f32.mxu0 0.0
    %v3577 = vand.u32 %v2350, 4294901760
    %v3578 = vsub.f32 %v2350, %v3577
    %v3579 = vand.u32 %v3578, 4294901760
    %3580 = vmatmul.mubr.f32.gmra.mxu0 %v3579
    %v3581 = vpop.f32.mrf.mxu0
    %v3582 = vadd.f32 %v3268, %v3581
    %v3583 = vpop.f32.mrf.mxu0
    %3584 = vmatprep.mubr.f32.mxu0 0.0
    %v3585 = vand.u32 %v2353, 4294901760
    %v3586 = vsub.f32 %v2353, %v3585
    %v3587 = vand.u32 %v3586, 4294901760
    %3588 = vmatmul.mubr.f32.gmra.mxu0 %v3587
    %v3589 = vpop.f32.mrf.mxu0
    %v3590 = vadd.f32 %v3275, %v3589
    %v3591 = vpop.f32.mrf.mxu0
    %3592 = vmatprep.mubr.f32.mxu0 0.0
    %v3593 = vand.u32 %v2356, 4294901760
    %v3594 = vsub.f32 %v2356, %v3593
    %v3595 = vand.u32 %v3594, 4294901760
    %3596 = vmatmul.mubr.f32.gmra.mxu0 %v3595
    %v3597 = vpop.f32.mrf.mxu0
    %v3598 = vadd.f32 %v3282, %v3597
    %v3599 = vpop.f32.mrf.mxu0
    %3600 = vmatprep.mubr.f32.mxu0 0.0
    %v3601 = vand.u32 %v2359, 4294901760
    %v3602 = vsub.f32 %v2359, %v3601
    %v3603 = vand.u32 %v3602, 4294901760
    %3604 = vmatmul.mubr.f32.gmra.mxu0 %v3603
    %v3605 = vpop.f32.mrf.mxu0
    %v3606 = vadd.f32 %v3289, %v3605
    %v3607 = vpop.f32.mrf.mxu0
    %3608 = vmatprep.mubr.f32.mxu0 0.0
    %v3609 = vand.u32 %v2362, 4294901760
    %v3610 = vsub.f32 %v2362, %v3609
    %v3611 = vand.u32 %v3610, 4294901760
    %3612 = vmatmul.mubr.f32.gmra.mxu0 %v3611
    %v3613 = vpop.f32.mrf.mxu0
    %v3614 = vadd.f32 %v3296, %v3613
    %v3615 = vpop.f32.mrf.mxu0
    %3616 = vmatprep.mubr.f32.mxu0 0.0
    %v3617 = vand.u32 %v2365, 4294901760
    %v3618 = vsub.f32 %v2365, %v3617
    %v3619 = vand.u32 %v3618, 4294901760
    %3620 = vmatmul.mubr.f32.gmra.mxu0 %v3619
    %v3621 = vpop.f32.mrf.mxu0
    %v3622 = vadd.f32 %v3303, %v3621
    %v3623 = vpop.f32.mrf.mxu0
    %3624 = vmatprep.mubr.f32.mxu0 0.0
    %v3625 = vand.u32 %v2368, 4294901760
    %v3626 = vsub.f32 %v2368, %v3625
    %v3627 = vand.u32 %v3626, 4294901760
    %3628 = vmatmul.mubr.f32.gmra.mxu0 %v3627
    %v3629 = vpop.f32.mrf.mxu0
    %v3630 = vadd.f32 %v3310, %v3629
    %v3631 = vpop.f32.mrf.mxu0
    %3632 = vmatprep.mubr.f32.mxu0 0.0
    %v3633 = vand.u32 %v2371, 4294901760
    %v3634 = vsub.f32 %v2371, %v3633
    %v3635 = vand.u32 %v3634, 4294901760
    %3636 = vmatmul.mubr.f32.gmra.mxu0 %v3635
    %v3637 = vpop.f32.mrf.mxu0
    %v3638 = vadd.f32 %v3317, %v3637
    %v3639 = vpop.f32.mrf.mxu0
    %3640 = vmatprep.mubr.f32.mxu0 0.0
    %v3641 = vand.u32 %v2374, 4294901760
    %v3642 = vsub.f32 %v2374, %v3641
    %v3643 = vand.u32 %v3642, 4294901760
    %3644 = vmatmul.mubr.f32.gmra.mxu0 %v3643
    %v3645 = vpop.f32.mrf.mxu0
    %v3646 = vadd.f32 %v3324, %v3645
    %v3647 = vpop.f32.mrf.mxu0
    %3648 = vmatprep.mubr.f32.mxu0 0.0
    %v3649 = vand.u32 %v2377, 4294901760
    %v3650 = vsub.f32 %v2377, %v3649
    %v3651 = vand.u32 %v3650, 4294901760
    %3652 = vmatmul.mubr.f32.gmra.mxu0 %v3651
    %v3653 = vpop.f32.mrf.mxu0
    %v3654 = vadd.f32 %v3331, %v3653
    %v3655 = vpop.f32.mrf.mxu0
    %3656 = vmatprep.mubr.f32.mxu0 0.0
    %v3657 = vand.u32 %v2380, 4294901760
    %v3658 = vsub.f32 %v2380, %v3657
    %v3659 = vand.u32 %v3658, 4294901760
    %3660 = vmatmul.mubr.f32.gmra.mxu0 %v3659
    %v3661 = vpop.f32.mrf.mxu0
    %v3662 = vadd.f32 %v3338, %v3661
    %v3663 = vpop.f32.mrf.mxu0
    %3664 = vmatprep.mubr.f32.mxu0 0.0
    %v3665 = vand.u32 %v2383, 4294901760
    %v3666 = vsub.f32 %v2383, %v3665
    %v3667 = vand.u32 %v3666, 4294901760
    %3668 = vmatmul.mubr.f32.gmra.mxu0 %v3667
    %v3669 = vpop.f32.mrf.mxu0
    %v3670 = vadd.f32 %v3345, %v3669
    %v3671 = vpop.f32.mrf.mxu0
    %3672 = vdwg.mxu0
    %3673 = vmatprep.subr.mxu0 0.0
    %3674 = vmatpush1.msra.mxu0 0.0
    %3675 = vmatprep.subr.mxu0 0.0
    %3676 = vmatpush1.msra.mxu0 0.0
    %3677 = vmatprep.subr.mxu0 0.0
    %3678 = vmatpush1.msra.mxu0 0.0
    %3679 = vmatprep.subr.mxu0 0.0
    %3680 = vmatpush1.msra.mxu0 0.0
    %3681 = vmatprep.subr.mxu0 0.0
    %3682 = vmatpush1.msra.mxu0 0.0
    %3683 = vmatprep.subr.mxu0 0.0
    %3684 = vmatpush1.msra.mxu0 0.0
    %3685 = vmatprep.subr.mxu0 0.0
    %3686 = vmatpush1.msra.mxu0 0.0
    %3687 = vmatprep.subr.mxu0 0.0
    %3688 = vmatpush1.msra.mxu0 0.0
    %3689 = vmatprep.subr.mxu0 0.0
    %3690 = vmatpush1.msra.mxu0 0.0
    %3691 = vmatprep.subr.mxu0 0.0
    %3692 = vmatpush1.msra.mxu0 0.0
    %3693 = vmatprep.subr.mxu0 0.0
    %3694 = vmatpush1.msra.mxu0 0.0
    %3695 = vmatprep.subr.mxu0 0.0
    %3696 = vmatpush1.msra.mxu0 0.0
    %3697 = vmatprep.subr.mxu0 0.0
    %v3698 = vand.u32 %v101, 4294901760
    %v3699 = vsub.f32 %v101, %v3698
    %v3700 = vand.u32 %v3699, 4294901760
    %3701 = vmatpush1.msra.mxu0 %v3700
    %3702 = vmatprep.subr.mxu0 0.0
    %v3703 = vand.u32 %v100, 4294901760
    %v3704 = vsub.f32 %v100, %v3703
    %v3705 = vand.u32 %v3704, 4294901760
    %3706 = vmatpush1.msra.mxu0 %v3705
    %3707 = vmatprep.subr.mxu0 0.0
    %v3708 = vand.u32 %v99, 4294901760
    %v3709 = vsub.f32 %v99, %v3708
    %v3710 = vand.u32 %v3709, 4294901760
    %3711 = vmatpush1.msra.mxu0 %v3710
    %3712 = vmatprep.subr.mxu0 0.0
    %v3713 = vand.u32 %v98, 4294901760
    %v3714 = vsub.f32 %v98, %v3713
    %v3715 = vand.u32 %v3714, 4294901760
    %3716 = vmatpush1.msra.mxu0 %v3715
    %3717 = vmatprep.subr.mxu0 0.0
    %3718 = vmatpush2.msra.mxu0 0.0
    %3719 = vmatprep.subr.mxu0 0.0
    %3720 = vmatpush2.msra.mxu0 0.0
    %3721 = vmatprep.subr.mxu0 0.0
    %3722 = vmatpush2.msra.mxu0 0.0
    %3723 = vmatprep.subr.mxu0 0.0
    %3724 = vmatpush2.msra.mxu0 0.0
    %3725 = vmatprep.subr.mxu0 0.0
    %3726 = vmatpush2.msra.mxu0 0.0
    %3727 = vmatprep.subr.mxu0 0.0
    %3728 = vmatpush2.msra.mxu0 0.0
    %3729 = vmatprep.subr.mxu0 0.0
    %3730 = vmatpush2.msra.mxu0 0.0
    %3731 = vmatprep.subr.mxu0 0.0
    %3732 = vmatpush2.msra.mxu0 0.0
    %3733 = vmatprep.subr.mxu0 0.0
    %3734 = vmatpush2.msra.mxu0 0.0
    %3735 = vmatprep.subr.mxu0 0.0
    %3736 = vmatpush2.msra.mxu0 0.0
    %3737 = vmatprep.subr.mxu0 0.0
    %3738 = vmatpush2.msra.mxu0 0.0
    %3739 = vmatprep.subr.mxu0 0.0
    %3740 = vmatpush2.msra.mxu0 0.0
    %3741 = vmatprep.subr.mxu0 0.0
    %3742 = vmatpush2.msra.mxu0 0.0
    %3743 = vmatprep.subr.mxu0 0.0
    %3744 = vmatpush2.msra.mxu0 0.0
    %3745 = vmatprep.subr.mxu0 0.0
    %3746 = vmatpush2.msra.mxu0 0.0
    %3747 = vmatprep.subr.mxu0 0.0
    %3748 = vmatpush2.msra.mxu0 0.0
    %3749 = vmatprep.mubr.f32.mxu0 0.0
    %v3750 = vand.u32 %v2290, 4294901760
    %3751 = vmatmul.mubr.f32.gmra.mxu0 %v3750
    %v3752 = vpop.f32.mrf.mxu0
    %v3753 = vadd.f32 %v3422, %v3752
    %v3754 = vpop.f32.mrf.mxu0
    %3755 = vmatprep.mubr.f32.mxu0 0.0
    %v3756 = vand.u32 %v2293, 4294901760
    %3757 = vmatmul.mubr.f32.gmra.mxu0 %v3756
    %v3758 = vpop.f32.mrf.mxu0
    %v3759 = vadd.f32 %v3430, %v3758
    %v3760 = vpop.f32.mrf.mxu0
    %3761 = vmatprep.mubr.f32.mxu0 0.0
    %v3762 = vand.u32 %v2296, 4294901760
    %3763 = vmatmul.mubr.f32.gmra.mxu0 %v3762
    %v3764 = vpop.f32.mrf.mxu0
    %v3765 = vadd.f32 %v3438, %v3764
    %v3766 = vpop.f32.mrf.mxu0
    %3767 = vmatprep.mubr.f32.mxu0 0.0
    %v3768 = vand.u32 %v2299, 4294901760
    %3769 = vmatmul.mubr.f32.gmra.mxu0 %v3768
    %v3770 = vpop.f32.mrf.mxu0
    %v3771 = vadd.f32 %v3446, %v3770
    %v3772 = vpop.f32.mrf.mxu0
    %3773 = vmatprep.mubr.f32.mxu0 0.0
    %v3774 = vand.u32 %v2302, 4294901760
    %3775 = vmatmul.mubr.f32.gmra.mxu0 %v3774
    %v3776 = vpop.f32.mrf.mxu0
    %v3777 = vadd.f32 %v3454, %v3776
    %v3778 = vpop.f32.mrf.mxu0
    %3779 = vmatprep.mubr.f32.mxu0 0.0
    %v3780 = vand.u32 %v2305, 4294901760
    %3781 = vmatmul.mubr.f32.gmra.mxu0 %v3780
    %v3782 = vpop.f32.mrf.mxu0
    %v3783 = vadd.f32 %v3462, %v3782
    %v3784 = vpop.f32.mrf.mxu0
    %3785 = vmatprep.mubr.f32.mxu0 0.0
    %v3786 = vand.u32 %v2308, 4294901760
    %3787 = vmatmul.mubr.f32.gmra.mxu0 %v3786
    %v3788 = vpop.f32.mrf.mxu0
    %v3789 = vadd.f32 %v3470, %v3788
    %v3790 = vpop.f32.mrf.mxu0
    %3791 = vmatprep.mubr.f32.mxu0 0.0
    %v3792 = vand.u32 %v2311, 4294901760
    %3793 = vmatmul.mubr.f32.gmra.mxu0 %v3792
    %v3794 = vpop.f32.mrf.mxu0
    %v3795 = vadd.f32 %v3478, %v3794
    %v3796 = vpop.f32.mrf.mxu0
    %3797 = vmatprep.mubr.f32.mxu0 0.0
    %v3798 = vand.u32 %v2314, 4294901760
    %3799 = vmatmul.mubr.f32.gmra.mxu0 %v3798
    %v3800 = vpop.f32.mrf.mxu0
    %v3801 = vadd.f32 %v3486, %v3800
    %v3802 = vpop.f32.mrf.mxu0
    %3803 = vmatprep.mubr.f32.mxu0 0.0
    %v3804 = vand.u32 %v2317, 4294901760
    %3805 = vmatmul.mubr.f32.gmra.mxu0 %v3804
    %v3806 = vpop.f32.mrf.mxu0
    %v3807 = vadd.f32 %v3494, %v3806
    %v3808 = vpop.f32.mrf.mxu0
    %3809 = vmatprep.mubr.f32.mxu0 0.0
    %v3810 = vand.u32 %v2320, 4294901760
    %3811 = vmatmul.mubr.f32.gmra.mxu0 %v3810
    %v3812 = vpop.f32.mrf.mxu0
    %v3813 = vadd.f32 %v3502, %v3812
    %v3814 = vpop.f32.mrf.mxu0
    %3815 = vmatprep.mubr.f32.mxu0 0.0
    %v3816 = vand.u32 %v2323, 4294901760
    %3817 = vmatmul.mubr.f32.gmra.mxu0 %v3816
    %v3818 = vpop.f32.mrf.mxu0
    %v3819 = vadd.f32 %v3510, %v3818
    %v3820 = vpop.f32.mrf.mxu0
    %3821 = vmatprep.mubr.f32.mxu0 0.0
    %v3822 = vand.u32 %v2326, 4294901760
    %3823 = vmatmul.mubr.f32.gmra.mxu0 %v3822
    %v3824 = vpop.f32.mrf.mxu0
    %v3825 = vadd.f32 %v3518, %v3824
    %v3826 = vpop.f32.mrf.mxu0
    %3827 = vmatprep.mubr.f32.mxu0 0.0
    %v3828 = vand.u32 %v2329, 4294901760
    %3829 = vmatmul.mubr.f32.gmra.mxu0 %v3828
    %v3830 = vpop.f32.mrf.mxu0
    %v3831 = vadd.f32 %v3526, %v3830
    %v3832 = vpop.f32.mrf.mxu0
    %3833 = vmatprep.mubr.f32.mxu0 0.0
    %v3834 = vand.u32 %v2332, 4294901760
    %3835 = vmatmul.mubr.f32.gmra.mxu0 %v3834
    %v3836 = vpop.f32.mrf.mxu0
    %v3837 = vadd.f32 %v3534, %v3836
    %v3838 = vpop.f32.mrf.mxu0
    %3839 = vmatprep.mubr.f32.mxu0 0.0
    %v3840 = vand.u32 %v2335, 4294901760
    %3841 = vmatmul.mubr.f32.gmra.mxu0 %v3840
    %v3842 = vpop.f32.mrf.mxu0
    %v3843 = vadd.f32 %v3542, %v3842
    %v3844 = vpop.f32.mrf.mxu0
    %3845 = vmatprep.mubr.f32.mxu0 0.0
    %v3846 = vand.u32 %v2338, 4294901760
    %3847 = vmatmul.mubr.f32.gmra.mxu0 %v3846
    %v3848 = vpop.f32.mrf.mxu0
    %v3849 = vadd.f32 %v3550, %v3848
    %v3850 = vpop.f32.mrf.mxu0
    %3851 = vmatprep.mubr.f32.mxu0 0.0
    %v3852 = vand.u32 %v2341, 4294901760
    %3853 = vmatmul.mubr.f32.gmra.mxu0 %v3852
    %v3854 = vpop.f32.mrf.mxu0
    %v3855 = vadd.f32 %v3558, %v3854
    %v3856 = vpop.f32.mrf.mxu0
    %3857 = vmatprep.mubr.f32.mxu0 0.0
    %v3858 = vand.u32 %v2344, 4294901760
    %3859 = vmatmul.mubr.f32.gmra.mxu0 %v3858
    %v3860 = vpop.f32.mrf.mxu0
    %v3861 = vadd.f32 %v3566, %v3860
    %v3862 = vpop.f32.mrf.mxu0
    %3863 = vmatprep.mubr.f32.mxu0 0.0
    %v3864 = vand.u32 %v2347, 4294901760
    %3865 = vmatmul.mubr.f32.gmra.mxu0 %v3864
    %v3866 = vpop.f32.mrf.mxu0
    %v3867 = vadd.f32 %v3574, %v3866
    %v3868 = vpop.f32.mrf.mxu0
    %3869 = vmatprep.mubr.f32.mxu0 0.0
    %v3870 = vand.u32 %v2350, 4294901760
    %3871 = vmatmul.mubr.f32.gmra.mxu0 %v3870
    %v3872 = vpop.f32.mrf.mxu0
    %v3873 = vadd.f32 %v3582, %v3872
    %v3874 = vpop.f32.mrf.mxu0
    %3875 = vmatprep.mubr.f32.mxu0 0.0
    %v3876 = vand.u32 %v2353, 4294901760
    %3877 = vmatmul.mubr.f32.gmra.mxu0 %v3876
    %v3878 = vpop.f32.mrf.mxu0
    %v3879 = vadd.f32 %v3590, %v3878
    %v3880 = vpop.f32.mrf.mxu0
    %3881 = vmatprep.mubr.f32.mxu0 0.0
    %v3882 = vand.u32 %v2356, 4294901760
    %3883 = vmatmul.mubr.f32.gmra.mxu0 %v3882
    %v3884 = vpop.f32.mrf.mxu0
    %v3885 = vadd.f32 %v3598, %v3884
    %v3886 = vpop.f32.mrf.mxu0
    %3887 = vmatprep.mubr.f32.mxu0 0.0
    %v3888 = vand.u32 %v2359, 4294901760
    %3889 = vmatmul.mubr.f32.gmra.mxu0 %v3888
    %v3890 = vpop.f32.mrf.mxu0
    %v3891 = vadd.f32 %v3606, %v3890
    %v3892 = vpop.f32.mrf.mxu0
    %3893 = vmatprep.mubr.f32.mxu0 0.0
    %v3894 = vand.u32 %v2362, 4294901760
    %3895 = vmatmul.mubr.f32.gmra.mxu0 %v3894
    %v3896 = vpop.f32.mrf.mxu0
    %v3897 = vadd.f32 %v3614, %v3896
    %v3898 = vpop.f32.mrf.mxu0
    %3899 = vmatprep.mubr.f32.mxu0 0.0
    %v3900 = vand.u32 %v2365, 4294901760
    %3901 = vmatmul.mubr.f32.gmra.mxu0 %v3900
    %v3902 = vpop.f32.mrf.mxu0
    %v3903 = vadd.f32 %v3622, %v3902
    %v3904 = vpop.f32.mrf.mxu0
    %3905 = vmatprep.mubr.f32.mxu0 0.0
    %v3906 = vand.u32 %v2368, 4294901760
    %3907 = vmatmul.mubr.f32.gmra.mxu0 %v3906
    %v3908 = vpop.f32.mrf.mxu0
    %v3909 = vadd.f32 %v3630, %v3908
    %v3910 = vpop.f32.mrf.mxu0
    %3911 = vmatprep.mubr.f32.mxu0 0.0
    %v3912 = vand.u32 %v2371, 4294901760
    %3913 = vmatmul.mubr.f32.gmra.mxu0 %v3912
    %v3914 = vpop.f32.mrf.mxu0
    %v3915 = vadd.f32 %v3638, %v3914
    %v3916 = vpop.f32.mrf.mxu0
    %3917 = vmatprep.mubr.f32.mxu0 0.0
    %v3918 = vand.u32 %v2374, 4294901760
    %3919 = vmatmul.mubr.f32.gmra.mxu0 %v3918
    %v3920 = vpop.f32.mrf.mxu0
    %v3921 = vadd.f32 %v3646, %v3920
    %v3922 = vpop.f32.mrf.mxu0
    %3923 = vmatprep.mubr.f32.mxu0 0.0
    %v3924 = vand.u32 %v2377, 4294901760
    %3925 = vmatmul.mubr.f32.gmra.mxu0 %v3924
    %v3926 = vpop.f32.mrf.mxu0
    %v3927 = vadd.f32 %v3654, %v3926
    %v3928 = vpop.f32.mrf.mxu0
    %3929 = vmatprep.mubr.f32.mxu0 0.0
    %v3930 = vand.u32 %v2380, 4294901760
    %3931 = vmatmul.mubr.f32.gmra.mxu0 %v3930
    %v3932 = vpop.f32.mrf.mxu0
    %v3933 = vadd.f32 %v3662, %v3932
    %v3934 = vpop.f32.mrf.mxu0
    %3935 = vmatprep.mubr.f32.mxu0 0.0
    %v3936 = vand.u32 %v2383, 4294901760
    %3937 = vmatmul.mubr.f32.gmra.mxu0 %v3936
    %v3938 = vpop.f32.mrf.mxu0
    %v3939 = vadd.f32 %v3670, %v3938
    %v3940 = vpop.f32.mrf.mxu0
    %3941 = vdwg.mxu0
    %3942 = vmatprep.subr.mxu0 0.0
    %3943 = vmatpush1.msra.mxu0 0.0
    %3944 = vmatprep.subr.mxu0 0.0
    %3945 = vmatpush1.msra.mxu0 0.0
    %3946 = vmatprep.subr.mxu0 0.0
    %3947 = vmatpush1.msra.mxu0 0.0
    %3948 = vmatprep.subr.mxu0 0.0
    %3949 = vmatpush1.msra.mxu0 0.0
    %3950 = vmatprep.subr.mxu0 0.0
    %3951 = vmatpush1.msra.mxu0 0.0
    %3952 = vmatprep.subr.mxu0 0.0
    %3953 = vmatpush1.msra.mxu0 0.0
    %3954 = vmatprep.subr.mxu0 0.0
    %3955 = vmatpush1.msra.mxu0 0.0
    %3956 = vmatprep.subr.mxu0 0.0
    %3957 = vmatpush1.msra.mxu0 0.0
    %3958 = vmatprep.subr.mxu0 0.0
    %3959 = vmatpush1.msra.mxu0 0.0
    %3960 = vmatprep.subr.mxu0 0.0
    %3961 = vmatpush1.msra.mxu0 0.0
    %3962 = vmatprep.subr.mxu0 0.0
    %3963 = vmatpush1.msra.mxu0 0.0
    %3964 = vmatprep.subr.mxu0 0.0
    %3965 = vmatpush1.msra.mxu0 0.0
    %3966 = vmatprep.subr.mxu0 0.0
    %v3967 = vand.u32 %v101, 4294901760
    %3968 = vmatpush1.msra.mxu0 %v3967
    %3969 = vmatprep.subr.mxu0 0.0
    %v3970 = vand.u32 %v100, 4294901760
    %3971 = vmatpush1.msra.mxu0 %v3970
    %3972 = vmatprep.subr.mxu0 0.0
    %v3973 = vand.u32 %v99, 4294901760
    %3974 = vmatpush1.msra.mxu0 %v3973
    %3975 = vmatprep.subr.mxu0 0.0
    %v3976 = vand.u32 %v98, 4294901760
    %3977 = vmatpush1.msra.mxu0 %v3976
    %3978 = vmatprep.subr.mxu0 0.0
    %3979 = vmatpush2.msra.mxu0 0.0
    %3980 = vmatprep.subr.mxu0 0.0
    %3981 = vmatpush2.msra.mxu0 0.0
    %3982 = vmatprep.subr.mxu0 0.0
    %3983 = vmatpush2.msra.mxu0 0.0
    %3984 = vmatprep.subr.mxu0 0.0
    %3985 = vmatpush2.msra.mxu0 0.0
    %3986 = vmatprep.subr.mxu0 0.0
    %3987 = vmatpush2.msra.mxu0 0.0
    %3988 = vmatprep.subr.mxu0 0.0
    %3989 = vmatpush2.msra.mxu0 0.0
    %3990 = vmatprep.subr.mxu0 0.0
    %3991 = vmatpush2.msra.mxu0 0.0
    %3992 = vmatprep.subr.mxu0 0.0
    %3993 = vmatpush2.msra.mxu0 0.0
    %3994 = vmatprep.subr.mxu0 0.0
    %3995 = vmatpush2.msra.mxu0 0.0
    %3996 = vmatprep.subr.mxu0 0.0
    %3997 = vmatpush2.msra.mxu0 0.0
    %3998 = vmatprep.subr.mxu0 0.0
    %3999 = vmatpush2.msra.mxu0 0.0
    %4000 = vmatprep.subr.mxu0 0.0
    %4001 = vmatpush2.msra.mxu0 0.0
    %4002 = vmatprep.subr.mxu0 0.0
    %4003 = vmatpush2.msra.mxu0 0.0
    %4004 = vmatprep.subr.mxu0 0.0
    %4005 = vmatpush2.msra.mxu0 0.0
    %4006 = vmatprep.subr.mxu0 0.0
    %4007 = vmatpush2.msra.mxu0 0.0
    %4008 = vmatprep.subr.mxu0 0.0
    %4009 = vmatpush2.msra.mxu0 0.0
    %4010 = vmatprep.mubr.f32.mxu0 0.0
    %v4011 = vand.u32 %v2290, 4294901760
    %4012 = vmatmul.mubr.f32.gmra.mxu0 %v4011
    %v4013 = vpop.f32.mrf.mxu0
    %v4014 = vadd.f32 %v3753, %v4013
    %v4015 = vpop.f32.mrf.mxu0
    %4016 = vmatprep.mubr.f32.mxu0 0.0
    %v4017 = vand.u32 %v2293, 4294901760
    %4018 = vmatmul.mubr.f32.gmra.mxu0 %v4017
    %v4019 = vpop.f32.mrf.mxu0
    %v4020 = vadd.f32 %v3759, %v4019
    %v4021 = vpop.f32.mrf.mxu0
    %4022 = vmatprep.mubr.f32.mxu0 0.0
    %v4023 = vand.u32 %v2296, 4294901760
    %4024 = vmatmul.mubr.f32.gmra.mxu0 %v4023
    %v4025 = vpop.f32.mrf.mxu0
    %v4026 = vadd.f32 %v3765, %v4025
    %v4027 = vpop.f32.mrf.mxu0
    %4028 = vmatprep.mubr.f32.mxu0 0.0
    %v4029 = vand.u32 %v2299, 4294901760
    %4030 = vmatmul.mubr.f32.gmra.mxu0 %v4029
    %v4031 = vpop.f32.mrf.mxu0
    %v4032 = vadd.f32 %v3771, %v4031
    %v4033 = vpop.f32.mrf.mxu0
    %4034 = vmatprep.mubr.f32.mxu0 0.0
    %v4035 = vand.u32 %v2302, 4294901760
    %4036 = vmatmul.mubr.f32.gmra.mxu0 %v4035
    %v4037 = vpop.f32.mrf.mxu0
    %v4038 = vadd.f32 %v3777, %v4037
    %v4039 = vpop.f32.mrf.mxu0
    %4040 = vmatprep.mubr.f32.mxu0 0.0
    %v4041 = vand.u32 %v2305, 4294901760
    %4042 = vmatmul.mubr.f32.gmra.mxu0 %v4041
    %v4043 = vpop.f32.mrf.mxu0
    %v4044 = vadd.f32 %v3783, %v4043
    %v4045 = vpop.f32.mrf.mxu0
    %4046 = vmatprep.mubr.f32.mxu0 0.0
    %v4047 = vand.u32 %v2308, 4294901760
    %4048 = vmatmul.mubr.f32.gmra.mxu0 %v4047
    %v4049 = vpop.f32.mrf.mxu0
    %v4050 = vadd.f32 %v3789, %v4049
    %v4051 = vpop.f32.mrf.mxu0
    %4052 = vmatprep.mubr.f32.mxu0 0.0
    %v4053 = vand.u32 %v2311, 4294901760
    %4054 = vmatmul.mubr.f32.gmra.mxu0 %v4053
    %v4055 = vpop.f32.mrf.mxu0
    %v4056 = vadd.f32 %v3795, %v4055
    %v4057 = vpop.f32.mrf.mxu0
    %4058 = vmatprep.mubr.f32.mxu0 0.0
    %v4059 = vand.u32 %v2314, 4294901760
    %4060 = vmatmul.mubr.f32.gmra.mxu0 %v4059
    %v4061 = vpop.f32.mrf.mxu0
    %v4062 = vadd.f32 %v3801, %v4061
    %v4063 = vpop.f32.mrf.mxu0
    %4064 = vmatprep.mubr.f32.mxu0 0.0
    %v4065 = vand.u32 %v2317, 4294901760
    %4066 = vmatmul.mubr.f32.gmra.mxu0 %v4065
    %v4067 = vpop.f32.mrf.mxu0
    %v4068 = vadd.f32 %v3807, %v4067
    %v4069 = vpop.f32.mrf.mxu0
    %4070 = vmatprep.mubr.f32.mxu0 0.0
    %v4071 = vand.u32 %v2320, 4294901760
    %4072 = vmatmul.mubr.f32.gmra.mxu0 %v4071
    %v4073 = vpop.f32.mrf.mxu0
    %v4074 = vadd.f32 %v3813, %v4073
    %v4075 = vpop.f32.mrf.mxu0
    %4076 = vmatprep.mubr.f32.mxu0 0.0
    %v4077 = vand.u32 %v2323, 4294901760
    %4078 = vmatmul.mubr.f32.gmra.mxu0 %v4077
    %v4079 = vpop.f32.mrf.mxu0
    %v4080 = vadd.f32 %v3819, %v4079
    %v4081 = vpop.f32.mrf.mxu0
    %4082 = vmatprep.mubr.f32.mxu0 0.0
    %v4083 = vand.u32 %v2326, 4294901760
    %4084 = vmatmul.mubr.f32.gmra.mxu0 %v4083
    %v4085 = vpop.f32.mrf.mxu0
    %v4086 = vadd.f32 %v3825, %v4085
    %v4087 = vpop.f32.mrf.mxu0
    %4088 = vmatprep.mubr.f32.mxu0 0.0
    %v4089 = vand.u32 %v2329, 4294901760
    %4090 = vmatmul.mubr.f32.gmra.mxu0 %v4089
    %v4091 = vpop.f32.mrf.mxu0
    %v4092 = vadd.f32 %v3831, %v4091
    %v4093 = vpop.f32.mrf.mxu0
    %4094 = vmatprep.mubr.f32.mxu0 0.0
    %v4095 = vand.u32 %v2332, 4294901760
    %4096 = vmatmul.mubr.f32.gmra.mxu0 %v4095
    %v4097 = vpop.f32.mrf.mxu0
    %v4098 = vadd.f32 %v3837, %v4097
    %v4099 = vpop.f32.mrf.mxu0
    %4100 = vmatprep.mubr.f32.mxu0 0.0
    %v4101 = vand.u32 %v2335, 4294901760
    %4102 = vmatmul.mubr.f32.gmra.mxu0 %v4101
    %v4103 = vpop.f32.mrf.mxu0
    %v4104 = vadd.f32 %v3843, %v4103
    %v4105 = vpop.f32.mrf.mxu0
    %4106 = vmatprep.mubr.f32.mxu0 0.0
    %v4107 = vand.u32 %v2338, 4294901760
    %4108 = vmatmul.mubr.f32.gmra.mxu0 %v4107
    %v4109 = vpop.f32.mrf.mxu0
    %v4110 = vadd.f32 %v3849, %v4109
    %v4111 = vpop.f32.mrf.mxu0
    %4112 = vmatprep.mubr.f32.mxu0 0.0
    %v4113 = vand.u32 %v2341, 4294901760
    %4114 = vmatmul.mubr.f32.gmra.mxu0 %v4113
    %v4115 = vpop.f32.mrf.mxu0
    %v4116 = vadd.f32 %v3855, %v4115
    %v4117 = vpop.f32.mrf.mxu0
    %4118 = vmatprep.mubr.f32.mxu0 0.0
    %v4119 = vand.u32 %v2344, 4294901760
    %4120 = vmatmul.mubr.f32.gmra.mxu0 %v4119
    %v4121 = vpop.f32.mrf.mxu0
    %v4122 = vadd.f32 %v3861, %v4121
    %v4123 = vpop.f32.mrf.mxu0
    %4124 = vmatprep.mubr.f32.mxu0 0.0
    %v4125 = vand.u32 %v2347, 4294901760
    %4126 = vmatmul.mubr.f32.gmra.mxu0 %v4125
    %v4127 = vpop.f32.mrf.mxu0
    %v4128 = vadd.f32 %v3867, %v4127
    %v4129 = vpop.f32.mrf.mxu0
    %4130 = vmatprep.mubr.f32.mxu0 0.0
    %v4131 = vand.u32 %v2350, 4294901760
    %4132 = vmatmul.mubr.f32.gmra.mxu0 %v4131
    %v4133 = vpop.f32.mrf.mxu0
    %v4134 = vadd.f32 %v3873, %v4133
    %v4135 = vpop.f32.mrf.mxu0
    %4136 = vmatprep.mubr.f32.mxu0 0.0
    %v4137 = vand.u32 %v2353, 4294901760
    %4138 = vmatmul.mubr.f32.gmra.mxu0 %v4137
    %v4139 = vpop.f32.mrf.mxu0
    %v4140 = vadd.f32 %v3879, %v4139
    %v4141 = vpop.f32.mrf.mxu0
    %4142 = vmatprep.mubr.f32.mxu0 0.0
    %v4143 = vand.u32 %v2356, 4294901760
    %4144 = vmatmul.mubr.f32.gmra.mxu0 %v4143
    %v4145 = vpop.f32.mrf.mxu0
    %v4146 = vadd.f32 %v3885, %v4145
    %v4147 = vpop.f32.mrf.mxu0
    %4148 = vmatprep.mubr.f32.mxu0 0.0
    %v4149 = vand.u32 %v2359, 4294901760
    %4150 = vmatmul.mubr.f32.gmra.mxu0 %v4149
    %v4151 = vpop.f32.mrf.mxu0
    %v4152 = vadd.f32 %v3891, %v4151
    %v4153 = vpop.f32.mrf.mxu0
    %4154 = vmatprep.mubr.f32.mxu0 0.0
    %v4155 = vand.u32 %v2362, 4294901760
    %4156 = vmatmul.mubr.f32.gmra.mxu0 %v4155
    %v4157 = vpop.f32.mrf.mxu0
    %v4158 = vadd.f32 %v3897, %v4157
    %v4159 = vpop.f32.mrf.mxu0
    %4160 = vmatprep.mubr.f32.mxu0 0.0
    %v4161 = vand.u32 %v2365, 4294901760
    %4162 = vmatmul.mubr.f32.gmra.mxu0 %v4161
    %v4163 = vpop.f32.mrf.mxu0
    %v4164 = vadd.f32 %v3903, %v4163
    %v4165 = vpop.f32.mrf.mxu0
    %4166 = vmatprep.mubr.f32.mxu0 0.0
    %v4167 = vand.u32 %v2368, 4294901760
    %4168 = vmatmul.mubr.f32.gmra.mxu0 %v4167
    %v4169 = vpop.f32.mrf.mxu0
    %v4170 = vadd.f32 %v3909, %v4169
    %v4171 = vpop.f32.mrf.mxu0
    %4172 = vmatprep.mubr.f32.mxu0 0.0
    %v4173 = vand.u32 %v2371, 4294901760
    %4174 = vmatmul.mubr.f32.gmra.mxu0 %v4173
    %v4175 = vpop.f32.mrf.mxu0
    %v4176 = vadd.f32 %v3915, %v4175
    %v4177 = vpop.f32.mrf.mxu0
    %4178 = vmatprep.mubr.f32.mxu0 0.0
    %v4179 = vand.u32 %v2374, 4294901760
    %4180 = vmatmul.mubr.f32.gmra.mxu0 %v4179
    %v4181 = vpop.f32.mrf.mxu0
    %v4182 = vadd.f32 %v3921, %v4181
    %v4183 = vpop.f32.mrf.mxu0
    %4184 = vmatprep.mubr.f32.mxu0 0.0
    %v4185 = vand.u32 %v2377, 4294901760
    %4186 = vmatmul.mubr.f32.gmra.mxu0 %v4185
    %v4187 = vpop.f32.mrf.mxu0
    %v4188 = vadd.f32 %v3927, %v4187
    %v4189 = vpop.f32.mrf.mxu0
    %4190 = vmatprep.mubr.f32.mxu0 0.0
    %v4191 = vand.u32 %v2380, 4294901760
    %4192 = vmatmul.mubr.f32.gmra.mxu0 %v4191
    %v4193 = vpop.f32.mrf.mxu0
    %v4194 = vadd.f32 %v3933, %v4193
    %v4195 = vpop.f32.mrf.mxu0
    %4196 = vmatprep.mubr.f32.mxu0 0.0
    %v4197 = vand.u32 %v2383, 4294901760
    %4198 = vmatmul.mubr.f32.gmra.mxu0 %v4197
    %v4199 = vpop.f32.mrf.mxu0
    %v4200 = vadd.f32 %v3939, %v4199
    %v4201 = vpop.f32.mrf.mxu0
    %4202 = vdwg.mxu0
    %v4203 = vtanh.pop %v4014
    %v4204 = vtanh.pop %v4020
    %v4205 = vtanh.pop %v4026
    %v4206 = vtanh.pop %v4032
    %v4207 = vtanh.pop %v4038
    %v4208 = vtanh.pop %v4044
    %v4209 = vtanh.pop %v4050
    %v4210 = vtanh.pop %v4056
    %v4211 = vtanh.pop %v4062
    %v4212 = vtanh.pop %v4068
    %v4213 = vtanh.pop %v4074
    %v4214 = vtanh.pop %v4080
    %v4215 = vtanh.pop %v4086
    %v4216 = vtanh.pop %v4092
    %v4217 = vtanh.pop %v4098
    %v4218 = vtanh.pop %v4104
    %v4219 = vtanh.pop %v4110
    %v4220 = vtanh.pop %v4116
    %v4221 = vtanh.pop %v4122
    %v4222 = vtanh.pop %v4128
    %v4223 = vtanh.pop %v4134
    %v4224 = vtanh.pop %v4140
    %v4225 = vtanh.pop %v4146
    %v4226 = vtanh.pop %v4152
    %v4227 = vtanh.pop %v4158
    %v4228 = vtanh.pop %v4164
    %v4229 = vtanh.pop %v4170
    %v4230 = vtanh.pop %v4176
    %v4231 = vtanh.pop %v4182
    %v4232 = vtanh.pop %v4188
    %v4233 = vtanh.pop %v4194
    %v4234 = vtanh.pop %v4200
    %v4235 = vlaneseq
    %v4236 = vshrl.u32 %v4235, 7
    %v4237 = vsub.s32 0, %v4236
    %v4238 = vrot.slane %v119, %v4237
    %v4239 = vmul.f32 %v4203, %v4238
    %v4240 = vmul.f32 %v4204, %v4238
    %v4241 = vmul.f32 %v4205, %v4238
    %v4242 = vmul.f32 %v4206, %v4238
    %v4243 = vmul.f32 %v4207, %v4238
    %v4244 = vmul.f32 %v4208, %v4238
    %v4245 = vmul.f32 %v4209, %v4238
    %v4246 = vmul.f32 %v4210, %v4238
    %v4247 = vmul.f32 %v4211, %v4238
    %v4248 = vmul.f32 %v4212, %v4238
    %v4249 = vmul.f32 %v4213, %v4238
    %v4250 = vmul.f32 %v4214, %v4238
    %v4251 = vmul.f32 %v4215, %v4238
    %v4252 = vmul.f32 %v4216, %v4238
    %v4253 = vmul.f32 %v4217, %v4238
    %v4254 = vmul.f32 %v4218, %v4238
    %v4255 = vmul.f32 %v4219, %v4238
    %v4256 = vmul.f32 %v4220, %v4238
    %v4257 = vmul.f32 %v4221, %v4238
    %v4258 = vmul.f32 %v4222, %v4238
    %v4259 = vmul.f32 %v4223, %v4238
    %v4260 = vmul.f32 %v4224, %v4238
    %v4261 = vmul.f32 %v4225, %v4238
    %v4262 = vmul.f32 %v4226, %v4238
    %v4263 = vmul.f32 %v4227, %v4238
    %v4264 = vmul.f32 %v4228, %v4238
    %v4265 = vmul.f32 %v4229, %v4238
    %v4266 = vmul.f32 %v4230, %v4238
    %v4267 = vmul.f32 %v4231, %v4238
    %v4268 = vmul.f32 %v4232, %v4238
    %v4269 = vmul.f32 %v4233, %v4238
    %v4270 = vmul.f32 %v4234, %v4238
    %v4271 = vsel %vm2288, %v4239, 0.0
    %4272 = vadd.xlane.f32.xlu0 %v4271
    %v4273 = vpop.xlane.xlu0 %4272
    %v4274 = vsel %vm2288, %v4240, 0.0
    %4275 = vadd.xlane.f32.xlu0 %v4274
    %v4276 = vpop.xlane.xlu0 %4275
    %v4277 = vsel %vm2288, %v4241, 0.0
    %4278 = vadd.xlane.f32.xlu0 %v4277
    %v4279 = vpop.xlane.xlu0 %4278
    %v4280 = vsel %vm2288, %v4242, 0.0
    %4281 = vadd.xlane.f32.xlu0 %v4280
    %v4282 = vpop.xlane.xlu0 %4281
    %v4283 = vsel %vm2288, %v4243, 0.0
    %4284 = vadd.xlane.f32.xlu0 %v4283
    %v4285 = vpop.xlane.xlu0 %4284
    %v4286 = vsel %vm2288, %v4244, 0.0
    %4287 = vadd.xlane.f32.xlu0 %v4286
    %v4288 = vpop.xlane.xlu0 %4287
    %v4289 = vsel %vm2288, %v4245, 0.0
    %4290 = vadd.xlane.f32.xlu0 %v4289
    %v4291 = vpop.xlane.xlu0 %4290
    %v4292 = vsel %vm2288, %v4246, 0.0
    %4293 = vadd.xlane.f32.xlu0 %v4292
    %v4294 = vpop.xlane.xlu0 %4293
    %v4295 = vsel %vm2288, %v4247, 0.0
    %4296 = vadd.xlane.f32.xlu0 %v4295
    %v4297 = vpop.xlane.xlu0 %4296
    %v4298 = vsel %vm2288, %v4248, 0.0
    %4299 = vadd.xlane.f32.xlu0 %v4298
    %v4300 = vpop.xlane.xlu0 %4299
    %v4301 = vsel %vm2288, %v4249, 0.0
    %4302 = vadd.xlane.f32.xlu0 %v4301
    %v4303 = vpop.xlane.xlu0 %4302
    %v4304 = vsel %vm2288, %v4250, 0.0
    %4305 = vadd.xlane.f32.xlu0 %v4304
    %v4306 = vpop.xlane.xlu0 %4305
    %v4307 = vsel %vm2288, %v4251, 0.0
    %4308 = vadd.xlane.f32.xlu0 %v4307
    %v4309 = vpop.xlane.xlu0 %4308
    %v4310 = vsel %vm2288, %v4252, 0.0
    %4311 = vadd.xlane.f32.xlu0 %v4310
    %v4312 = vpop.xlane.xlu0 %4311
    %v4313 = vsel %vm2288, %v4253, 0.0
    %4314 = vadd.xlane.f32.xlu0 %v4313
    %v4315 = vpop.xlane.xlu0 %4314
    %v4316 = vsel %vm2288, %v4254, 0.0
    %4317 = vadd.xlane.f32.xlu0 %v4316
    %v4318 = vpop.xlane.xlu0 %4317
    %v4319 = vsel %vm2288, %v4255, 0.0
    %4320 = vadd.xlane.f32.xlu0 %v4319
    %v4321 = vpop.xlane.xlu0 %4320
    %v4322 = vsel %vm2288, %v4256, 0.0
    %4323 = vadd.xlane.f32.xlu0 %v4322
    %v4324 = vpop.xlane.xlu0 %4323
    %v4325 = vsel %vm2288, %v4257, 0.0
    %4326 = vadd.xlane.f32.xlu0 %v4325
    %v4327 = vpop.xlane.xlu0 %4326
    %v4328 = vsel %vm2288, %v4258, 0.0
    %4329 = vadd.xlane.f32.xlu0 %v4328
    %v4330 = vpop.xlane.xlu0 %4329
    %v4331 = vsel %vm2288, %v4259, 0.0
    %4332 = vadd.xlane.f32.xlu0 %v4331
    %v4333 = vpop.xlane.xlu0 %4332
    %v4334 = vsel %vm2288, %v4260, 0.0
    %4335 = vadd.xlane.f32.xlu0 %v4334
    %v4336 = vpop.xlane.xlu0 %4335
    %v4337 = vsel %vm2288, %v4261, 0.0
    %4338 = vadd.xlane.f32.xlu0 %v4337
    %v4339 = vpop.xlane.xlu0 %4338
    %v4340 = vsel %vm2288, %v4262, 0.0
    %4341 = vadd.xlane.f32.xlu0 %v4340
    %v4342 = vpop.xlane.xlu0 %4341
    %v4343 = vsel %vm2288, %v4263, 0.0
    %4344 = vadd.xlane.f32.xlu0 %v4343
    %v4345 = vpop.xlane.xlu0 %4344
    %v4346 = vsel %vm2288, %v4264, 0.0
    %4347 = vadd.xlane.f32.xlu0 %v4346
    %v4348 = vpop.xlane.xlu0 %4347
    %v4349 = vsel %vm2288, %v4265, 0.0
    %4350 = vadd.xlane.f32.xlu0 %v4349
    %v4351 = vpop.xlane.xlu0 %4350
    %v4352 = vsel %vm2288, %v4266, 0.0
    %4353 = vadd.xlane.f32.xlu0 %v4352
    %v4354 = vpop.xlane.xlu0 %4353
    %v4355 = vsel %vm2288, %v4267, 0.0
    %4356 = vadd.xlane.f32.xlu0 %v4355
    %v4357 = vpop.xlane.xlu0 %4356
    %v4358 = vsel %vm2288, %v4268, 0.0
    %4359 = vadd.xlane.f32.xlu0 %v4358
    %v4360 = vpop.xlane.xlu0 %4359
    %v4361 = vsel %vm2288, %v4269, 0.0
    %4362 = vadd.xlane.f32.xlu0 %v4361
    %v4363 = vpop.xlane.xlu0 %4362
    %v4364 = vsel %vm2288, %v4270, 0.0
    %4365 = vadd.xlane.f32.xlu0 %v4364
    %v4366 = vpop.xlane.xlu0 %4365
    %v4367 = vsel %vm58, %v4273, -1e+09
    %v4368 = vsel %vm59, %v4276, -1e+09
    %v4369 = vsel %vm60, %v4279, -1e+09
    %v4370 = vsel %vm61, %v4282, -1e+09
    %v4371 = vsel %vm62, %v4285, -1e+09
    %v4372 = vsel %vm63, %v4288, -1e+09
    %v4373 = vsel %vm64, %v4291, -1e+09
    %v4374 = vsel %vm65, %v4294, -1e+09
    %v4375 = vsel %vm66, %v4297, -1e+09
    %v4376 = vsel %vm67, %v4300, -1e+09
    %v4377 = vsel %vm68, %v4303, -1e+09
    %v4378 = vsel %vm69, %v4306, -1e+09
    %v4379 = vsel %vm70, %v4309, -1e+09
    %v4380 = vsel %vm71, %v4312, -1e+09
    %v4381 = vsel %vm72, %v4315, -1e+09
    %v4382 = vsel %vm73, %v4318, -1e+09
    %v4383 = vsel %vm74, %v4321, -1e+09
    %v4384 = vsel %vm75, %v4324, -1e+09
    %v4385 = vsel %vm76, %v4327, -1e+09
    %v4386 = vsel %vm77, %v4330, -1e+09
    %v4387 = vsel %vm78, %v4333, -1e+09
    %v4388 = vsel %vm79, %v4336, -1e+09
    %v4389 = vsel %vm80, %v4339, -1e+09
    %v4390 = vsel %vm81, %v4342, -1e+09
    %v4391 = vsel %vm82, %v4345, -1e+09
    %v4392 = vsel %vm83, %v4348, -1e+09
    %v4393 = vsel %vm84, %v4351, -1e+09
    %v4394 = vsel %vm85, %v4354, -1e+09
    %v4395 = vsel %vm86, %v4357, -1e+09
    %v4396 = vsel %vm87, %v4360, -1e+09
    %v4397 = vsel %vm88, %v4363, -1e+09
    %v4398 = vsel %vm89, %v4366, -1e+09
    %vm4399 = vcmask 15368
    %v4400 = vsel %vm4399, %v4367, -inf
    %v4401 = vsel %vm4399, %v4368, -inf
    %v4402 = vmax.f32 %v4400, %v4401
    %v4403 = vrot.slane %v4402, 4
    %v4404 = vmax.f32 %v4402, %v4403
    %v4405 = vrot.slane %v4404, 2
    %v4406 = vmax.f32 %v4404, %v4405
    %v4407 = vrot.slane %v4406, 1
    %v4408 = vmax.f32 %v4406, %v4407
    %v4409 = vsel %vm4399, %v4369, -inf
    %v4410 = vsel %vm4399, %v4370, -inf
    %v4411 = vmax.f32 %v4409, %v4410
    %v4412 = vrot.slane %v4411, 4
    %v4413 = vmax.f32 %v4411, %v4412
    %v4414 = vrot.slane %v4413, 2
    %v4415 = vmax.f32 %v4413, %v4414
    %v4416 = vrot.slane %v4415, 1
    %v4417 = vmax.f32 %v4415, %v4416
    %v4418 = vsel %vm4399, %v4371, -inf
    %v4419 = vsel %vm4399, %v4372, -inf
    %v4420 = vmax.f32 %v4418, %v4419
    %v4421 = vrot.slane %v4420, 4
    %v4422 = vmax.f32 %v4420, %v4421
    %v4423 = vrot.slane %v4422, 2
    %v4424 = vmax.f32 %v4422, %v4423
    %v4425 = vrot.slane %v4424, 1
    %v4426 = vmax.f32 %v4424, %v4425
    %v4427 = vsel %vm4399, %v4373, -inf
    %v4428 = vsel %vm4399, %v4374, -inf
    %v4429 = vmax.f32 %v4427, %v4428
    %v4430 = vrot.slane %v4429, 4
    %v4431 = vmax.f32 %v4429, %v4430
    %v4432 = vrot.slane %v4431, 2
    %v4433 = vmax.f32 %v4431, %v4432
    %v4434 = vrot.slane %v4433, 1
    %v4435 = vmax.f32 %v4433, %v4434
    %v4436 = vsel %vm4399, %v4375, -inf
    %v4437 = vsel %vm4399, %v4376, -inf
    %v4438 = vmax.f32 %v4436, %v4437
    %v4439 = vrot.slane %v4438, 4
    %v4440 = vmax.f32 %v4438, %v4439
    %v4441 = vrot.slane %v4440, 2
    %v4442 = vmax.f32 %v4440, %v4441
    %v4443 = vrot.slane %v4442, 1
    %v4444 = vmax.f32 %v4442, %v4443
    %v4445 = vsel %vm4399, %v4377, -inf
    %v4446 = vsel %vm4399, %v4378, -inf
    %v4447 = vmax.f32 %v4445, %v4446
    %v4448 = vrot.slane %v4447, 4
    %v4449 = vmax.f32 %v4447, %v4448
    %v4450 = vrot.slane %v4449, 2
    %v4451 = vmax.f32 %v4449, %v4450
    %v4452 = vrot.slane %v4451, 1
    %v4453 = vmax.f32 %v4451, %v4452
    %v4454 = vsel %vm4399, %v4379, -inf
    %v4455 = vsel %vm4399, %v4380, -inf
    %v4456 = vmax.f32 %v4454, %v4455
    %v4457 = vrot.slane %v4456, 4
    %v4458 = vmax.f32 %v4456, %v4457
    %v4459 = vrot.slane %v4458, 2
    %v4460 = vmax.f32 %v4458, %v4459
    %v4461 = vrot.slane %v4460, 1
    %v4462 = vmax.f32 %v4460, %v4461
    %v4463 = vsel %vm4399, %v4381, -inf
    %v4464 = vsel %vm4399, %v4382, -inf
    %v4465 = vmax.f32 %v4463, %v4464
    %v4466 = vrot.slane %v4465, 4
    %v4467 = vmax.f32 %v4465, %v4466
    %v4468 = vrot.slane %v4467, 2
    %v4469 = vmax.f32 %v4467, %v4468
    %v4470 = vrot.slane %v4469, 1
    %v4471 = vmax.f32 %v4469, %v4470
    %v4472 = vsel %vm4399, %v4383, -inf
    %v4473 = vsel %vm4399, %v4384, -inf
    %v4474 = vmax.f32 %v4472, %v4473
    %v4475 = vrot.slane %v4474, 4
    %v4476 = vmax.f32 %v4474, %v4475
    %v4477 = vrot.slane %v4476, 2
    %v4478 = vmax.f32 %v4476, %v4477
    %v4479 = vrot.slane %v4478, 1
    %v4480 = vmax.f32 %v4478, %v4479
    %v4481 = vsel %vm4399, %v4385, -inf
    %v4482 = vsel %vm4399, %v4386, -inf
    %v4483 = vmax.f32 %v4481, %v4482
    %v4484 = vrot.slane %v4483, 4
    %v4485 = vmax.f32 %v4483, %v4484
    %v4486 = vrot.slane %v4485, 2
    %v4487 = vmax.f32 %v4485, %v4486
    %v4488 = vrot.slane %v4487, 1
    %v4489 = vmax.f32 %v4487, %v4488
    %v4490 = vsel %vm4399, %v4387, -inf
    %v4491 = vsel %vm4399, %v4388, -inf
    %v4492 = vmax.f32 %v4490, %v4491
    %v4493 = vrot.slane %v4492, 4
    %v4494 = vmax.f32 %v4492, %v4493
    %v4495 = vrot.slane %v4494, 2
    %v4496 = vmax.f32 %v4494, %v4495
    %v4497 = vrot.slane %v4496, 1
    %v4498 = vmax.f32 %v4496, %v4497
    %v4499 = vsel %vm4399, %v4389, -inf
    %v4500 = vsel %vm4399, %v4390, -inf
    %v4501 = vmax.f32 %v4499, %v4500
    %v4502 = vrot.slane %v4501, 4
    %v4503 = vmax.f32 %v4501, %v4502
    %v4504 = vrot.slane %v4503, 2
    %v4505 = vmax.f32 %v4503, %v4504
    %v4506 = vrot.slane %v4505, 1
    %v4507 = vmax.f32 %v4505, %v4506
    %v4508 = vsel %vm4399, %v4391, -inf
    %v4509 = vsel %vm4399, %v4392, -inf
    %v4510 = vmax.f32 %v4508, %v4509
    %v4511 = vrot.slane %v4510, 4
    %v4512 = vmax.f32 %v4510, %v4511
    %v4513 = vrot.slane %v4512, 2
    %v4514 = vmax.f32 %v4512, %v4513
    %v4515 = vrot.slane %v4514, 1
    %v4516 = vmax.f32 %v4514, %v4515
    %v4517 = vsel %vm4399, %v4393, -inf
    %v4518 = vsel %vm4399, %v4394, -inf
    %v4519 = vmax.f32 %v4517, %v4518
    %v4520 = vrot.slane %v4519, 4
    %v4521 = vmax.f32 %v4519, %v4520
    %v4522 = vrot.slane %v4521, 2
    %v4523 = vmax.f32 %v4521, %v4522
    %v4524 = vrot.slane %v4523, 1
    %v4525 = vmax.f32 %v4523, %v4524
    %v4526 = vsel %vm4399, %v4395, -inf
    %v4527 = vsel %vm4399, %v4396, -inf
    %v4528 = vmax.f32 %v4526, %v4527
    %v4529 = vrot.slane %v4528, 4
    %v4530 = vmax.f32 %v4528, %v4529
    %v4531 = vrot.slane %v4530, 2
    %v4532 = vmax.f32 %v4530, %v4531
    %v4533 = vrot.slane %v4532, 1
    %v4534 = vmax.f32 %v4532, %v4533
    %v4535 = vsel %vm4399, %v4397, -inf
    %v4536 = vsel %vm4399, %v4398, -inf
    %v4537 = vmax.f32 %v4535, %v4536
    %v4538 = vrot.slane %v4537, 4
    %v4539 = vmax.f32 %v4537, %v4538
    %v4540 = vrot.slane %v4539, 2
    %v4541 = vmax.f32 %v4539, %v4540
    %v4542 = vrot.slane %v4541, 1
    %v4543 = vmax.f32 %v4541, %v4542
    %v4544 = vsub.f32 %v4367, %v4408
    %v4545 = vsub.f32 %v4368, %v4408
    %v4546 = vsub.f32 %v4369, %v4417
    %v4547 = vsub.f32 %v4370, %v4417
    %v4548 = vsub.f32 %v4371, %v4426
    %v4549 = vsub.f32 %v4372, %v4426
    %v4550 = vsub.f32 %v4373, %v4435
    %v4551 = vsub.f32 %v4374, %v4435
    %v4552 = vsub.f32 %v4375, %v4444
    %v4553 = vsub.f32 %v4376, %v4444
    %v4554 = vsub.f32 %v4377, %v4453
    %v4555 = vsub.f32 %v4378, %v4453
    %v4556 = vsub.f32 %v4379, %v4462
    %v4557 = vsub.f32 %v4380, %v4462
    %v4558 = vsub.f32 %v4381, %v4471
    %v4559 = vsub.f32 %v4382, %v4471
    %v4560 = vsub.f32 %v4383, %v4480
    %v4561 = vsub.f32 %v4384, %v4480
    %v4562 = vsub.f32 %v4385, %v4489
    %v4563 = vsub.f32 %v4386, %v4489
    %v4564 = vsub.f32 %v4387, %v4498
    %v4565 = vsub.f32 %v4388, %v4498
    %v4566 = vsub.f32 %v4389, %v4507
    %v4567 = vsub.f32 %v4390, %v4507
    %v4568 = vsub.f32 %v4391, %v4516
    %v4569 = vsub.f32 %v4392, %v4516
    %v4570 = vsub.f32 %v4393, %v4525
    %v4571 = vsub.f32 %v4394, %v4525
    %v4572 = vsub.f32 %v4395, %v4534
    %v4573 = vsub.f32 %v4396, %v4534
    %v4574 = vsub.f32 %v4397, %v4543
    %v4575 = vsub.f32 %v4398, %v4543
    %v4576 = vmul.f32 %v4544, 1.442695
    %v4577 = vpow.pop %v4576
    %v4578 = vmul.f32 %v4545, 1.442695
    %v4579 = vpow.pop %v4578
    %v4580 = vmul.f32 %v4546, 1.442695
    %v4581 = vpow.pop %v4580
    %v4582 = vmul.f32 %v4547, 1.442695
    %v4583 = vpow.pop %v4582
    %v4584 = vmul.f32 %v4548, 1.442695
    %v4585 = vpow.pop %v4584
    %v4586 = vmul.f32 %v4549, 1.442695
    %v4587 = vpow.pop %v4586
    %v4588 = vmul.f32 %v4550, 1.442695
    %v4589 = vpow.pop %v4588
    %v4590 = vmul.f32 %v4551, 1.442695
    %v4591 = vpow.pop %v4590
    %v4592 = vmul.f32 %v4552, 1.442695
    %v4593 = vpow.pop %v4592
    %v4594 = vmul.f32 %v4553, 1.442695
    %v4595 = vpow.pop %v4594
    %v4596 = vmul.f32 %v4554, 1.442695
    %v4597 = vpow.pop %v4596
    %v4598 = vmul.f32 %v4555, 1.442695
    %v4599 = vpow.pop %v4598
    %v4600 = vmul.f32 %v4556, 1.442695
    %v4601 = vpow.pop %v4600
    %v4602 = vmul.f32 %v4557, 1.442695
    %v4603 = vpow.pop %v4602
    %v4604 = vmul.f32 %v4558, 1.442695
    %v4605 = vpow.pop %v4604
    %v4606 = vmul.f32 %v4559, 1.442695
    %v4607 = vpow.pop %v4606
    %v4608 = vmul.f32 %v4560, 1.442695
    %v4609 = vpow.pop %v4608
    %v4610 = vmul.f32 %v4561, 1.442695
    %v4611 = vpow.pop %v4610
    %v4612 = vmul.f32 %v4562, 1.442695
    %v4613 = vpow.pop %v4612
    %v4614 = vmul.f32 %v4563, 1.442695
    %v4615 = vpow.pop %v4614
    %v4616 = vmul.f32 %v4564, 1.442695
    %v4617 = vpow.pop %v4616
    %v4618 = vmul.f32 %v4565, 1.442695
    %v4619 = vpow.pop %v4618
    %v4620 = vmul.f32 %v4566, 1.442695
    %v4621 = vpow.pop %v4620
    %v4622 = vmul.f32 %v4567, 1.442695
    %v4623 = vpow.pop %v4622
    %v4624 = vmul.f32 %v4568, 1.442695
    %v4625 = vpow.pop %v4624
    %v4626 = vmul.f32 %v4569, 1.442695
    %v4627 = vpow.pop %v4626
    %v4628 = vmul.f32 %v4570, 1.442695
    %v4629 = vpow.pop %v4628
    %v4630 = vmul.f32 %v4571, 1.442695
    %v4631 = vpow.pop %v4630
    %v4632 = vmul.f32 %v4572, 1.442695
    %v4633 = vpow.pop %v4632
    %v4634 = vmul.f32 %v4573, 1.442695
    %v4635 = vpow.pop %v4634
    %v4636 = vmul.f32 %v4574, 1.442695
    %v4637 = vpow.pop %v4636
    %v4638 = vmul.f32 %v4575, 1.442695
    %v4639 = vpow.pop %v4638
    %v4640 = vsel %vm4399, %v4577, 0.0
    %v4641 = vsel %vm4399, %v4579, 0.0
    %v4642 = vadd.f32 %v4640, %v4641
    %v4643 = vrot.slane %v4642, 4
    %v4644 = vadd.f32 %v4642, %v4643
    %v4645 = vrot.slane %v4644, 2
    %v4646 = vadd.f32 %v4644, %v4645
    %v4647 = vrot.slane %v4646, 1
    %v4648 = vadd.f32 %v4646, %v4647
    %v4649 = vsel %vm4399, %v4581, 0.0
    %v4650 = vsel %vm4399, %v4583, 0.0
    %v4651 = vadd.f32 %v4649, %v4650
    %v4652 = vrot.slane %v4651, 4
    %v4653 = vadd.f32 %v4651, %v4652
    %v4654 = vrot.slane %v4653, 2
    %v4655 = vadd.f32 %v4653, %v4654
    %v4656 = vrot.slane %v4655, 1
    %v4657 = vadd.f32 %v4655, %v4656
    %v4658 = vsel %vm4399, %v4585, 0.0
    %v4659 = vsel %vm4399, %v4587, 0.0
    %v4660 = vadd.f32 %v4658, %v4659
    %v4661 = vrot.slane %v4660, 4
    %v4662 = vadd.f32 %v4660, %v4661
    %v4663 = vrot.slane %v4662, 2
    %v4664 = vadd.f32 %v4662, %v4663
    %v4665 = vrot.slane %v4664, 1
    %v4666 = vadd.f32 %v4664, %v4665
    %v4667 = vsel %vm4399, %v4589, 0.0
    %v4668 = vsel %vm4399, %v4591, 0.0
    %v4669 = vadd.f32 %v4667, %v4668
    %v4670 = vrot.slane %v4669, 4
    %v4671 = vadd.f32 %v4669, %v4670
    %v4672 = vrot.slane %v4671, 2
    %v4673 = vadd.f32 %v4671, %v4672
    %v4674 = vrot.slane %v4673, 1
    %v4675 = vadd.f32 %v4673, %v4674
    %v4676 = vsel %vm4399, %v4593, 0.0
    %v4677 = vsel %vm4399, %v4595, 0.0
    %v4678 = vadd.f32 %v4676, %v4677
    %v4679 = vrot.slane %v4678, 4
    %v4680 = vadd.f32 %v4678, %v4679
    %v4681 = vrot.slane %v4680, 2
    %v4682 = vadd.f32 %v4680, %v4681
    %v4683 = vrot.slane %v4682, 1
    %v4684 = vadd.f32 %v4682, %v4683
    %v4685 = vsel %vm4399, %v4597, 0.0
    %v4686 = vsel %vm4399, %v4599, 0.0
    %v4687 = vadd.f32 %v4685, %v4686
    %v4688 = vrot.slane %v4687, 4
    %v4689 = vadd.f32 %v4687, %v4688
    %v4690 = vrot.slane %v4689, 2
    %v4691 = vadd.f32 %v4689, %v4690
    %v4692 = vrot.slane %v4691, 1
    %v4693 = vadd.f32 %v4691, %v4692
    %v4694 = vsel %vm4399, %v4601, 0.0
    %v4695 = vsel %vm4399, %v4603, 0.0
    %v4696 = vadd.f32 %v4694, %v4695
    %v4697 = vrot.slane %v4696, 4
    %v4698 = vadd.f32 %v4696, %v4697
    %v4699 = vrot.slane %v4698, 2
    %v4700 = vadd.f32 %v4698, %v4699
    %v4701 = vrot.slane %v4700, 1
    %v4702 = vadd.f32 %v4700, %v4701
    %v4703 = vsel %vm4399, %v4605, 0.0
    %v4704 = vsel %vm4399, %v4607, 0.0
    %v4705 = vadd.f32 %v4703, %v4704
    %v4706 = vrot.slane %v4705, 4
    %v4707 = vadd.f32 %v4705, %v4706
    %v4708 = vrot.slane %v4707, 2
    %v4709 = vadd.f32 %v4707, %v4708
    %v4710 = vrot.slane %v4709, 1
    %v4711 = vadd.f32 %v4709, %v4710
    %v4712 = vsel %vm4399, %v4609, 0.0
    %v4713 = vsel %vm4399, %v4611, 0.0
    %v4714 = vadd.f32 %v4712, %v4713
    %v4715 = vrot.slane %v4714, 4
    %v4716 = vadd.f32 %v4714, %v4715
    %v4717 = vrot.slane %v4716, 2
    %v4718 = vadd.f32 %v4716, %v4717
    %v4719 = vrot.slane %v4718, 1
    %v4720 = vadd.f32 %v4718, %v4719
    %v4721 = vsel %vm4399, %v4613, 0.0
    %v4722 = vsel %vm4399, %v4615, 0.0
    %v4723 = vadd.f32 %v4721, %v4722
    %v4724 = vrot.slane %v4723, 4
    %v4725 = vadd.f32 %v4723, %v4724
    %v4726 = vrot.slane %v4725, 2
    %v4727 = vadd.f32 %v4725, %v4726
    %v4728 = vrot.slane %v4727, 1
    %v4729 = vadd.f32 %v4727, %v4728
    %v4730 = vsel %vm4399, %v4617, 0.0
    %v4731 = vsel %vm4399, %v4619, 0.0
    %v4732 = vadd.f32 %v4730, %v4731
    %v4733 = vrot.slane %v4732, 4
    %v4734 = vadd.f32 %v4732, %v4733
    %v4735 = vrot.slane %v4734, 2
    %v4736 = vadd.f32 %v4734, %v4735
    %v4737 = vrot.slane %v4736, 1
    %v4738 = vadd.f32 %v4736, %v4737
    %v4739 = vsel %vm4399, %v4621, 0.0
    %v4740 = vsel %vm4399, %v4623, 0.0
    %v4741 = vadd.f32 %v4739, %v4740
    %v4742 = vrot.slane %v4741, 4
    %v4743 = vadd.f32 %v4741, %v4742
    %v4744 = vrot.slane %v4743, 2
    %v4745 = vadd.f32 %v4743, %v4744
    %v4746 = vrot.slane %v4745, 1
    %v4747 = vadd.f32 %v4745, %v4746
    %v4748 = vsel %vm4399, %v4625, 0.0
    %v4749 = vsel %vm4399, %v4627, 0.0
    %v4750 = vadd.f32 %v4748, %v4749
    %v4751 = vrot.slane %v4750, 4
    %v4752 = vadd.f32 %v4750, %v4751
    %v4753 = vrot.slane %v4752, 2
    %v4754 = vadd.f32 %v4752, %v4753
    %v4755 = vrot.slane %v4754, 1
    %v4756 = vadd.f32 %v4754, %v4755
    %v4757 = vsel %vm4399, %v4629, 0.0
    %v4758 = vsel %vm4399, %v4631, 0.0
    %v4759 = vadd.f32 %v4757, %v4758
    %v4760 = vrot.slane %v4759, 4
    %v4761 = vadd.f32 %v4759, %v4760
    %v4762 = vrot.slane %v4761, 2
    %v4763 = vadd.f32 %v4761, %v4762
    %v4764 = vrot.slane %v4763, 1
    %v4765 = vadd.f32 %v4763, %v4764
    %v4766 = vsel %vm4399, %v4633, 0.0
    %v4767 = vsel %vm4399, %v4635, 0.0
    %v4768 = vadd.f32 %v4766, %v4767
    %v4769 = vrot.slane %v4768, 4
    %v4770 = vadd.f32 %v4768, %v4769
    %v4771 = vrot.slane %v4770, 2
    %v4772 = vadd.f32 %v4770, %v4771
    %v4773 = vrot.slane %v4772, 1
    %v4774 = vadd.f32 %v4772, %v4773
    %v4775 = vsel %vm4399, %v4637, 0.0
    %v4776 = vsel %vm4399, %v4639, 0.0
    %v4777 = vadd.f32 %v4775, %v4776
    %v4778 = vrot.slane %v4777, 4
    %v4779 = vadd.f32 %v4777, %v4778
    %v4780 = vrot.slane %v4779, 2
    %v4781 = vadd.f32 %v4779, %v4780
    %v4782 = vrot.slane %v4781, 1
    %v4783 = vadd.f32 %v4781, %v4782
    %v4784 = vrcp.pop %v4648
    %v4785 = vmul.f32 %v4577, %v4784
    %v4786 = vmul.f32 %v4579, %v4784
    %v4787 = vrcp.pop %v4657
    %v4788 = vmul.f32 %v4581, %v4787
    %v4789 = vmul.f32 %v4583, %v4787
    %v4790 = vrcp.pop %v4666
    %v4791 = vmul.f32 %v4585, %v4790
    %v4792 = vmul.f32 %v4587, %v4790
    %v4793 = vrcp.pop %v4675
    %v4794 = vmul.f32 %v4589, %v4793
    %v4795 = vmul.f32 %v4591, %v4793
    %v4796 = vrcp.pop %v4684
    %v4797 = vmul.f32 %v4593, %v4796
    %v4798 = vmul.f32 %v4595, %v4796
    %v4799 = vrcp.pop %v4693
    %v4800 = vmul.f32 %v4597, %v4799
    %v4801 = vmul.f32 %v4599, %v4799
    %v4802 = vrcp.pop %v4702
    %v4803 = vmul.f32 %v4601, %v4802
    %v4804 = vmul.f32 %v4603, %v4802
    %v4805 = vrcp.pop %v4711
    %v4806 = vmul.f32 %v4605, %v4805
    %v4807 = vmul.f32 %v4607, %v4805
    %v4808 = vrcp.pop %v4720
    %v4809 = vmul.f32 %v4609, %v4808
    %v4810 = vmul.f32 %v4611, %v4808
    %v4811 = vrcp.pop %v4729
    %v4812 = vmul.f32 %v4613, %v4811
    %v4813 = vmul.f32 %v4615, %v4811
    %v4814 = vrcp.pop %v4738
    %v4815 = vmul.f32 %v4617, %v4814
    %v4816 = vmul.f32 %v4619, %v4814
    %v4817 = vrcp.pop %v4747
    %v4818 = vmul.f32 %v4621, %v4817
    %v4819 = vmul.f32 %v4623, %v4817
    %v4820 = vrcp.pop %v4756
    %v4821 = vmul.f32 %v4625, %v4820
    %v4822 = vmul.f32 %v4627, %v4820
    %v4823 = vrcp.pop %v4765
    %v4824 = vmul.f32 %v4629, %v4823
    %v4825 = vmul.f32 %v4631, %v4823
    %v4826 = vrcp.pop %v4774
    %v4827 = vmul.f32 %v4633, %v4826
    %v4828 = vmul.f32 %v4635, %v4826
    %v4829 = vrcp.pop %v4783
    %v4830 = vmul.f32 %v4637, %v4829
    %v4831 = vmul.f32 %v4639, %v4829
    %4833 = vset.pattern.permute.xlu0 1
    %4834 = vperm.xlu0 %4833, %v4785
    %v4835 = vpop.permute.xlu0 %4834
    %4838 = vset.pattern.permute.xlu0 1
    %4839 = vperm.xlu0 %4838, %v4786
    %v4840 = vpop.permute.xlu0 %4839
    %4843 = vset.pattern.permute.xlu0 1
    %4844 = vperm.xlu0 %4843, %v4788
    %v4845 = vpop.permute.xlu0 %4844
    %4848 = vset.pattern.permute.xlu0 1
    %4849 = vperm.xlu0 %4848, %v4789
    %v4850 = vpop.permute.xlu0 %4849
    %4853 = vset.pattern.permute.xlu0 1
    %4854 = vperm.xlu0 %4853, %v4791
    %v4855 = vpop.permute.xlu0 %4854
    %4858 = vset.pattern.permute.xlu0 1
    %4859 = vperm.xlu0 %4858, %v4792
    %v4860 = vpop.permute.xlu0 %4859
    %4863 = vset.pattern.permute.xlu0 1
    %4864 = vperm.xlu0 %4863, %v4794
    %v4865 = vpop.permute.xlu0 %4864
    %4868 = vset.pattern.permute.xlu0 1
    %4869 = vperm.xlu0 %4868, %v4795
    %v4870 = vpop.permute.xlu0 %4869
    %4873 = vset.pattern.permute.xlu0 1
    %4874 = vperm.xlu0 %4873, %v4797
    %v4875 = vpop.permute.xlu0 %4874
    %4878 = vset.pattern.permute.xlu0 1
    %4879 = vperm.xlu0 %4878, %v4798
    %v4880 = vpop.permute.xlu0 %4879
    %4883 = vset.pattern.permute.xlu0 1
    %4884 = vperm.xlu0 %4883, %v4800
    %v4885 = vpop.permute.xlu0 %4884
    %4888 = vset.pattern.permute.xlu0 1
    %4889 = vperm.xlu0 %4888, %v4801
    %v4890 = vpop.permute.xlu0 %4889
    %4893 = vset.pattern.permute.xlu0 1
    %4894 = vperm.xlu0 %4893, %v4803
    %v4895 = vpop.permute.xlu0 %4894
    %4898 = vset.pattern.permute.xlu0 1
    %4899 = vperm.xlu0 %4898, %v4804
    %v4900 = vpop.permute.xlu0 %4899
    %4903 = vset.pattern.permute.xlu0 1
    %4904 = vperm.xlu0 %4903, %v4806
    %v4905 = vpop.permute.xlu0 %4904
    %4908 = vset.pattern.permute.xlu0 1
    %4909 = vperm.xlu0 %4908, %v4807
    %v4910 = vpop.permute.xlu0 %4909
    %4913 = vset.pattern.permute.xlu0 1
    %4914 = vperm.xlu0 %4913, %v4809
    %v4915 = vpop.permute.xlu0 %4914
    %4918 = vset.pattern.permute.xlu0 1
    %4919 = vperm.xlu0 %4918, %v4810
    %v4920 = vpop.permute.xlu0 %4919
    %4923 = vset.pattern.permute.xlu0 1
    %4924 = vperm.xlu0 %4923, %v4812
    %v4925 = vpop.permute.xlu0 %4924
    %4928 = vset.pattern.permute.xlu0 1
    %4929 = vperm.xlu0 %4928, %v4813
    %v4930 = vpop.permute.xlu0 %4929
    %4933 = vset.pattern.permute.xlu0 1
    %4934 = vperm.xlu0 %4933, %v4815
    %v4935 = vpop.permute.xlu0 %4934
    %4938 = vset.pattern.permute.xlu0 1
    %4939 = vperm.xlu0 %4938, %v4816
    %v4940 = vpop.permute.xlu0 %4939
    %4943 = vset.pattern.permute.xlu0 1
    %4944 = vperm.xlu0 %4943, %v4818
    %v4945 = vpop.permute.xlu0 %4944
    %4948 = vset.pattern.permute.xlu0 1
    %4949 = vperm.xlu0 %4948, %v4819
    %v4950 = vpop.permute.xlu0 %4949
    %4953 = vset.pattern.permute.xlu0 1
    %4954 = vperm.xlu0 %4953, %v4821
    %v4955 = vpop.permute.xlu0 %4954
    %4958 = vset.pattern.permute.xlu0 1
    %4959 = vperm.xlu0 %4958, %v4822
    %v4960 = vpop.permute.xlu0 %4959
    %4963 = vset.pattern.permute.xlu0 1
    %4964 = vperm.xlu0 %4963, %v4824
    %v4965 = vpop.permute.xlu0 %4964
    %4968 = vset.pattern.permute.xlu0 1
    %4969 = vperm.xlu0 %4968, %v4825
    %v4970 = vpop.permute.xlu0 %4969
    %4973 = vset.pattern.permute.xlu0 1
    %4974 = vperm.xlu0 %4973, %v4827
    %v4975 = vpop.permute.xlu0 %4974
    %4978 = vset.pattern.permute.xlu0 1
    %4979 = vperm.xlu0 %4978, %v4828
    %v4980 = vpop.permute.xlu0 %4979
    %4983 = vset.pattern.permute.xlu0 1
    %4984 = vperm.xlu0 %4983, %v4830
    %v4985 = vpop.permute.xlu0 %4984
    %4988 = vset.pattern.permute.xlu0 1
    %4989 = vperm.xlu0 %4988, %v4831
    %v4990 = vpop.permute.xlu0 %4989
    %v4992 = vmul.f32 %v4835, %v2095
    %v4993 = vmul.f32 %v4840, %v2101
    %v4994 = vmul.f32 %v4845, %v2107
    %v4995 = vmul.f32 %v4850, %v2113
    %v4996 = vmul.f32 %v4855, %v2119
    %v4997 = vmul.f32 %v4860, %v2125
    %v4998 = vmul.f32 %v4865, %v2131
    %v4999 = vmul.f32 %v4870, %v2137
    %v5000 = vmul.f32 %v4875, %v2143
    %v5001 = vmul.f32 %v4880, %v2149
    %v5002 = vmul.f32 %v4885, %v2155
    %v5003 = vmul.f32 %v4890, %v2161
    %v5004 = vmul.f32 %v4895, %v2167
    %v5005 = vmul.f32 %v4900, %v2173
    %v5006 = vmul.f32 %v4905, %v2179
    %v5007 = vmul.f32 %v4910, %v2185
    %v5008 = vmul.f32 %v4915, %v2191
    %v5009 = vmul.f32 %v4920, %v2197
    %v5010 = vmul.f32 %v4925, %v2203
    %v5011 = vmul.f32 %v4930, %v2209
    %v5012 = vmul.f32 %v4935, %v2215
    %v5013 = vmul.f32 %v4940, %v2221
    %v5014 = vmul.f32 %v4945, %v2227
    %v5015 = vmul.f32 %v4950, %v2233
    %v5016 = vmul.f32 %v4955, %v2239
    %v5017 = vmul.f32 %v4960, %v2245
    %v5018 = vmul.f32 %v4965, %v2251
    %v5019 = vmul.f32 %v4970, %v2257
    %v5020 = vmul.f32 %v4975, %v2263
    %v5021 = vmul.f32 %v4980, %v2269
    %v5022 = vmul.f32 %v4985, %v2275
    %v5023 = vmul.f32 %v4990, %v2281
    %v5024 = vsel %vm2288, %v4992, 0.0
    %v5025 = vsel %vm2288, %v4993, 0.0
    %v5026 = vadd.f32 %v5024, %v5025
    %v5027 = vrot.slane %v5026, 4
    %v5028 = vadd.f32 %v5026, %v5027
    %v5029 = vrot.slane %v5028, 2
    %v5030 = vadd.f32 %v5028, %v5029
    %v5031 = vrot.slane %v5030, 1
    %v5032 = vadd.f32 %v5030, %v5031
    %v5033 = vsel %vm2288, %v4994, 0.0
    %v5034 = vsel %vm2288, %v4995, 0.0
    %v5035 = vadd.f32 %v5033, %v5034
    %v5036 = vrot.slane %v5035, 4
    %v5037 = vadd.f32 %v5035, %v5036
    %v5038 = vrot.slane %v5037, 2
    %v5039 = vadd.f32 %v5037, %v5038
    %v5040 = vrot.slane %v5039, 1
    %v5041 = vadd.f32 %v5039, %v5040
    %v5042 = vsel %vm2288, %v4996, 0.0
    %v5043 = vsel %vm2288, %v4997, 0.0
    %v5044 = vadd.f32 %v5042, %v5043
    %v5045 = vrot.slane %v5044, 4
    %v5046 = vadd.f32 %v5044, %v5045
    %v5047 = vrot.slane %v5046, 2
    %v5048 = vadd.f32 %v5046, %v5047
    %v5049 = vrot.slane %v5048, 1
    %v5050 = vadd.f32 %v5048, %v5049
    %v5051 = vsel %vm2288, %v4998, 0.0
    %v5052 = vsel %vm2288, %v4999, 0.0
    %v5053 = vadd.f32 %v5051, %v5052
    %v5054 = vrot.slane %v5053, 4
    %v5055 = vadd.f32 %v5053, %v5054
    %v5056 = vrot.slane %v5055, 2
    %v5057 = vadd.f32 %v5055, %v5056
    %v5058 = vrot.slane %v5057, 1
    %v5059 = vadd.f32 %v5057, %v5058
    %v5060 = vsel %vm2288, %v5000, 0.0
    %v5061 = vsel %vm2288, %v5001, 0.0
    %v5062 = vadd.f32 %v5060, %v5061
    %v5063 = vrot.slane %v5062, 4
    %v5064 = vadd.f32 %v5062, %v5063
    %v5065 = vrot.slane %v5064, 2
    %v5066 = vadd.f32 %v5064, %v5065
    %v5067 = vrot.slane %v5066, 1
    %v5068 = vadd.f32 %v5066, %v5067
    %v5069 = vsel %vm2288, %v5002, 0.0
    %v5070 = vsel %vm2288, %v5003, 0.0
    %v5071 = vadd.f32 %v5069, %v5070
    %v5072 = vrot.slane %v5071, 4
    %v5073 = vadd.f32 %v5071, %v5072
    %v5074 = vrot.slane %v5073, 2
    %v5075 = vadd.f32 %v5073, %v5074
    %v5076 = vrot.slane %v5075, 1
    %v5077 = vadd.f32 %v5075, %v5076
    %v5078 = vsel %vm2288, %v5004, 0.0
    %v5079 = vsel %vm2288, %v5005, 0.0
    %v5080 = vadd.f32 %v5078, %v5079
    %v5081 = vrot.slane %v5080, 4
    %v5082 = vadd.f32 %v5080, %v5081
    %v5083 = vrot.slane %v5082, 2
    %v5084 = vadd.f32 %v5082, %v5083
    %v5085 = vrot.slane %v5084, 1
    %v5086 = vadd.f32 %v5084, %v5085
    %v5087 = vsel %vm2288, %v5006, 0.0
    %v5088 = vsel %vm2288, %v5007, 0.0
    %v5089 = vadd.f32 %v5087, %v5088
    %v5090 = vrot.slane %v5089, 4
    %v5091 = vadd.f32 %v5089, %v5090
    %v5092 = vrot.slane %v5091, 2
    %v5093 = vadd.f32 %v5091, %v5092
    %v5094 = vrot.slane %v5093, 1
    %v5095 = vadd.f32 %v5093, %v5094
    %v5096 = vsel %vm2288, %v5008, 0.0
    %v5097 = vsel %vm2288, %v5009, 0.0
    %v5098 = vadd.f32 %v5096, %v5097
    %v5099 = vrot.slane %v5098, 4
    %v5100 = vadd.f32 %v5098, %v5099
    %v5101 = vrot.slane %v5100, 2
    %v5102 = vadd.f32 %v5100, %v5101
    %v5103 = vrot.slane %v5102, 1
    %v5104 = vadd.f32 %v5102, %v5103
    %v5105 = vsel %vm2288, %v5010, 0.0
    %v5106 = vsel %vm2288, %v5011, 0.0
    %v5107 = vadd.f32 %v5105, %v5106
    %v5108 = vrot.slane %v5107, 4
    %v5109 = vadd.f32 %v5107, %v5108
    %v5110 = vrot.slane %v5109, 2
    %v5111 = vadd.f32 %v5109, %v5110
    %v5112 = vrot.slane %v5111, 1
    %v5113 = vadd.f32 %v5111, %v5112
    %v5114 = vsel %vm2288, %v5012, 0.0
    %v5115 = vsel %vm2288, %v5013, 0.0
    %v5116 = vadd.f32 %v5114, %v5115
    %v5117 = vrot.slane %v5116, 4
    %v5118 = vadd.f32 %v5116, %v5117
    %v5119 = vrot.slane %v5118, 2
    %v5120 = vadd.f32 %v5118, %v5119
    %v5121 = vrot.slane %v5120, 1
    %v5122 = vadd.f32 %v5120, %v5121
    %v5123 = vsel %vm2288, %v5014, 0.0
    %v5124 = vsel %vm2288, %v5015, 0.0
    %v5125 = vadd.f32 %v5123, %v5124
    %v5126 = vrot.slane %v5125, 4
    %v5127 = vadd.f32 %v5125, %v5126
    %v5128 = vrot.slane %v5127, 2
    %v5129 = vadd.f32 %v5127, %v5128
    %v5130 = vrot.slane %v5129, 1
    %v5131 = vadd.f32 %v5129, %v5130
    %v5132 = vsel %vm2288, %v5016, 0.0
    %v5133 = vsel %vm2288, %v5017, 0.0
    %v5134 = vadd.f32 %v5132, %v5133
    %v5135 = vrot.slane %v5134, 4
    %v5136 = vadd.f32 %v5134, %v5135
    %v5137 = vrot.slane %v5136, 2
    %v5138 = vadd.f32 %v5136, %v5137
    %v5139 = vrot.slane %v5138, 1
    %v5140 = vadd.f32 %v5138, %v5139
    %v5141 = vsel %vm2288, %v5018, 0.0
    %v5142 = vsel %vm2288, %v5019, 0.0
    %v5143 = vadd.f32 %v5141, %v5142
    %v5144 = vrot.slane %v5143, 4
    %v5145 = vadd.f32 %v5143, %v5144
    %v5146 = vrot.slane %v5145, 2
    %v5147 = vadd.f32 %v5145, %v5146
    %v5148 = vrot.slane %v5147, 1
    %v5149 = vadd.f32 %v5147, %v5148
    %v5150 = vsel %vm2288, %v5020, 0.0
    %v5151 = vsel %vm2288, %v5021, 0.0
    %v5152 = vadd.f32 %v5150, %v5151
    %v5153 = vrot.slane %v5152, 4
    %v5154 = vadd.f32 %v5152, %v5153
    %v5155 = vrot.slane %v5154, 2
    %v5156 = vadd.f32 %v5154, %v5155
    %v5157 = vrot.slane %v5156, 1
    %v5158 = vadd.f32 %v5156, %v5157
    %v5159 = vsel %vm2288, %v5022, 0.0
    %v5160 = vsel %vm2288, %v5023, 0.0
    %v5161 = vadd.f32 %v5159, %v5160
    %v5162 = vrot.slane %v5161, 4
    %v5163 = vadd.f32 %v5161, %v5162
    %v5164 = vrot.slane %v5163, 2
    %v5165 = vadd.f32 %v5163, %v5164
    %v5166 = vrot.slane %v5165, 1
    %v5167 = vadd.f32 %v5165, %v5166
    %v5168 = vlaneseq
    %v5169 = vshrl.u32 %v5168, 7
    %v5170 = vsub.s32 0, %v5169
    %v5171 = vrot.slane %v120, %v5170
    %vm5188 = vcmask 1041409
    %v5189 = vsel %vm5188, %v5041, %v5032
    %vm5190 = vcmask 1042434
    %v5191 = vsel %vm5190, %v5050, %v5189
    %vm5192 = vcmask 1043459
    %v5193 = vsel %vm5192, %v5059, %v5191
    %vm5194 = vcmask 1044484
    %v5195 = vsel %vm5194, %v5068, %v5193
    %vm5196 = vcmask 1045509
    %v5197 = vsel %vm5196, %v5077, %v5195
    %vm5198 = vcmask 1046534
    %v5199 = vsel %vm5198, %v5086, %v5197
    %vm5200 = vcmask 1047559
    %v5201 = vsel %vm5200, %v5095, %v5199
    %v5202 = vsel %vm5188, %v5113, %v5104
    %v5203 = vsel %vm5190, %v5122, %v5202
    %v5204 = vsel %vm5192, %v5131, %v5203
    %v5205 = vsel %vm5194, %v5140, %v5204
    %v5206 = vsel %vm5196, %v5149, %v5205
    %v5207 = vsel %vm5198, %v5158, %v5206
    %v5208 = vsel %vm5200, %v5167, %v5207
    %v5209 = vsel %vm2288, %v5201, 0
    %v5211 = vsel %vm2288, %v5208, 0
    %5213 = vmatprep.subr.mxu0 0.0
    %5214 = vmatpush1.msra.mxu0 0.0
    %5215 = vmatprep.subr.mxu0 0.0
    %5216 = vmatpush1.msra.mxu0 0.0
    %5217 = vmatprep.subr.mxu0 0.0
    %5218 = vmatpush1.msra.mxu0 0.0
    %5219 = vmatprep.subr.mxu0 0.0
    %5220 = vmatpush1.msra.mxu0 0.0
    %5221 = vmatprep.subr.mxu0 0.0
    %5222 = vmatpush1.msra.mxu0 0.0
    %5223 = vmatprep.subr.mxu0 0.0
    %5224 = vmatpush1.msra.mxu0 0.0
    %5225 = vmatprep.subr.mxu0 0.0
    %5226 = vmatpush1.msra.mxu0 0.0
    %5227 = vmatprep.subr.mxu0 0.0
    %5228 = vmatpush1.msra.mxu0 0.0
    %5229 = vmatprep.subr.mxu0 0.0
    %5230 = vmatpush1.msra.mxu0 0.0
    %5231 = vmatprep.subr.mxu0 0.0
    %5232 = vmatpush1.msra.mxu0 0.0
    %5233 = vmatprep.subr.mxu0 0.0
    %5234 = vmatpush1.msra.mxu0 0.0
    %5235 = vmatprep.subr.mxu0 0.0
    %5236 = vmatpush1.msra.mxu0 0.0
    %5237 = vmatprep.subr.mxu0 0.0
    %v5238 = vand.u32 %v105, 4294901760
    %5239 = vmatpush1.msra.mxu0 %v5238
    %5240 = vmatprep.subr.mxu0 0.0
    %v5241 = vand.u32 %v104, 4294901760
    %5242 = vmatpush1.msra.mxu0 %v5241
    %5243 = vmatprep.subr.mxu0 0.0
    %v5244 = vand.u32 %v103, 4294901760
    %5245 = vmatpush1.msra.mxu0 %v5244
    %5246 = vmatprep.subr.mxu0 0.0
    %v5247 = vand.u32 %v102, 4294901760
    %5248 = vmatpush1.msra.mxu0 %v5247
    %5249 = vmatprep.subr.mxu0 0.0
    %5250 = vmatpush2.msra.mxu0 0.0
    %5251 = vmatprep.subr.mxu0 0.0
    %5252 = vmatpush2.msra.mxu0 0.0
    %5253 = vmatprep.subr.mxu0 0.0
    %5254 = vmatpush2.msra.mxu0 0.0
    %5255 = vmatprep.subr.mxu0 0.0
    %5256 = vmatpush2.msra.mxu0 0.0
    %5257 = vmatprep.subr.mxu0 0.0
    %5258 = vmatpush2.msra.mxu0 0.0
    %5259 = vmatprep.subr.mxu0 0.0
    %5260 = vmatpush2.msra.mxu0 0.0
    %5261 = vmatprep.subr.mxu0 0.0
    %5262 = vmatpush2.msra.mxu0 0.0
    %5263 = vmatprep.subr.mxu0 0.0
    %5264 = vmatpush2.msra.mxu0 0.0
    %5265 = vmatprep.subr.mxu0 0.0
    %5266 = vmatpush2.msra.mxu0 0.0
    %5267 = vmatprep.subr.mxu0 0.0
    %5268 = vmatpush2.msra.mxu0 0.0
    %5269 = vmatprep.subr.mxu0 0.0
    %5270 = vmatpush2.msra.mxu0 0.0
    %5271 = vmatprep.subr.mxu0 0.0
    %5272 = vmatpush2.msra.mxu0 0.0
    %5273 = vmatprep.subr.mxu0 0.0
    %5274 = vmatpush2.msra.mxu0 0.0
    %5275 = vmatprep.subr.mxu0 0.0
    %5276 = vmatpush2.msra.mxu0 0.0
    %5277 = vmatprep.subr.mxu0 0.0
    %5278 = vmatpush2.msra.mxu0 0.0
    %5279 = vmatprep.subr.mxu0 0.0
    %5280 = vmatpush2.msra.mxu0 0.0
    %5281 = vmatprep.mubr.f32.mxu0 0.0
    %v5282 = vand.u32 %v5209, 4294901760
    %v5283 = vsub.f32 %v5209, %v5282
    %v5284 = vand.u32 %v5283, 4294901760
    %v5285 = vsub.f32 %v5283, %v5284
    %v5286 = vand.u32 %v5285, 4294901760
    %5287 = vmatmul.mubr.f32.gmra.mxu0 %v5286
    %v5288 = vpop.f32.mrf.mxu0
    %v5289 = vadd.f32 %v5171, %v5288
    %v5290 = vpop.f32.mrf.mxu0
    %5291 = vmatprep.mubr.f32.mxu0 0.0
    %v5292 = vand.u32 %v5211, 4294901760
    %v5293 = vsub.f32 %v5211, %v5292
    %v5294 = vand.u32 %v5293, 4294901760
    %v5295 = vsub.f32 %v5293, %v5294
    %v5296 = vand.u32 %v5295, 4294901760
    %5297 = vmatmul.mubr.f32.gmra.mxu0 %v5296
    %v5298 = vpop.f32.mrf.mxu0
    %v5299 = vadd.f32 %v5171, %v5298
    %v5300 = vpop.f32.mrf.mxu0
    %5301 = vdwg.mxu0
    %5302 = vmatprep.subr.mxu0 0.0
    %5303 = vmatpush1.msra.mxu0 0.0
    %5304 = vmatprep.subr.mxu0 0.0
    %5305 = vmatpush1.msra.mxu0 0.0
    %5306 = vmatprep.subr.mxu0 0.0
    %5307 = vmatpush1.msra.mxu0 0.0
    %5308 = vmatprep.subr.mxu0 0.0
    %5309 = vmatpush1.msra.mxu0 0.0
    %5310 = vmatprep.subr.mxu0 0.0
    %5311 = vmatpush1.msra.mxu0 0.0
    %5312 = vmatprep.subr.mxu0 0.0
    %5313 = vmatpush1.msra.mxu0 0.0
    %5314 = vmatprep.subr.mxu0 0.0
    %5315 = vmatpush1.msra.mxu0 0.0
    %5316 = vmatprep.subr.mxu0 0.0
    %5317 = vmatpush1.msra.mxu0 0.0
    %5318 = vmatprep.subr.mxu0 0.0
    %5319 = vmatpush1.msra.mxu0 0.0
    %5320 = vmatprep.subr.mxu0 0.0
    %5321 = vmatpush1.msra.mxu0 0.0
    %5322 = vmatprep.subr.mxu0 0.0
    %5323 = vmatpush1.msra.mxu0 0.0
    %5324 = vmatprep.subr.mxu0 0.0
    %5325 = vmatpush1.msra.mxu0 0.0
    %5326 = vmatprep.subr.mxu0 0.0
    %v5327 = vand.u32 %v105, 4294901760
    %v5328 = vsub.f32 %v105, %v5327
    %v5329 = vand.u32 %v5328, 4294901760
    %v5330 = vsub.f32 %v5328, %v5329
    %v5331 = vand.u32 %v5330, 4294901760
    %5332 = vmatpush1.msra.mxu0 %v5331
    %5333 = vmatprep.subr.mxu0 0.0
    %v5334 = vand.u32 %v104, 4294901760
    %v5335 = vsub.f32 %v104, %v5334
    %v5336 = vand.u32 %v5335, 4294901760
    %v5337 = vsub.f32 %v5335, %v5336
    %v5338 = vand.u32 %v5337, 4294901760
    %5339 = vmatpush1.msra.mxu0 %v5338
    %5340 = vmatprep.subr.mxu0 0.0
    %v5341 = vand.u32 %v103, 4294901760
    %v5342 = vsub.f32 %v103, %v5341
    %v5343 = vand.u32 %v5342, 4294901760
    %v5344 = vsub.f32 %v5342, %v5343
    %v5345 = vand.u32 %v5344, 4294901760
    %5346 = vmatpush1.msra.mxu0 %v5345
    %5347 = vmatprep.subr.mxu0 0.0
    %v5348 = vand.u32 %v102, 4294901760
    %v5349 = vsub.f32 %v102, %v5348
    %v5350 = vand.u32 %v5349, 4294901760
    %v5351 = vsub.f32 %v5349, %v5350
    %v5352 = vand.u32 %v5351, 4294901760
    %5353 = vmatpush1.msra.mxu0 %v5352
    %5354 = vmatprep.subr.mxu0 0.0
    %5355 = vmatpush2.msra.mxu0 0.0
    %5356 = vmatprep.subr.mxu0 0.0
    %5357 = vmatpush2.msra.mxu0 0.0
    %5358 = vmatprep.subr.mxu0 0.0
    %5359 = vmatpush2.msra.mxu0 0.0
    %5360 = vmatprep.subr.mxu0 0.0
    %5361 = vmatpush2.msra.mxu0 0.0
    %5362 = vmatprep.subr.mxu0 0.0
    %5363 = vmatpush2.msra.mxu0 0.0
    %5364 = vmatprep.subr.mxu0 0.0
    %5365 = vmatpush2.msra.mxu0 0.0
    %5366 = vmatprep.subr.mxu0 0.0
    %5367 = vmatpush2.msra.mxu0 0.0
    %5368 = vmatprep.subr.mxu0 0.0
    %5369 = vmatpush2.msra.mxu0 0.0
    %5370 = vmatprep.subr.mxu0 0.0
    %5371 = vmatpush2.msra.mxu0 0.0
    %5372 = vmatprep.subr.mxu0 0.0
    %5373 = vmatpush2.msra.mxu0 0.0
    %5374 = vmatprep.subr.mxu0 0.0
    %5375 = vmatpush2.msra.mxu0 0.0
    %5376 = vmatprep.subr.mxu0 0.0
    %5377 = vmatpush2.msra.mxu0 0.0
    %5378 = vmatprep.subr.mxu0 0.0
    %5379 = vmatpush2.msra.mxu0 0.0
    %5380 = vmatprep.subr.mxu0 0.0
    %5381 = vmatpush2.msra.mxu0 0.0
    %5382 = vmatprep.subr.mxu0 0.0
    %5383 = vmatpush2.msra.mxu0 0.0
    %5384 = vmatprep.subr.mxu0 0.0
    %5385 = vmatpush2.msra.mxu0 0.0
    %5386 = vmatprep.mubr.f32.mxu0 0.0
    %v5387 = vand.u32 %v5209, 4294901760
    %5388 = vmatmul.mubr.f32.gmra.mxu0 %v5387
    %v5389 = vpop.f32.mrf.mxu0
    %v5390 = vadd.f32 %v5289, %v5389
    %v5391 = vpop.f32.mrf.mxu0
    %5392 = vmatprep.mubr.f32.mxu0 0.0
    %v5393 = vand.u32 %v5211, 4294901760
    %5394 = vmatmul.mubr.f32.gmra.mxu0 %v5393
    %v5395 = vpop.f32.mrf.mxu0
    %v5396 = vadd.f32 %v5299, %v5395
    %v5397 = vpop.f32.mrf.mxu0
    %5398 = vdwg.mxu0
    %5399 = vmatprep.subr.mxu0 0.0
    %5400 = vmatpush1.msra.mxu0 0.0
    %5401 = vmatprep.subr.mxu0 0.0
    %5402 = vmatpush1.msra.mxu0 0.0
    %5403 = vmatprep.subr.mxu0 0.0
    %5404 = vmatpush1.msra.mxu0 0.0
    %5405 = vmatprep.subr.mxu0 0.0
    %5406 = vmatpush1.msra.mxu0 0.0
    %5407 = vmatprep.subr.mxu0 0.0
    %5408 = vmatpush1.msra.mxu0 0.0
    %5409 = vmatprep.subr.mxu0 0.0
    %5410 = vmatpush1.msra.mxu0 0.0
    %5411 = vmatprep.subr.mxu0 0.0
    %5412 = vmatpush1.msra.mxu0 0.0
    %5413 = vmatprep.subr.mxu0 0.0
    %5414 = vmatpush1.msra.mxu0 0.0
    %5415 = vmatprep.subr.mxu0 0.0
    %5416 = vmatpush1.msra.mxu0 0.0
    %5417 = vmatprep.subr.mxu0 0.0
    %5418 = vmatpush1.msra.mxu0 0.0
    %5419 = vmatprep.subr.mxu0 0.0
    %5420 = vmatpush1.msra.mxu0 0.0
    %5421 = vmatprep.subr.mxu0 0.0
    %5422 = vmatpush1.msra.mxu0 0.0
    %5423 = vmatprep.subr.mxu0 0.0
    %v5424 = vand.u32 %v105, 4294901760
    %v5425 = vsub.f32 %v105, %v5424
    %5426 = vmatpush1.msra.mxu0 %v5425
    %5427 = vmatprep.subr.mxu0 0.0
    %v5428 = vand.u32 %v104, 4294901760
    %v5429 = vsub.f32 %v104, %v5428
    %5430 = vmatpush1.msra.mxu0 %v5429
    %5431 = vmatprep.subr.mxu0 0.0
    %v5432 = vand.u32 %v103, 4294901760
    %v5433 = vsub.f32 %v103, %v5432
    %5434 = vmatpush1.msra.mxu0 %v5433
    %5435 = vmatprep.subr.mxu0 0.0
    %v5436 = vand.u32 %v102, 4294901760
    %v5437 = vsub.f32 %v102, %v5436
    %5438 = vmatpush1.msra.mxu0 %v5437
    %5439 = vmatprep.subr.mxu0 0.0
    %5440 = vmatpush2.msra.mxu0 0.0
    %5441 = vmatprep.subr.mxu0 0.0
    %5442 = vmatpush2.msra.mxu0 0.0
    %5443 = vmatprep.subr.mxu0 0.0
    %5444 = vmatpush2.msra.mxu0 0.0
    %5445 = vmatprep.subr.mxu0 0.0
    %5446 = vmatpush2.msra.mxu0 0.0
    %5447 = vmatprep.subr.mxu0 0.0
    %5448 = vmatpush2.msra.mxu0 0.0
    %5449 = vmatprep.subr.mxu0 0.0
    %5450 = vmatpush2.msra.mxu0 0.0
    %5451 = vmatprep.subr.mxu0 0.0
    %5452 = vmatpush2.msra.mxu0 0.0
    %5453 = vmatprep.subr.mxu0 0.0
    %5454 = vmatpush2.msra.mxu0 0.0
    %5455 = vmatprep.subr.mxu0 0.0
    %5456 = vmatpush2.msra.mxu0 0.0
    %5457 = vmatprep.subr.mxu0 0.0
    %5458 = vmatpush2.msra.mxu0 0.0
    %5459 = vmatprep.subr.mxu0 0.0
    %5460 = vmatpush2.msra.mxu0 0.0
    %5461 = vmatprep.subr.mxu0 0.0
    %5462 = vmatpush2.msra.mxu0 0.0
    %5463 = vmatprep.subr.mxu0 0.0
    %5464 = vmatpush2.msra.mxu0 0.0
    %5465 = vmatprep.subr.mxu0 0.0
    %5466 = vmatpush2.msra.mxu0 0.0
    %5467 = vmatprep.subr.mxu0 0.0
    %5468 = vmatpush2.msra.mxu0 0.0
    %5469 = vmatprep.subr.mxu0 0.0
    %5470 = vmatpush2.msra.mxu0 0.0
    %5471 = vmatprep.mubr.f32.mxu0 0.0
    %v5472 = vand.u32 %v5209, 4294901760
    %v5473 = vsub.f32 %v5209, %v5472
    %5474 = vmatmul.mubr.f32.gmra.mxu0 %v5473
    %v5475 = vpop.f32.mrf.mxu0
    %v5476 = vadd.f32 %v5390, %v5475
    %v5477 = vpop.f32.mrf.mxu0
    %5478 = vmatprep.mubr.f32.mxu0 0.0
    %v5479 = vand.u32 %v5211, 4294901760
    %v5480 = vsub.f32 %v5211, %v5479
    %5481 = vmatmul.mubr.f32.gmra.mxu0 %v5480
    %v5482 = vpop.f32.mrf.mxu0
    %v5483 = vadd.f32 %v5396, %v5482
    %v5484 = vpop.f32.mrf.mxu0
    %5485 = vdwg.mxu0
    %5486 = vmatprep.subr.mxu0 0.0
    %5487 = vmatpush1.msra.mxu0 0.0
    %5488 = vmatprep.subr.mxu0 0.0
    %5489 = vmatpush1.msra.mxu0 0.0
    %5490 = vmatprep.subr.mxu0 0.0
    %5491 = vmatpush1.msra.mxu0 0.0
    %5492 = vmatprep.subr.mxu0 0.0
    %5493 = vmatpush1.msra.mxu0 0.0
    %5494 = vmatprep.subr.mxu0 0.0
    %5495 = vmatpush1.msra.mxu0 0.0
    %5496 = vmatprep.subr.mxu0 0.0
    %5497 = vmatpush1.msra.mxu0 0.0
    %5498 = vmatprep.subr.mxu0 0.0
    %5499 = vmatpush1.msra.mxu0 0.0
    %5500 = vmatprep.subr.mxu0 0.0
    %5501 = vmatpush1.msra.mxu0 0.0
    %5502 = vmatprep.subr.mxu0 0.0
    %5503 = vmatpush1.msra.mxu0 0.0
    %5504 = vmatprep.subr.mxu0 0.0
    %5505 = vmatpush1.msra.mxu0 0.0
    %5506 = vmatprep.subr.mxu0 0.0
    %5507 = vmatpush1.msra.mxu0 0.0
    %5508 = vmatprep.subr.mxu0 0.0
    %5509 = vmatpush1.msra.mxu0 0.0
    %5510 = vmatprep.subr.mxu0 0.0
    %v5511 = vand.u32 %v105, 4294901760
    %5512 = vmatpush1.msra.mxu0 %v5511
    %5513 = vmatprep.subr.mxu0 0.0
    %v5514 = vand.u32 %v104, 4294901760
    %5515 = vmatpush1.msra.mxu0 %v5514
    %5516 = vmatprep.subr.mxu0 0.0
    %v5517 = vand.u32 %v103, 4294901760
    %5518 = vmatpush1.msra.mxu0 %v5517
    %5519 = vmatprep.subr.mxu0 0.0
    %v5520 = vand.u32 %v102, 4294901760
    %5521 = vmatpush1.msra.mxu0 %v5520
    %5522 = vmatprep.subr.mxu0 0.0
    %5523 = vmatpush2.msra.mxu0 0.0
    %5524 = vmatprep.subr.mxu0 0.0
    %5525 = vmatpush2.msra.mxu0 0.0
    %5526 = vmatprep.subr.mxu0 0.0
    %5527 = vmatpush2.msra.mxu0 0.0
    %5528 = vmatprep.subr.mxu0 0.0
    %5529 = vmatpush2.msra.mxu0 0.0
    %5530 = vmatprep.subr.mxu0 0.0
    %5531 = vmatpush2.msra.mxu0 0.0
    %5532 = vmatprep.subr.mxu0 0.0
    %5533 = vmatpush2.msra.mxu0 0.0
    %5534 = vmatprep.subr.mxu0 0.0
    %5535 = vmatpush2.msra.mxu0 0.0
    %5536 = vmatprep.subr.mxu0 0.0
    %5537 = vmatpush2.msra.mxu0 0.0
    %5538 = vmatprep.subr.mxu0 0.0
    %5539 = vmatpush2.msra.mxu0 0.0
    %5540 = vmatprep.subr.mxu0 0.0
    %5541 = vmatpush2.msra.mxu0 0.0
    %5542 = vmatprep.subr.mxu0 0.0
    %5543 = vmatpush2.msra.mxu0 0.0
    %5544 = vmatprep.subr.mxu0 0.0
    %5545 = vmatpush2.msra.mxu0 0.0
    %5546 = vmatprep.subr.mxu0 0.0
    %5547 = vmatpush2.msra.mxu0 0.0
    %5548 = vmatprep.subr.mxu0 0.0
    %5549 = vmatpush2.msra.mxu0 0.0
    %5550 = vmatprep.subr.mxu0 0.0
    %5551 = vmatpush2.msra.mxu0 0.0
    %5552 = vmatprep.subr.mxu0 0.0
    %5553 = vmatpush2.msra.mxu0 0.0
    %5554 = vmatprep.mubr.f32.mxu0 0.0
    %v5555 = vand.u32 %v5209, 4294901760
    %v5556 = vsub.f32 %v5209, %v5555
    %v5557 = vand.u32 %v5556, 4294901760
    %5558 = vmatmul.mubr.f32.gmra.mxu0 %v5557
    %v5559 = vpop.f32.mrf.mxu0
    %v5560 = vadd.f32 %v5476, %v5559
    %v5561 = vpop.f32.mrf.mxu0
    %5562 = vmatprep.mubr.f32.mxu0 0.0
    %v5563 = vand.u32 %v5211, 4294901760
    %v5564 = vsub.f32 %v5211, %v5563
    %v5565 = vand.u32 %v5564, 4294901760
    %5566 = vmatmul.mubr.f32.gmra.mxu0 %v5565
    %v5567 = vpop.f32.mrf.mxu0
    %v5568 = vadd.f32 %v5483, %v5567
    %v5569 = vpop.f32.mrf.mxu0
    %5570 = vdwg.mxu0
    %5571 = vmatprep.subr.mxu0 0.0
    %5572 = vmatpush1.msra.mxu0 0.0
    %5573 = vmatprep.subr.mxu0 0.0
    %5574 = vmatpush1.msra.mxu0 0.0
    %5575 = vmatprep.subr.mxu0 0.0
    %5576 = vmatpush1.msra.mxu0 0.0
    %5577 = vmatprep.subr.mxu0 0.0
    %5578 = vmatpush1.msra.mxu0 0.0
    %5579 = vmatprep.subr.mxu0 0.0
    %5580 = vmatpush1.msra.mxu0 0.0
    %5581 = vmatprep.subr.mxu0 0.0
    %5582 = vmatpush1.msra.mxu0 0.0
    %5583 = vmatprep.subr.mxu0 0.0
    %5584 = vmatpush1.msra.mxu0 0.0
    %5585 = vmatprep.subr.mxu0 0.0
    %5586 = vmatpush1.msra.mxu0 0.0
    %5587 = vmatprep.subr.mxu0 0.0
    %5588 = vmatpush1.msra.mxu0 0.0
    %5589 = vmatprep.subr.mxu0 0.0
    %5590 = vmatpush1.msra.mxu0 0.0
    %5591 = vmatprep.subr.mxu0 0.0
    %5592 = vmatpush1.msra.mxu0 0.0
    %5593 = vmatprep.subr.mxu0 0.0
    %5594 = vmatpush1.msra.mxu0 0.0
    %5595 = vmatprep.subr.mxu0 0.0
    %v5596 = vand.u32 %v105, 4294901760
    %v5597 = vsub.f32 %v105, %v5596
    %v5598 = vand.u32 %v5597, 4294901760
    %5599 = vmatpush1.msra.mxu0 %v5598
    %5600 = vmatprep.subr.mxu0 0.0
    %v5601 = vand.u32 %v104, 4294901760
    %v5602 = vsub.f32 %v104, %v5601
    %v5603 = vand.u32 %v5602, 4294901760
    %5604 = vmatpush1.msra.mxu0 %v5603
    %5605 = vmatprep.subr.mxu0 0.0
    %v5606 = vand.u32 %v103, 4294901760
    %v5607 = vsub.f32 %v103, %v5606
    %v5608 = vand.u32 %v5607, 4294901760
    %5609 = vmatpush1.msra.mxu0 %v5608
    %5610 = vmatprep.subr.mxu0 0.0
    %v5611 = vand.u32 %v102, 4294901760
    %v5612 = vsub.f32 %v102, %v5611
    %v5613 = vand.u32 %v5612, 4294901760
    %5614 = vmatpush1.msra.mxu0 %v5613
    %5615 = vmatprep.subr.mxu0 0.0
    %5616 = vmatpush2.msra.mxu0 0.0
    %5617 = vmatprep.subr.mxu0 0.0
    %5618 = vmatpush2.msra.mxu0 0.0
    %5619 = vmatprep.subr.mxu0 0.0
    %5620 = vmatpush2.msra.mxu0 0.0
    %5621 = vmatprep.subr.mxu0 0.0
    %5622 = vmatpush2.msra.mxu0 0.0
    %5623 = vmatprep.subr.mxu0 0.0
    %5624 = vmatpush2.msra.mxu0 0.0
    %5625 = vmatprep.subr.mxu0 0.0
    %5626 = vmatpush2.msra.mxu0 0.0
    %5627 = vmatprep.subr.mxu0 0.0
    %5628 = vmatpush2.msra.mxu0 0.0
    %5629 = vmatprep.subr.mxu0 0.0
    %5630 = vmatpush2.msra.mxu0 0.0
    %5631 = vmatprep.subr.mxu0 0.0
    %5632 = vmatpush2.msra.mxu0 0.0
    %5633 = vmatprep.subr.mxu0 0.0
    %5634 = vmatpush2.msra.mxu0 0.0
    %5635 = vmatprep.subr.mxu0 0.0
    %5636 = vmatpush2.msra.mxu0 0.0
    %5637 = vmatprep.subr.mxu0 0.0
    %5638 = vmatpush2.msra.mxu0 0.0
    %5639 = vmatprep.subr.mxu0 0.0
    %5640 = vmatpush2.msra.mxu0 0.0
    %5641 = vmatprep.subr.mxu0 0.0
    %5642 = vmatpush2.msra.mxu0 0.0
    %5643 = vmatprep.subr.mxu0 0.0
    %5644 = vmatpush2.msra.mxu0 0.0
    %5645 = vmatprep.subr.mxu0 0.0
    %5646 = vmatpush2.msra.mxu0 0.0
    %5647 = vmatprep.mubr.f32.mxu0 0.0
    %v5648 = vand.u32 %v5209, 4294901760
    %5649 = vmatmul.mubr.f32.gmra.mxu0 %v5648
    %v5650 = vpop.f32.mrf.mxu0
    %v5651 = vadd.f32 %v5560, %v5650
    %v5652 = vpop.f32.mrf.mxu0
    %5653 = vmatprep.mubr.f32.mxu0 0.0
    %v5654 = vand.u32 %v5211, 4294901760
    %5655 = vmatmul.mubr.f32.gmra.mxu0 %v5654
    %v5656 = vpop.f32.mrf.mxu0
    %v5657 = vadd.f32 %v5568, %v5656
    %v5658 = vpop.f32.mrf.mxu0
    %5659 = vdwg.mxu0
    %5660 = vmatprep.subr.mxu0 0.0
    %5661 = vmatpush1.msra.mxu0 0.0
    %5662 = vmatprep.subr.mxu0 0.0
    %5663 = vmatpush1.msra.mxu0 0.0
    %5664 = vmatprep.subr.mxu0 0.0
    %5665 = vmatpush1.msra.mxu0 0.0
    %5666 = vmatprep.subr.mxu0 0.0
    %5667 = vmatpush1.msra.mxu0 0.0
    %5668 = vmatprep.subr.mxu0 0.0
    %5669 = vmatpush1.msra.mxu0 0.0
    %5670 = vmatprep.subr.mxu0 0.0
    %5671 = vmatpush1.msra.mxu0 0.0
    %5672 = vmatprep.subr.mxu0 0.0
    %5673 = vmatpush1.msra.mxu0 0.0
    %5674 = vmatprep.subr.mxu0 0.0
    %5675 = vmatpush1.msra.mxu0 0.0
    %5676 = vmatprep.subr.mxu0 0.0
    %5677 = vmatpush1.msra.mxu0 0.0
    %5678 = vmatprep.subr.mxu0 0.0
    %5679 = vmatpush1.msra.mxu0 0.0
    %5680 = vmatprep.subr.mxu0 0.0
    %5681 = vmatpush1.msra.mxu0 0.0
    %5682 = vmatprep.subr.mxu0 0.0
    %5683 = vmatpush1.msra.mxu0 0.0
    %5684 = vmatprep.subr.mxu0 0.0
    %v5685 = vand.u32 %v105, 4294901760
    %5686 = vmatpush1.msra.mxu0 %v5685
    %5687 = vmatprep.subr.mxu0 0.0
    %v5688 = vand.u32 %v104, 4294901760
    %5689 = vmatpush1.msra.mxu0 %v5688
    %5690 = vmatprep.subr.mxu0 0.0
    %v5691 = vand.u32 %v103, 4294901760
    %5692 = vmatpush1.msra.mxu0 %v5691
    %5693 = vmatprep.subr.mxu0 0.0
    %v5694 = vand.u32 %v102, 4294901760
    %5695 = vmatpush1.msra.mxu0 %v5694
    %5696 = vmatprep.subr.mxu0 0.0
    %5697 = vmatpush2.msra.mxu0 0.0
    %5698 = vmatprep.subr.mxu0 0.0
    %5699 = vmatpush2.msra.mxu0 0.0
    %5700 = vmatprep.subr.mxu0 0.0
    %5701 = vmatpush2.msra.mxu0 0.0
    %5702 = vmatprep.subr.mxu0 0.0
    %5703 = vmatpush2.msra.mxu0 0.0
    %5704 = vmatprep.subr.mxu0 0.0
    %5705 = vmatpush2.msra.mxu0 0.0
    %5706 = vmatprep.subr.mxu0 0.0
    %5707 = vmatpush2.msra.mxu0 0.0
    %5708 = vmatprep.subr.mxu0 0.0
    %5709 = vmatpush2.msra.mxu0 0.0
    %5710 = vmatprep.subr.mxu0 0.0
    %5711 = vmatpush2.msra.mxu0 0.0
    %5712 = vmatprep.subr.mxu0 0.0
    %5713 = vmatpush2.msra.mxu0 0.0
    %5714 = vmatprep.subr.mxu0 0.0
    %5715 = vmatpush2.msra.mxu0 0.0
    %5716 = vmatprep.subr.mxu0 0.0
    %5717 = vmatpush2.msra.mxu0 0.0
    %5718 = vmatprep.subr.mxu0 0.0
    %5719 = vmatpush2.msra.mxu0 0.0
    %5720 = vmatprep.subr.mxu0 0.0
    %5721 = vmatpush2.msra.mxu0 0.0
    %5722 = vmatprep.subr.mxu0 0.0
    %5723 = vmatpush2.msra.mxu0 0.0
    %5724 = vmatprep.subr.mxu0 0.0
    %5725 = vmatpush2.msra.mxu0 0.0
    %5726 = vmatprep.subr.mxu0 0.0
    %5727 = vmatpush2.msra.mxu0 0.0
    %5728 = vmatprep.mubr.f32.mxu0 0.0
    %v5729 = vand.u32 %v5209, 4294901760
    %5730 = vmatmul.mubr.f32.gmra.mxu0 %v5729
    %v5731 = vpop.f32.mrf.mxu0
    %v5732 = vadd.f32 %v5651, %v5731
    %v5733 = vpop.f32.mrf.mxu0
    %5734 = vmatprep.mubr.f32.mxu0 0.0
    %v5735 = vand.u32 %v5211, 4294901760
    %5736 = vmatmul.mubr.f32.gmra.mxu0 %v5735
    %v5737 = vpop.f32.mrf.mxu0
    %v5738 = vadd.f32 %v5657, %v5737
    %v5739 = vpop.f32.mrf.mxu0
    %5740 = vdwg.mxu0
    %v5741 = vmax.f32 %v5732, 0.0
    %v5742 = vmax.f32 %v5738, 0.0
    %v5743 = vlaneseq
    %v5744 = vshrl.u32 %v5743, 7
    %v5745 = vsub.s32 0, %v5744
    %v5746 = vrot.slane %v121, %v5745
    %v5748 = vsel %vm317, %v5741, 0
    %v5751 = vsel %vm317, %v5742, 0
    %5753 = vmatprep.subr.mxu0 0.0
    %5754 = vmatpush1.msra.mxu0 0.0
    %5755 = vmatprep.subr.mxu0 0.0
    %5756 = vmatpush1.msra.mxu0 0.0
    %5757 = vmatprep.subr.mxu0 0.0
    %5758 = vmatpush1.msra.mxu0 0.0
    %5759 = vmatprep.subr.mxu0 0.0
    %5760 = vmatpush1.msra.mxu0 0.0
    %5761 = vmatprep.subr.mxu0 0.0
    %5762 = vmatpush1.msra.mxu0 0.0
    %5763 = vmatprep.subr.mxu0 0.0
    %5764 = vmatpush1.msra.mxu0 0.0
    %5765 = vmatprep.subr.mxu0 0.0
    %5766 = vmatpush1.msra.mxu0 0.0
    %5767 = vmatprep.subr.mxu0 0.0
    %5768 = vmatpush1.msra.mxu0 0.0
    %5769 = vmatprep.subr.mxu0 0.0
    %v5770 = vand.u32 %v113, 4294901760
    %5771 = vmatpush1.msra.mxu0 %v5770
    %5772 = vmatprep.subr.mxu0 0.0
    %v5773 = vand.u32 %v112, 4294901760
    %5774 = vmatpush1.msra.mxu0 %v5773
    %5775 = vmatprep.subr.mxu0 0.0
    %v5776 = vand.u32 %v111, 4294901760
    %5777 = vmatpush1.msra.mxu0 %v5776
    %5778 = vmatprep.subr.mxu0 0.0
    %v5779 = vand.u32 %v110, 4294901760
    %5780 = vmatpush1.msra.mxu0 %v5779
    %5781 = vmatprep.subr.mxu0 0.0
    %v5782 = vand.u32 %v109, 4294901760
    %5783 = vmatpush1.msra.mxu0 %v5782
    %5784 = vmatprep.subr.mxu0 0.0
    %v5785 = vand.u32 %v108, 4294901760
    %5786 = vmatpush1.msra.mxu0 %v5785
    %5787 = vmatprep.subr.mxu0 0.0
    %v5788 = vand.u32 %v107, 4294901760
    %5789 = vmatpush1.msra.mxu0 %v5788
    %5790 = vmatprep.subr.mxu0 0.0
    %v5791 = vand.u32 %v106, 4294901760
    %5792 = vmatpush1.msra.mxu0 %v5791
    %5793 = vmatprep.subr.mxu0 0.0
    %5794 = vmatpush2.msra.mxu0 0.0
    %5795 = vmatprep.subr.mxu0 0.0
    %5796 = vmatpush2.msra.mxu0 0.0
    %5797 = vmatprep.subr.mxu0 0.0
    %5798 = vmatpush2.msra.mxu0 0.0
    %5799 = vmatprep.subr.mxu0 0.0
    %5800 = vmatpush2.msra.mxu0 0.0
    %5801 = vmatprep.subr.mxu0 0.0
    %5802 = vmatpush2.msra.mxu0 0.0
    %5803 = vmatprep.subr.mxu0 0.0
    %5804 = vmatpush2.msra.mxu0 0.0
    %5805 = vmatprep.subr.mxu0 0.0
    %5806 = vmatpush2.msra.mxu0 0.0
    %5807 = vmatprep.subr.mxu0 0.0
    %5808 = vmatpush2.msra.mxu0 0.0
    %5809 = vmatprep.subr.mxu0 0.0
    %5810 = vmatpush2.msra.mxu0 0.0
    %5811 = vmatprep.subr.mxu0 0.0
    %5812 = vmatpush2.msra.mxu0 0.0
    %5813 = vmatprep.subr.mxu0 0.0
    %5814 = vmatpush2.msra.mxu0 0.0
    %5815 = vmatprep.subr.mxu0 0.0
    %5816 = vmatpush2.msra.mxu0 0.0
    %5817 = vmatprep.subr.mxu0 0.0
    %5818 = vmatpush2.msra.mxu0 0.0
    %5819 = vmatprep.subr.mxu0 0.0
    %5820 = vmatpush2.msra.mxu0 0.0
    %5821 = vmatprep.subr.mxu0 0.0
    %5822 = vmatpush2.msra.mxu0 0.0
    %5823 = vmatprep.subr.mxu0 0.0
    %5824 = vmatpush2.msra.mxu0 0.0
    %5825 = vmatprep.mubr.f32.mxu0 0.0
    %v5826 = vand.u32 %v5748, 4294901760
    %v5827 = vsub.f32 %v5748, %v5826
    %v5828 = vand.u32 %v5827, 4294901760
    %v5829 = vsub.f32 %v5827, %v5828
    %v5830 = vand.u32 %v5829, 4294901760
    %5831 = vmatmul.mubr.f32.gmra.mxu0 %v5830
    %v5832 = vpop.f32.mrf.mxu0
    %v5833 = vadd.f32 %v5746, %v5832
    %v5834 = vpop.f32.mrf.mxu0
    %5835 = vmatprep.mubr.f32.mxu0 0.0
    %v5836 = vand.u32 %v5751, 4294901760
    %v5837 = vsub.f32 %v5751, %v5836
    %v5838 = vand.u32 %v5837, 4294901760
    %v5839 = vsub.f32 %v5837, %v5838
    %v5840 = vand.u32 %v5839, 4294901760
    %5841 = vmatmul.mubr.f32.gmra.mxu0 %v5840
    %v5842 = vpop.f32.mrf.mxu0
    %v5843 = vadd.f32 %v5746, %v5842
    %v5844 = vpop.f32.mrf.mxu0
    %5845 = vdwg.mxu0
    %5846 = vmatprep.subr.mxu0 0.0
    %5847 = vmatpush1.msra.mxu0 0.0
    %5848 = vmatprep.subr.mxu0 0.0
    %5849 = vmatpush1.msra.mxu0 0.0
    %5850 = vmatprep.subr.mxu0 0.0
    %5851 = vmatpush1.msra.mxu0 0.0
    %5852 = vmatprep.subr.mxu0 0.0
    %5853 = vmatpush1.msra.mxu0 0.0
    %5854 = vmatprep.subr.mxu0 0.0
    %5855 = vmatpush1.msra.mxu0 0.0
    %5856 = vmatprep.subr.mxu0 0.0
    %5857 = vmatpush1.msra.mxu0 0.0
    %5858 = vmatprep.subr.mxu0 0.0
    %5859 = vmatpush1.msra.mxu0 0.0
    %5860 = vmatprep.subr.mxu0 0.0
    %5861 = vmatpush1.msra.mxu0 0.0
    %5862 = vmatprep.subr.mxu0 0.0
    %v5863 = vand.u32 %v113, 4294901760
    %v5864 = vsub.f32 %v113, %v5863
    %v5865 = vand.u32 %v5864, 4294901760
    %v5866 = vsub.f32 %v5864, %v5865
    %v5867 = vand.u32 %v5866, 4294901760
    %5868 = vmatpush1.msra.mxu0 %v5867
    %5869 = vmatprep.subr.mxu0 0.0
    %v5870 = vand.u32 %v112, 4294901760
    %v5871 = vsub.f32 %v112, %v5870
    %v5872 = vand.u32 %v5871, 4294901760
    %v5873 = vsub.f32 %v5871, %v5872
    %v5874 = vand.u32 %v5873, 4294901760
    %5875 = vmatpush1.msra.mxu0 %v5874
    %5876 = vmatprep.subr.mxu0 0.0
    %v5877 = vand.u32 %v111, 4294901760
    %v5878 = vsub.f32 %v111, %v5877
    %v5879 = vand.u32 %v5878, 4294901760
    %v5880 = vsub.f32 %v5878, %v5879
    %v5881 = vand.u32 %v5880, 4294901760
    %5882 = vmatpush1.msra.mxu0 %v5881
    %5883 = vmatprep.subr.mxu0 0.0
    %v5884 = vand.u32 %v110, 4294901760
    %v5885 = vsub.f32 %v110, %v5884
    %v5886 = vand.u32 %v5885, 4294901760
    %v5887 = vsub.f32 %v5885, %v5886
    %v5888 = vand.u32 %v5887, 4294901760
    %5889 = vmatpush1.msra.mxu0 %v5888
    %5890 = vmatprep.subr.mxu0 0.0
    %v5891 = vand.u32 %v109, 4294901760
    %v5892 = vsub.f32 %v109, %v5891
    %v5893 = vand.u32 %v5892, 4294901760
    %v5894 = vsub.f32 %v5892, %v5893
    %v5895 = vand.u32 %v5894, 4294901760
    %5896 = vmatpush1.msra.mxu0 %v5895
    %5897 = vmatprep.subr.mxu0 0.0
    %v5898 = vand.u32 %v108, 4294901760
    %v5899 = vsub.f32 %v108, %v5898
    %v5900 = vand.u32 %v5899, 4294901760
    %v5901 = vsub.f32 %v5899, %v5900
    %v5902 = vand.u32 %v5901, 4294901760
    %5903 = vmatpush1.msra.mxu0 %v5902
    %5904 = vmatprep.subr.mxu0 0.0
    %v5905 = vand.u32 %v107, 4294901760
    %v5906 = vsub.f32 %v107, %v5905
    %v5907 = vand.u32 %v5906, 4294901760
    %v5908 = vsub.f32 %v5906, %v5907
    %v5909 = vand.u32 %v5908, 4294901760
    %5910 = vmatpush1.msra.mxu0 %v5909
    %5911 = vmatprep.subr.mxu0 0.0
    %v5912 = vand.u32 %v106, 4294901760
    %v5913 = vsub.f32 %v106, %v5912
    %v5914 = vand.u32 %v5913, 4294901760
    %v5915 = vsub.f32 %v5913, %v5914
    %v5916 = vand.u32 %v5915, 4294901760
    %5917 = vmatpush1.msra.mxu0 %v5916
    %5918 = vmatprep.subr.mxu0 0.0
    %5919 = vmatpush2.msra.mxu0 0.0
    %5920 = vmatprep.subr.mxu0 0.0
    %5921 = vmatpush2.msra.mxu0 0.0
    %5922 = vmatprep.subr.mxu0 0.0
    %5923 = vmatpush2.msra.mxu0 0.0
    %5924 = vmatprep.subr.mxu0 0.0
    %5925 = vmatpush2.msra.mxu0 0.0
    %5926 = vmatprep.subr.mxu0 0.0
    %5927 = vmatpush2.msra.mxu0 0.0
    %5928 = vmatprep.subr.mxu0 0.0
    %5929 = vmatpush2.msra.mxu0 0.0
    %5930 = vmatprep.subr.mxu0 0.0
    %5931 = vmatpush2.msra.mxu0 0.0
    %5932 = vmatprep.subr.mxu0 0.0
    %5933 = vmatpush2.msra.mxu0 0.0
    %5934 = vmatprep.subr.mxu0 0.0
    %5935 = vmatpush2.msra.mxu0 0.0
    %5936 = vmatprep.subr.mxu0 0.0
    %5937 = vmatpush2.msra.mxu0 0.0
    %5938 = vmatprep.subr.mxu0 0.0
    %5939 = vmatpush2.msra.mxu0 0.0
    %5940 = vmatprep.subr.mxu0 0.0
    %5941 = vmatpush2.msra.mxu0 0.0
    %5942 = vmatprep.subr.mxu0 0.0
    %5943 = vmatpush2.msra.mxu0 0.0
    %5944 = vmatprep.subr.mxu0 0.0
    %5945 = vmatpush2.msra.mxu0 0.0
    %5946 = vmatprep.subr.mxu0 0.0
    %5947 = vmatpush2.msra.mxu0 0.0
    %5948 = vmatprep.subr.mxu0 0.0
    %5949 = vmatpush2.msra.mxu0 0.0
    %5950 = vmatprep.mubr.f32.mxu0 0.0
    %v5951 = vand.u32 %v5748, 4294901760
    %5952 = vmatmul.mubr.f32.gmra.mxu0 %v5951
    %v5953 = vpop.f32.mrf.mxu0
    %v5954 = vadd.f32 %v5833, %v5953
    %v5955 = vpop.f32.mrf.mxu0
    %5956 = vmatprep.mubr.f32.mxu0 0.0
    %v5957 = vand.u32 %v5751, 4294901760
    %5958 = vmatmul.mubr.f32.gmra.mxu0 %v5957
    %v5959 = vpop.f32.mrf.mxu0
    %v5960 = vadd.f32 %v5843, %v5959
    %v5961 = vpop.f32.mrf.mxu0
    %5962 = vdwg.mxu0
    %5963 = vmatprep.subr.mxu0 0.0
    %5964 = vmatpush1.msra.mxu0 0.0
    %5965 = vmatprep.subr.mxu0 0.0
    %5966 = vmatpush1.msra.mxu0 0.0
    %5967 = vmatprep.subr.mxu0 0.0
    %5968 = vmatpush1.msra.mxu0 0.0
    %5969 = vmatprep.subr.mxu0 0.0
    %5970 = vmatpush1.msra.mxu0 0.0
    %5971 = vmatprep.subr.mxu0 0.0
    %5972 = vmatpush1.msra.mxu0 0.0
    %5973 = vmatprep.subr.mxu0 0.0
    %5974 = vmatpush1.msra.mxu0 0.0
    %5975 = vmatprep.subr.mxu0 0.0
    %5976 = vmatpush1.msra.mxu0 0.0
    %5977 = vmatprep.subr.mxu0 0.0
    %5978 = vmatpush1.msra.mxu0 0.0
    %5979 = vmatprep.subr.mxu0 0.0
    %v5980 = vand.u32 %v113, 4294901760
    %v5981 = vsub.f32 %v113, %v5980
    %5982 = vmatpush1.msra.mxu0 %v5981
    %5983 = vmatprep.subr.mxu0 0.0
    %v5984 = vand.u32 %v112, 4294901760
    %v5985 = vsub.f32 %v112, %v5984
    %5986 = vmatpush1.msra.mxu0 %v5985
    %5987 = vmatprep.subr.mxu0 0.0
    %v5988 = vand.u32 %v111, 4294901760
    %v5989 = vsub.f32 %v111, %v5988
    %5990 = vmatpush1.msra.mxu0 %v5989
    %5991 = vmatprep.subr.mxu0 0.0
    %v5992 = vand.u32 %v110, 4294901760
    %v5993 = vsub.f32 %v110, %v5992
    %5994 = vmatpush1.msra.mxu0 %v5993
    %5995 = vmatprep.subr.mxu0 0.0
    %v5996 = vand.u32 %v109, 4294901760
    %v5997 = vsub.f32 %v109, %v5996
    %5998 = vmatpush1.msra.mxu0 %v5997
    %5999 = vmatprep.subr.mxu0 0.0
    %v6000 = vand.u32 %v108, 4294901760
    %v6001 = vsub.f32 %v108, %v6000
    %6002 = vmatpush1.msra.mxu0 %v6001
    %6003 = vmatprep.subr.mxu0 0.0
    %v6004 = vand.u32 %v107, 4294901760
    %v6005 = vsub.f32 %v107, %v6004
    %6006 = vmatpush1.msra.mxu0 %v6005
    %6007 = vmatprep.subr.mxu0 0.0
    %v6008 = vand.u32 %v106, 4294901760
    %v6009 = vsub.f32 %v106, %v6008
    %6010 = vmatpush1.msra.mxu0 %v6009
    %6011 = vmatprep.subr.mxu0 0.0
    %6012 = vmatpush2.msra.mxu0 0.0
    %6013 = vmatprep.subr.mxu0 0.0
    %6014 = vmatpush2.msra.mxu0 0.0
    %6015 = vmatprep.subr.mxu0 0.0
    %6016 = vmatpush2.msra.mxu0 0.0
    %6017 = vmatprep.subr.mxu0 0.0
    %6018 = vmatpush2.msra.mxu0 0.0
    %6019 = vmatprep.subr.mxu0 0.0
    %6020 = vmatpush2.msra.mxu0 0.0
    %6021 = vmatprep.subr.mxu0 0.0
    %6022 = vmatpush2.msra.mxu0 0.0
    %6023 = vmatprep.subr.mxu0 0.0
    %6024 = vmatpush2.msra.mxu0 0.0
    %6025 = vmatprep.subr.mxu0 0.0
    %6026 = vmatpush2.msra.mxu0 0.0
    %6027 = vmatprep.subr.mxu0 0.0
    %6028 = vmatpush2.msra.mxu0 0.0
    %6029 = vmatprep.subr.mxu0 0.0
    %6030 = vmatpush2.msra.mxu0 0.0
    %6031 = vmatprep.subr.mxu0 0.0
    %6032 = vmatpush2.msra.mxu0 0.0
    %6033 = vmatprep.subr.mxu0 0.0
    %6034 = vmatpush2.msra.mxu0 0.0
    %6035 = vmatprep.subr.mxu0 0.0
    %6036 = vmatpush2.msra.mxu0 0.0
    %6037 = vmatprep.subr.mxu0 0.0
    %6038 = vmatpush2.msra.mxu0 0.0
    %6039 = vmatprep.subr.mxu0 0.0
    %6040 = vmatpush2.msra.mxu0 0.0
    %6041 = vmatprep.subr.mxu0 0.0
    %6042 = vmatpush2.msra.mxu0 0.0
    %6043 = vmatprep.mubr.f32.mxu0 0.0
    %v6044 = vand.u32 %v5748, 4294901760
    %v6045 = vsub.f32 %v5748, %v6044
    %6046 = vmatmul.mubr.f32.gmra.mxu0 %v6045
    %v6047 = vpop.f32.mrf.mxu0
    %v6048 = vadd.f32 %v5954, %v6047
    %v6049 = vpop.f32.mrf.mxu0
    %6050 = vmatprep.mubr.f32.mxu0 0.0
    %v6051 = vand.u32 %v5751, 4294901760
    %v6052 = vsub.f32 %v5751, %v6051
    %6053 = vmatmul.mubr.f32.gmra.mxu0 %v6052
    %v6054 = vpop.f32.mrf.mxu0
    %v6055 = vadd.f32 %v5960, %v6054
    %v6056 = vpop.f32.mrf.mxu0
    %6057 = vdwg.mxu0
    %6058 = vmatprep.subr.mxu0 0.0
    %6059 = vmatpush1.msra.mxu0 0.0
    %6060 = vmatprep.subr.mxu0 0.0
    %6061 = vmatpush1.msra.mxu0 0.0
    %6062 = vmatprep.subr.mxu0 0.0
    %6063 = vmatpush1.msra.mxu0 0.0
    %6064 = vmatprep.subr.mxu0 0.0
    %6065 = vmatpush1.msra.mxu0 0.0
    %6066 = vmatprep.subr.mxu0 0.0
    %6067 = vmatpush1.msra.mxu0 0.0
    %6068 = vmatprep.subr.mxu0 0.0
    %6069 = vmatpush1.msra.mxu0 0.0
    %6070 = vmatprep.subr.mxu0 0.0
    %6071 = vmatpush1.msra.mxu0 0.0
    %6072 = vmatprep.subr.mxu0 0.0
    %6073 = vmatpush1.msra.mxu0 0.0
    %6074 = vmatprep.subr.mxu0 0.0
    %v6075 = vand.u32 %v113, 4294901760
    %6076 = vmatpush1.msra.mxu0 %v6075
    %6077 = vmatprep.subr.mxu0 0.0
    %v6078 = vand.u32 %v112, 4294901760
    %6079 = vmatpush1.msra.mxu0 %v6078
    %6080 = vmatprep.subr.mxu0 0.0
    %v6081 = vand.u32 %v111, 4294901760
    %6082 = vmatpush1.msra.mxu0 %v6081
    %6083 = vmatprep.subr.mxu0 0.0
    %v6084 = vand.u32 %v110, 4294901760
    %6085 = vmatpush1.msra.mxu0 %v6084
    %6086 = vmatprep.subr.mxu0 0.0
    %v6087 = vand.u32 %v109, 4294901760
    %6088 = vmatpush1.msra.mxu0 %v6087
    %6089 = vmatprep.subr.mxu0 0.0
    %v6090 = vand.u32 %v108, 4294901760
    %6091 = vmatpush1.msra.mxu0 %v6090
    %6092 = vmatprep.subr.mxu0 0.0
    %v6093 = vand.u32 %v107, 4294901760
    %6094 = vmatpush1.msra.mxu0 %v6093
    %6095 = vmatprep.subr.mxu0 0.0
    %v6096 = vand.u32 %v106, 4294901760
    %6097 = vmatpush1.msra.mxu0 %v6096
    %6098 = vmatprep.subr.mxu0 0.0
    %6099 = vmatpush2.msra.mxu0 0.0
    %6100 = vmatprep.subr.mxu0 0.0
    %6101 = vmatpush2.msra.mxu0 0.0
    %6102 = vmatprep.subr.mxu0 0.0
    %6103 = vmatpush2.msra.mxu0 0.0
    %6104 = vmatprep.subr.mxu0 0.0
    %6105 = vmatpush2.msra.mxu0 0.0
    %6106 = vmatprep.subr.mxu0 0.0
    %6107 = vmatpush2.msra.mxu0 0.0
    %6108 = vmatprep.subr.mxu0 0.0
    %6109 = vmatpush2.msra.mxu0 0.0
    %6110 = vmatprep.subr.mxu0 0.0
    %6111 = vmatpush2.msra.mxu0 0.0
    %6112 = vmatprep.subr.mxu0 0.0
    %6113 = vmatpush2.msra.mxu0 0.0
    %6114 = vmatprep.subr.mxu0 0.0
    %6115 = vmatpush2.msra.mxu0 0.0
    %6116 = vmatprep.subr.mxu0 0.0
    %6117 = vmatpush2.msra.mxu0 0.0
    %6118 = vmatprep.subr.mxu0 0.0
    %6119 = vmatpush2.msra.mxu0 0.0
    %6120 = vmatprep.subr.mxu0 0.0
    %6121 = vmatpush2.msra.mxu0 0.0
    %6122 = vmatprep.subr.mxu0 0.0
    %6123 = vmatpush2.msra.mxu0 0.0
    %6124 = vmatprep.subr.mxu0 0.0
    %6125 = vmatpush2.msra.mxu0 0.0
    %6126 = vmatprep.subr.mxu0 0.0
    %6127 = vmatpush2.msra.mxu0 0.0
    %6128 = vmatprep.subr.mxu0 0.0
    %6129 = vmatpush2.msra.mxu0 0.0
    %6130 = vmatprep.mubr.f32.mxu0 0.0
    %v6131 = vand.u32 %v5748, 4294901760
    %v6132 = vsub.f32 %v5748, %v6131
    %v6133 = vand.u32 %v6132, 4294901760
    %6134 = vmatmul.mubr.f32.gmra.mxu0 %v6133
    %v6135 = vpop.f32.mrf.mxu0
    %v6136 = vadd.f32 %v6048, %v6135
    %v6137 = vpop.f32.mrf.mxu0
    %6138 = vmatprep.mubr.f32.mxu0 0.0
    %v6139 = vand.u32 %v5751, 4294901760
    %v6140 = vsub.f32 %v5751, %v6139
    %v6141 = vand.u32 %v6140, 4294901760
    %6142 = vmatmul.mubr.f32.gmra.mxu0 %v6141
    %v6143 = vpop.f32.mrf.mxu0
    %v6144 = vadd.f32 %v6055, %v6143
    %v6145 = vpop.f32.mrf.mxu0
    %6146 = vdwg.mxu0
    %6147 = vmatprep.subr.mxu0 0.0
    %6148 = vmatpush1.msra.mxu0 0.0
    %6149 = vmatprep.subr.mxu0 0.0
    %6150 = vmatpush1.msra.mxu0 0.0
    %6151 = vmatprep.subr.mxu0 0.0
    %6152 = vmatpush1.msra.mxu0 0.0
    %6153 = vmatprep.subr.mxu0 0.0
    %6154 = vmatpush1.msra.mxu0 0.0
    %6155 = vmatprep.subr.mxu0 0.0
    %6156 = vmatpush1.msra.mxu0 0.0
    %6157 = vmatprep.subr.mxu0 0.0
    %6158 = vmatpush1.msra.mxu0 0.0
    %6159 = vmatprep.subr.mxu0 0.0
    %6160 = vmatpush1.msra.mxu0 0.0
    %6161 = vmatprep.subr.mxu0 0.0
    %6162 = vmatpush1.msra.mxu0 0.0
    %6163 = vmatprep.subr.mxu0 0.0
    %v6164 = vand.u32 %v113, 4294901760
    %v6165 = vsub.f32 %v113, %v6164
    %v6166 = vand.u32 %v6165, 4294901760
    %6167 = vmatpush1.msra.mxu0 %v6166
    %6168 = vmatprep.subr.mxu0 0.0
    %v6169 = vand.u32 %v112, 4294901760
    %v6170 = vsub.f32 %v112, %v6169
    %v6171 = vand.u32 %v6170, 4294901760
    %6172 = vmatpush1.msra.mxu0 %v6171
    %6173 = vmatprep.subr.mxu0 0.0
    %v6174 = vand.u32 %v111, 4294901760
    %v6175 = vsub.f32 %v111, %v6174
    %v6176 = vand.u32 %v6175, 4294901760
    %6177 = vmatpush1.msra.mxu0 %v6176
    %6178 = vmatprep.subr.mxu0 0.0
    %v6179 = vand.u32 %v110, 4294901760
    %v6180 = vsub.f32 %v110, %v6179
    %v6181 = vand.u32 %v6180, 4294901760
    %6182 = vmatpush1.msra.mxu0 %v6181
    %6183 = vmatprep.subr.mxu0 0.0
    %v6184 = vand.u32 %v109, 4294901760
    %v6185 = vsub.f32 %v109, %v6184
    %v6186 = vand.u32 %v6185, 4294901760
    %6187 = vmatpush1.msra.mxu0 %v6186
    %6188 = vmatprep.subr.mxu0 0.0
    %v6189 = vand.u32 %v108, 4294901760
    %v6190 = vsub.f32 %v108, %v6189
    %v6191 = vand.u32 %v6190, 4294901760
    %6192 = vmatpush1.msra.mxu0 %v6191
    %6193 = vmatprep.subr.mxu0 0.0
    %v6194 = vand.u32 %v107, 4294901760
    %v6195 = vsub.f32 %v107, %v6194
    %v6196 = vand.u32 %v6195, 4294901760
    %6197 = vmatpush1.msra.mxu0 %v6196
    %6198 = vmatprep.subr.mxu0 0.0
    %v6199 = vand.u32 %v106, 4294901760
    %v6200 = vsub.f32 %v106, %v6199
    %v6201 = vand.u32 %v6200, 4294901760
    %6202 = vmatpush1.msra.mxu0 %v6201
    %6203 = vmatprep.subr.mxu0 0.0
    %6204 = vmatpush2.msra.mxu0 0.0
    %6205 = vmatprep.subr.mxu0 0.0
    %6206 = vmatpush2.msra.mxu0 0.0
    %6207 = vmatprep.subr.mxu0 0.0
    %6208 = vmatpush2.msra.mxu0 0.0
    %6209 = vmatprep.subr.mxu0 0.0
    %6210 = vmatpush2.msra.mxu0 0.0
    %6211 = vmatprep.subr.mxu0 0.0
    %6212 = vmatpush2.msra.mxu0 0.0
    %6213 = vmatprep.subr.mxu0 0.0
    %6214 = vmatpush2.msra.mxu0 0.0
    %6215 = vmatprep.subr.mxu0 0.0
    %6216 = vmatpush2.msra.mxu0 0.0
    %6217 = vmatprep.subr.mxu0 0.0
    %6218 = vmatpush2.msra.mxu0 0.0
    %6219 = vmatprep.subr.mxu0 0.0
    %6220 = vmatpush2.msra.mxu0 0.0
    %6221 = vmatprep.subr.mxu0 0.0
    %6222 = vmatpush2.msra.mxu0 0.0
    %6223 = vmatprep.subr.mxu0 0.0
    %6224 = vmatpush2.msra.mxu0 0.0
    %6225 = vmatprep.subr.mxu0 0.0
    %6226 = vmatpush2.msra.mxu0 0.0
    %6227 = vmatprep.subr.mxu0 0.0
    %6228 = vmatpush2.msra.mxu0 0.0
    %6229 = vmatprep.subr.mxu0 0.0
    %6230 = vmatpush2.msra.mxu0 0.0
    %6231 = vmatprep.subr.mxu0 0.0
    %6232 = vmatpush2.msra.mxu0 0.0
    %6233 = vmatprep.subr.mxu0 0.0
    %6234 = vmatpush2.msra.mxu0 0.0
    %6235 = vmatprep.mubr.f32.mxu0 0.0
    %v6236 = vand.u32 %v5748, 4294901760
    %6237 = vmatmul.mubr.f32.gmra.mxu0 %v6236
    %v6238 = vpop.f32.mrf.mxu0
    %v6239 = vadd.f32 %v6136, %v6238
    %v6240 = vpop.f32.mrf.mxu0
    %6241 = vmatprep.mubr.f32.mxu0 0.0
    %v6242 = vand.u32 %v5751, 4294901760
    %6243 = vmatmul.mubr.f32.gmra.mxu0 %v6242
    %v6244 = vpop.f32.mrf.mxu0
    %v6245 = vadd.f32 %v6144, %v6244
    %v6246 = vpop.f32.mrf.mxu0
    %6247 = vdwg.mxu0
    %6248 = vmatprep.subr.mxu0 0.0
    %6249 = vmatpush1.msra.mxu0 0.0
    %6250 = vmatprep.subr.mxu0 0.0
    %6251 = vmatpush1.msra.mxu0 0.0
    %6252 = vmatprep.subr.mxu0 0.0
    %6253 = vmatpush1.msra.mxu0 0.0
    %6254 = vmatprep.subr.mxu0 0.0
    %6255 = vmatpush1.msra.mxu0 0.0
    %6256 = vmatprep.subr.mxu0 0.0
    %6257 = vmatpush1.msra.mxu0 0.0
    %6258 = vmatprep.subr.mxu0 0.0
    %6259 = vmatpush1.msra.mxu0 0.0
    %6260 = vmatprep.subr.mxu0 0.0
    %6261 = vmatpush1.msra.mxu0 0.0
    %6262 = vmatprep.subr.mxu0 0.0
    %6263 = vmatpush1.msra.mxu0 0.0
    %6264 = vmatprep.subr.mxu0 0.0
    %v6265 = vand.u32 %v113, 4294901760
    %6266 = vmatpush1.msra.mxu0 %v6265
    %6267 = vmatprep.subr.mxu0 0.0
    %v6268 = vand.u32 %v112, 4294901760
    %6269 = vmatpush1.msra.mxu0 %v6268
    %6270 = vmatprep.subr.mxu0 0.0
    %v6271 = vand.u32 %v111, 4294901760
    %6272 = vmatpush1.msra.mxu0 %v6271
    %6273 = vmatprep.subr.mxu0 0.0
    %v6274 = vand.u32 %v110, 4294901760
    %6275 = vmatpush1.msra.mxu0 %v6274
    %6276 = vmatprep.subr.mxu0 0.0
    %v6277 = vand.u32 %v109, 4294901760
    %6278 = vmatpush1.msra.mxu0 %v6277
    %6279 = vmatprep.subr.mxu0 0.0
    %v6280 = vand.u32 %v108, 4294901760
    %6281 = vmatpush1.msra.mxu0 %v6280
    %6282 = vmatprep.subr.mxu0 0.0
    %v6283 = vand.u32 %v107, 4294901760
    %6284 = vmatpush1.msra.mxu0 %v6283
    %6285 = vmatprep.subr.mxu0 0.0
    %v6286 = vand.u32 %v106, 4294901760
    %6287 = vmatpush1.msra.mxu0 %v6286
    %6288 = vmatprep.subr.mxu0 0.0
    %6289 = vmatpush2.msra.mxu0 0.0
    %6290 = vmatprep.subr.mxu0 0.0
    %6291 = vmatpush2.msra.mxu0 0.0
    %6292 = vmatprep.subr.mxu0 0.0
    %6293 = vmatpush2.msra.mxu0 0.0
    %6294 = vmatprep.subr.mxu0 0.0
    %6295 = vmatpush2.msra.mxu0 0.0
    %6296 = vmatprep.subr.mxu0 0.0
    %6297 = vmatpush2.msra.mxu0 0.0
    %6298 = vmatprep.subr.mxu0 0.0
    %6299 = vmatpush2.msra.mxu0 0.0
    %6300 = vmatprep.subr.mxu0 0.0
    %6301 = vmatpush2.msra.mxu0 0.0
    %6302 = vmatprep.subr.mxu0 0.0
    %6303 = vmatpush2.msra.mxu0 0.0
    %6304 = vmatprep.subr.mxu0 0.0
    %6305 = vmatpush2.msra.mxu0 0.0
    %6306 = vmatprep.subr.mxu0 0.0
    %6307 = vmatpush2.msra.mxu0 0.0
    %6308 = vmatprep.subr.mxu0 0.0
    %6309 = vmatpush2.msra.mxu0 0.0
    %6310 = vmatprep.subr.mxu0 0.0
    %6311 = vmatpush2.msra.mxu0 0.0
    %6312 = vmatprep.subr.mxu0 0.0
    %6313 = vmatpush2.msra.mxu0 0.0
    %6314 = vmatprep.subr.mxu0 0.0
    %6315 = vmatpush2.msra.mxu0 0.0
    %6316 = vmatprep.subr.mxu0 0.0
    %6317 = vmatpush2.msra.mxu0 0.0
    %6318 = vmatprep.subr.mxu0 0.0
    %6319 = vmatpush2.msra.mxu0 0.0
    %6320 = vmatprep.mubr.f32.mxu0 0.0
    %v6321 = vand.u32 %v5748, 4294901760
    %6322 = vmatmul.mubr.f32.gmra.mxu0 %v6321
    %v6323 = vpop.f32.mrf.mxu0
    %v6324 = vadd.f32 %v6239, %v6323
    %v6325 = vpop.f32.mrf.mxu0
    %6326 = vmatprep.mubr.f32.mxu0 0.0
    %v6327 = vand.u32 %v5751, 4294901760
    %6328 = vmatmul.mubr.f32.gmra.mxu0 %v6327
    %v6329 = vpop.f32.mrf.mxu0
    %v6330 = vadd.f32 %v6245, %v6329
    %v6331 = vpop.f32.mrf.mxu0
    %6332 = vdwg.mxu0
    %v6333 = vmax.f32 %v6324, 0.0
    %v6334 = vmax.f32 %v6330, 0.0
    %v6335 = vlaneseq
    %v6336 = vshrl.u32 %v6335, 7
    %v6337 = vsub.s32 0, %v6336
    %v6338 = vrot.slane %v122, %v6337
    %v6340 = vsel %vm2288, %v6333, 0
    %v6343 = vsel %vm2288, %v6334, 0
    %6345 = vmatprep.subr.mxu0 0.0
    %6346 = vmatpush1.msra.mxu0 0.0
    %6347 = vmatprep.subr.mxu0 0.0
    %6348 = vmatpush1.msra.mxu0 0.0
    %6349 = vmatprep.subr.mxu0 0.0
    %6350 = vmatpush1.msra.mxu0 0.0
    %6351 = vmatprep.subr.mxu0 0.0
    %6352 = vmatpush1.msra.mxu0 0.0
    %6353 = vmatprep.subr.mxu0 0.0
    %6354 = vmatpush1.msra.mxu0 0.0
    %6355 = vmatprep.subr.mxu0 0.0
    %6356 = vmatpush1.msra.mxu0 0.0
    %6357 = vmatprep.subr.mxu0 0.0
    %6358 = vmatpush1.msra.mxu0 0.0
    %6359 = vmatprep.subr.mxu0 0.0
    %6360 = vmatpush1.msra.mxu0 0.0
    %6361 = vmatprep.subr.mxu0 0.0
    %6362 = vmatpush1.msra.mxu0 0.0
    %6363 = vmatprep.subr.mxu0 0.0
    %6364 = vmatpush1.msra.mxu0 0.0
    %6365 = vmatprep.subr.mxu0 0.0
    %6366 = vmatpush1.msra.mxu0 0.0
    %6367 = vmatprep.subr.mxu0 0.0
    %6368 = vmatpush1.msra.mxu0 0.0
    %6369 = vmatprep.subr.mxu0 0.0
    %v6370 = vand.u32 %v117, 4294901760
    %6371 = vmatpush1.msra.mxu0 %v6370
    %6372 = vmatprep.subr.mxu0 0.0
    %v6373 = vand.u32 %v116, 4294901760
    %6374 = vmatpush1.msra.mxu0 %v6373
    %6375 = vmatprep.subr.mxu0 0.0
    %v6376 = vand.u32 %v115, 4294901760
    %6377 = vmatpush1.msra.mxu0 %v6376
    %6378 = vmatprep.subr.mxu0 0.0
    %v6379 = vand.u32 %v114, 4294901760
    %6380 = vmatpush1.msra.mxu0 %v6379
    %6381 = vmatprep.subr.mxu0 0.0
    %6382 = vmatpush2.msra.mxu0 0.0
    %6383 = vmatprep.subr.mxu0 0.0
    %6384 = vmatpush2.msra.mxu0 0.0
    %6385 = vmatprep.subr.mxu0 0.0
    %6386 = vmatpush2.msra.mxu0 0.0
    %6387 = vmatprep.subr.mxu0 0.0
    %6388 = vmatpush2.msra.mxu0 0.0
    %6389 = vmatprep.subr.mxu0 0.0
    %6390 = vmatpush2.msra.mxu0 0.0
    %6391 = vmatprep.subr.mxu0 0.0
    %6392 = vmatpush2.msra.mxu0 0.0
    %6393 = vmatprep.subr.mxu0 0.0
    %6394 = vmatpush2.msra.mxu0 0.0
    %6395 = vmatprep.subr.mxu0 0.0
    %6396 = vmatpush2.msra.mxu0 0.0
    %6397 = vmatprep.subr.mxu0 0.0
    %6398 = vmatpush2.msra.mxu0 0.0
    %6399 = vmatprep.subr.mxu0 0.0
    %6400 = vmatpush2.msra.mxu0 0.0
    %6401 = vmatprep.subr.mxu0 0.0
    %6402 = vmatpush2.msra.mxu0 0.0
    %6403 = vmatprep.subr.mxu0 0.0
    %6404 = vmatpush2.msra.mxu0 0.0
    %6405 = vmatprep.subr.mxu0 0.0
    %6406 = vmatpush2.msra.mxu0 0.0
    %6407 = vmatprep.subr.mxu0 0.0
    %6408 = vmatpush2.msra.mxu0 0.0
    %6409 = vmatprep.subr.mxu0 0.0
    %6410 = vmatpush2.msra.mxu0 0.0
    %6411 = vmatprep.subr.mxu0 0.0
    %6412 = vmatpush2.msra.mxu0 0.0
    %6413 = vmatprep.mubr.f32.mxu0 0.0
    %v6414 = vand.u32 %v6340, 4294901760
    %v6415 = vsub.f32 %v6340, %v6414
    %v6416 = vand.u32 %v6415, 4294901760
    %v6417 = vsub.f32 %v6415, %v6416
    %v6418 = vand.u32 %v6417, 4294901760
    %6419 = vmatmul.mubr.f32.gmra.mxu0 %v6418
    %v6420 = vpop.f32.mrf.mxu0
    %v6421 = vadd.f32 %v6338, %v6420
    %v6422 = vpop.f32.mrf.mxu0
    %6423 = vmatprep.mubr.f32.mxu0 0.0
    %v6424 = vand.u32 %v6343, 4294901760
    %v6425 = vsub.f32 %v6343, %v6424
    %v6426 = vand.u32 %v6425, 4294901760
    %v6427 = vsub.f32 %v6425, %v6426
    %v6428 = vand.u32 %v6427, 4294901760
    %6429 = vmatmul.mubr.f32.gmra.mxu0 %v6428
    %v6430 = vpop.f32.mrf.mxu0
    %v6431 = vadd.f32 %v6338, %v6430
    %v6432 = vpop.f32.mrf.mxu0
    %6433 = vdwg.mxu0
    %6434 = vmatprep.subr.mxu0 0.0
    %6435 = vmatpush1.msra.mxu0 0.0
    %6436 = vmatprep.subr.mxu0 0.0
    %6437 = vmatpush1.msra.mxu0 0.0
    %6438 = vmatprep.subr.mxu0 0.0
    %6439 = vmatpush1.msra.mxu0 0.0
    %6440 = vmatprep.subr.mxu0 0.0
    %6441 = vmatpush1.msra.mxu0 0.0
    %6442 = vmatprep.subr.mxu0 0.0
    %6443 = vmatpush1.msra.mxu0 0.0
    %6444 = vmatprep.subr.mxu0 0.0
    %6445 = vmatpush1.msra.mxu0 0.0
    %6446 = vmatprep.subr.mxu0 0.0
    %6447 = vmatpush1.msra.mxu0 0.0
    %6448 = vmatprep.subr.mxu0 0.0
    %6449 = vmatpush1.msra.mxu0 0.0
    %6450 = vmatprep.subr.mxu0 0.0
    %6451 = vmatpush1.msra.mxu0 0.0
    %6452 = vmatprep.subr.mxu0 0.0
    %6453 = vmatpush1.msra.mxu0 0.0
    %6454 = vmatprep.subr.mxu0 0.0
    %6455 = vmatpush1.msra.mxu0 0.0
    %6456 = vmatprep.subr.mxu0 0.0
    %6457 = vmatpush1.msra.mxu0 0.0
    %6458 = vmatprep.subr.mxu0 0.0
    %v6459 = vand.u32 %v117, 4294901760
    %v6460 = vsub.f32 %v117, %v6459
    %v6461 = vand.u32 %v6460, 4294901760
    %v6462 = vsub.f32 %v6460, %v6461
    %v6463 = vand.u32 %v6462, 4294901760
    %6464 = vmatpush1.msra.mxu0 %v6463
    %6465 = vmatprep.subr.mxu0 0.0
    %v6466 = vand.u32 %v116, 4294901760
    %v6467 = vsub.f32 %v116, %v6466
    %v6468 = vand.u32 %v6467, 4294901760
    %v6469 = vsub.f32 %v6467, %v6468
    %v6470 = vand.u32 %v6469, 4294901760
    %6471 = vmatpush1.msra.mxu0 %v6470
    %6472 = vmatprep.subr.mxu0 0.0
    %v6473 = vand.u32 %v115, 4294901760
    %v6474 = vsub.f32 %v115, %v6473
    %v6475 = vand.u32 %v6474, 4294901760
    %v6476 = vsub.f32 %v6474, %v6475
    %v6477 = vand.u32 %v6476, 4294901760
    %6478 = vmatpush1.msra.mxu0 %v6477
    %6479 = vmatprep.subr.mxu0 0.0
    %v6480 = vand.u32 %v114, 4294901760
    %v6481 = vsub.f32 %v114, %v6480
    %v6482 = vand.u32 %v6481, 4294901760
    %v6483 = vsub.f32 %v6481, %v6482
    %v6484 = vand.u32 %v6483, 4294901760
    %6485 = vmatpush1.msra.mxu0 %v6484
    %6486 = vmatprep.subr.mxu0 0.0
    %6487 = vmatpush2.msra.mxu0 0.0
    %6488 = vmatprep.subr.mxu0 0.0
    %6489 = vmatpush2.msra.mxu0 0.0
    %6490 = vmatprep.subr.mxu0 0.0
    %6491 = vmatpush2.msra.mxu0 0.0
    %6492 = vmatprep.subr.mxu0 0.0
    %6493 = vmatpush2.msra.mxu0 0.0
    %6494 = vmatprep.subr.mxu0 0.0
    %6495 = vmatpush2.msra.mxu0 0.0
    %6496 = vmatprep.subr.mxu0 0.0
    %6497 = vmatpush2.msra.mxu0 0.0
    %6498 = vmatprep.subr.mxu0 0.0
    %6499 = vmatpush2.msra.mxu0 0.0
    %6500 = vmatprep.subr.mxu0 0.0
    %6501 = vmatpush2.msra.mxu0 0.0
    %6502 = vmatprep.subr.mxu0 0.0
    %6503 = vmatpush2.msra.mxu0 0.0
    %6504 = vmatprep.subr.mxu0 0.0
    %6505 = vmatpush2.msra.mxu0 0.0
    %6506 = vmatprep.subr.mxu0 0.0
    %6507 = vmatpush2.msra.mxu0 0.0
    %6508 = vmatprep.subr.mxu0 0.0
    %6509 = vmatpush2.msra.mxu0 0.0
    %6510 = vmatprep.subr.mxu0 0.0
    %6511 = vmatpush2.msra.mxu0 0.0
    %6512 = vmatprep.subr.mxu0 0.0
    %6513 = vmatpush2.msra.mxu0 0.0
    %6514 = vmatprep.subr.mxu0 0.0
    %6515 = vmatpush2.msra.mxu0 0.0
    %6516 = vmatprep.subr.mxu0 0.0
    %6517 = vmatpush2.msra.mxu0 0.0
    %6518 = vmatprep.mubr.f32.mxu0 0.0
    %v6519 = vand.u32 %v6340, 4294901760
    %6520 = vmatmul.mubr.f32.gmra.mxu0 %v6519
    %v6521 = vpop.f32.mrf.mxu0
    %v6522 = vadd.f32 %v6421, %v6521
    %v6523 = vpop.f32.mrf.mxu0
    %6524 = vmatprep.mubr.f32.mxu0 0.0
    %v6525 = vand.u32 %v6343, 4294901760
    %6526 = vmatmul.mubr.f32.gmra.mxu0 %v6525
    %v6527 = vpop.f32.mrf.mxu0
    %v6528 = vadd.f32 %v6431, %v6527
    %v6529 = vpop.f32.mrf.mxu0
    %6530 = vdwg.mxu0
    %6531 = vmatprep.subr.mxu0 0.0
    %6532 = vmatpush1.msra.mxu0 0.0
    %6533 = vmatprep.subr.mxu0 0.0
    %6534 = vmatpush1.msra.mxu0 0.0
    %6535 = vmatprep.subr.mxu0 0.0
    %6536 = vmatpush1.msra.mxu0 0.0
    %6537 = vmatprep.subr.mxu0 0.0
    %6538 = vmatpush1.msra.mxu0 0.0
    %6539 = vmatprep.subr.mxu0 0.0
    %6540 = vmatpush1.msra.mxu0 0.0
    %6541 = vmatprep.subr.mxu0 0.0
    %6542 = vmatpush1.msra.mxu0 0.0
    %6543 = vmatprep.subr.mxu0 0.0
    %6544 = vmatpush1.msra.mxu0 0.0
    %6545 = vmatprep.subr.mxu0 0.0
    %6546 = vmatpush1.msra.mxu0 0.0
    %6547 = vmatprep.subr.mxu0 0.0
    %6548 = vmatpush1.msra.mxu0 0.0
    %6549 = vmatprep.subr.mxu0 0.0
    %6550 = vmatpush1.msra.mxu0 0.0
    %6551 = vmatprep.subr.mxu0 0.0
    %6552 = vmatpush1.msra.mxu0 0.0
    %6553 = vmatprep.subr.mxu0 0.0
    %6554 = vmatpush1.msra.mxu0 0.0
    %6555 = vmatprep.subr.mxu0 0.0
    %v6556 = vand.u32 %v117, 4294901760
    %v6557 = vsub.f32 %v117, %v6556
    %6558 = vmatpush1.msra.mxu0 %v6557
    %6559 = vmatprep.subr.mxu0 0.0
    %v6560 = vand.u32 %v116, 4294901760
    %v6561 = vsub.f32 %v116, %v6560
    %6562 = vmatpush1.msra.mxu0 %v6561
    %6563 = vmatprep.subr.mxu0 0.0
    %v6564 = vand.u32 %v115, 4294901760
    %v6565 = vsub.f32 %v115, %v6564
    %6566 = vmatpush1.msra.mxu0 %v6565
    %6567 = vmatprep.subr.mxu0 0.0
    %v6568 = vand.u32 %v114, 4294901760
    %v6569 = vsub.f32 %v114, %v6568
    %6570 = vmatpush1.msra.mxu0 %v6569
    %6571 = vmatprep.subr.mxu0 0.0
    %6572 = vmatpush2.msra.mxu0 0.0
    %6573 = vmatprep.subr.mxu0 0.0
    %6574 = vmatpush2.msra.mxu0 0.0
    %6575 = vmatprep.subr.mxu0 0.0
    %6576 = vmatpush2.msra.mxu0 0.0
    %6577 = vmatprep.subr.mxu0 0.0
    %6578 = vmatpush2.msra.mxu0 0.0
    %6579 = vmatprep.subr.mxu0 0.0
    %6580 = vmatpush2.msra.mxu0 0.0
    %6581 = vmatprep.subr.mxu0 0.0
    %6582 = vmatpush2.msra.mxu0 0.0
    %6583 = vmatprep.subr.mxu0 0.0
    %6584 = vmatpush2.msra.mxu0 0.0
    %6585 = vmatprep.subr.mxu0 0.0
    %6586 = vmatpush2.msra.mxu0 0.0
    %6587 = vmatprep.subr.mxu0 0.0
    %6588 = vmatpush2.msra.mxu0 0.0
    %6589 = vmatprep.subr.mxu0 0.0
    %6590 = vmatpush2.msra.mxu0 0.0
    %6591 = vmatprep.subr.mxu0 0.0
    %6592 = vmatpush2.msra.mxu0 0.0
    %6593 = vmatprep.subr.mxu0 0.0
    %6594 = vmatpush2.msra.mxu0 0.0
    %6595 = vmatprep.subr.mxu0 0.0
    %6596 = vmatpush2.msra.mxu0 0.0
    %6597 = vmatprep.subr.mxu0 0.0
    %6598 = vmatpush2.msra.mxu0 0.0
    %6599 = vmatprep.subr.mxu0 0.0
    %6600 = vmatpush2.msra.mxu0 0.0
    %6601 = vmatprep.subr.mxu0 0.0
    %6602 = vmatpush2.msra.mxu0 0.0
    %6603 = vmatprep.mubr.f32.mxu0 0.0
    %v6604 = vand.u32 %v6340, 4294901760
    %v6605 = vsub.f32 %v6340, %v6604
    %6606 = vmatmul.mubr.f32.gmra.mxu0 %v6605
    %v6607 = vpop.f32.mrf.mxu0
    %v6608 = vadd.f32 %v6522, %v6607
    %v6609 = vpop.f32.mrf.mxu0
    %6610 = vmatprep.mubr.f32.mxu0 0.0
    %v6611 = vand.u32 %v6343, 4294901760
    %v6612 = vsub.f32 %v6343, %v6611
    %6613 = vmatmul.mubr.f32.gmra.mxu0 %v6612
    %v6614 = vpop.f32.mrf.mxu0
    %v6615 = vadd.f32 %v6528, %v6614
    %v6616 = vpop.f32.mrf.mxu0
    %6617 = vdwg.mxu0
    %6618 = vmatprep.subr.mxu0 0.0
    %6619 = vmatpush1.msra.mxu0 0.0
    %6620 = vmatprep.subr.mxu0 0.0
    %6621 = vmatpush1.msra.mxu0 0.0
    %6622 = vmatprep.subr.mxu0 0.0
    %6623 = vmatpush1.msra.mxu0 0.0
    %6624 = vmatprep.subr.mxu0 0.0
    %6625 = vmatpush1.msra.mxu0 0.0
    %6626 = vmatprep.subr.mxu0 0.0
    %6627 = vmatpush1.msra.mxu0 0.0
    %6628 = vmatprep.subr.mxu0 0.0
    %6629 = vmatpush1.msra.mxu0 0.0
    %6630 = vmatprep.subr.mxu0 0.0
    %6631 = vmatpush1.msra.mxu0 0.0
    %6632 = vmatprep.subr.mxu0 0.0
    %6633 = vmatpush1.msra.mxu0 0.0
    %6634 = vmatprep.subr.mxu0 0.0
    %6635 = vmatpush1.msra.mxu0 0.0
    %6636 = vmatprep.subr.mxu0 0.0
    %6637 = vmatpush1.msra.mxu0 0.0
    %6638 = vmatprep.subr.mxu0 0.0
    %6639 = vmatpush1.msra.mxu0 0.0
    %6640 = vmatprep.subr.mxu0 0.0
    %6641 = vmatpush1.msra.mxu0 0.0
    %6642 = vmatprep.subr.mxu0 0.0
    %v6643 = vand.u32 %v117, 4294901760
    %6644 = vmatpush1.msra.mxu0 %v6643
    %6645 = vmatprep.subr.mxu0 0.0
    %v6646 = vand.u32 %v116, 4294901760
    %6647 = vmatpush1.msra.mxu0 %v6646
    %6648 = vmatprep.subr.mxu0 0.0
    %v6649 = vand.u32 %v115, 4294901760
    %6650 = vmatpush1.msra.mxu0 %v6649
    %6651 = vmatprep.subr.mxu0 0.0
    %v6652 = vand.u32 %v114, 4294901760
    %6653 = vmatpush1.msra.mxu0 %v6652
    %6654 = vmatprep.subr.mxu0 0.0
    %6655 = vmatpush2.msra.mxu0 0.0
    %6656 = vmatprep.subr.mxu0 0.0
    %6657 = vmatpush2.msra.mxu0 0.0
    %6658 = vmatprep.subr.mxu0 0.0
    %6659 = vmatpush2.msra.mxu0 0.0
    %6660 = vmatprep.subr.mxu0 0.0
    %6661 = vmatpush2.msra.mxu0 0.0
    %6662 = vmatprep.subr.mxu0 0.0
    %6663 = vmatpush2.msra.mxu0 0.0
    %6664 = vmatprep.subr.mxu0 0.0
    %6665 = vmatpush2.msra.mxu0 0.0
    %6666 = vmatprep.subr.mxu0 0.0
    %6667 = vmatpush2.msra.mxu0 0.0
    %6668 = vmatprep.subr.mxu0 0.0
    %6669 = vmatpush2.msra.mxu0 0.0
    %6670 = vmatprep.subr.mxu0 0.0
    %6671 = vmatpush2.msra.mxu0 0.0
    %6672 = vmatprep.subr.mxu0 0.0
    %6673 = vmatpush2.msra.mxu0 0.0
    %6674 = vmatprep.subr.mxu0 0.0
    %6675 = vmatpush2.msra.mxu0 0.0
    %6676 = vmatprep.subr.mxu0 0.0
    %6677 = vmatpush2.msra.mxu0 0.0
    %6678 = vmatprep.subr.mxu0 0.0
    %6679 = vmatpush2.msra.mxu0 0.0
    %6680 = vmatprep.subr.mxu0 0.0
    %6681 = vmatpush2.msra.mxu0 0.0
    %6682 = vmatprep.subr.mxu0 0.0
    %6683 = vmatpush2.msra.mxu0 0.0
    %6684 = vmatprep.subr.mxu0 0.0
    %6685 = vmatpush2.msra.mxu0 0.0
    %6686 = vmatprep.mubr.f32.mxu0 0.0
    %v6687 = vand.u32 %v6340, 4294901760
    %v6688 = vsub.f32 %v6340, %v6687
    %v6689 = vand.u32 %v6688, 4294901760
    %6690 = vmatmul.mubr.f32.gmra.mxu0 %v6689
    %v6691 = vpop.f32.mrf.mxu0
    %v6692 = vadd.f32 %v6608, %v6691
    %v6693 = vpop.f32.mrf.mxu0
    %6694 = vmatprep.mubr.f32.mxu0 0.0
    %v6695 = vand.u32 %v6343, 4294901760
    %v6696 = vsub.f32 %v6343, %v6695
    %v6697 = vand.u32 %v6696, 4294901760
    %6698 = vmatmul.mubr.f32.gmra.mxu0 %v6697
    %v6699 = vpop.f32.mrf.mxu0
    %v6700 = vadd.f32 %v6615, %v6699
    %v6701 = vpop.f32.mrf.mxu0
    %6702 = vdwg.mxu0
    %6703 = vmatprep.subr.mxu0 0.0
    %6704 = vmatpush1.msra.mxu0 0.0
    %6705 = vmatprep.subr.mxu0 0.0
    %6706 = vmatpush1.msra.mxu0 0.0
    %6707 = vmatprep.subr.mxu0 0.0
    %6708 = vmatpush1.msra.mxu0 0.0
    %6709 = vmatprep.subr.mxu0 0.0
    %6710 = vmatpush1.msra.mxu0 0.0
    %6711 = vmatprep.subr.mxu0 0.0
    %6712 = vmatpush1.msra.mxu0 0.0
    %6713 = vmatprep.subr.mxu0 0.0
    %6714 = vmatpush1.msra.mxu0 0.0
    %6715 = vmatprep.subr.mxu0 0.0
    %6716 = vmatpush1.msra.mxu0 0.0
    %6717 = vmatprep.subr.mxu0 0.0
    %6718 = vmatpush1.msra.mxu0 0.0
    %6719 = vmatprep.subr.mxu0 0.0
    %6720 = vmatpush1.msra.mxu0 0.0
    %6721 = vmatprep.subr.mxu0 0.0
    %6722 = vmatpush1.msra.mxu0 0.0
    %6723 = vmatprep.subr.mxu0 0.0
    %6724 = vmatpush1.msra.mxu0 0.0
    %6725 = vmatprep.subr.mxu0 0.0
    %6726 = vmatpush1.msra.mxu0 0.0
    %6727 = vmatprep.subr.mxu0 0.0
    %v6728 = vand.u32 %v117, 4294901760
    %v6729 = vsub.f32 %v117, %v6728
    %v6730 = vand.u32 %v6729, 4294901760
    %6731 = vmatpush1.msra.mxu0 %v6730
    %6732 = vmatprep.subr.mxu0 0.0
    %v6733 = vand.u32 %v116, 4294901760
    %v6734 = vsub.f32 %v116, %v6733
    %v6735 = vand.u32 %v6734, 4294901760
    %6736 = vmatpush1.msra.mxu0 %v6735
    %6737 = vmatprep.subr.mxu0 0.0
    %v6738 = vand.u32 %v115, 4294901760
    %v6739 = vsub.f32 %v115, %v6738
    %v6740 = vand.u32 %v6739, 4294901760
    %6741 = vmatpush1.msra.mxu0 %v6740
    %6742 = vmatprep.subr.mxu0 0.0
    %v6743 = vand.u32 %v114, 4294901760
    %v6744 = vsub.f32 %v114, %v6743
    %v6745 = vand.u32 %v6744, 4294901760
    %6746 = vmatpush1.msra.mxu0 %v6745
    %6747 = vmatprep.subr.mxu0 0.0
    %6748 = vmatpush2.msra.mxu0 0.0
    %6749 = vmatprep.subr.mxu0 0.0
    %6750 = vmatpush2.msra.mxu0 0.0
    %6751 = vmatprep.subr.mxu0 0.0
    %6752 = vmatpush2.msra.mxu0 0.0
    %6753 = vmatprep.subr.mxu0 0.0
    %6754 = vmatpush2.msra.mxu0 0.0
    %6755 = vmatprep.subr.mxu0 0.0
    %6756 = vmatpush2.msra.mxu0 0.0
    %6757 = vmatprep.subr.mxu0 0.0
    %6758 = vmatpush2.msra.mxu0 0.0
    %6759 = vmatprep.subr.mxu0 0.0
    %6760 = vmatpush2.msra.mxu0 0.0
    %6761 = vmatprep.subr.mxu0 0.0
    %6762 = vmatpush2.msra.mxu0 0.0
    %6763 = vmatprep.subr.mxu0 0.0
    %6764 = vmatpush2.msra.mxu0 0.0
    %6765 = vmatprep.subr.mxu0 0.0
    %6766 = vmatpush2.msra.mxu0 0.0
    %6767 = vmatprep.subr.mxu0 0.0
    %6768 = vmatpush2.msra.mxu0 0.0
    %6769 = vmatprep.subr.mxu0 0.0
    %6770 = vmatpush2.msra.mxu0 0.0
    %6771 = vmatprep.subr.mxu0 0.0
    %6772 = vmatpush2.msra.mxu0 0.0
    %6773 = vmatprep.subr.mxu0 0.0
    %6774 = vmatpush2.msra.mxu0 0.0
    %6775 = vmatprep.subr.mxu0 0.0
    %6776 = vmatpush2.msra.mxu0 0.0
    %6777 = vmatprep.subr.mxu0 0.0
    %6778 = vmatpush2.msra.mxu0 0.0
    %6779 = vmatprep.mubr.f32.mxu0 0.0
    %v6780 = vand.u32 %v6340, 4294901760
    %6781 = vmatmul.mubr.f32.gmra.mxu0 %v6780
    %v6782 = vpop.f32.mrf.mxu0
    %v6783 = vadd.f32 %v6692, %v6782
    %v6784 = vpop.f32.mrf.mxu0
    %6785 = vmatprep.mubr.f32.mxu0 0.0
    %v6786 = vand.u32 %v6343, 4294901760
    %6787 = vmatmul.mubr.f32.gmra.mxu0 %v6786
    %v6788 = vpop.f32.mrf.mxu0
    %v6789 = vadd.f32 %v6700, %v6788
    %v6790 = vpop.f32.mrf.mxu0
    %6791 = vdwg.mxu0
    %6792 = vmatprep.subr.mxu0 0.0
    %6793 = vmatpush1.msra.mxu0 0.0
    %6794 = vmatprep.subr.mxu0 0.0
    %6795 = vmatpush1.msra.mxu0 0.0
    %6796 = vmatprep.subr.mxu0 0.0
    %6797 = vmatpush1.msra.mxu0 0.0
    %6798 = vmatprep.subr.mxu0 0.0
    %6799 = vmatpush1.msra.mxu0 0.0
    %6800 = vmatprep.subr.mxu0 0.0
    %6801 = vmatpush1.msra.mxu0 0.0
    %6802 = vmatprep.subr.mxu0 0.0
    %6803 = vmatpush1.msra.mxu0 0.0
    %6804 = vmatprep.subr.mxu0 0.0
    %6805 = vmatpush1.msra.mxu0 0.0
    %6806 = vmatprep.subr.mxu0 0.0
    %6807 = vmatpush1.msra.mxu0 0.0
    %6808 = vmatprep.subr.mxu0 0.0
    %6809 = vmatpush1.msra.mxu0 0.0
    %6810 = vmatprep.subr.mxu0 0.0
    %6811 = vmatpush1.msra.mxu0 0.0
    %6812 = vmatprep.subr.mxu0 0.0
    %6813 = vmatpush1.msra.mxu0 0.0
    %6814 = vmatprep.subr.mxu0 0.0
    %6815 = vmatpush1.msra.mxu0 0.0
    %6816 = vmatprep.subr.mxu0 0.0
    %v6817 = vand.u32 %v117, 4294901760
    %6818 = vmatpush1.msra.mxu0 %v6817
    %6819 = vmatprep.subr.mxu0 0.0
    %v6820 = vand.u32 %v116, 4294901760
    %6821 = vmatpush1.msra.mxu0 %v6820
    %6822 = vmatprep.subr.mxu0 0.0
    %v6823 = vand.u32 %v115, 4294901760
    %6824 = vmatpush1.msra.mxu0 %v6823
    %6825 = vmatprep.subr.mxu0 0.0
    %v6826 = vand.u32 %v114, 4294901760
    %6827 = vmatpush1.msra.mxu0 %v6826
    %6828 = vmatprep.subr.mxu0 0.0
    %6829 = vmatpush2.msra.mxu0 0.0
    %6830 = vmatprep.subr.mxu0 0.0
    %6831 = vmatpush2.msra.mxu0 0.0
    %6832 = vmatprep.subr.mxu0 0.0
    %6833 = vmatpush2.msra.mxu0 0.0
    %6834 = vmatprep.subr.mxu0 0.0
    %6835 = vmatpush2.msra.mxu0 0.0
    %6836 = vmatprep.subr.mxu0 0.0
    %6837 = vmatpush2.msra.mxu0 0.0
    %6838 = vmatprep.subr.mxu0 0.0
    %6839 = vmatpush2.msra.mxu0 0.0
    %6840 = vmatprep.subr.mxu0 0.0
    %6841 = vmatpush2.msra.mxu0 0.0
    %6842 = vmatprep.subr.mxu0 0.0
    %6843 = vmatpush2.msra.mxu0 0.0
    %6844 = vmatprep.subr.mxu0 0.0
    %6845 = vmatpush2.msra.mxu0 0.0
    %6846 = vmatprep.subr.mxu0 0.0
    %6847 = vmatpush2.msra.mxu0 0.0
    %6848 = vmatprep.subr.mxu0 0.0
    %6849 = vmatpush2.msra.mxu0 0.0
    %6850 = vmatprep.subr.mxu0 0.0
    %6851 = vmatpush2.msra.mxu0 0.0
    %6852 = vmatprep.subr.mxu0 0.0
    %6853 = vmatpush2.msra.mxu0 0.0
    %6854 = vmatprep.subr.mxu0 0.0
    %6855 = vmatpush2.msra.mxu0 0.0
    %6856 = vmatprep.subr.mxu0 0.0
    %6857 = vmatpush2.msra.mxu0 0.0
    %6858 = vmatprep.subr.mxu0 0.0
    %6859 = vmatpush2.msra.mxu0 0.0
    %6860 = vmatprep.mubr.f32.mxu0 0.0
    %v6861 = vand.u32 %v6340, 4294901760
    %6862 = vmatmul.mubr.f32.gmra.mxu0 %v6861
    %v6863 = vpop.f32.mrf.mxu0
    %v6864 = vadd.f32 %v6783, %v6863
    %v6865 = vpop.f32.mrf.mxu0
    %6866 = vmatprep.mubr.f32.mxu0 0.0
    %v6867 = vand.u32 %v6343, 4294901760
    %6868 = vmatmul.mubr.f32.gmra.mxu0 %v6867
    %v6869 = vpop.f32.mrf.mxu0
    %v6870 = vadd.f32 %v6789, %v6869
    %v6871 = vpop.f32.mrf.mxu0
    %6872 = vdwg.mxu0
    %6873 = vst [vmem:[#allocation5] sm:$0xff] %v6864
    %6874 = vst [vmem:[#allocation5 + $0x8] sm:$0xff] %v6870
    // Predicated region
    $region14: #{tpu_custom_call.1} parent=1 // pred_check
      _
    $region15: #{tpu_custom_call.1} parent=1 // pred_check_branch
      %6876 = sbr.rel (0) target = $region17
    $region16: #{tpu_custom_call.1} parent=1 // pred_region
      %s6878 = ssub.s32 256, 256
      %6879 = vsyncadd [#allocation4], %s6878
      %s6880 = sshll.u32 [#allocation5], 4
      %s6881 = int_to_ptr.vmem [resolvable:$true] %s6880
      %6886 = dma.vmem_to_hbm [thread:$0]  %s6881, 256, %s2, [#allocation4], 128, 128, 8
    $region17: #{tpu_custom_call.1} parent=1 // pred_fallthru
      _
    // Predicated region
    $region18: #{tpu_custom_call.1} parent=1 // pred_check
      _
    $region19: #{tpu_custom_call.1} parent=1 // pred_check_branch
      %6888 = sbr.rel (0) target = $region21
    $region20: #{tpu_custom_call.1} parent=1 // pred_region
      %6889 = dma.done [#allocation4], 256
    $region21: #{tpu_custom_call.1} parent=1 // pred_fallthru
      _
    %6890 = vsyncpa [#allocation3], 1
    %6891 = vsyncpa [#allocation4], 1

</llo_original>
